<compile_context>
chip_gen: v7x
topology: tpu7x:2x2x1
jax: 0.10.0
libtpu: 0.0.40
codegen_flags: <defaults>
</compile_context>

<pallas_src>
import numpy as np
import jax
import jax.numpy as jnp
from jax import lax
from jax.experimental import pallas as pl
from jax.experimental.pallas import tpu as pltpu


# ---------------------------------------------------------------------------
# Weight composition (done once, on host, at parameter-build time).
# ---------------------------------------------------------------------------
# parity -> ((kernel index ky, patch index dy), ...) for the sub-pixel form:
#   out[2m + r] = sum over (ky, dy) of x_pad[m + dy - 1] * W[..., ky]
_TAPS = {0: ((1, 1), (3, 0)), 1: ((0, 2), (2, 1))}


def _compose_deconv_taps(W, b):
    """W: PyTorch ConvTranspose2d weight (C_in, C_out, 4, 4); b: (C_out,).

    Returns w_taps (9, C_in, 4*C_out), bias (1, 4*C_out) such that for a
    1-zero-padded input x_pad:
      out[2i+ry, 2j+rx, co] =
        sum_{dy,dx} x_pad[i+dy, j+dx, :] @ w_taps[dy*3+dx][:, (ry*2+rx)*C_out+co]
        + b[co]
    """
    W = np.asarray(W, np.float32)
    b = np.asarray(b, np.float32)
    C_in, C_out = W.shape[0], W.shape[1]
    Wm = np.zeros((3, 3, C_in, 2, 2, C_out), np.float32)
    for ry in (0, 1):
        for rx in (0, 1):
            for ky, dyi in _TAPS[ry]:
                for kx, dxi in _TAPS[rx]:
                    Wm[dyi, dxi, :, ry, rx, :] = W[:, :, ky, kx]
    bias = np.tile(b, 4)[None, :].astype(np.float32)
    return Wm.reshape(9, C_in, 4 * C_out), bias


def make_params(raw):
    """Compose the decoder weights once (bf16 operands for the MXU).

    w1: (9*E, 4*H)      -- layer 1 as one K = 9*E contraction (rows = tap,c_in)
    b1: (1, 4*H)
    w2: (9, 4*H, 16)    -- layer 2 per window shift (qy,qx), contracting over
                           the full lane-dense parity-packed hidden (K = 4*H);
                           columns = (ap*2+bp)*4 + (ry*2+rx).
    b2: (1, 16)
    """
    # layer 1
    w1_taps, b1c = _compose_deconv_taps(raw["w1"], raw["b1"])   # (9,E,4H),(1,4H)
    E = w1_taps.shape[1]
    w1c = w1_taps.reshape(9 * E, w1_taps.shape[2])              # (9E, 4H)

    # layer 2: fold the mod-4 (sub-pixel) parity decomposition into the weight
    w2_taps, _ = _compose_deconv_taps(raw["w2"], raw["b2"])     # (9, H, 4)
    Hc = w2_taps.shape[1]
    w2s = np.zeros((3, 3, 4, Hc, 16), np.float32)  # [qy+1,qx+1,plane,c,col]
    for ap in range(2):
        for bp in range(2):
            for dy in range(3):
                for dx in range(3):
                    qy, ay = divmod(ap + dy - 1, 2)
                    qx, bx = divmod(bp + dx - 1, 2)
                    plane = ay * 2 + bx
                    col0 = (ap * 2 + bp) * 4
                    w2s[qy + 1, qx + 1, plane, :, col0:col0 + 4] += \
                        w2_taps[dy * 3 + dx]
    w2s = w2s.reshape(9, 4 * Hc, 16)
    b2c = np.full((1, 16), float(np.asarray(raw["b2"]).reshape(-1)[0]),
                  np.float32)

    return {
        "w1": jnp.asarray(w1c, jnp.bfloat16),   # (9E, 4H)
        "b1": jnp.asarray(b1c, jnp.float32),    # (1, 4H)
        "w2": jnp.asarray(w2s, jnp.bfloat16),   # (9, 4H, 16)
        "b2": jnp.asarray(b2c, jnp.float32),    # (1, 16)
    }


# ---------------------------------------------------------------------------
# Fused decoder kernel: one grid step = one batch element, fully VMEM-resident.
# ---------------------------------------------------------------------------
def _decoder_kernel(xp_ref, w1_ref, b1_ref, w2_ref, b2_ref, o_ref,
                    patch_ref, hp_ref):
    S = xp_ref.shape[1] - 2       # latent spatial size
    E = xp_ref.shape[3]           # embedding channels
    C = hp_ref.shape[2]           # 4 * hidden_dim (lane-dense hidden width)
    f32 = jnp.float32

    # -------- layer 1: ConvT(E->H, 4, s2, p1) + ReLU as ONE K=9E matmul -----
    # xp_ref already holds the 1-px zero-padded bf16 input; fill the im2col
    # patch scratch (columns ordered (dy*3+dx, c_in)).
    for dy in range(3):
        for dx in range(3):
            t = dy * 3 + dx
            patch_ref[:, t * E:(t + 1) * E] = (
                xp_ref[0, dy:dy + S, dx:dx + S, :].reshape(S * S, E))
    h = jnp.dot(patch_ref[...], w1_ref[...], preferred_element_type=f32)
    h = jnp.maximum(h + b1_ref[...], 0.0)            # (S*S, 4*H) f32

    # -------- hidden -> zero-halo, parity-packed, lane-dense bf16 scratch ---
    # Halo-only zeroing (interior is fully overwritten); runs EVERY grid step
    # (each TensorCore has its own scratch instance under "parallel").
    zc = jnp.zeros((S + 2, 1, C), hp_ref.dtype)
    hp_ref[:, 0:1, :] = zc
    hp_ref[:, S + 1:S + 2, :] = zc
    zr = jnp.zeros((1, S + 2, C), hp_ref.dtype)
    hp_ref[0:1, :, :] = zr
    hp_ref[S + 1:S + 2, :, :] = zr
    # single interior write, single f32->bf16 cast
    hp_ref[1:S + 1, 1:S + 1, :] = h.astype(hp_ref.dtype).reshape(S, S, C)

    # -------- layer 2: ConvT(H->1, 4, s2, p1) + sigmoid, 9 K=128 matmuls ----
    # For each window shift (qy,qx) the pre-composed weight contracts over the
    # full parity-packed hidden; all 16 output phases share one accumulator.
    acc = jnp.zeros((S * S, 16), f32)
    for s in range(9):
        qy = s // 3 - 1
        qx = s % 3 - 1
        win = hp_ref[1 + qy:1 + qy + S, 1 + qx:1 + qx + S, :].reshape(S * S, C)
        acc = acc + jnp.dot(win, w2_ref[s], preferred_element_type=f32)
    o_ref[0] = jax.nn.sigmoid(acc + b2_ref[...])     # (S*S, 16) f32, one store


def decoder_forward(x_nchw, params):
    """x_nchw: (B, E, S, S) f32 -> (B, 1, 4S, 4S) f32 (matches PyTorch)."""
    B, E, S, _ = x_nchw.shape
    w1, b1, w2, b2 = params["w1"], params["b1"], params["w2"], params["b2"]
    C = w2.shape[1]                     # 4 * hidden_dim

    # Tiny XLA-side layout prep (8 KiB): NCHW->NHWC, 1-px zero pad, bf16 cast.
    x_nhwc = jnp.transpose(x_nchw, (0, 2, 3, 1))
    x_pad = jnp.pad(x_nhwc, ((0, 0), (1, 1), (1, 1), (0, 0))).astype(jnp.bfloat16)

    out = pl.pallas_call(
        _decoder_kernel,
        out_shape=jax.ShapeDtypeStruct((B, S * S, 16), jnp.float32),
        grid=(B,),
        in_specs=[
            pl.BlockSpec((1, S + 2, S + 2, E), lambda b: (b, 0, 0, 0)),
            pl.BlockSpec(w1.shape, lambda b: (0, 0)),
            pl.BlockSpec(b1.shape, lambda b: (0, 0)),
            pl.BlockSpec(w2.shape, lambda b: (0, 0, 0)),
            pl.BlockSpec(b2.shape, lambda b: (0, 0)),
        ],
        out_specs=pl.BlockSpec((1, S * S, 16), lambda b: (b, 0, 0)),
        scratch_shapes=[
            pltpu.VMEM((S * S, 9 * E), jnp.bfloat16),      # layer-1 im2col patches
            pltpu.VMEM((S + 2, S + 2, C), jnp.bfloat16),   # padded parity-packed hidden
        ],
        compiler_params=pltpu.CompilerParams(
            dimension_semantics=("parallel",)),
    )(x_pad, w1, b1, w2, b2)

    # TODO(synk): final 2x2x2x2 sub-pixel phase unshuffle of the 32 KiB output
    # stays in XLA -- lane-interleaved stores are not expressible via BlockSpec.
    y = out.reshape(B, S, S, 2, 2, 2, 2)          # [b, m, n, ap, bp, ry, rx]
    y = y.transpose(0, 1, 3, 5, 2, 4, 6)          # [b, m, ap, ry, n, bp, rx]
    return y.reshape(B, 1, 4 * S, 4 * S)


# ---------------------------------------------------------------------------
# Pure-JAX reference (for correctness check)
# ---------------------------------------------------------------------------
def _ref_conv_transpose(x, W, b):
    Wf = jnp.transpose(jnp.flip(W, (2, 3)), (1, 0, 2, 3))  # (C_out, C_in, 4, 4)
    y = lax.conv_general_dilated(
        x, Wf, window_strides=(1, 1), padding=((2, 2), (2, 2)),
        lhs_dilation=(2, 2), dimension_numbers=("NCHW", "OIHW", "NCHW"))
    return y + b[None, :, None, None]


def decoder_ref(x, raw):
    y = jax.nn.relu(_ref_conv_transpose(x, raw["w1"], raw["b1"]))
    return jax.nn.sigmoid(_ref_conv_transpose(y, raw["w2"], raw["b2"]))


# ---------------------------------------------------------------------------
if __name__ == "__main__":
    E, HID = 4, 32          # embedding_dim, hidden_dim
    B, S = 2, 16            # batch, latent spatial size

    key = jax.random.PRNGKey(0)
    k1, k2, k3, k4, k5 = jax.random.split(key, 5)
    bnd1 = 1.0 / np.sqrt(E * 16)
    bnd2 = 1.0 / np.sqrt(HID * 16)
    raw = {
        "w1": jax.random.uniform(k1, (E, HID, 4, 4), jnp.float32, -bnd1, bnd1),
        "b1": jax.random.uniform(k2, (HID,), jnp.float32, -bnd1, bnd1),
        "w2": jax.random.uniform(k3, (HID, 1, 4, 4), jnp.float32, -bnd2, bnd2),
        "b2": jax.random.uniform(k4, (1,), jnp.float32, -bnd2, bnd2),
    }
    params = make_params(raw)

    x = jax.random.normal(k5, (B, E, S, S), jnp.float32)

    out = jax.block_until_ready(jax.jit(decoder_forward)(x, params))
    assert out.shape == (B, 1, 4 * S, 4 * S), out.shape

    ref = jax.block_until_ready(decoder_ref(x, raw))
    # bf16 MXU operands with f32 accumulation/epilogue -> loosened tolerance.
    np.testing.assert_allclose(np.asarray(out), np.asarray(ref),
                               rtol=0.0, atol=1e-2)

    print("KERNEL_OK")
</pallas_src>

<mosaic_0001>
module attributes {stable_mosaic.version = 11 : i64} {
  func.func @_decoder_kernel(%arg0: i32, %arg1: memref<1x18x18x4xbf16, #tpu.memory_space<vmem>>, %arg2: memref<36x128xbf16, #tpu.memory_space<vmem>>, %arg3: memref<1x128xf32, #tpu.memory_space<vmem>>, %arg4: memref<9x128x16xbf16, #tpu.memory_space<vmem>>, %arg5: memref<1x16xf32, #tpu.memory_space<vmem>>, %arg6: memref<1x256x16xf32, #tpu.memory_space<vmem>>, %arg7: memref<256x36xbf16, #tpu.memory_space<vmem>>, %arg8: memref<18x18x128xbf16, #tpu.memory_space<vmem>>) attributes {dimension_semantics = [#tpu.dimension_semantics<parallel>], iteration_bounds = array<i64: 2>, scalar_prefetch = 0 : i64, scratch_operands = 2 : i64, tpu.core_type = #tpu.core_type<tc>, window_params = [{transform_indices = @transform_0, window_bounds = array<i64: 1, 18, 18, 4>}, {pipeline_mode = #tpu.pipeline_mode<synchronous>, transform_indices = @transform_1, window_bounds = array<i64: 36, 128>}, {pipeline_mode = #tpu.pipeline_mode<synchronous>, transform_indices = @transform_2, window_bounds = array<i64: 1, 128>}, {pipeline_mode = #tpu.pipeline_mode<synchronous>, transform_indices = @transform_3, window_bounds = array<i64: 9, 128, 16>}, {pipeline_mode = #tpu.pipeline_mode<synchronous>, transform_indices = @transform_4, window_bounds = array<i64: 1, 16>}, {transform_indices = @transform_5, window_bounds = array<i64: 1, 256, 16>}]} {
    %c0 = arith.constant 0 : index
    %c0_0 = arith.constant 0 : index
    %c0_1 = arith.constant 0 : index
    %c0_2 = arith.constant 0 : index
    %0 = vector.load %arg1[%c0, %c0_0, %c0_1, %c0_2] : memref<1x18x18x4xbf16, #tpu.memory_space<vmem>>, vector<1x16x16x4xbf16>
    %1 = vector.shape_cast %0 : vector<1x16x16x4xbf16> to vector<16x16x4xbf16>
    %2 = vector.shape_cast %1 : vector<16x16x4xbf16> to vector<256x4xbf16>
    %c0_3 = arith.constant 0 : index
    %c0_4 = arith.constant 0 : index
    %3 = vector.load %arg7[%c0_3, %c0_4] : memref<256x36xbf16, #tpu.memory_space<vmem>>, vector<256x4xbf16>
    tpu.vector_store %arg7[%c0_3, %c0_4], %2 {strides = array<i32>} : memref<256x36xbf16, #tpu.memory_space<vmem>>, vector<256x4xbf16>,
    %c0_5 = arith.constant 0 : index
    %c0_6 = arith.constant 0 : index
    %c1 = arith.constant 1 : index
    %c0_7 = arith.constant 0 : index
    %4 = vector.load %arg1[%c0_5, %c0_6, %c1, %c0_7] : memref<1x18x18x4xbf16, #tpu.memory_space<vmem>>, vector<1x16x16x4xbf16>
    %5 = vector.shape_cast %4 : vector<1x16x16x4xbf16> to vector<16x16x4xbf16>
    %6 = vector.shape_cast %5 : vector<16x16x4xbf16> to vector<256x4xbf16>
    %c0_8 = arith.constant 0 : index
    %c4 = arith.constant 4 : index
    %7 = vector.load %arg7[%c0_8, %c4] : memref<256x36xbf16, #tpu.memory_space<vmem>>, vector<256x4xbf16>
    tpu.vector_store %arg7[%c0_8, %c4], %6 {strides = array<i32>} : memref<256x36xbf16, #tpu.memory_space<vmem>>, vector<256x4xbf16>,
    %c0_9 = arith.constant 0 : index
    %c0_10 = arith.constant 0 : index
    %c2 = arith.constant 2 : index
    %c0_11 = arith.constant 0 : index
    %8 = vector.load %arg1[%c0_9, %c0_10, %c2, %c0_11] : memref<1x18x18x4xbf16, #tpu.memory_space<vmem>>, vector<1x16x16x4xbf16>
    %9 = vector.shape_cast %8 : vector<1x16x16x4xbf16> to vector<16x16x4xbf16>
    %10 = vector.shape_cast %9 : vector<16x16x4xbf16> to vector<256x4xbf16>
    %c0_12 = arith.constant 0 : index
    %c8 = arith.constant 8 : index
    %11 = vector.load %arg7[%c0_12, %c8] : memref<256x36xbf16, #tpu.memory_space<vmem>>, vector<256x4xbf16>
    tpu.vector_store %arg7[%c0_12, %c8], %10 {strides = array<i32>} : memref<256x36xbf16, #tpu.memory_space<vmem>>, vector<256x4xbf16>,
    %c0_13 = arith.constant 0 : index
    %c1_14 = arith.constant 1 : index
    %c0_15 = arith.constant 0 : index
    %c0_16 = arith.constant 0 : index
    %12 = vector.load %arg1[%c0_13, %c1_14, %c0_15, %c0_16] : memref<1x18x18x4xbf16, #tpu.memory_space<vmem>>, vector<1x16x16x4xbf16>
    %13 = vector.shape_cast %12 : vector<1x16x16x4xbf16> to vector<16x16x4xbf16>
    %14 = vector.shape_cast %13 : vector<16x16x4xbf16> to vector<256x4xbf16>
    %c0_17 = arith.constant 0 : index
    %c12 = arith.constant 12 : index
    %15 = vector.load %arg7[%c0_17, %c12] : memref<256x36xbf16, #tpu.memory_space<vmem>>, vector<256x4xbf16>
    tpu.vector_store %arg7[%c0_17, %c12], %14 {strides = array<i32>} : memref<256x36xbf16, #tpu.memory_space<vmem>>, vector<256x4xbf16>,
    %c0_18 = arith.constant 0 : index
    %c1_19 = arith.constant 1 : index
    %c1_20 = arith.constant 1 : index
    %c0_21 = arith.constant 0 : index
    %16 = vector.load %arg1[%c0_18, %c1_19, %c1_20, %c0_21] : memref<1x18x18x4xbf16, #tpu.memory_space<vmem>>, vector<1x16x16x4xbf16>
    %17 = vector.shape_cast %16 : vector<1x16x16x4xbf16> to vector<16x16x4xbf16>
    %18 = vector.shape_cast %17 : vector<16x16x4xbf16> to vector<256x4xbf16>
    %c0_22 = arith.constant 0 : index
    %c16 = arith.constant 16 : index
    %19 = vector.load %arg7[%c0_22, %c16] : memref<256x36xbf16, #tpu.memory_space<vmem>>, vector<256x4xbf16>
    tpu.vector_store %arg7[%c0_22, %c16], %18 {strides = array<i32>} : memref<256x36xbf16, #tpu.memory_space<vmem>>, vector<256x4xbf16>,
    %c0_23 = arith.constant 0 : index
    %c1_24 = arith.constant 1 : index
    %c2_25 = arith.constant 2 : index
    %c0_26 = arith.constant 0 : index
    %20 = vector.load %arg1[%c0_23, %c1_24, %c2_25, %c0_26] : memref<1x18x18x4xbf16, #tpu.memory_space<vmem>>, vector<1x16x16x4xbf16>
    %21 = vector.shape_cast %20 : vector<1x16x16x4xbf16> to vector<16x16x4xbf16>
    %22 = vector.shape_cast %21 : vector<16x16x4xbf16> to vector<256x4xbf16>
    %c0_27 = arith.constant 0 : index
    %c20 = arith.constant 20 : index
    %23 = vector.load %arg7[%c0_27, %c20] : memref<256x36xbf16, #tpu.memory_space<vmem>>, vector<256x4xbf16>
    tpu.vector_store %arg7[%c0_27, %c20], %22 {strides = array<i32>} : memref<256x36xbf16, #tpu.memory_space<vmem>>, vector<256x4xbf16>,
    %c0_28 = arith.constant 0 : index
    %c2_29 = arith.constant 2 : index
    %c0_30 = arith.constant 0 : index
    %c0_31 = arith.constant 0 : index
    %24 = vector.load %arg1[%c0_28, %c2_29, %c0_30, %c0_31] : memref<1x18x18x4xbf16, #tpu.memory_space<vmem>>, vector<1x16x16x4xbf16>
    %25 = vector.shape_cast %24 : vector<1x16x16x4xbf16> to vector<16x16x4xbf16>
    %26 = vector.shape_cast %25 : vector<16x16x4xbf16> to vector<256x4xbf16>
    %c0_32 = arith.constant 0 : index
    %c24 = arith.constant 24 : index
    %27 = vector.load %arg7[%c0_32, %c24] : memref<256x36xbf16, #tpu.memory_space<vmem>>, vector<256x4xbf16>
    tpu.vector_store %arg7[%c0_32, %c24], %26 {strides = array<i32>} : memref<256x36xbf16, #tpu.memory_space<vmem>>, vector<256x4xbf16>,
    %c0_33 = arith.constant 0 : index
    %c2_34 = arith.constant 2 : index
    %c1_35 = arith.constant 1 : index
    %c0_36 = arith.constant 0 : index
    %28 = vector.load %arg1[%c0_33, %c2_34, %c1_35, %c0_36] : memref<1x18x18x4xbf16, #tpu.memory_space<vmem>>, vector<1x16x16x4xbf16>
    %29 = vector.shape_cast %28 : vector<1x16x16x4xbf16> to vector<16x16x4xbf16>
    %30 = vector.shape_cast %29 : vector<16x16x4xbf16> to vector<256x4xbf16>
    %c0_37 = arith.constant 0 : index
    %c28 = arith.constant 28 : index
    %31 = vector.load %arg7[%c0_37, %c28] : memref<256x36xbf16, #tpu.memory_space<vmem>>, vector<256x4xbf16>
    tpu.vector_store %arg7[%c0_37, %c28], %30 {strides = array<i32>} : memref<256x36xbf16, #tpu.memory_space<vmem>>, vector<256x4xbf16>,
    %c0_38 = arith.constant 0 : index
    %c2_39 = arith.constant 2 : index
    %c2_40 = arith.constant 2 : index
    %c0_41 = arith.constant 0 : index
    %32 = vector.load %arg1[%c0_38, %c2_39, %c2_40, %c0_41] : memref<1x18x18x4xbf16, #tpu.memory_space<vmem>>, vector<1x16x16x4xbf16>
    %33 = vector.shape_cast %32 : vector<1x16x16x4xbf16> to vector<16x16x4xbf16>
    %34 = vector.shape_cast %33 : vector<16x16x4xbf16> to vector<256x4xbf16>
    %c0_42 = arith.constant 0 : index
    %c32 = arith.constant 32 : index
    %35 = vector.load %arg7[%c0_42, %c32] : memref<256x36xbf16, #tpu.memory_space<vmem>>, vector<256x4xbf16>
    tpu.vector_store %arg7[%c0_42, %c32], %34 {strides = array<i32>} : memref<256x36xbf16, #tpu.memory_space<vmem>>, vector<256x4xbf16>,
    %c0_43 = arith.constant 0 : index
    %c0_44 = arith.constant 0 : index
    %36 = vector.load %arg7[%c0_43, %c0_44] : memref<256x36xbf16, #tpu.memory_space<vmem>>, vector<256x36xbf16>
    %c0_45 = arith.constant 0 : index
    %c0_46 = arith.constant 0 : index
    %37 = vector.load %arg2[%c0_45, %c0_46] : memref<36x128xbf16, #tpu.memory_space<vmem>>, vector<36x128xbf16>
    %cst = arith.constant dense<0.000000e+00> : vector<256x128xf32>
    %38 = tpu.matmul %36, %37, %cst {dimension_numbers = #tpu.dot_dimension_numbers<[1], [0], [0], [1], [0, 0, 1, 1], [], []>} : vector<256x36xbf16>, vector<36x128xbf16>, vector<256x128xf32> -> vector<256x128xf32>
    %c0_47 = arith.constant 0 : index
    %c0_48 = arith.constant 0 : index
    %39 = vector.load %arg3[%c0_47, %c0_48] : memref<1x128xf32, #tpu.memory_space<vmem>>, vector<1x128xf32>
    %40 = vector.broadcast %39 : vector<1x128xf32> to vector<256x128xf32>
    %41 = arith.addf %38, %40 : vector<256x128xf32>
    %cst_49 = arith.constant 0.000000e+00 : f32
    %42 = vector.broadcast %cst_49 : f32 to vector<256x128xf32>
    %43 = arith.maximumf %41, %42 : vector<256x128xf32>
    %cst_50 = arith.constant 0.000000e+00 : bf16
    %44 = vector.broadcast %cst_50 : bf16 to vector<18x1x128xbf16>
    %c0_51 = arith.constant 0 : index
    %c0_52 = arith.constant 0 : index
    %c0_53 = arith.constant 0 : index
    %45 = vector.load %arg8[%c0_51, %c0_52, %c0_53] : memref<18x18x128xbf16, #tpu.memory_space<vmem>>, vector<18x1x128xbf16>
    tpu.vector_store %arg8[%c0_51, %c0_52, %c0_53], %44 {strides = array<i32>} : memref<18x18x128xbf16, #tpu.memory_space<vmem>>, vector<18x1x128xbf16>,
    %c0_54 = arith.constant 0 : index
    %c17 = arith.constant 17 : index
    %c0_55 = arith.constant 0 : index
    %46 = vector.load %arg8[%c0_54, %c17, %c0_55] : memref<18x18x128xbf16, #tpu.memory_space<vmem>>, vector<18x1x128xbf16>
    tpu.vector_store %arg8[%c0_54, %c17, %c0_55], %44 {strides = array<i32>} : memref<18x18x128xbf16, #tpu.memory_space<vmem>>, vector<18x1x128xbf16>,
    %cst_56 = arith.constant 0.000000e+00 : bf16
    %47 = vector.broadcast %cst_56 : bf16 to vector<1x18x128xbf16>
    %c0_57 = arith.constant 0 : index
    %c0_58 = arith.constant 0 : index
    %c0_59 = arith.constant 0 : index
    %48 = vector.load %arg8[%c0_57, %c0_58, %c0_59] : memref<18x18x128xbf16, #tpu.memory_space<vmem>>, vector<1x18x128xbf16>
    tpu.vector_store %arg8[%c0_57, %c0_58, %c0_59], %47 {strides = array<i32>} : memref<18x18x128xbf16, #tpu.memory_space<vmem>>, vector<1x18x128xbf16>,
    %c17_60 = arith.constant 17 : index
    %c0_61 = arith.constant 0 : index
    %c0_62 = arith.constant 0 : index
    %49 = vector.load %arg8[%c17_60, %c0_61, %c0_62] : memref<18x18x128xbf16, #tpu.memory_space<vmem>>, vector<1x18x128xbf16>
    tpu.vector_store %arg8[%c17_60, %c0_61, %c0_62], %47 {strides = array<i32>} : memref<18x18x128xbf16, #tpu.memory_space<vmem>>, vector<1x18x128xbf16>,
    %50 = arith.truncf %43 : vector<256x128xf32> to vector<256x128xbf16>
    %51 = vector.shape_cast %50 : vector<256x128xbf16> to vector<16x16x128xbf16>
    %c1_63 = arith.constant 1 : index
    %c1_64 = arith.constant 1 : index
    %c0_65 = arith.constant 0 : index
    %52 = vector.load %arg8[%c1_63, %c1_64, %c0_65] : memref<18x18x128xbf16, #tpu.memory_space<vmem>>, vector<16x16x128xbf16>
    tpu.vector_store %arg8[%c1_63, %c1_64, %c0_65], %51 {strides = array<i32>} : memref<18x18x128xbf16, #tpu.memory_space<vmem>>, vector<16x16x128xbf16>,
    %cst_66 = arith.constant 0.000000e+00 : f32
    %53 = vector.broadcast %cst_66 : f32 to vector<256x16xf32>
    %c0_67 = arith.constant 0 : index
    %c0_68 = arith.constant 0 : index
    %c0_69 = arith.constant 0 : index
    %54 = vector.load %arg8[%c0_67, %c0_68, %c0_69] : memref<18x18x128xbf16, #tpu.memory_space<vmem>>, vector<16x16x128xbf16>
    %55 = vector.shape_cast %54 : vector<16x16x128xbf16> to vector<256x128xbf16>
    %c0_70 = arith.constant 0 : index
    %c0_71 = arith.constant 0 : index
    %c0_72 = arith.constant 0 : index
    %56 = vector.load %arg4[%c0_70, %c0_71, %c0_72] : memref<9x128x16xbf16, #tpu.memory_space<vmem>>, vector<1x128x16xbf16>
    %57 = vector.shape_cast %56 : vector<1x128x16xbf16> to vector<128x16xbf16>
    %cst_73 = arith.constant dense<0.000000e+00> : vector<256x16xf32>
    %58 = tpu.matmul %55, %57, %cst_73 {dimension_numbers = #tpu.dot_dimension_numbers<[1], [0], [0], [1], [0, 0, 1, 1], [], []>} : vector<256x128xbf16>, vector<128x16xbf16>, vector<256x16xf32> -> vector<256x16xf32>
    %59 = arith.addf %53, %58 : vector<256x16xf32>
    %c0_74 = arith.constant 0 : index
    %c1_75 = arith.constant 1 : index
    %c0_76 = arith.constant 0 : index
    %60 = vector.load %arg8[%c0_74, %c1_75, %c0_76] : memref<18x18x128xbf16, #tpu.memory_space<vmem>>, vector<16x16x128xbf16>
    %61 = vector.shape_cast %60 : vector<16x16x128xbf16> to vector<256x128xbf16>
    %c1_77 = arith.constant 1 : index
    %c0_78 = arith.constant 0 : index
    %c0_79 = arith.constant 0 : index
    %62 = vector.load %arg4[%c1_77, %c0_78, %c0_79] : memref<9x128x16xbf16, #tpu.memory_space<vmem>>, vector<1x128x16xbf16>
    %63 = vector.shape_cast %62 : vector<1x128x16xbf16> to vector<128x16xbf16>
    %cst_80 = arith.constant dense<0.000000e+00> : vector<256x16xf32>
    %64 = tpu.matmul %61, %63, %cst_80 {dimension_numbers = #tpu.dot_dimension_numbers<[1], [0], [0], [1], [0, 0, 1, 1], [], []>} : vector<256x128xbf16>, vector<128x16xbf16>, vector<256x16xf32> -> vector<256x16xf32>
    %65 = arith.addf %59, %64 : vector<256x16xf32>
    %c0_81 = arith.constant 0 : index
    %c2_82 = arith.constant 2 : index
    %c0_83 = arith.constant 0 : index
    %66 = vector.load %arg8[%c0_81, %c2_82, %c0_83] : memref<18x18x128xbf16, #tpu.memory_space<vmem>>, vector<16x16x128xbf16>
    %67 = vector.shape_cast %66 : vector<16x16x128xbf16> to vector<256x128xbf16>
    %c2_84 = arith.constant 2 : index
    %c0_85 = arith.constant 0 : index
    %c0_86 = arith.constant 0 : index
    %68 = vector.load %arg4[%c2_84, %c0_85, %c0_86] : memref<9x128x16xbf16, #tpu.memory_space<vmem>>, vector<1x128x16xbf16>
    %69 = vector.shape_cast %68 : vector<1x128x16xbf16> to vector<128x16xbf16>
    %cst_87 = arith.constant dense<0.000000e+00> : vector<256x16xf32>
    %70 = tpu.matmul %67, %69, %cst_87 {dimension_numbers = #tpu.dot_dimension_numbers<[1], [0], [0], [1], [0, 0, 1, 1], [], []>} : vector<256x128xbf16>, vector<128x16xbf16>, vector<256x16xf32> -> vector<256x16xf32>
    %71 = arith.addf %65, %70 : vector<256x16xf32>
    %c1_88 = arith.constant 1 : index
    %c0_89 = arith.constant 0 : index
    %c0_90 = arith.constant 0 : index
    %72 = vector.load %arg8[%c1_88, %c0_89, %c0_90] : memref<18x18x128xbf16, #tpu.memory_space<vmem>>, vector<16x16x128xbf16>
    %73 = vector.shape_cast %72 : vector<16x16x128xbf16> to vector<256x128xbf16>
    %c3 = arith.constant 3 : index
    %c0_91 = arith.constant 0 : index
    %c0_92 = arith.constant 0 : index
    %74 = vector.load %arg4[%c3, %c0_91, %c0_92] : memref<9x128x16xbf16, #tpu.memory_space<vmem>>, vector<1x128x16xbf16>
    %75 = vector.shape_cast %74 : vector<1x128x16xbf16> to vector<128x16xbf16>
    %cst_93 = arith.constant dense<0.000000e+00> : vector<256x16xf32>
    %76 = tpu.matmul %73, %75, %cst_93 {dimension_numbers = #tpu.dot_dimension_numbers<[1], [0], [0], [1], [0, 0, 1, 1], [], []>} : vector<256x128xbf16>, vector<128x16xbf16>, vector<256x16xf32> -> vector<256x16xf32>
    %77 = arith.addf %71, %76 : vector<256x16xf32>
    %c1_94 = arith.constant 1 : index
    %c1_95 = arith.constant 1 : index
    %c0_96 = arith.constant 0 : index
    %78 = vector.load %arg8[%c1_94, %c1_95, %c0_96] : memref<18x18x128xbf16, #tpu.memory_space<vmem>>, vector<16x16x128xbf16>
    %79 = vector.shape_cast %78 : vector<16x16x128xbf16> to vector<256x128xbf16>
    %c4_97 = arith.constant 4 : index
    %c0_98 = arith.constant 0 : index
    %c0_99 = arith.constant 0 : index
    %80 = vector.load %arg4[%c4_97, %c0_98, %c0_99] : memref<9x128x16xbf16, #tpu.memory_space<vmem>>, vector<1x128x16xbf16>
    %81 = vector.shape_cast %80 : vector<1x128x16xbf16> to vector<128x16xbf16>
    %cst_100 = arith.constant dense<0.000000e+00> : vector<256x16xf32>
    %82 = tpu.matmul %79, %81, %cst_100 {dimension_numbers = #tpu.dot_dimension_numbers<[1], [0], [0], [1], [0, 0, 1, 1], [], []>} : vector<256x128xbf16>, vector<128x16xbf16>, vector<256x16xf32> -> vector<256x16xf32>
    %83 = arith.addf %77, %82 : vector<256x16xf32>
    %c1_101 = arith.constant 1 : index
    %c2_102 = arith.constant 2 : index
    %c0_103 = arith.constant 0 : index
    %84 = vector.load %arg8[%c1_101, %c2_102, %c0_103] : memref<18x18x128xbf16, #tpu.memory_space<vmem>>, vector<16x16x128xbf16>
    %85 = vector.shape_cast %84 : vector<16x16x128xbf16> to vector<256x128xbf16>
    %c5 = arith.constant 5 : index
    %c0_104 = arith.constant 0 : index
    %c0_105 = arith.constant 0 : index
    %86 = vector.load %arg4[%c5, %c0_104, %c0_105] : memref<9x128x16xbf16, #tpu.memory_space<vmem>>, vector<1x128x16xbf16>
    %87 = vector.shape_cast %86 : vector<1x128x16xbf16> to vector<128x16xbf16>
    %cst_106 = arith.constant dense<0.000000e+00> : vector<256x16xf32>
    %88 = tpu.matmul %85, %87, %cst_106 {dimension_numbers = #tpu.dot_dimension_numbers<[1], [0], [0], [1], [0, 0, 1, 1], [], []>} : vector<256x128xbf16>, vector<128x16xbf16>, vector<256x16xf32> -> vector<256x16xf32>
    %89 = arith.addf %83, %88 : vector<256x16xf32>
    %c2_107 = arith.constant 2 : index
    %c0_108 = arith.constant 0 : index
    %c0_109 = arith.constant 0 : index
    %90 = vector.load %arg8[%c2_107, %c0_108, %c0_109] : memref<18x18x128xbf16, #tpu.memory_space<vmem>>, vector<16x16x128xbf16>
    %91 = vector.shape_cast %90 : vector<16x16x128xbf16> to vector<256x128xbf16>
    %c6 = arith.constant 6 : index
    %c0_110 = arith.constant 0 : index
    %c0_111 = arith.constant 0 : index
    %92 = vector.load %arg4[%c6, %c0_110, %c0_111] : memref<9x128x16xbf16, #tpu.memory_space<vmem>>, vector<1x128x16xbf16>
    %93 = vector.shape_cast %92 : vector<1x128x16xbf16> to vector<128x16xbf16>
    %cst_112 = arith.constant dense<0.000000e+00> : vector<256x16xf32>
    %94 = tpu.matmul %91, %93, %cst_112 {dimension_numbers = #tpu.dot_dimension_numbers<[1], [0], [0], [1], [0, 0, 1, 1], [], []>} : vector<256x128xbf16>, vector<128x16xbf16>, vector<256x16xf32> -> vector<256x16xf32>
    %95 = arith.addf %89, %94 : vector<256x16xf32>
    %c2_113 = arith.constant 2 : index
    %c1_114 = arith.constant 1 : index
    %c0_115 = arith.constant 0 : index
    %96 = vector.load %arg8[%c2_113, %c1_114, %c0_115] : memref<18x18x128xbf16, #tpu.memory_space<vmem>>, vector<16x16x128xbf16>
    %97 = vector.shape_cast %96 : vector<16x16x128xbf16> to vector<256x128xbf16>
    %c7 = arith.constant 7 : index
    %c0_116 = arith.constant 0 : index
    %c0_117 = arith.constant 0 : index
    %98 = vector.load %arg4[%c7, %c0_116, %c0_117] : memref<9x128x16xbf16, #tpu.memory_space<vmem>>, vector<1x128x16xbf16>
    %99 = vector.shape_cast %98 : vector<1x128x16xbf16> to vector<128x16xbf16>
    %cst_118 = arith.constant dense<0.000000e+00> : vector<256x16xf32>
    %100 = tpu.matmul %97, %99, %cst_118 {dimension_numbers = #tpu.dot_dimension_numbers<[1], [0], [0], [1], [0, 0, 1, 1], [], []>} : vector<256x128xbf16>, vector<128x16xbf16>, vector<256x16xf32> -> vector<256x16xf32>
    %101 = arith.addf %95, %100 : vector<256x16xf32>
    %c2_119 = arith.constant 2 : index
    %c2_120 = arith.constant 2 : index
    %c0_121 = arith.constant 0 : index
    %102 = vector.load %arg8[%c2_119, %c2_120, %c0_121] : memref<18x18x128xbf16, #tpu.memory_space<vmem>>, vector<16x16x128xbf16>
    %103 = vector.shape_cast %102 : vector<16x16x128xbf16> to vector<256x128xbf16>
    %c8_122 = arith.constant 8 : index
    %c0_123 = arith.constant 0 : index
    %c0_124 = arith.constant 0 : index
    %104 = vector.load %arg4[%c8_122, %c0_123, %c0_124] : memref<9x128x16xbf16, #tpu.memory_space<vmem>>, vector<1x128x16xbf16>
    %105 = vector.shape_cast %104 : vector<1x128x16xbf16> to vector<128x16xbf16>
    %cst_125 = arith.constant dense<0.000000e+00> : vector<256x16xf32>
    %106 = tpu.matmul %103, %105, %cst_125 {dimension_numbers = #tpu.dot_dimension_numbers<[1], [0], [0], [1], [0, 0, 1, 1], [], []>} : vector<256x128xbf16>, vector<128x16xbf16>, vector<256x16xf32> -> vector<256x16xf32>
    %107 = arith.addf %101, %106 : vector<256x16xf32>
    %c0_126 = arith.constant 0 : index
    %c0_127 = arith.constant 0 : index
    %108 = vector.load %arg5[%c0_126, %c0_127] : memref<1x16xf32, #tpu.memory_space<vmem>>, vector<1x16xf32>
    %109 = vector.broadcast %108 : vector<1x16xf32> to vector<256x16xf32>
    %110 = arith.addf %107, %109 : vector<256x16xf32>
    %111 = arith.negf %110 : vector<256x16xf32>
    %112 = math.exp %111 : vector<256x16xf32>
    %cst_128 = arith.constant 1.000000e+00 : f32
    %113 = vector.broadcast %cst_128 : f32 to vector<256x16xf32>
    %114 = arith.addf %113, %112 : vector<256x16xf32>
    %115 = arith.divf %113, %114 : vector<256x16xf32>
    %c0_129 = arith.constant 0 : index
    %c0_130 = arith.constant 0 : index
    %c0_131 = arith.constant 0 : index
    %116 = vector.load %arg6[%c0_129, %c0_130, %c0_131] : memref<1x256x16xf32, #tpu.memory_space<vmem>>, vector<1x256x16xf32>
    %117 = vector.shape_cast %116 : vector<1x256x16xf32> to vector<256x16xf32>
    %118 = vector.shape_cast %115 : vector<256x16xf32> to vector<1x256x16xf32>
    tpu.vector_store %arg6[%c0_129, %c0_130, %c0_131], %118 {strides = array<i32>} : memref<1x256x16xf32, #tpu.memory_space<vmem>>, vector<1x256x16xf32>,
    return
  }
  func.func @transform_0(%arg0: i32) -> (i32, i32, i32, i32) {
    %c0_i32 = arith.constant 0 : i32
    %c0_i32_0 = arith.constant 0 : i32
    %c0_i32_1 = arith.constant 0 : i32
    %c0_i32_2 = arith.constant 0 : i32
    return %arg0, %c0_i32, %c0_i32_0, %c0_i32_1 : i32, i32, i32, i32
  }
  func.func @transform_1(%arg0: i32) -> (i32, i32) {
    %c0_i32 = arith.constant 0 : i32
    %c0_i32_0 = arith.constant 0 : i32
    %c0_i32_1 = arith.constant 0 : i32
    return %c0_i32, %c0_i32_0 : i32, i32
  }
  func.func @transform_2(%arg0: i32) -> (i32, i32) {
    %c0_i32 = arith.constant 0 : i32
    %c0_i32_0 = arith.constant 0 : i32
    %c0_i32_1 = arith.constant 0 : i32
    return %c0_i32, %c0_i32_0 : i32, i32
  }
  func.func @transform_3(%arg0: i32) -> (i32, i32, i32) {
    %c0_i32 = arith.constant 0 : i32
    %c0_i32_0 = arith.constant 0 : i32
    %c0_i32_1 = arith.constant 0 : i32
    %c0_i32_2 = arith.constant 0 : i32
    return %c0_i32, %c0_i32_0, %c0_i32_1 : i32, i32, i32
  }
  func.func @transform_4(%arg0: i32) -> (i32, i32) {
    %c0_i32 = arith.constant 0 : i32
    %c0_i32_0 = arith.constant 0 : i32
    %c0_i32_1 = arith.constant 0 : i32
    return %c0_i32, %c0_i32_0 : i32, i32
  }
  func.func @transform_5(%arg0: i32) -> (i32, i32, i32) {
    %c0_i32 = arith.constant 0 : i32
    %c0_i32_0 = arith.constant 0 : i32
    %c0_i32_1 = arith.constant 0 : i32
    return %arg0, %c0_i32, %c0_i32_0 : i32, i32, i32
  }
}

</mosaic_0001>

<llo_original>
// kernel: decoder_forward.1
$region0: #{decoder_forward.1}
  #allocation0 [shape = 'u32[]', space=smem, size = 0x4, offset = 0x4, fixed_abs, tag = 'smem constant byte address 0x4 - core index']
  #allocation1 [shape = 'u32[144,128]{1,0:T(1,128)}', space=vmem, size = 0x12000, scoped, tag = 'internal scratch']
  #allocation2 [shape = 'bf16[256,36]{1,0:T(16,128)(2,1)}', space=vmem, size = 0x10000, scoped, tag = 'scratch operand']
  #allocation3 [shape = 'bf16[18,18,128]{2,1,0:T(8,128)(2,1)}', space=vmem, size = 0x1b000, scoped, tag = 'scratch operand']
  %s0 = inlined_call_operand.vmem [shape: bf16[2,18,18,4], index: 0, kind: input, shape index: {}]
  %s1 = inlined_call_operand.hbm [shape: bf16[36,128], index: 1, kind: input, shape index: {}]
  %s2 = inlined_call_operand.hbm [shape: f32[1,128], index: 2, kind: input, shape index: {}]
  %s3 = inlined_call_operand.vmem [shape: bf16[9,128,16], index: 3, kind: input, shape index: {}]
  %s4 = inlined_call_operand.hbm [shape: f32[1,16], index: 4, kind: input, shape index: {}]
  %s5 = inlined_call_operand.vmem [shape: f32[2,256,16], index: 5, kind: output, shape index: {}]
  %s6 = sld [smem:[#allocation0]]
  $region65: #{decoder_forward.1} parent=0
    _
  %s8 = ssub.s32 1, %s6
  %s9 = scalar_select 0, %s8, %s6
  $region1: #{decoder_forward.1} parent=0
    #allocation4 [shape = 'u8[10240]{0}', space=vmem, size = 0x2800, scoped, tag = 'input window, operand 1, single buffered']
    #allocation5 [shape = 's32[2]{0}', space=sflag, size = 0x8, scoped, tag = 'scoped memory for decoder_forward.1']
    #allocation6 [shape = 'u8[512]{0}', space=vmem, size = 0x400, scoped, tag = 'input window, operand 2, single buffered']
    #allocation7 [shape = 's32[1]{0}', space=sflag, size = 0x4, scoped, tag = 'scoped memory for decoder_forward.1']
    #allocation8 [shape = 'u8[512]{0}', space=vmem, size = 0x400, scoped, tag = 'input window, operand 4, single buffered']
    %10 = vsyncpa [#allocation5], 0
    %11 = vsyncpa [#allocation7], 0
    loop: start=0, step=1, limit=4
    $region2: #{decoder_forward.1} parent=1 // loop_pre_header
      _
    $region3: #{decoder_forward.1} parent=1 // loop_header
      %s13 = sphi 0, %s17
      %p14 = scmp.ge.s32.totalorder %s13, 4
      %s23 = sphi 0, %s25
      %s26 = sphi 0, %s23
      %s27 = sphi 0, %s26
      %s43 = sphi 0, %s27
      %s47 = sphi 0, %s47
      %s49 = sphi 0, %s47
      %s50 = sphi 0, %s49
      %s64 = sphi 0, %s50
      %s68 = sphi 0, %s68
      %s70 = sphi 0, %s68
      %s71 = sphi 0, %s70
      %s85 = sphi 0, %s71
      %s89 = sphi 0, %s89
      %s91 = sphi 0, %s89
      %s92 = sphi 0, %s91
      %s106 = sphi 0, %s92
      %s110 = sphi 0, %s110
      %s112 = sphi 0, %s110
      %s113 = sphi 0, %s112
      %s127 = sphi 0, %s113
      %s133 = sphi 0, %s135
      %s136 = sphi 0, %s133
      %s137 = sphi 0, %s136
      %s153 = sphi 0, %s137
    $region4: #{decoder_forward.1} parent=1 // loop_header_branch
      %16 = sbr.rel (%p14) target = $region8
    $region5: #{decoder_forward.1} parent=1 // loop_body
      %s18 = ssub.s32 %s13, 1
      %s19 = ssub.s32 %s13, 2
      %s20 = sadd.s32 %s13, 1
      %s21 = ssub.s32 %s13, %s20
      %p22 = scmp.eq.s32.totalorder %s21, 0
      %s24 = sadd.s32 %s23, 1
      %s25 = scalar_select %p22, %s23, %s24
      %p28 = pneg %p22
      %p29 = scmp.eq.s32.totalorder %s13, 1
      %p30 = por %p28, %p29
      %p31 = scmp.ne.s32.totalorder %s23, %s26
      %p32 = scmp.eq.s32.totalorder %s13, 0
      %p33 = por %p31, %p32
      %p34 = scmp.ne.s32.totalorder %s23, %s26
      %p35 = scmp.eq.s32.totalorder %s18, 1
      %p36 = por %p34, %p35
      %p37 = scmp.ne.s32.totalorder %s26, %s27
      %p38 = scmp.eq.s32.totalorder %s18, 0
      %p39 = por %p37, %p38
      %p40 = scmp.ne.s32.totalorder %s26, %s27
      %p41 = scmp.eq.s32.totalorder %s19, 1
      %p42 = por %p40, %p41
      %p44 = scmp.ne.s32.totalorder %s27, %s43
      %p45 = scmp.eq.s32.totalorder %s19, 0
      %p46 = por %p44, %p45
      %s48 = sadd.s32 %s47, 1
      %p51 = scmp.eq.s32.totalorder %s13, 1
      %p52 = scmp.ne.s32.totalorder %s47, %s49
      %p53 = scmp.eq.s32.totalorder %s13, 0
      %p54 = por %p52, %p53
      %p55 = scmp.ne.s32.totalorder %s47, %s49
      %p56 = scmp.eq.s32.totalorder %s18, 1
      %p57 = por %p55, %p56
      %p58 = scmp.ne.s32.totalorder %s49, %s50
      %p59 = scmp.eq.s32.totalorder %s18, 0
      %p60 = por %p58, %p59
      %p61 = scmp.ne.s32.totalorder %s49, %s50
      %p62 = scmp.eq.s32.totalorder %s19, 1
      %p63 = por %p61, %p62
      %p65 = scmp.ne.s32.totalorder %s50, %s64
      %p66 = scmp.eq.s32.totalorder %s19, 0
      %p67 = por %p65, %p66
      %s69 = sadd.s32 %s68, 1
      %p72 = scmp.eq.s32.totalorder %s13, 1
      %p73 = scmp.ne.s32.totalorder %s68, %s70
      %p74 = scmp.eq.s32.totalorder %s13, 0
      %p75 = por %p73, %p74
      %p76 = scmp.ne.s32.totalorder %s68, %s70
      %p77 = scmp.eq.s32.totalorder %s18, 1
      %p78 = por %p76, %p77
      %p79 = scmp.ne.s32.totalorder %s70, %s71
      %p80 = scmp.eq.s32.totalorder %s18, 0
      %p81 = por %p79, %p80
      %p82 = scmp.ne.s32.totalorder %s70, %s71
      %p83 = scmp.eq.s32.totalorder %s19, 1
      %p84 = por %p82, %p83
      %p86 = scmp.ne.s32.totalorder %s71, %s85
      %p87 = scmp.eq.s32.totalorder %s19, 0
      %p88 = por %p86, %p87
      %s90 = sadd.s32 %s89, 1
      %p93 = scmp.eq.s32.totalorder %s13, 1
      %p94 = scmp.ne.s32.totalorder %s89, %s91
      %p95 = scmp.eq.s32.totalorder %s13, 0
      %p96 = por %p94, %p95
      %p97 = scmp.ne.s32.totalorder %s89, %s91
      %p98 = scmp.eq.s32.totalorder %s18, 1
      %p99 = por %p97, %p98
      %p100 = scmp.ne.s32.totalorder %s91, %s92
      %p101 = scmp.eq.s32.totalorder %s18, 0
      %p102 = por %p100, %p101
      %p103 = scmp.ne.s32.totalorder %s91, %s92
      %p104 = scmp.eq.s32.totalorder %s19, 1
      %p105 = por %p103, %p104
      %p107 = scmp.ne.s32.totalorder %s92, %s106
      %p108 = scmp.eq.s32.totalorder %s19, 0
      %p109 = por %p107, %p108
      %s111 = sadd.s32 %s110, 1
      %p114 = scmp.eq.s32.totalorder %s13, 1
      %p115 = scmp.ne.s32.totalorder %s110, %s112
      %p116 = scmp.eq.s32.totalorder %s13, 0
      %p117 = por %p115, %p116
      %p118 = scmp.ne.s32.totalorder %s110, %s112
      %p119 = scmp.eq.s32.totalorder %s18, 1
      %p120 = por %p118, %p119
      %p121 = scmp.ne.s32.totalorder %s112, %s113
      %p122 = scmp.eq.s32.totalorder %s18, 0
      %p123 = por %p121, %p122
      %p124 = scmp.ne.s32.totalorder %s112, %s113
      %p125 = scmp.eq.s32.totalorder %s19, 1
      %p126 = por %p124, %p125
      %p128 = scmp.ne.s32.totalorder %s113, %s127
      %p129 = scmp.eq.s32.totalorder %s19, 0
      %p130 = por %p128, %p129
      %s131 = ssub.s32 %s13, %s20
      %p132 = scmp.eq.s32.totalorder %s131, 0
      %s134 = sadd.s32 %s133, 1
      %s135 = scalar_select %p132, %s133, %s134
      %p138 = pneg %p132
      %p139 = scmp.eq.s32.totalorder %s13, 1
      %p140 = por %p138, %p139
      %p141 = scmp.ne.s32.totalorder %s133, %s136
      %p142 = scmp.eq.s32.totalorder %s13, 0
      %p143 = por %p141, %p142
      %p144 = scmp.ne.s32.totalorder %s133, %s136
      %p145 = scmp.eq.s32.totalorder %s18, 1
      %p146 = por %p144, %p145
      %p147 = scmp.ne.s32.totalorder %s136, %s137
      %p148 = scmp.eq.s32.totalorder %s18, 0
      %p149 = por %p147, %p148
      %p150 = scmp.ne.s32.totalorder %s136, %s137
      %p151 = scmp.eq.s32.totalorder %s19, 1
      %p152 = por %p150, %p151
      %p154 = scmp.ne.s32.totalorder %s137, %s153
      %p155 = scmp.eq.s32.totalorder %s19, 0
      %p156 = por %p154, %p155
      %p157 = scmp.le.s32.totalorder 1, %s13
      %p158 = scmp.lt.s32.totalorder %s13, 3
      %p159 = pnand %p157, %p158
      %p160 = pneg %p159
      // Predicated region
      $region9: #{decoder_forward.1} parent=5 // pred_check
        _
      $region10: #{decoder_forward.1} parent=5 // pred_check_branch
        %162 = sbr.rel (%p159) target = $region12
      $region11: #{decoder_forward.1} parent=5 // pred_region
        %s163 = ssub.s32 %s13, 1
        // Predicated region
        $region13: #{decoder_forward.1} parent=11 // pred_check
          %p164 = pneg %p60
        $region14: #{decoder_forward.1} parent=11 // pred_check_branch
          %166 = sbr.rel (%p164) target = $region16
        $region15: #{decoder_forward.1} parent=11 // pred_region
          %s168 = ssub.s32 320, 320
          %169 = vsyncadd [#allocation5], %s168
          %s170 = sshll.u32 [#allocation4], 4
          %s171 = int_to_ptr.vmem [resolvable:$true] %s170
          %176 = dma.hbm_to_vmem [thread:$0]  %s1, 320, %s171, [#allocation5], 64, 64, 4
        $region16: #{decoder_forward.1} parent=11 // pred_fallthru
          _
        // Predicated region
        $region17: #{decoder_forward.1} parent=11 // pred_check
          %p177 = pneg %p81
        $region18: #{decoder_forward.1} parent=11 // pred_check_branch
          %179 = sbr.rel (%p177) target = $region20
        $region19: #{decoder_forward.1} parent=11 // pred_region
          %s181 = ssub.s32 16, 16
          %182 = vsyncadd [#allocation7], %s181
          %s184 = sshll.u32 [#allocation6], 4
          %s185 = int_to_ptr.vmem [resolvable:$true] %s184
          %187 = dma.hbm_to_vmem [thread:$0]  %s2, 16, %s185, [#allocation7]
        $region20: #{decoder_forward.1} parent=11 // pred_fallthru
          _
        // Predicated region
        $region21: #{decoder_forward.1} parent=11 // pred_check
          %p188 = pneg %p102
        $region22: #{decoder_forward.1} parent=11 // pred_check_branch
          %190 = sbr.rel (%p188) target = $region24
        $region23: #{decoder_forward.1} parent=11 // pred_region
          _
        $region24: #{decoder_forward.1} parent=11 // pred_fallthru
          _
        // Predicated region
        $region25: #{decoder_forward.1} parent=11 // pred_check
          %p191 = pneg %p123
        $region26: #{decoder_forward.1} parent=11 // pred_check_branch
          %193 = sbr.rel (%p191) target = $region28
        $region27: #{decoder_forward.1} parent=11 // pred_region
          %s195 = ssub.s32 16, 16
          %196 = vsyncadd [#allocation7], %s195
          %s198 = sshll.u32 [#allocation8], 4
          %s199 = int_to_ptr.vmem [resolvable:$true] %s198
          %201 = dma.hbm_to_vmem [thread:$0]  %s4, 16, %s199, [#allocation7]
        $region28: #{decoder_forward.1} parent=11 // pred_fallthru
          _
      $region12: #{decoder_forward.1} parent=5 // pred_fallthru
        _
      %p202 = scmp.lt.s32.totalorder %s13, 2
      // Predicated region
      $region29: #{decoder_forward.1} parent=5 // pred_check
        %p203 = pneg %p202
      $region30: #{decoder_forward.1} parent=5 // pred_check_branch
        %205 = sbr.rel (%p203) target = $region32
      $region31: #{decoder_forward.1} parent=5 // pred_region
        // Predicated region
        $region33: #{decoder_forward.1} parent=31 // pred_check
          %p206 = pneg %p33
        $region34: #{decoder_forward.1} parent=31 // pred_check_branch
          %208 = sbr.rel (%p206) target = $region36
        $region35: #{decoder_forward.1} parent=31 // pred_region
          %p209 = scmp.lt.s32.totalorder %s13, 1
          %s210 = scalar_select %p209, %s13, 1
          %s211 = smul.addr %s210, 54
          %s212 = smul.addr %s211, 4
          %s213 = scalar_lea.vmem %s0, %s212
        $region36: #{decoder_forward.1} parent=31 // pred_fallthru
          _
      $region32: #{decoder_forward.1} parent=5 // pred_fallthru
        _
      %p214 = scmp.le.s32.totalorder 1, %s13
      %p215 = scmp.lt.s32.totalorder %s13, 3
      %p216 = pnand %p214, %p215
      %p217 = pneg %p216
      // Predicated region
      $region37: #{decoder_forward.1} parent=5 // pred_check
        _
      $region38: #{decoder_forward.1} parent=5 // pred_check_branch
        %219 = sbr.rel (%p216) target = $region40
      $region39: #{decoder_forward.1} parent=5 // pred_region
        %s220 = ssub.s32 %s13, 1
        // Predicated region
        $region41: #{decoder_forward.1} parent=39 // pred_check
          %p221 = pneg %p60
        $region42: #{decoder_forward.1} parent=39 // pred_check_branch
          %223 = sbr.rel (%p221) target = $region44
        $region43: #{decoder_forward.1} parent=39 // pred_region
          %224 = dma.done [#allocation5], 320
        $region44: #{decoder_forward.1} parent=39 // pred_fallthru
          _
        // Predicated region
        $region45: #{decoder_forward.1} parent=39 // pred_check
          %p225 = pneg %p81
        $region46: #{decoder_forward.1} parent=39 // pred_check_branch
          %227 = sbr.rel (%p225) target = $region48
        $region47: #{decoder_forward.1} parent=39 // pred_region
          %228 = dma.done [#allocation7], 16
        $region48: #{decoder_forward.1} parent=39 // pred_fallthru
          _
        // Predicated region
        $region49: #{decoder_forward.1} parent=39 // pred_check
          %p229 = pneg %p123
        $region50: #{decoder_forward.1} parent=39 // pred_check_branch
          %231 = sbr.rel (%p229) target = $region52
        $region51: #{decoder_forward.1} parent=39 // pred_region
          %232 = dma.done [#allocation7], 16
        $region52: #{decoder_forward.1} parent=39 // pred_fallthru
          _
        %p233 = scmp.lt.s32.totalorder %s18, 1
        %s234 = scalar_select %p233, %s18, 1
        %s235 = smul.addr %s234, 54
        %s236 = smul.addr %s235, 4
        %s237 = scalar_lea.vmem %s0, %s236
        %p238 = pneg %p39
        %p239 = pneg %p36
        %p240 = pneg %p60
        %p241 = pneg %p57
        %p242 = pneg %p81
        %p243 = pneg %p78
        %p244 = pneg %p102
        %p245 = pneg %p99
        %p246 = pneg %p123
        %p247 = pneg %p120
        %p248 = pneg %p149
        %p249 = pneg %p146
        %p250 = scmp.lt.s32.totalorder %s18, 1
        %s251 = scalar_select %p250, %s18, 1
        %s252 = smul.addr %s251, 32
        %s253 = smul.addr %s252, 8
        %s254 = scalar_lea.vmem %s5, %s253
        %p255 = scmp.lt.s32.totalorder %s18, 1
        %s256 = scalar_select %p255, %s18, 1
        %s257 = smul.addr %s256, 54
        %s258 = smul.addr %s257, 4
        %s259 = scalar_lea.vmem %s0, %s258
        %p260 = scmp.lt.s32.totalorder %s18, 1
        %s261 = scalar_select %p260, %s18, 1
        %s262 = smul.addr %s261, 32
        %s263 = smul.addr %s262, 8
        %s264 = scalar_lea.vmem %s5, %s263
        %v266 = vld [vmem:[%s259] sm:$0xf]
        %v267 = vld [vmem:[%s259 + $0x4] sm:$0xf]
        %v268 = vld [vmem:[%s259 + $0xc] sm:$0xf]
        %v269 = vld [vmem:[%s259 + $0x10] sm:$0xf]
        %v270 = vld [vmem:[%s259 + $0x18] sm:$0xf]
        %v271 = vld [vmem:[%s259 + $0x1c] sm:$0xf]
        %v272 = vld [vmem:[%s259 + $0x24] sm:$0xf]
        %v273 = vld [vmem:[%s259 + $0x28] sm:$0xf]
        %v274 = vld [vmem:[%s259 + $0x30] sm:$0xf]
        %v275 = vld [vmem:[%s259 + $0x34] sm:$0xf]
        %v276 = vld [vmem:[%s259 + $0x3c] sm:$0xf]
        %v277 = vld [vmem:[%s259 + $0x40] sm:$0xf]
        %v278 = vld [vmem:[%s259 + $0x48] sm:$0xf]
        %v279 = vld [vmem:[%s259 + $0x4c] sm:$0xf]
        %v280 = vld [vmem:[%s259 + $0x54] sm:$0xf]
        %v281 = vld [vmem:[%s259 + $0x58] sm:$0xf]
        %v282 = vld [vmem:[%s259 + $0x60] sm:$0xf]
        %v283 = vld [vmem:[%s259 + $0x64] sm:$0xf]
        %v284 = vld [vmem:[%s259 + $0x6c] sm:$0xf]
        %v285 = vld [vmem:[%s259 + $0x70] sm:$0xf]
        %v286 = vld [vmem:[%s259 + $0x78] sm:$0xf]
        %v287 = vld [vmem:[%s259 + $0x7c] sm:$0xf]
        %v288 = vld [vmem:[%s259 + $0x84] sm:$0xf]
        %v289 = vld [vmem:[%s259 + $0x88] sm:$0xf]
        %v290 = vld [vmem:[%s259 + $0x90] sm:$0xf]
        %v291 = vld [vmem:[%s259 + $0x94] sm:$0xf]
        %v292 = vld [vmem:[%s259 + $0x9c] sm:$0xf]
        %v293 = vld [vmem:[%s259 + $0xa0] sm:$0xf]
        %v294 = vld [vmem:[%s259 + $0xa8] sm:$0xf]
        %v295 = vld [vmem:[%s259 + $0xac] sm:$0xf]
        %v296 = vld [vmem:[%s259 + $0xb4] sm:$0xf]
        %v297 = vld [vmem:[%s259 + $0xb8] sm:$0xf]
        %v330 = vunpack.c.l.b16 %v266
        %v331 = vunpack.c.l.b16 %v267
        %v332 = vunpack.c.l.b16 %v268
        %v333 = vunpack.c.l.b16 %v269
        %v334 = vunpack.c.l.b16 %v270
        %v335 = vunpack.c.l.b16 %v271
        %v336 = vunpack.c.l.b16 %v272
        %v337 = vunpack.c.l.b16 %v273
        %v338 = vunpack.c.l.b16 %v274
        %v339 = vunpack.c.l.b16 %v275
        %v340 = vunpack.c.l.b16 %v276
        %v341 = vunpack.c.l.b16 %v277
        %v342 = vunpack.c.l.b16 %v278
        %v343 = vunpack.c.l.b16 %v279
        %v344 = vunpack.c.l.b16 %v280
        %v345 = vunpack.c.l.b16 %v281
        %v346 = vunpack.c.l.b16 %v282
        %v347 = vunpack.c.l.b16 %v283
        %v348 = vunpack.c.l.b16 %v284
        %v349 = vunpack.c.l.b16 %v285
        %v350 = vunpack.c.l.b16 %v286
        %v351 = vunpack.c.l.b16 %v287
        %v352 = vunpack.c.l.b16 %v288
        %v353 = vunpack.c.l.b16 %v289
        %v354 = vunpack.c.l.b16 %v290
        %v355 = vunpack.c.l.b16 %v291
        %v356 = vunpack.c.l.b16 %v292
        %v357 = vunpack.c.l.b16 %v293
        %v358 = vunpack.c.l.b16 %v294
        %v359 = vunpack.c.l.b16 %v295
        %v360 = vunpack.c.l.b16 %v296
        %v361 = vunpack.c.l.b16 %v297
        %v362 = vpack.c.b16 %v331, %v330
        %v363 = vpack.c.b16 %v333, %v332
        %v364 = vpack.c.b16 %v335, %v334
        %v365 = vpack.c.b16 %v337, %v336
        %v366 = vpack.c.b16 %v339, %v338
        %v367 = vpack.c.b16 %v341, %v340
        %v368 = vpack.c.b16 %v343, %v342
        %v369 = vpack.c.b16 %v345, %v344
        %v370 = vpack.c.b16 %v347, %v346
        %v371 = vpack.c.b16 %v349, %v348
        %v372 = vpack.c.b16 %v351, %v350
        %v373 = vpack.c.b16 %v353, %v352
        %v374 = vpack.c.b16 %v355, %v354
        %v375 = vpack.c.b16 %v357, %v356
        %v376 = vpack.c.b16 %v359, %v358
        %v377 = vpack.c.b16 %v361, %v360
        %vm394 = vcmask 31744
        %395 = vst.msk [vmem:[#allocation2] sm:$0xff] %vm394, %v362
        %396 = vst.msk [vmem:[#allocation2 + $0x8] sm:$0xff] %vm394, %v363
        %397 = vst.msk [vmem:[#allocation2 + $0x10] sm:$0xff] %vm394, %v364
        %398 = vst.msk [vmem:[#allocation2 + $0x18] sm:$0xff] %vm394, %v365
        %399 = vst.msk [vmem:[#allocation2 + $0x20] sm:$0xff] %vm394, %v366
        %400 = vst.msk [vmem:[#allocation2 + $0x28] sm:$0xff] %vm394, %v367
        %401 = vst.msk [vmem:[#allocation2 + $0x30] sm:$0xff] %vm394, %v368
        %402 = vst.msk [vmem:[#allocation2 + $0x38] sm:$0xff] %vm394, %v369
        %403 = vst.msk [vmem:[#allocation2 + $0x40] sm:$0xff] %vm394, %v370
        %404 = vst.msk [vmem:[#allocation2 + $0x48] sm:$0xff] %vm394, %v371
        %405 = vst.msk [vmem:[#allocation2 + $0x50] sm:$0xff] %vm394, %v372
        %406 = vst.msk [vmem:[#allocation2 + $0x58] sm:$0xff] %vm394, %v373
        %407 = vst.msk [vmem:[#allocation2 + $0x60] sm:$0xff] %vm394, %v374
        %408 = vst.msk [vmem:[#allocation2 + $0x68] sm:$0xff] %vm394, %v375
        %409 = vst.msk [vmem:[#allocation2 + $0x70] sm:$0xff] %vm394, %v376
        %410 = vst.msk [vmem:[#allocation2 + $0x78] sm:$0xff] %vm394, %v377
        %v411 = vld [vmem:[%s259] sm:$0xf]
        %v412 = vld [vmem:[%s259 + $0x4] sm:$0xf]
        %v413 = vld [vmem:[%s259 + $0x8] sm:$0x1]
        %v414 = vld [vmem:[%s259 + $0xc] sm:$0xf]
        %v415 = vld [vmem:[%s259 + $0x10] sm:$0xf]
        %v416 = vld [vmem:[%s259 + $0x14] sm:$0x1]
        %v417 = vld [vmem:[%s259 + $0x18] sm:$0xf]
        %v418 = vld [vmem:[%s259 + $0x1c] sm:$0xf]
        %v419 = vld [vmem:[%s259 + $0x20] sm:$0x1]
        %v420 = vld [vmem:[%s259 + $0x24] sm:$0xf]
        %v421 = vld [vmem:[%s259 + $0x28] sm:$0xf]
        %v422 = vld [vmem:[%s259 + $0x2c] sm:$0x1]
        %v423 = vld [vmem:[%s259 + $0x30] sm:$0xf]
        %v424 = vld [vmem:[%s259 + $0x34] sm:$0xf]
        %v425 = vld [vmem:[%s259 + $0x38] sm:$0x1]
        %v426 = vld [vmem:[%s259 + $0x3c] sm:$0xf]
        %v427 = vld [vmem:[%s259 + $0x40] sm:$0xf]
        %v428 = vld [vmem:[%s259 + $0x44] sm:$0x1]
        %v429 = vld [vmem:[%s259 + $0x48] sm:$0xf]
        %v430 = vld [vmem:[%s259 + $0x4c] sm:$0xf]
        %v431 = vld [vmem:[%s259 + $0x50] sm:$0x1]
        %v432 = vld [vmem:[%s259 + $0x54] sm:$0xf]
        %v433 = vld [vmem:[%s259 + $0x58] sm:$0xf]
        %v434 = vld [vmem:[%s259 + $0x5c] sm:$0x1]
        %v435 = vld [vmem:[%s259 + $0x60] sm:$0xf]
        %v436 = vld [vmem:[%s259 + $0x64] sm:$0xf]
        %v437 = vld [vmem:[%s259 + $0x68] sm:$0x1]
        %v438 = vld [vmem:[%s259 + $0x6c] sm:$0xf]
        %v439 = vld [vmem:[%s259 + $0x70] sm:$0xf]
        %v440 = vld [vmem:[%s259 + $0x74] sm:$0x1]
        %v441 = vld [vmem:[%s259 + $0x78] sm:$0xf]
        %v442 = vld [vmem:[%s259 + $0x7c] sm:$0xf]
        %v443 = vld [vmem:[%s259 + $0x80] sm:$0x1]
        %v444 = vld [vmem:[%s259 + $0x84] sm:$0xf]
        %v445 = vld [vmem:[%s259 + $0x88] sm:$0xf]
        %v446 = vld [vmem:[%s259 + $0x8c] sm:$0x1]
        %v447 = vld [vmem:[%s259 + $0x90] sm:$0xf]
        %v448 = vld [vmem:[%s259 + $0x94] sm:$0xf]
        %v449 = vld [vmem:[%s259 + $0x98] sm:$0x1]
        %v450 = vld [vmem:[%s259 + $0x9c] sm:$0xf]
        %v451 = vld [vmem:[%s259 + $0xa0] sm:$0xf]
        %v452 = vld [vmem:[%s259 + $0xa4] sm:$0x1]
        %v453 = vld [vmem:[%s259 + $0xa8] sm:$0xf]
        %v454 = vld [vmem:[%s259 + $0xac] sm:$0xf]
        %v455 = vld [vmem:[%s259 + $0xb0] sm:$0x1]
        %v456 = vld [vmem:[%s259 + $0xb4] sm:$0xf]
        %v457 = vld [vmem:[%s259 + $0xb8] sm:$0xf]
        %v458 = vld [vmem:[%s259 + $0xbc] sm:$0x1]
        %vm459 = vsmask.f32 3328
        %vm460 = vsmask.f32 7440
        %vm461 = vmor %vm459, %vm460
        %v463 = vshrl.u32 %v411, 16
        %v465 = vrot.slane %v463, 4
        %v466 = vshll.u32 %v411, 16
        %v468 = vrot.slane %v466, 5
        %v469 = vor.u32 %v465, %v468
        %v470 = vrot.slane %v469, 4
        %v472 = vshll.u32 %v412, 16
        %v474 = vrot.slane %v472, 5
        %v475 = vsel %vm461, %v470, %v474
        %v476 = vshrl.u32 %v412, 16
        %v478 = vrot.slane %v476, 4
        %v479 = vor.u32 %v478, %v474
        %v480 = vrot.slane %v479, 4
        %v482 = vshll.u32 %v413, 16
        %v484 = vrot.slane %v482, 5
        %v485 = vsel %vm461, %v480, %v484
        %v487 = vshrl.u32 %v414, 16
        %v489 = vrot.slane %v487, 4
        %v490 = vshll.u32 %v414, 16
        %v492 = vrot.slane %v490, 5
        %v493 = vor.u32 %v489, %v492
        %v494 = vrot.slane %v493, 4
        %v496 = vshll.u32 %v415, 16
        %v498 = vrot.slane %v496, 5
        %v499 = vsel %vm461, %v494, %v498
        %v500 = vshrl.u32 %v415, 16
        %v502 = vrot.slane %v500, 4
        %v503 = vor.u32 %v502, %v498
        %v504 = vrot.slane %v503, 4
        %v506 = vshll.u32 %v416, 16
        %v508 = vrot.slane %v506, 5
        %v509 = vsel %vm461, %v504, %v508
        %v511 = vshrl.u32 %v417, 16
        %v513 = vrot.slane %v511, 4
        %v514 = vshll.u32 %v417, 16
        %v516 = vrot.slane %v514, 5
        %v517 = vor.u32 %v513, %v516
        %v518 = vrot.slane %v517, 4
        %v520 = vshll.u32 %v418, 16
        %v522 = vrot.slane %v520, 5
        %v523 = vsel %vm461, %v518, %v522
        %v524 = vshrl.u32 %v418, 16
        %v526 = vrot.slane %v524, 4
        %v527 = vor.u32 %v526, %v522
        %v528 = vrot.slane %v527, 4
        %v530 = vshll.u32 %v419, 16
        %v532 = vrot.slane %v530, 5
        %v533 = vsel %vm461, %v528, %v532
        %v535 = vshrl.u32 %v420, 16
        %v537 = vrot.slane %v535, 4
        %v538 = vshll.u32 %v420, 16
        %v540 = vrot.slane %v538, 5
        %v541 = vor.u32 %v537, %v540
        %v542 = vrot.slane %v541, 4
        %v544 = vshll.u32 %v421, 16
        %v546 = vrot.slane %v544, 5
        %v547 = vsel %vm461, %v542, %v546
        %v548 = vshrl.u32 %v421, 16
        %v550 = vrot.slane %v548, 4
        %v551 = vor.u32 %v550, %v546
        %v552 = vrot.slane %v551, 4
        %v554 = vshll.u32 %v422, 16
        %v556 = vrot.slane %v554, 5
        %v557 = vsel %vm461, %v552, %v556
        %v559 = vshrl.u32 %v423, 16
        %v561 = vrot.slane %v559, 4
        %v562 = vshll.u32 %v423, 16
        %v564 = vrot.slane %v562, 5
        %v565 = vor.u32 %v561, %v564
        %v566 = vrot.slane %v565, 4
        %v568 = vshll.u32 %v424, 16
        %v570 = vrot.slane %v568, 5
        %v571 = vsel %vm461, %v566, %v570
        %v572 = vshrl.u32 %v424, 16
        %v574 = vrot.slane %v572, 4
        %v575 = vor.u32 %v574, %v570
        %v576 = vrot.slane %v575, 4
        %v578 = vshll.u32 %v425, 16
        %v580 = vrot.slane %v578, 5
        %v581 = vsel %vm461, %v576, %v580
        %v583 = vshrl.u32 %v426, 16
        %v585 = vrot.slane %v583, 4
        %v586 = vshll.u32 %v426, 16
        %v588 = vrot.slane %v586, 5
        %v589 = vor.u32 %v585, %v588
        %v590 = vrot.slane %v589, 4
        %v592 = vshll.u32 %v427, 16
        %v594 = vrot.slane %v592, 5
        %v595 = vsel %vm461, %v590, %v594
        %v596 = vshrl.u32 %v427, 16
        %v598 = vrot.slane %v596, 4
        %v599 = vor.u32 %v598, %v594
        %v600 = vrot.slane %v599, 4
        %v602 = vshll.u32 %v428, 16
        %v604 = vrot.slane %v602, 5
        %v605 = vsel %vm461, %v600, %v604
        %v607 = vshrl.u32 %v429, 16
        %v609 = vrot.slane %v607, 4
        %v610 = vshll.u32 %v429, 16
        %v612 = vrot.slane %v610, 5
        %v613 = vor.u32 %v609, %v612
        %v614 = vrot.slane %v613, 4
        %v616 = vshll.u32 %v430, 16
        %v618 = vrot.slane %v616, 5
        %v619 = vsel %vm461, %v614, %v618
        %v620 = vshrl.u32 %v430, 16
        %v622 = vrot.slane %v620, 4
        %v623 = vor.u32 %v622, %v618
        %v624 = vrot.slane %v623, 4
        %v626 = vshll.u32 %v431, 16
        %v628 = vrot.slane %v626, 5
        %v629 = vsel %vm461, %v624, %v628
        %v631 = vshrl.u32 %v432, 16
        %v633 = vrot.slane %v631, 4
        %v634 = vshll.u32 %v432, 16
        %v636 = vrot.slane %v634, 5
        %v637 = vor.u32 %v633, %v636
        %v638 = vrot.slane %v637, 4
        %v640 = vshll.u32 %v433, 16
        %v642 = vrot.slane %v640, 5
        %v643 = vsel %vm461, %v638, %v642
        %v644 = vshrl.u32 %v433, 16
        %v646 = vrot.slane %v644, 4
        %v647 = vor.u32 %v646, %v642
        %v648 = vrot.slane %v647, 4
        %v650 = vshll.u32 %v434, 16
        %v652 = vrot.slane %v650, 5
        %v653 = vsel %vm461, %v648, %v652
        %v655 = vshrl.u32 %v435, 16
        %v657 = vrot.slane %v655, 4
        %v658 = vshll.u32 %v435, 16
        %v660 = vrot.slane %v658, 5
        %v661 = vor.u32 %v657, %v660
        %v662 = vrot.slane %v661, 4
        %v664 = vshll.u32 %v436, 16
        %v666 = vrot.slane %v664, 5
        %v667 = vsel %vm461, %v662, %v666
        %v668 = vshrl.u32 %v436, 16
        %v670 = vrot.slane %v668, 4
        %v671 = vor.u32 %v670, %v666
        %v672 = vrot.slane %v671, 4
        %v674 = vshll.u32 %v437, 16
        %v676 = vrot.slane %v674, 5
        %v677 = vsel %vm461, %v672, %v676
        %v679 = vshrl.u32 %v438, 16
        %v681 = vrot.slane %v679, 4
        %v682 = vshll.u32 %v438, 16
        %v684 = vrot.slane %v682, 5
        %v685 = vor.u32 %v681, %v684
        %v686 = vrot.slane %v685, 4
        %v688 = vshll.u32 %v439, 16
        %v690 = vrot.slane %v688, 5
        %v691 = vsel %vm461, %v686, %v690
        %v692 = vshrl.u32 %v439, 16
        %v694 = vrot.slane %v692, 4
        %v695 = vor.u32 %v694, %v690
        %v696 = vrot.slane %v695, 4
        %v698 = vshll.u32 %v440, 16
        %v700 = vrot.slane %v698, 5
        %v701 = vsel %vm461, %v696, %v700
        %v703 = vshrl.u32 %v441, 16
        %v705 = vrot.slane %v703, 4
        %v706 = vshll.u32 %v441, 16
        %v708 = vrot.slane %v706, 5
        %v709 = vor.u32 %v705, %v708
        %v710 = vrot.slane %v709, 4
        %v712 = vshll.u32 %v442, 16
        %v714 = vrot.slane %v712, 5
        %v715 = vsel %vm461, %v710, %v714
        %v716 = vshrl.u32 %v442, 16
        %v718 = vrot.slane %v716, 4
        %v719 = vor.u32 %v718, %v714
        %v720 = vrot.slane %v719, 4
        %v722 = vshll.u32 %v443, 16
        %v724 = vrot.slane %v722, 5
        %v725 = vsel %vm461, %v720, %v724
        %v727 = vshrl.u32 %v444, 16
        %v729 = vrot.slane %v727, 4
        %v730 = vshll.u32 %v444, 16
        %v732 = vrot.slane %v730, 5
        %v733 = vor.u32 %v729, %v732
        %v734 = vrot.slane %v733, 4
        %v736 = vshll.u32 %v445, 16
        %v738 = vrot.slane %v736, 5
        %v739 = vsel %vm461, %v734, %v738
        %v740 = vshrl.u32 %v445, 16
        %v742 = vrot.slane %v740, 4
        %v743 = vor.u32 %v742, %v738
        %v744 = vrot.slane %v743, 4
        %v746 = vshll.u32 %v446, 16
        %v748 = vrot.slane %v746, 5
        %v749 = vsel %vm461, %v744, %v748
        %v751 = vshrl.u32 %v447, 16
        %v753 = vrot.slane %v751, 4
        %v754 = vshll.u32 %v447, 16
        %v756 = vrot.slane %v754, 5
        %v757 = vor.u32 %v753, %v756
        %v758 = vrot.slane %v757, 4
        %v760 = vshll.u32 %v448, 16
        %v762 = vrot.slane %v760, 5
        %v763 = vsel %vm461, %v758, %v762
        %v764 = vshrl.u32 %v448, 16
        %v766 = vrot.slane %v764, 4
        %v767 = vor.u32 %v766, %v762
        %v768 = vrot.slane %v767, 4
        %v770 = vshll.u32 %v449, 16
        %v772 = vrot.slane %v770, 5
        %v773 = vsel %vm461, %v768, %v772
        %v775 = vshrl.u32 %v450, 16
        %v777 = vrot.slane %v775, 4
        %v778 = vshll.u32 %v450, 16
        %v780 = vrot.slane %v778, 5
        %v781 = vor.u32 %v777, %v780
        %v782 = vrot.slane %v781, 4
        %v784 = vshll.u32 %v451, 16
        %v786 = vrot.slane %v784, 5
        %v787 = vsel %vm461, %v782, %v786
        %v788 = vshrl.u32 %v451, 16
        %v790 = vrot.slane %v788, 4
        %v791 = vor.u32 %v790, %v786
        %v792 = vrot.slane %v791, 4
        %v794 = vshll.u32 %v452, 16
        %v796 = vrot.slane %v794, 5
        %v797 = vsel %vm461, %v792, %v796
        %v799 = vshrl.u32 %v453, 16
        %v801 = vrot.slane %v799, 4
        %v802 = vshll.u32 %v453, 16
        %v804 = vrot.slane %v802, 5
        %v805 = vor.u32 %v801, %v804
        %v806 = vrot.slane %v805, 4
        %v808 = vshll.u32 %v454, 16
        %v810 = vrot.slane %v808, 5
        %v811 = vsel %vm461, %v806, %v810
        %v812 = vshrl.u32 %v454, 16
        %v814 = vrot.slane %v812, 4
        %v815 = vor.u32 %v814, %v810
        %v816 = vrot.slane %v815, 4
        %v818 = vshll.u32 %v455, 16
        %v820 = vrot.slane %v818, 5
        %v821 = vsel %vm461, %v816, %v820
        %v823 = vshrl.u32 %v456, 16
        %v825 = vrot.slane %v823, 4
        %v826 = vshll.u32 %v456, 16
        %v828 = vrot.slane %v826, 5
        %v829 = vor.u32 %v825, %v828
        %v830 = vrot.slane %v829, 4
        %v832 = vshll.u32 %v457, 16
        %v834 = vrot.slane %v832, 5
        %v835 = vsel %vm461, %v830, %v834
        %v836 = vshrl.u32 %v457, 16
        %v838 = vrot.slane %v836, 4
        %v839 = vor.u32 %v838, %v834
        %v840 = vrot.slane %v839, 4
        %v842 = vshll.u32 %v458, 16
        %v844 = vrot.slane %v842, 5
        %v845 = vsel %vm461, %v840, %v844
        %v846 = vunpack.c.l.b16 %v475
        %v847 = vunpack.c.l.b16 %v485
        %v848 = vunpack.c.l.b16 %v499
        %v849 = vunpack.c.l.b16 %v509
        %v850 = vunpack.c.l.b16 %v523
        %v851 = vunpack.c.l.b16 %v533
        %v852 = vunpack.c.l.b16 %v547
        %v853 = vunpack.c.l.b16 %v557
        %v854 = vunpack.c.l.b16 %v571
        %v855 = vunpack.c.l.b16 %v581
        %v856 = vunpack.c.l.b16 %v595
        %v857 = vunpack.c.l.b16 %v605
        %v858 = vunpack.c.l.b16 %v619
        %v859 = vunpack.c.l.b16 %v629
        %v860 = vunpack.c.l.b16 %v643
        %v861 = vunpack.c.l.b16 %v653
        %v862 = vunpack.c.l.b16 %v667
        %v863 = vunpack.c.l.b16 %v677
        %v864 = vunpack.c.l.b16 %v691
        %v865 = vunpack.c.l.b16 %v701
        %v866 = vunpack.c.l.b16 %v715
        %v867 = vunpack.c.l.b16 %v725
        %v868 = vunpack.c.l.b16 %v739
        %v869 = vunpack.c.l.b16 %v749
        %v870 = vunpack.c.l.b16 %v763
        %v871 = vunpack.c.l.b16 %v773
        %v872 = vunpack.c.l.b16 %v787
        %v873 = vunpack.c.l.b16 %v797
        %v874 = vunpack.c.l.b16 %v811
        %v875 = vunpack.c.l.b16 %v821
        %v876 = vunpack.c.l.b16 %v835
        %v877 = vunpack.c.l.b16 %v845
        %v878 = vpack.c.b16 %v847, %v846
        %v879 = vpack.c.b16 %v849, %v848
        %v880 = vpack.c.b16 %v851, %v850
        %v881 = vpack.c.b16 %v853, %v852
        %v882 = vpack.c.b16 %v855, %v854
        %v883 = vpack.c.b16 %v857, %v856
        %v884 = vpack.c.b16 %v859, %v858
        %v885 = vpack.c.b16 %v861, %v860
        %v886 = vpack.c.b16 %v863, %v862
        %v887 = vpack.c.b16 %v865, %v864
        %v888 = vpack.c.b16 %v867, %v866
        %v889 = vpack.c.b16 %v869, %v868
        %v890 = vpack.c.b16 %v871, %v870
        %v891 = vpack.c.b16 %v873, %v872
        %v892 = vpack.c.b16 %v875, %v874
        %v893 = vpack.c.b16 %v877, %v876
        %894 = vrot.lane.b32.xlu0 %v878, 4
        %v895 = vpop.permute.xlu0 %894
        %896 = vrot.lane.b32.xlu0 %v879, 4
        %v897 = vpop.permute.xlu0 %896
        %898 = vrot.lane.b32.xlu0 %v880, 4
        %v899 = vpop.permute.xlu0 %898
        %900 = vrot.lane.b32.xlu0 %v881, 4
        %v901 = vpop.permute.xlu0 %900
        %902 = vrot.lane.b32.xlu0 %v882, 4
        %v903 = vpop.permute.xlu0 %902
        %904 = vrot.lane.b32.xlu0 %v883, 4
        %v905 = vpop.permute.xlu0 %904
        %906 = vrot.lane.b32.xlu0 %v884, 4
        %v907 = vpop.permute.xlu0 %906
        %908 = vrot.lane.b32.xlu0 %v885, 4
        %v909 = vpop.permute.xlu0 %908
        %910 = vrot.lane.b32.xlu0 %v886, 4
        %v911 = vpop.permute.xlu0 %910
        %912 = vrot.lane.b32.xlu0 %v887, 4
        %v913 = vpop.permute.xlu0 %912
        %914 = vrot.lane.b32.xlu0 %v888, 4
        %v915 = vpop.permute.xlu0 %914
        %916 = vrot.lane.b32.xlu0 %v889, 4
        %v917 = vpop.permute.xlu0 %916
        %918 = vrot.lane.b32.xlu0 %v890, 4
        %v919 = vpop.permute.xlu0 %918
        %920 = vrot.lane.b32.xlu0 %v891, 4
        %v921 = vpop.permute.xlu0 %920
        %922 = vrot.lane.b32.xlu0 %v892, 4
        %v923 = vpop.permute.xlu0 %922
        %924 = vrot.lane.b32.xlu0 %v893, 4
        %v925 = vpop.permute.xlu0 %924
        %vm942 = vcmask 64544
        %943 = vst.msk [vmem:[#allocation2] sm:$0xff] %vm942, %v895
        %944 = vst.msk [vmem:[#allocation2 + $0x8] sm:$0xff] %vm942, %v897
        %945 = vst.msk [vmem:[#allocation2 + $0x10] sm:$0xff] %vm942, %v899
        %946 = vst.msk [vmem:[#allocation2 + $0x18] sm:$0xff] %vm942, %v901
        %947 = vst.msk [vmem:[#allocation2 + $0x20] sm:$0xff] %vm942, %v903
        %948 = vst.msk [vmem:[#allocation2 + $0x28] sm:$0xff] %vm942, %v905
        %949 = vst.msk [vmem:[#allocation2 + $0x30] sm:$0xff] %vm942, %v907
        %950 = vst.msk [vmem:[#allocation2 + $0x38] sm:$0xff] %vm942, %v909
        %951 = vst.msk [vmem:[#allocation2 + $0x40] sm:$0xff] %vm942, %v911
        %952 = vst.msk [vmem:[#allocation2 + $0x48] sm:$0xff] %vm942, %v913
        %953 = vst.msk [vmem:[#allocation2 + $0x50] sm:$0xff] %vm942, %v915
        %954 = vst.msk [vmem:[#allocation2 + $0x58] sm:$0xff] %vm942, %v917
        %955 = vst.msk [vmem:[#allocation2 + $0x60] sm:$0xff] %vm942, %v919
        %956 = vst.msk [vmem:[#allocation2 + $0x68] sm:$0xff] %vm942, %v921
        %957 = vst.msk [vmem:[#allocation2 + $0x70] sm:$0xff] %vm942, %v923
        %958 = vst.msk [vmem:[#allocation2 + $0x78] sm:$0xff] %vm942, %v925
        %v959 = vld [vmem:[%s259] sm:$0xe]
        %v960 = vld [vmem:[%s259 + $0x4] sm:$0xf]
        %v961 = vld [vmem:[%s259 + $0x8] sm:$0x1]
        %v962 = vld [vmem:[%s259 + $0xc] sm:$0xe]
        %v963 = vld [vmem:[%s259 + $0x10] sm:$0xf]
        %v964 = vld [vmem:[%s259 + $0x14] sm:$0x1]
        %v965 = vld [vmem:[%s259 + $0x18] sm:$0xe]
        %v966 = vld [vmem:[%s259 + $0x1c] sm:$0xf]
        %v967 = vld [vmem:[%s259 + $0x20] sm:$0x1]
        %v968 = vld [vmem:[%s259 + $0x24] sm:$0xe]
        %v969 = vld [vmem:[%s259 + $0x28] sm:$0xf]
        %v970 = vld [vmem:[%s259 + $0x2c] sm:$0x1]
        %v971 = vld [vmem:[%s259 + $0x30] sm:$0xe]
        %v972 = vld [vmem:[%s259 + $0x34] sm:$0xf]
        %v973 = vld [vmem:[%s259 + $0x38] sm:$0x1]
        %v974 = vld [vmem:[%s259 + $0x3c] sm:$0xe]
        %v975 = vld [vmem:[%s259 + $0x40] sm:$0xf]
        %v976 = vld [vmem:[%s259 + $0x44] sm:$0x1]
        %v977 = vld [vmem:[%s259 + $0x48] sm:$0xe]
        %v978 = vld [vmem:[%s259 + $0x4c] sm:$0xf]
        %v979 = vld [vmem:[%s259 + $0x50] sm:$0x1]
        %v980 = vld [vmem:[%s259 + $0x54] sm:$0xe]
        %v981 = vld [vmem:[%s259 + $0x58] sm:$0xf]
        %v982 = vld [vmem:[%s259 + $0x5c] sm:$0x1]
        %v983 = vld [vmem:[%s259 + $0x60] sm:$0xe]
        %v984 = vld [vmem:[%s259 + $0x64] sm:$0xf]
        %v985 = vld [vmem:[%s259 + $0x68] sm:$0x1]
        %v986 = vld [vmem:[%s259 + $0x6c] sm:$0xe]
        %v987 = vld [vmem:[%s259 + $0x70] sm:$0xf]
        %v988 = vld [vmem:[%s259 + $0x74] sm:$0x1]
        %v989 = vld [vmem:[%s259 + $0x78] sm:$0xe]
        %v990 = vld [vmem:[%s259 + $0x7c] sm:$0xf]
        %v991 = vld [vmem:[%s259 + $0x80] sm:$0x1]
        %v992 = vld [vmem:[%s259 + $0x84] sm:$0xe]
        %v993 = vld [vmem:[%s259 + $0x88] sm:$0xf]
        %v994 = vld [vmem:[%s259 + $0x8c] sm:$0x1]
        %v995 = vld [vmem:[%s259 + $0x90] sm:$0xe]
        %v996 = vld [vmem:[%s259 + $0x94] sm:$0xf]
        %v997 = vld [vmem:[%s259 + $0x98] sm:$0x1]
        %v998 = vld [vmem:[%s259 + $0x9c] sm:$0xe]
        %v999 = vld [vmem:[%s259 + $0xa0] sm:$0xf]
        %v1000 = vld [vmem:[%s259 + $0xa4] sm:$0x1]
        %v1001 = vld [vmem:[%s259 + $0xa8] sm:$0xe]
        %v1002 = vld [vmem:[%s259 + $0xac] sm:$0xf]
        %v1003 = vld [vmem:[%s259 + $0xb0] sm:$0x1]
        %v1004 = vld [vmem:[%s259 + $0xb4] sm:$0xe]
        %v1005 = vld [vmem:[%s259 + $0xb8] sm:$0xf]
        %v1006 = vld [vmem:[%s259 + $0xbc] sm:$0x1]
        %vm1055 = vcmask 1042432
        %vm1056 = vcmask 1046532
        %vm1057 = vmor %vm1055, %vm1056
        %v1058 = vrot.slane %v959, 5
        %v1059 = vrot.slane %v1058, 4
        %v1060 = vrot.slane %v960, 5
        %v1061 = vsel %vm1057, %v1059, %v1060
        %v1062 = vrot.slane %v1060, 4
        %v1063 = vrot.slane %v961, 5
        %v1064 = vsel %vm1057, %v1062, %v1063
        %v1065 = vrot.slane %v962, 5
        %v1066 = vrot.slane %v1065, 4
        %v1067 = vrot.slane %v963, 5
        %v1068 = vsel %vm1057, %v1066, %v1067
        %v1069 = vrot.slane %v1067, 4
        %v1070 = vrot.slane %v964, 5
        %v1071 = vsel %vm1057, %v1069, %v1070
        %v1072 = vrot.slane %v965, 5
        %v1073 = vrot.slane %v1072, 4
        %v1074 = vrot.slane %v966, 5
        %v1075 = vsel %vm1057, %v1073, %v1074
        %v1076 = vrot.slane %v1074, 4
        %v1077 = vrot.slane %v967, 5
        %v1078 = vsel %vm1057, %v1076, %v1077
        %v1079 = vrot.slane %v968, 5
        %v1080 = vrot.slane %v1079, 4
        %v1081 = vrot.slane %v969, 5
        %v1082 = vsel %vm1057, %v1080, %v1081
        %v1083 = vrot.slane %v1081, 4
        %v1084 = vrot.slane %v970, 5
        %v1085 = vsel %vm1057, %v1083, %v1084
        %v1086 = vrot.slane %v971, 5
        %v1087 = vrot.slane %v1086, 4
        %v1088 = vrot.slane %v972, 5
        %v1089 = vsel %vm1057, %v1087, %v1088
        %v1090 = vrot.slane %v1088, 4
        %v1091 = vrot.slane %v973, 5
        %v1092 = vsel %vm1057, %v1090, %v1091
        %v1093 = vrot.slane %v974, 5
        %v1094 = vrot.slane %v1093, 4
        %v1095 = vrot.slane %v975, 5
        %v1096 = vsel %vm1057, %v1094, %v1095
        %v1097 = vrot.slane %v1095, 4
        %v1098 = vrot.slane %v976, 5
        %v1099 = vsel %vm1057, %v1097, %v1098
        %v1100 = vrot.slane %v977, 5
        %v1101 = vrot.slane %v1100, 4
        %v1102 = vrot.slane %v978, 5
        %v1103 = vsel %vm1057, %v1101, %v1102
        %v1104 = vrot.slane %v1102, 4
        %v1105 = vrot.slane %v979, 5
        %v1106 = vsel %vm1057, %v1104, %v1105
        %v1107 = vrot.slane %v980, 5
        %v1108 = vrot.slane %v1107, 4
        %v1109 = vrot.slane %v981, 5
        %v1110 = vsel %vm1057, %v1108, %v1109
        %v1111 = vrot.slane %v1109, 4
        %v1112 = vrot.slane %v982, 5
        %v1113 = vsel %vm1057, %v1111, %v1112
        %v1114 = vrot.slane %v983, 5
        %v1115 = vrot.slane %v1114, 4
        %v1116 = vrot.slane %v984, 5
        %v1117 = vsel %vm1057, %v1115, %v1116
        %v1118 = vrot.slane %v1116, 4
        %v1119 = vrot.slane %v985, 5
        %v1120 = vsel %vm1057, %v1118, %v1119
        %v1121 = vrot.slane %v986, 5
        %v1122 = vrot.slane %v1121, 4
        %v1123 = vrot.slane %v987, 5
        %v1124 = vsel %vm1057, %v1122, %v1123
        %v1125 = vrot.slane %v1123, 4
        %v1126 = vrot.slane %v988, 5
        %v1127 = vsel %vm1057, %v1125, %v1126
        %v1128 = vrot.slane %v989, 5
        %v1129 = vrot.slane %v1128, 4
        %v1130 = vrot.slane %v990, 5
        %v1131 = vsel %vm1057, %v1129, %v1130
        %v1132 = vrot.slane %v1130, 4
        %v1133 = vrot.slane %v991, 5
        %v1134 = vsel %vm1057, %v1132, %v1133
        %v1135 = vrot.slane %v992, 5
        %v1136 = vrot.slane %v1135, 4
        %v1137 = vrot.slane %v993, 5
        %v1138 = vsel %vm1057, %v1136, %v1137
        %v1139 = vrot.slane %v1137, 4
        %v1140 = vrot.slane %v994, 5
        %v1141 = vsel %vm1057, %v1139, %v1140
        %v1142 = vrot.slane %v995, 5
        %v1143 = vrot.slane %v1142, 4
        %v1144 = vrot.slane %v996, 5
        %v1145 = vsel %vm1057, %v1143, %v1144
        %v1146 = vrot.slane %v1144, 4
        %v1147 = vrot.slane %v997, 5
        %v1148 = vsel %vm1057, %v1146, %v1147
        %v1149 = vrot.slane %v998, 5
        %v1150 = vrot.slane %v1149, 4
        %v1151 = vrot.slane %v999, 5
        %v1152 = vsel %vm1057, %v1150, %v1151
        %v1153 = vrot.slane %v1151, 4
        %v1154 = vrot.slane %v1000, 5
        %v1155 = vsel %vm1057, %v1153, %v1154
        %v1156 = vrot.slane %v1001, 5
        %v1157 = vrot.slane %v1156, 4
        %v1158 = vrot.slane %v1002, 5
        %v1159 = vsel %vm1057, %v1157, %v1158
        %v1160 = vrot.slane %v1158, 4
        %v1161 = vrot.slane %v1003, 5
        %v1162 = vsel %vm1057, %v1160, %v1161
        %v1163 = vrot.slane %v1004, 5
        %v1164 = vrot.slane %v1163, 4
        %v1165 = vrot.slane %v1005, 5
        %v1166 = vsel %vm1057, %v1164, %v1165
        %v1167 = vrot.slane %v1165, 4
        %v1168 = vrot.slane %v1006, 5
        %v1169 = vsel %vm1057, %v1167, %v1168
        %v1170 = vunpack.c.l.b16 %v1061
        %v1171 = vunpack.c.l.b16 %v1064
        %v1172 = vunpack.c.l.b16 %v1068
        %v1173 = vunpack.c.l.b16 %v1071
        %v1174 = vunpack.c.l.b16 %v1075
        %v1175 = vunpack.c.l.b16 %v1078
        %v1176 = vunpack.c.l.b16 %v1082
        %v1177 = vunpack.c.l.b16 %v1085
        %v1178 = vunpack.c.l.b16 %v1089
        %v1179 = vunpack.c.l.b16 %v1092
        %v1180 = vunpack.c.l.b16 %v1096
        %v1181 = vunpack.c.l.b16 %v1099
        %v1182 = vunpack.c.l.b16 %v1103
        %v1183 = vunpack.c.l.b16 %v1106
        %v1184 = vunpack.c.l.b16 %v1110
        %v1185 = vunpack.c.l.b16 %v1113
        %v1186 = vunpack.c.l.b16 %v1117
        %v1187 = vunpack.c.l.b16 %v1120
        %v1188 = vunpack.c.l.b16 %v1124
        %v1189 = vunpack.c.l.b16 %v1127
        %v1190 = vunpack.c.l.b16 %v1131
        %v1191 = vunpack.c.l.b16 %v1134
        %v1192 = vunpack.c.l.b16 %v1138
        %v1193 = vunpack.c.l.b16 %v1141
        %v1194 = vunpack.c.l.b16 %v1145
        %v1195 = vunpack.c.l.b16 %v1148
        %v1196 = vunpack.c.l.b16 %v1152
        %v1197 = vunpack.c.l.b16 %v1155
        %v1198 = vunpack.c.l.b16 %v1159
        %v1199 = vunpack.c.l.b16 %v1162
        %v1200 = vunpack.c.l.b16 %v1166
        %v1201 = vunpack.c.l.b16 %v1169
        %v1202 = vpack.c.b16 %v1171, %v1170
        %v1203 = vpack.c.b16 %v1173, %v1172
        %v1204 = vpack.c.b16 %v1175, %v1174
        %v1205 = vpack.c.b16 %v1177, %v1176
        %v1206 = vpack.c.b16 %v1179, %v1178
        %v1207 = vpack.c.b16 %v1181, %v1180
        %v1208 = vpack.c.b16 %v1183, %v1182
        %v1209 = vpack.c.b16 %v1185, %v1184
        %v1210 = vpack.c.b16 %v1187, %v1186
        %v1211 = vpack.c.b16 %v1189, %v1188
        %v1212 = vpack.c.b16 %v1191, %v1190
        %v1213 = vpack.c.b16 %v1193, %v1192
        %v1214 = vpack.c.b16 %v1195, %v1194
        %v1215 = vpack.c.b16 %v1197, %v1196
        %v1216 = vpack.c.b16 %v1199, %v1198
        %v1217 = vpack.c.b16 %v1201, %v1200
        %1218 = vrot.lane.b32.xlu0 %v1202, 8
        %v1219 = vpop.permute.xlu0 %1218
        %1220 = vrot.lane.b32.xlu0 %v1203, 8
        %v1221 = vpop.permute.xlu0 %1220
        %1222 = vrot.lane.b32.xlu0 %v1204, 8
        %v1223 = vpop.permute.xlu0 %1222
        %1224 = vrot.lane.b32.xlu0 %v1205, 8
        %v1225 = vpop.permute.xlu0 %1224
        %1226 = vrot.lane.b32.xlu0 %v1206, 8
        %v1227 = vpop.permute.xlu0 %1226
        %1228 = vrot.lane.b32.xlu0 %v1207, 8
        %v1229 = vpop.permute.xlu0 %1228
        %1230 = vrot.lane.b32.xlu0 %v1208, 8
        %v1231 = vpop.permute.xlu0 %1230
        %1232 = vrot.lane.b32.xlu0 %v1209, 8
        %v1233 = vpop.permute.xlu0 %1232
        %1234 = vrot.lane.b32.xlu0 %v1210, 8
        %v1235 = vpop.permute.xlu0 %1234
        %1236 = vrot.lane.b32.xlu0 %v1211, 8
        %v1237 = vpop.permute.xlu0 %1236
        %1238 = vrot.lane.b32.xlu0 %v1212, 8
        %v1239 = vpop.permute.xlu0 %1238
        %1240 = vrot.lane.b32.xlu0 %v1213, 8
        %v1241 = vpop.permute.xlu0 %1240
        %1242 = vrot.lane.b32.xlu0 %v1214, 8
        %v1243 = vpop.permute.xlu0 %1242
        %1244 = vrot.lane.b32.xlu0 %v1215, 8
        %v1245 = vpop.permute.xlu0 %1244
        %1246 = vrot.lane.b32.xlu0 %v1216, 8
        %v1247 = vpop.permute.xlu0 %1246
        %1248 = vrot.lane.b32.xlu0 %v1217, 8
        %v1249 = vpop.permute.xlu0 %1248
        %vm1266 = vcmask 97344
        %1267 = vst.msk [vmem:[#allocation2] sm:$0xff] %vm1266, %v1219
        %1268 = vst.msk [vmem:[#allocation2 + $0x8] sm:$0xff] %vm1266, %v1221
        %1269 = vst.msk [vmem:[#allocation2 + $0x10] sm:$0xff] %vm1266, %v1223
        %1270 = vst.msk [vmem:[#allocation2 + $0x18] sm:$0xff] %vm1266, %v1225
        %1271 = vst.msk [vmem:[#allocation2 + $0x20] sm:$0xff] %vm1266, %v1227
        %1272 = vst.msk [vmem:[#allocation2 + $0x28] sm:$0xff] %vm1266, %v1229
        %1273 = vst.msk [vmem:[#allocation2 + $0x30] sm:$0xff] %vm1266, %v1231
        %1274 = vst.msk [vmem:[#allocation2 + $0x38] sm:$0xff] %vm1266, %v1233
        %1275 = vst.msk [vmem:[#allocation2 + $0x40] sm:$0xff] %vm1266, %v1235
        %1276 = vst.msk [vmem:[#allocation2 + $0x48] sm:$0xff] %vm1266, %v1237
        %1277 = vst.msk [vmem:[#allocation2 + $0x50] sm:$0xff] %vm1266, %v1239
        %1278 = vst.msk [vmem:[#allocation2 + $0x58] sm:$0xff] %vm1266, %v1241
        %1279 = vst.msk [vmem:[#allocation2 + $0x60] sm:$0xff] %vm1266, %v1243
        %1280 = vst.msk [vmem:[#allocation2 + $0x68] sm:$0xff] %vm1266, %v1245
        %1281 = vst.msk [vmem:[#allocation2 + $0x70] sm:$0xff] %vm1266, %v1247
        %1282 = vst.msk [vmem:[#allocation2 + $0x78] sm:$0xff] %vm1266, %v1249
        %s1283 = scalar_lea.vmem %s259, 12
        %v1284 = vld [vmem:[%s1283] sm:$0xf]
        %v1285 = vld [vmem:[%s1283 + $0x4] sm:$0xf]
        %v1286 = vld [vmem:[%s1283 + $0xc] sm:$0xf]
        %v1287 = vld [vmem:[%s1283 + $0x10] sm:$0xf]
        %v1288 = vld [vmem:[%s1283 + $0x18] sm:$0xf]
        %v1289 = vld [vmem:[%s1283 + $0x1c] sm:$0xf]
        %v1290 = vld [vmem:[%s1283 + $0x24] sm:$0xf]
        %v1291 = vld [vmem:[%s1283 + $0x28] sm:$0xf]
        %v1292 = vld [vmem:[%s1283 + $0x30] sm:$0xf]
        %v1293 = vld [vmem:[%s1283 + $0x34] sm:$0xf]
        %v1294 = vld [vmem:[%s1283 + $0x3c] sm:$0xf]
        %v1295 = vld [vmem:[%s1283 + $0x40] sm:$0xf]
        %v1296 = vld [vmem:[%s1283 + $0x48] sm:$0xf]
        %v1297 = vld [vmem:[%s1283 + $0x4c] sm:$0xf]
        %v1298 = vld [vmem:[%s1283 + $0x54] sm:$0xf]
        %v1299 = vld [vmem:[%s1283 + $0x58] sm:$0xf]
        %v1300 = vld [vmem:[%s1283 + $0x60] sm:$0xf]
        %v1301 = vld [vmem:[%s1283 + $0x64] sm:$0xf]
        %v1302 = vld [vmem:[%s1283 + $0x6c] sm:$0xf]
        %v1303 = vld [vmem:[%s1283 + $0x70] sm:$0xf]
        %v1304 = vld [vmem:[%s1283 + $0x78] sm:$0xf]
        %v1305 = vld [vmem:[%s1283 + $0x7c] sm:$0xf]
        %v1306 = vld [vmem:[%s1283 + $0x84] sm:$0xf]
        %v1307 = vld [vmem:[%s1283 + $0x88] sm:$0xf]
        %v1308 = vld [vmem:[%s1283 + $0x90] sm:$0xf]
        %v1309 = vld [vmem:[%s1283 + $0x94] sm:$0xf]
        %v1310 = vld [vmem:[%s1283 + $0x9c] sm:$0xf]
        %v1311 = vld [vmem:[%s1283 + $0xa0] sm:$0xf]
        %v1312 = vld [vmem:[%s1283 + $0xa8] sm:$0xf]
        %v1313 = vld [vmem:[%s1283 + $0xac] sm:$0xf]
        %v1314 = vld [vmem:[%s1283 + $0xb4] sm:$0xf]
        %v1315 = vld [vmem:[%s1283 + $0xb8] sm:$0xf]
        %v1348 = vunpack.c.l.b16 %v1284
        %v1349 = vunpack.c.l.b16 %v1285
        %v1350 = vunpack.c.l.b16 %v1286
        %v1351 = vunpack.c.l.b16 %v1287
        %v1352 = vunpack.c.l.b16 %v1288
        %v1353 = vunpack.c.l.b16 %v1289
        %v1354 = vunpack.c.l.b16 %v1290
        %v1355 = vunpack.c.l.b16 %v1291
        %v1356 = vunpack.c.l.b16 %v1292
        %v1357 = vunpack.c.l.b16 %v1293
        %v1358 = vunpack.c.l.b16 %v1294
        %v1359 = vunpack.c.l.b16 %v1295
        %v1360 = vunpack.c.l.b16 %v1296
        %v1361 = vunpack.c.l.b16 %v1297
        %v1362 = vunpack.c.l.b16 %v1298
        %v1363 = vunpack.c.l.b16 %v1299
        %v1364 = vunpack.c.l.b16 %v1300
        %v1365 = vunpack.c.l.b16 %v1301
        %v1366 = vunpack.c.l.b16 %v1302
        %v1367 = vunpack.c.l.b16 %v1303
        %v1368 = vunpack.c.l.b16 %v1304
        %v1369 = vunpack.c.l.b16 %v1305
        %v1370 = vunpack.c.l.b16 %v1306
        %v1371 = vunpack.c.l.b16 %v1307
        %v1372 = vunpack.c.l.b16 %v1308
        %v1373 = vunpack.c.l.b16 %v1309
        %v1374 = vunpack.c.l.b16 %v1310
        %v1375 = vunpack.c.l.b16 %v1311
        %v1376 = vunpack.c.l.b16 %v1312
        %v1377 = vunpack.c.l.b16 %v1313
        %v1378 = vunpack.c.l.b16 %v1314
        %v1379 = vunpack.c.l.b16 %v1315
        %v1380 = vpack.c.b16 %v1349, %v1348
        %v1381 = vpack.c.b16 %v1351, %v1350
        %v1382 = vpack.c.b16 %v1353, %v1352
        %v1383 = vpack.c.b16 %v1355, %v1354
        %v1384 = vpack.c.b16 %v1357, %v1356
        %v1385 = vpack.c.b16 %v1359, %v1358
        %v1386 = vpack.c.b16 %v1361, %v1360
        %v1387 = vpack.c.b16 %v1363, %v1362
        %v1388 = vpack.c.b16 %v1365, %v1364
        %v1389 = vpack.c.b16 %v1367, %v1366
        %v1390 = vpack.c.b16 %v1369, %v1368
        %v1391 = vpack.c.b16 %v1371, %v1370
        %v1392 = vpack.c.b16 %v1373, %v1372
        %v1393 = vpack.c.b16 %v1375, %v1374
        %v1394 = vpack.c.b16 %v1377, %v1376
        %v1395 = vpack.c.b16 %v1379, %v1378
        %1396 = vrot.lane.b32.xlu0 %v1380, 12
        %v1397 = vpop.permute.xlu0 %1396
        %1398 = vrot.lane.b32.xlu0 %v1381, 12
        %v1399 = vpop.permute.xlu0 %1398
        %1400 = vrot.lane.b32.xlu0 %v1382, 12
        %v1401 = vpop.permute.xlu0 %1400
        %1402 = vrot.lane.b32.xlu0 %v1383, 12
        %v1403 = vpop.permute.xlu0 %1402
        %1404 = vrot.lane.b32.xlu0 %v1384, 12
        %v1405 = vpop.permute.xlu0 %1404
        %1406 = vrot.lane.b32.xlu0 %v1385, 12
        %v1407 = vpop.permute.xlu0 %1406
        %1408 = vrot.lane.b32.xlu0 %v1386, 12
        %v1409 = vpop.permute.xlu0 %1408
        %1410 = vrot.lane.b32.xlu0 %v1387, 12
        %v1411 = vpop.permute.xlu0 %1410
        %1412 = vrot.lane.b32.xlu0 %v1388, 12
        %v1413 = vpop.permute.xlu0 %1412
        %1414 = vrot.lane.b32.xlu0 %v1389, 12
        %v1415 = vpop.permute.xlu0 %1414
        %1416 = vrot.lane.b32.xlu0 %v1390, 12
        %v1417 = vpop.permute.xlu0 %1416
        %1418 = vrot.lane.b32.xlu0 %v1391, 12
        %v1419 = vpop.permute.xlu0 %1418
        %1420 = vrot.lane.b32.xlu0 %v1392, 12
        %v1421 = vpop.permute.xlu0 %1420
        %1422 = vrot.lane.b32.xlu0 %v1393, 12
        %v1423 = vpop.permute.xlu0 %1422
        %1424 = vrot.lane.b32.xlu0 %v1394, 12
        %v1425 = vpop.permute.xlu0 %1424
        %1426 = vrot.lane.b32.xlu0 %v1395, 12
        %v1427 = vpop.permute.xlu0 %1426
        %vm1444 = vcmask 130144
        %1445 = vst.msk [vmem:[#allocation2] sm:$0xff] %vm1444, %v1397
        %1446 = vst.msk [vmem:[#allocation2 + $0x8] sm:$0xff] %vm1444, %v1399
        %1447 = vst.msk [vmem:[#allocation2 + $0x10] sm:$0xff] %vm1444, %v1401
        %1448 = vst.msk [vmem:[#allocation2 + $0x18] sm:$0xff] %vm1444, %v1403
        %1449 = vst.msk [vmem:[#allocation2 + $0x20] sm:$0xff] %vm1444, %v1405
        %1450 = vst.msk [vmem:[#allocation2 + $0x28] sm:$0xff] %vm1444, %v1407
        %1451 = vst.msk [vmem:[#allocation2 + $0x30] sm:$0xff] %vm1444, %v1409
        %1452 = vst.msk [vmem:[#allocation2 + $0x38] sm:$0xff] %vm1444, %v1411
        %1453 = vst.msk [vmem:[#allocation2 + $0x40] sm:$0xff] %vm1444, %v1413
        %1454 = vst.msk [vmem:[#allocation2 + $0x48] sm:$0xff] %vm1444, %v1415
        %1455 = vst.msk [vmem:[#allocation2 + $0x50] sm:$0xff] %vm1444, %v1417
        %1456 = vst.msk [vmem:[#allocation2 + $0x58] sm:$0xff] %vm1444, %v1419
        %1457 = vst.msk [vmem:[#allocation2 + $0x60] sm:$0xff] %vm1444, %v1421
        %1458 = vst.msk [vmem:[#allocation2 + $0x68] sm:$0xff] %vm1444, %v1423
        %1459 = vst.msk [vmem:[#allocation2 + $0x70] sm:$0xff] %vm1444, %v1425
        %1460 = vst.msk [vmem:[#allocation2 + $0x78] sm:$0xff] %vm1444, %v1427
        %v1461 = vld [vmem:[%s1283] sm:$0xf]
        %v1462 = vld [vmem:[%s1283 + $0x4] sm:$0xf]
        %v1463 = vld [vmem:[%s1283 + $0x8] sm:$0x1]
        %v1464 = vld [vmem:[%s1283 + $0xc] sm:$0xf]
        %v1465 = vld [vmem:[%s1283 + $0x10] sm:$0xf]
        %v1466 = vld [vmem:[%s1283 + $0x14] sm:$0x1]
        %v1467 = vld [vmem:[%s1283 + $0x18] sm:$0xf]
        %v1468 = vld [vmem:[%s1283 + $0x1c] sm:$0xf]
        %v1469 = vld [vmem:[%s1283 + $0x20] sm:$0x1]
        %v1470 = vld [vmem:[%s1283 + $0x24] sm:$0xf]
        %v1471 = vld [vmem:[%s1283 + $0x28] sm:$0xf]
        %v1472 = vld [vmem:[%s1283 + $0x2c] sm:$0x1]
        %v1473 = vld [vmem:[%s1283 + $0x30] sm:$0xf]
        %v1474 = vld [vmem:[%s1283 + $0x34] sm:$0xf]
        %v1475 = vld [vmem:[%s1283 + $0x38] sm:$0x1]
        %v1476 = vld [vmem:[%s1283 + $0x3c] sm:$0xf]
        %v1477 = vld [vmem:[%s1283 + $0x40] sm:$0xf]
        %v1478 = vld [vmem:[%s1283 + $0x44] sm:$0x1]
        %v1479 = vld [vmem:[%s1283 + $0x48] sm:$0xf]
        %v1480 = vld [vmem:[%s1283 + $0x4c] sm:$0xf]
        %v1481 = vld [vmem:[%s1283 + $0x50] sm:$0x1]
        %v1482 = vld [vmem:[%s1283 + $0x54] sm:$0xf]
        %v1483 = vld [vmem:[%s1283 + $0x58] sm:$0xf]
        %v1484 = vld [vmem:[%s1283 + $0x5c] sm:$0x1]
        %v1485 = vld [vmem:[%s1283 + $0x60] sm:$0xf]
        %v1486 = vld [vmem:[%s1283 + $0x64] sm:$0xf]
        %v1487 = vld [vmem:[%s1283 + $0x68] sm:$0x1]
        %v1488 = vld [vmem:[%s1283 + $0x6c] sm:$0xf]
        %v1489 = vld [vmem:[%s1283 + $0x70] sm:$0xf]
        %v1490 = vld [vmem:[%s1283 + $0x74] sm:$0x1]
        %v1491 = vld [vmem:[%s1283 + $0x78] sm:$0xf]
        %v1492 = vld [vmem:[%s1283 + $0x7c] sm:$0xf]
        %v1493 = vld [vmem:[%s1283 + $0x80] sm:$0x1]
        %v1494 = vld [vmem:[%s1283 + $0x84] sm:$0xf]
        %v1495 = vld [vmem:[%s1283 + $0x88] sm:$0xf]
        %v1496 = vld [vmem:[%s1283 + $0x8c] sm:$0x1]
        %v1497 = vld [vmem:[%s1283 + $0x90] sm:$0xf]
        %v1498 = vld [vmem:[%s1283 + $0x94] sm:$0xf]
        %v1499 = vld [vmem:[%s1283 + $0x98] sm:$0x1]
        %v1500 = vld [vmem:[%s1283 + $0x9c] sm:$0xf]
        %v1501 = vld [vmem:[%s1283 + $0xa0] sm:$0xf]
        %v1502 = vld [vmem:[%s1283 + $0xa4] sm:$0x1]
        %v1503 = vld [vmem:[%s1283 + $0xa8] sm:$0xf]
        %v1504 = vld [vmem:[%s1283 + $0xac] sm:$0xf]
        %v1505 = vld [vmem:[%s1283 + $0xb0] sm:$0x1]
        %v1506 = vld [vmem:[%s1283 + $0xb4] sm:$0xf]
        %v1507 = vld [vmem:[%s1283 + $0xb8] sm:$0xf]
        %v1508 = vld [vmem:[%s1283 + $0xbc] sm:$0x1]
        %v1510 = vshrl.u32 %v1461, 16
        %v1512 = vrot.slane %v1510, 4
        %v1513 = vshll.u32 %v1461, 16
        %v1515 = vrot.slane %v1513, 5
        %v1516 = vor.u32 %v1512, %v1515
        %v1517 = vrot.slane %v1516, 4
        %v1519 = vshll.u32 %v1462, 16
        %v1521 = vrot.slane %v1519, 5
        %v1522 = vsel %vm461, %v1517, %v1521
        %v1523 = vshrl.u32 %v1462, 16
        %v1525 = vrot.slane %v1523, 4
        %v1526 = vor.u32 %v1525, %v1521
        %v1527 = vrot.slane %v1526, 4
        %v1529 = vshll.u32 %v1463, 16
        %v1531 = vrot.slane %v1529, 5
        %v1532 = vsel %vm461, %v1527, %v1531
        %v1534 = vshrl.u32 %v1464, 16
        %v1536 = vrot.slane %v1534, 4
        %v1537 = vshll.u32 %v1464, 16
        %v1539 = vrot.slane %v1537, 5
        %v1540 = vor.u32 %v1536, %v1539
        %v1541 = vrot.slane %v1540, 4
        %v1543 = vshll.u32 %v1465, 16
        %v1545 = vrot.slane %v1543, 5
        %v1546 = vsel %vm461, %v1541, %v1545
        %v1547 = vshrl.u32 %v1465, 16
        %v1549 = vrot.slane %v1547, 4
        %v1550 = vor.u32 %v1549, %v1545
        %v1551 = vrot.slane %v1550, 4
        %v1553 = vshll.u32 %v1466, 16
        %v1555 = vrot.slane %v1553, 5
        %v1556 = vsel %vm461, %v1551, %v1555
        %v1558 = vshrl.u32 %v1467, 16
        %v1560 = vrot.slane %v1558, 4
        %v1561 = vshll.u32 %v1467, 16
        %v1563 = vrot.slane %v1561, 5
        %v1564 = vor.u32 %v1560, %v1563
        %v1565 = vrot.slane %v1564, 4
        %v1567 = vshll.u32 %v1468, 16
        %v1569 = vrot.slane %v1567, 5
        %v1570 = vsel %vm461, %v1565, %v1569
        %v1571 = vshrl.u32 %v1468, 16
        %v1573 = vrot.slane %v1571, 4
        %v1574 = vor.u32 %v1573, %v1569
        %v1575 = vrot.slane %v1574, 4
        %v1577 = vshll.u32 %v1469, 16
        %v1579 = vrot.slane %v1577, 5
        %v1580 = vsel %vm461, %v1575, %v1579
        %v1582 = vshrl.u32 %v1470, 16
        %v1584 = vrot.slane %v1582, 4
        %v1585 = vshll.u32 %v1470, 16
        %v1587 = vrot.slane %v1585, 5
        %v1588 = vor.u32 %v1584, %v1587
        %v1589 = vrot.slane %v1588, 4
        %v1591 = vshll.u32 %v1471, 16
        %v1593 = vrot.slane %v1591, 5
        %v1594 = vsel %vm461, %v1589, %v1593
        %v1595 = vshrl.u32 %v1471, 16
        %v1597 = vrot.slane %v1595, 4
        %v1598 = vor.u32 %v1597, %v1593
        %v1599 = vrot.slane %v1598, 4
        %v1601 = vshll.u32 %v1472, 16
        %v1603 = vrot.slane %v1601, 5
        %v1604 = vsel %vm461, %v1599, %v1603
        %v1606 = vshrl.u32 %v1473, 16
        %v1608 = vrot.slane %v1606, 4
        %v1609 = vshll.u32 %v1473, 16
        %v1611 = vrot.slane %v1609, 5
        %v1612 = vor.u32 %v1608, %v1611
        %v1613 = vrot.slane %v1612, 4
        %v1615 = vshll.u32 %v1474, 16
        %v1617 = vrot.slane %v1615, 5
        %v1618 = vsel %vm461, %v1613, %v1617
        %v1619 = vshrl.u32 %v1474, 16
        %v1621 = vrot.slane %v1619, 4
        %v1622 = vor.u32 %v1621, %v1617
        %v1623 = vrot.slane %v1622, 4
        %v1625 = vshll.u32 %v1475, 16
        %v1627 = vrot.slane %v1625, 5
        %v1628 = vsel %vm461, %v1623, %v1627
        %v1630 = vshrl.u32 %v1476, 16
        %v1632 = vrot.slane %v1630, 4
        %v1633 = vshll.u32 %v1476, 16
        %v1635 = vrot.slane %v1633, 5
        %v1636 = vor.u32 %v1632, %v1635
        %v1637 = vrot.slane %v1636, 4
        %v1639 = vshll.u32 %v1477, 16
        %v1641 = vrot.slane %v1639, 5
        %v1642 = vsel %vm461, %v1637, %v1641
        %v1643 = vshrl.u32 %v1477, 16
        %v1645 = vrot.slane %v1643, 4
        %v1646 = vor.u32 %v1645, %v1641
        %v1647 = vrot.slane %v1646, 4
        %v1649 = vshll.u32 %v1478, 16
        %v1651 = vrot.slane %v1649, 5
        %v1652 = vsel %vm461, %v1647, %v1651
        %v1654 = vshrl.u32 %v1479, 16
        %v1656 = vrot.slane %v1654, 4
        %v1657 = vshll.u32 %v1479, 16
        %v1659 = vrot.slane %v1657, 5
        %v1660 = vor.u32 %v1656, %v1659
        %v1661 = vrot.slane %v1660, 4
        %v1663 = vshll.u32 %v1480, 16
        %v1665 = vrot.slane %v1663, 5
        %v1666 = vsel %vm461, %v1661, %v1665
        %v1667 = vshrl.u32 %v1480, 16
        %v1669 = vrot.slane %v1667, 4
        %v1670 = vor.u32 %v1669, %v1665
        %v1671 = vrot.slane %v1670, 4
        %v1673 = vshll.u32 %v1481, 16
        %v1675 = vrot.slane %v1673, 5
        %v1676 = vsel %vm461, %v1671, %v1675
        %v1678 = vshrl.u32 %v1482, 16
        %v1680 = vrot.slane %v1678, 4
        %v1681 = vshll.u32 %v1482, 16
        %v1683 = vrot.slane %v1681, 5
        %v1684 = vor.u32 %v1680, %v1683
        %v1685 = vrot.slane %v1684, 4
        %v1687 = vshll.u32 %v1483, 16
        %v1689 = vrot.slane %v1687, 5
        %v1690 = vsel %vm461, %v1685, %v1689
        %v1691 = vshrl.u32 %v1483, 16
        %v1693 = vrot.slane %v1691, 4
        %v1694 = vor.u32 %v1693, %v1689
        %v1695 = vrot.slane %v1694, 4
        %v1697 = vshll.u32 %v1484, 16
        %v1699 = vrot.slane %v1697, 5
        %v1700 = vsel %vm461, %v1695, %v1699
        %v1702 = vshrl.u32 %v1485, 16
        %v1704 = vrot.slane %v1702, 4
        %v1705 = vshll.u32 %v1485, 16
        %v1707 = vrot.slane %v1705, 5
        %v1708 = vor.u32 %v1704, %v1707
        %v1709 = vrot.slane %v1708, 4
        %v1711 = vshll.u32 %v1486, 16
        %v1713 = vrot.slane %v1711, 5
        %v1714 = vsel %vm461, %v1709, %v1713
        %v1715 = vshrl.u32 %v1486, 16
        %v1717 = vrot.slane %v1715, 4
        %v1718 = vor.u32 %v1717, %v1713
        %v1719 = vrot.slane %v1718, 4
        %v1721 = vshll.u32 %v1487, 16
        %v1723 = vrot.slane %v1721, 5
        %v1724 = vsel %vm461, %v1719, %v1723
        %v1726 = vshrl.u32 %v1488, 16
        %v1728 = vrot.slane %v1726, 4
        %v1729 = vshll.u32 %v1488, 16
        %v1731 = vrot.slane %v1729, 5
        %v1732 = vor.u32 %v1728, %v1731
        %v1733 = vrot.slane %v1732, 4
        %v1735 = vshll.u32 %v1489, 16
        %v1737 = vrot.slane %v1735, 5
        %v1738 = vsel %vm461, %v1733, %v1737
        %v1739 = vshrl.u32 %v1489, 16
        %v1741 = vrot.slane %v1739, 4
        %v1742 = vor.u32 %v1741, %v1737
        %v1743 = vrot.slane %v1742, 4
        %v1745 = vshll.u32 %v1490, 16
        %v1747 = vrot.slane %v1745, 5
        %v1748 = vsel %vm461, %v1743, %v1747
        %v1750 = vshrl.u32 %v1491, 16
        %v1752 = vrot.slane %v1750, 4
        %v1753 = vshll.u32 %v1491, 16
        %v1755 = vrot.slane %v1753, 5
        %v1756 = vor.u32 %v1752, %v1755
        %v1757 = vrot.slane %v1756, 4
        %v1759 = vshll.u32 %v1492, 16
        %v1761 = vrot.slane %v1759, 5
        %v1762 = vsel %vm461, %v1757, %v1761
        %v1763 = vshrl.u32 %v1492, 16
        %v1765 = vrot.slane %v1763, 4
        %v1766 = vor.u32 %v1765, %v1761
        %v1767 = vrot.slane %v1766, 4
        %v1769 = vshll.u32 %v1493, 16
        %v1771 = vrot.slane %v1769, 5
        %v1772 = vsel %vm461, %v1767, %v1771
        %v1774 = vshrl.u32 %v1494, 16
        %v1776 = vrot.slane %v1774, 4
        %v1777 = vshll.u32 %v1494, 16
        %v1779 = vrot.slane %v1777, 5
        %v1780 = vor.u32 %v1776, %v1779
        %v1781 = vrot.slane %v1780, 4
        %v1783 = vshll.u32 %v1495, 16
        %v1785 = vrot.slane %v1783, 5
        %v1786 = vsel %vm461, %v1781, %v1785
        %v1787 = vshrl.u32 %v1495, 16
        %v1789 = vrot.slane %v1787, 4
        %v1790 = vor.u32 %v1789, %v1785
        %v1791 = vrot.slane %v1790, 4
        %v1793 = vshll.u32 %v1496, 16
        %v1795 = vrot.slane %v1793, 5
        %v1796 = vsel %vm461, %v1791, %v1795
        %v1798 = vshrl.u32 %v1497, 16
        %v1800 = vrot.slane %v1798, 4
        %v1801 = vshll.u32 %v1497, 16
        %v1803 = vrot.slane %v1801, 5
        %v1804 = vor.u32 %v1800, %v1803
        %v1805 = vrot.slane %v1804, 4
        %v1807 = vshll.u32 %v1498, 16
        %v1809 = vrot.slane %v1807, 5
        %v1810 = vsel %vm461, %v1805, %v1809
        %v1811 = vshrl.u32 %v1498, 16
        %v1813 = vrot.slane %v1811, 4
        %v1814 = vor.u32 %v1813, %v1809
        %v1815 = vrot.slane %v1814, 4
        %v1817 = vshll.u32 %v1499, 16
        %v1819 = vrot.slane %v1817, 5
        %v1820 = vsel %vm461, %v1815, %v1819
        %v1822 = vshrl.u32 %v1500, 16
        %v1824 = vrot.slane %v1822, 4
        %v1825 = vshll.u32 %v1500, 16
        %v1827 = vrot.slane %v1825, 5
        %v1828 = vor.u32 %v1824, %v1827
        %v1829 = vrot.slane %v1828, 4
        %v1831 = vshll.u32 %v1501, 16
        %v1833 = vrot.slane %v1831, 5
        %v1834 = vsel %vm461, %v1829, %v1833
        %v1835 = vshrl.u32 %v1501, 16
        %v1837 = vrot.slane %v1835, 4
        %v1838 = vor.u32 %v1837, %v1833
        %v1839 = vrot.slane %v1838, 4
        %v1841 = vshll.u32 %v1502, 16
        %v1843 = vrot.slane %v1841, 5
        %v1844 = vsel %vm461, %v1839, %v1843
        %v1846 = vshrl.u32 %v1503, 16
        %v1848 = vrot.slane %v1846, 4
        %v1849 = vshll.u32 %v1503, 16
        %v1851 = vrot.slane %v1849, 5
        %v1852 = vor.u32 %v1848, %v1851
        %v1853 = vrot.slane %v1852, 4
        %v1855 = vshll.u32 %v1504, 16
        %v1857 = vrot.slane %v1855, 5
        %v1858 = vsel %vm461, %v1853, %v1857
        %v1859 = vshrl.u32 %v1504, 16
        %v1861 = vrot.slane %v1859, 4
        %v1862 = vor.u32 %v1861, %v1857
        %v1863 = vrot.slane %v1862, 4
        %v1865 = vshll.u32 %v1505, 16
        %v1867 = vrot.slane %v1865, 5
        %v1868 = vsel %vm461, %v1863, %v1867
        %v1870 = vshrl.u32 %v1506, 16
        %v1872 = vrot.slane %v1870, 4
        %v1873 = vshll.u32 %v1506, 16
        %v1875 = vrot.slane %v1873, 5
        %v1876 = vor.u32 %v1872, %v1875
        %v1877 = vrot.slane %v1876, 4
        %v1879 = vshll.u32 %v1507, 16
        %v1881 = vrot.slane %v1879, 5
        %v1882 = vsel %vm461, %v1877, %v1881
        %v1883 = vshrl.u32 %v1507, 16
        %v1885 = vrot.slane %v1883, 4
        %v1886 = vor.u32 %v1885, %v1881
        %v1887 = vrot.slane %v1886, 4
        %v1889 = vshll.u32 %v1508, 16
        %v1891 = vrot.slane %v1889, 5
        %v1892 = vsel %vm461, %v1887, %v1891
        %v1893 = vunpack.c.l.b16 %v1522
        %v1894 = vunpack.c.l.b16 %v1532
        %v1895 = vunpack.c.l.b16 %v1546
        %v1896 = vunpack.c.l.b16 %v1556
        %v1897 = vunpack.c.l.b16 %v1570
        %v1898 = vunpack.c.l.b16 %v1580
        %v1899 = vunpack.c.l.b16 %v1594
        %v1900 = vunpack.c.l.b16 %v1604
        %v1901 = vunpack.c.l.b16 %v1618
        %v1902 = vunpack.c.l.b16 %v1628
        %v1903 = vunpack.c.l.b16 %v1642
        %v1904 = vunpack.c.l.b16 %v1652
        %v1905 = vunpack.c.l.b16 %v1666
        %v1906 = vunpack.c.l.b16 %v1676
        %v1907 = vunpack.c.l.b16 %v1690
        %v1908 = vunpack.c.l.b16 %v1700
        %v1909 = vunpack.c.l.b16 %v1714
        %v1910 = vunpack.c.l.b16 %v1724
        %v1911 = vunpack.c.l.b16 %v1738
        %v1912 = vunpack.c.l.b16 %v1748
        %v1913 = vunpack.c.l.b16 %v1762
        %v1914 = vunpack.c.l.b16 %v1772
        %v1915 = vunpack.c.l.b16 %v1786
        %v1916 = vunpack.c.l.b16 %v1796
        %v1917 = vunpack.c.l.b16 %v1810
        %v1918 = vunpack.c.l.b16 %v1820
        %v1919 = vunpack.c.l.b16 %v1834
        %v1920 = vunpack.c.l.b16 %v1844
        %v1921 = vunpack.c.l.b16 %v1858
        %v1922 = vunpack.c.l.b16 %v1868
        %v1923 = vunpack.c.l.b16 %v1882
        %v1924 = vunpack.c.l.b16 %v1892
        %v1925 = vpack.c.b16 %v1894, %v1893
        %v1926 = vpack.c.b16 %v1896, %v1895
        %v1927 = vpack.c.b16 %v1898, %v1897
        %v1928 = vpack.c.b16 %v1900, %v1899
        %v1929 = vpack.c.b16 %v1902, %v1901
        %v1930 = vpack.c.b16 %v1904, %v1903
        %v1931 = vpack.c.b16 %v1906, %v1905
        %v1932 = vpack.c.b16 %v1908, %v1907
        %v1933 = vpack.c.b16 %v1910, %v1909
        %v1934 = vpack.c.b16 %v1912, %v1911
        %v1935 = vpack.c.b16 %v1914, %v1913
        %v1936 = vpack.c.b16 %v1916, %v1915
        %v1937 = vpack.c.b16 %v1918, %v1917
        %v1938 = vpack.c.b16 %v1920, %v1919
        %v1939 = vpack.c.b16 %v1922, %v1921
        %v1940 = vpack.c.b16 %v1924, %v1923
        %1941 = vrot.lane.b32.xlu0 %v1925, 16
        %v1942 = vpop.permute.xlu0 %1941
        %1943 = vrot.lane.b32.xlu0 %v1926, 16
        %v1944 = vpop.permute.xlu0 %1943
        %1945 = vrot.lane.b32.xlu0 %v1927, 16
        %v1946 = vpop.permute.xlu0 %1945
        %1947 = vrot.lane.b32.xlu0 %v1928, 16
        %v1948 = vpop.permute.xlu0 %1947
        %1949 = vrot.lane.b32.xlu0 %v1929, 16
        %v1950 = vpop.permute.xlu0 %1949
        %1951 = vrot.lane.b32.xlu0 %v1930, 16
        %v1952 = vpop.permute.xlu0 %1951
        %1953 = vrot.lane.b32.xlu0 %v1931, 16
        %v1954 = vpop.permute.xlu0 %1953
        %1955 = vrot.lane.b32.xlu0 %v1932, 16
        %v1956 = vpop.permute.xlu0 %1955
        %1957 = vrot.lane.b32.xlu0 %v1933, 16
        %v1958 = vpop.permute.xlu0 %1957
        %1959 = vrot.lane.b32.xlu0 %v1934, 16
        %v1960 = vpop.permute.xlu0 %1959
        %1961 = vrot.lane.b32.xlu0 %v1935, 16
        %v1962 = vpop.permute.xlu0 %1961
        %1963 = vrot.lane.b32.xlu0 %v1936, 16
        %v1964 = vpop.permute.xlu0 %1963
        %1965 = vrot.lane.b32.xlu0 %v1937, 16
        %v1966 = vpop.permute.xlu0 %1965
        %1967 = vrot.lane.b32.xlu0 %v1938, 16
        %v1968 = vpop.permute.xlu0 %1967
        %1969 = vrot.lane.b32.xlu0 %v1939, 16
        %v1970 = vpop.permute.xlu0 %1969
        %1971 = vrot.lane.b32.xlu0 %v1940, 16
        %v1972 = vpop.permute.xlu0 %1971
        %vm1989 = vcmask 162944
        %1990 = vst.msk [vmem:[#allocation2] sm:$0xff] %vm1989, %v1942
        %1991 = vst.msk [vmem:[#allocation2 + $0x8] sm:$0xff] %vm1989, %v1944
        %1992 = vst.msk [vmem:[#allocation2 + $0x10] sm:$0xff] %vm1989, %v1946
        %1993 = vst.msk [vmem:[#allocation2 + $0x18] sm:$0xff] %vm1989, %v1948
        %1994 = vst.msk [vmem:[#allocation2 + $0x20] sm:$0xff] %vm1989, %v1950
        %1995 = vst.msk [vmem:[#allocation2 + $0x28] sm:$0xff] %vm1989, %v1952
        %1996 = vst.msk [vmem:[#allocation2 + $0x30] sm:$0xff] %vm1989, %v1954
        %1997 = vst.msk [vmem:[#allocation2 + $0x38] sm:$0xff] %vm1989, %v1956
        %1998 = vst.msk [vmem:[#allocation2 + $0x40] sm:$0xff] %vm1989, %v1958
        %1999 = vst.msk [vmem:[#allocation2 + $0x48] sm:$0xff] %vm1989, %v1960
        %2000 = vst.msk [vmem:[#allocation2 + $0x50] sm:$0xff] %vm1989, %v1962
        %2001 = vst.msk [vmem:[#allocation2 + $0x58] sm:$0xff] %vm1989, %v1964
        %2002 = vst.msk [vmem:[#allocation2 + $0x60] sm:$0xff] %vm1989, %v1966
        %2003 = vst.msk [vmem:[#allocation2 + $0x68] sm:$0xff] %vm1989, %v1968
        %2004 = vst.msk [vmem:[#allocation2 + $0x70] sm:$0xff] %vm1989, %v1970
        %2005 = vst.msk [vmem:[#allocation2 + $0x78] sm:$0xff] %vm1989, %v1972
        %v2006 = vld [vmem:[%s1283] sm:$0xe]
        %v2007 = vld [vmem:[%s1283 + $0x4] sm:$0xf]
        %v2008 = vld [vmem:[%s1283 + $0x8] sm:$0x1]
        %v2009 = vld [vmem:[%s1283 + $0xc] sm:$0xe]
        %v2010 = vld [vmem:[%s1283 + $0x10] sm:$0xf]
        %v2011 = vld [vmem:[%s1283 + $0x14] sm:$0x1]
        %v2012 = vld [vmem:[%s1283 + $0x18] sm:$0xe]
        %v2013 = vld [vmem:[%s1283 + $0x1c] sm:$0xf]
        %v2014 = vld [vmem:[%s1283 + $0x20] sm:$0x1]
        %v2015 = vld [vmem:[%s1283 + $0x24] sm:$0xe]
        %v2016 = vld [vmem:[%s1283 + $0x28] sm:$0xf]
        %v2017 = vld [vmem:[%s1283 + $0x2c] sm:$0x1]
        %v2018 = vld [vmem:[%s1283 + $0x30] sm:$0xe]
        %v2019 = vld [vmem:[%s1283 + $0x34] sm:$0xf]
        %v2020 = vld [vmem:[%s1283 + $0x38] sm:$0x1]
        %v2021 = vld [vmem:[%s1283 + $0x3c] sm:$0xe]
        %v2022 = vld [vmem:[%s1283 + $0x40] sm:$0xf]
        %v2023 = vld [vmem:[%s1283 + $0x44] sm:$0x1]
        %v2024 = vld [vmem:[%s1283 + $0x48] sm:$0xe]
        %v2025 = vld [vmem:[%s1283 + $0x4c] sm:$0xf]
        %v2026 = vld [vmem:[%s1283 + $0x50] sm:$0x1]
        %v2027 = vld [vmem:[%s1283 + $0x54] sm:$0xe]
        %v2028 = vld [vmem:[%s1283 + $0x58] sm:$0xf]
        %v2029 = vld [vmem:[%s1283 + $0x5c] sm:$0x1]
        %v2030 = vld [vmem:[%s1283 + $0x60] sm:$0xe]
        %v2031 = vld [vmem:[%s1283 + $0x64] sm:$0xf]
        %v2032 = vld [vmem:[%s1283 + $0x68] sm:$0x1]
        %v2033 = vld [vmem:[%s1283 + $0x6c] sm:$0xe]
        %v2034 = vld [vmem:[%s1283 + $0x70] sm:$0xf]
        %v2035 = vld [vmem:[%s1283 + $0x74] sm:$0x1]
        %v2036 = vld [vmem:[%s1283 + $0x78] sm:$0xe]
        %v2037 = vld [vmem:[%s1283 + $0x7c] sm:$0xf]
        %v2038 = vld [vmem:[%s1283 + $0x80] sm:$0x1]
        %v2039 = vld [vmem:[%s1283 + $0x84] sm:$0xe]
        %v2040 = vld [vmem:[%s1283 + $0x88] sm:$0xf]
        %v2041 = vld [vmem:[%s1283 + $0x8c] sm:$0x1]
        %v2042 = vld [vmem:[%s1283 + $0x90] sm:$0xe]
        %v2043 = vld [vmem:[%s1283 + $0x94] sm:$0xf]
        %v2044 = vld [vmem:[%s1283 + $0x98] sm:$0x1]
        %v2045 = vld [vmem:[%s1283 + $0x9c] sm:$0xe]
        %v2046 = vld [vmem:[%s1283 + $0xa0] sm:$0xf]
        %v2047 = vld [vmem:[%s1283 + $0xa4] sm:$0x1]
        %v2048 = vld [vmem:[%s1283 + $0xa8] sm:$0xe]
        %v2049 = vld [vmem:[%s1283 + $0xac] sm:$0xf]
        %v2050 = vld [vmem:[%s1283 + $0xb0] sm:$0x1]
        %v2051 = vld [vmem:[%s1283 + $0xb4] sm:$0xe]
        %v2052 = vld [vmem:[%s1283 + $0xb8] sm:$0xf]
        %v2053 = vld [vmem:[%s1283 + $0xbc] sm:$0x1]
        %v2102 = vrot.slane %v2006, 5
        %v2103 = vrot.slane %v2102, 4
        %v2104 = vrot.slane %v2007, 5
        %v2105 = vsel %vm1057, %v2103, %v2104
        %v2106 = vrot.slane %v2104, 4
        %v2107 = vrot.slane %v2008, 5
        %v2108 = vsel %vm1057, %v2106, %v2107
        %v2109 = vrot.slane %v2009, 5
        %v2110 = vrot.slane %v2109, 4
        %v2111 = vrot.slane %v2010, 5
        %v2112 = vsel %vm1057, %v2110, %v2111
        %v2113 = vrot.slane %v2111, 4
        %v2114 = vrot.slane %v2011, 5
        %v2115 = vsel %vm1057, %v2113, %v2114
        %v2116 = vrot.slane %v2012, 5
        %v2117 = vrot.slane %v2116, 4
        %v2118 = vrot.slane %v2013, 5
        %v2119 = vsel %vm1057, %v2117, %v2118
        %v2120 = vrot.slane %v2118, 4
        %v2121 = vrot.slane %v2014, 5
        %v2122 = vsel %vm1057, %v2120, %v2121
        %v2123 = vrot.slane %v2015, 5
        %v2124 = vrot.slane %v2123, 4
        %v2125 = vrot.slane %v2016, 5
        %v2126 = vsel %vm1057, %v2124, %v2125
        %v2127 = vrot.slane %v2125, 4
        %v2128 = vrot.slane %v2017, 5
        %v2129 = vsel %vm1057, %v2127, %v2128
        %v2130 = vrot.slane %v2018, 5
        %v2131 = vrot.slane %v2130, 4
        %v2132 = vrot.slane %v2019, 5
        %v2133 = vsel %vm1057, %v2131, %v2132
        %v2134 = vrot.slane %v2132, 4
        %v2135 = vrot.slane %v2020, 5
        %v2136 = vsel %vm1057, %v2134, %v2135
        %v2137 = vrot.slane %v2021, 5
        %v2138 = vrot.slane %v2137, 4
        %v2139 = vrot.slane %v2022, 5
        %v2140 = vsel %vm1057, %v2138, %v2139
        %v2141 = vrot.slane %v2139, 4
        %v2142 = vrot.slane %v2023, 5
        %v2143 = vsel %vm1057, %v2141, %v2142
        %v2144 = vrot.slane %v2024, 5
        %v2145 = vrot.slane %v2144, 4
        %v2146 = vrot.slane %v2025, 5
        %v2147 = vsel %vm1057, %v2145, %v2146
        %v2148 = vrot.slane %v2146, 4
        %v2149 = vrot.slane %v2026, 5
        %v2150 = vsel %vm1057, %v2148, %v2149
        %v2151 = vrot.slane %v2027, 5
        %v2152 = vrot.slane %v2151, 4
        %v2153 = vrot.slane %v2028, 5
        %v2154 = vsel %vm1057, %v2152, %v2153
        %v2155 = vrot.slane %v2153, 4
        %v2156 = vrot.slane %v2029, 5
        %v2157 = vsel %vm1057, %v2155, %v2156
        %v2158 = vrot.slane %v2030, 5
        %v2159 = vrot.slane %v2158, 4
        %v2160 = vrot.slane %v2031, 5
        %v2161 = vsel %vm1057, %v2159, %v2160
        %v2162 = vrot.slane %v2160, 4
        %v2163 = vrot.slane %v2032, 5
        %v2164 = vsel %vm1057, %v2162, %v2163
        %v2165 = vrot.slane %v2033, 5
        %v2166 = vrot.slane %v2165, 4
        %v2167 = vrot.slane %v2034, 5
        %v2168 = vsel %vm1057, %v2166, %v2167
        %v2169 = vrot.slane %v2167, 4
        %v2170 = vrot.slane %v2035, 5
        %v2171 = vsel %vm1057, %v2169, %v2170
        %v2172 = vrot.slane %v2036, 5
        %v2173 = vrot.slane %v2172, 4
        %v2174 = vrot.slane %v2037, 5
        %v2175 = vsel %vm1057, %v2173, %v2174
        %v2176 = vrot.slane %v2174, 4
        %v2177 = vrot.slane %v2038, 5
        %v2178 = vsel %vm1057, %v2176, %v2177
        %v2179 = vrot.slane %v2039, 5
        %v2180 = vrot.slane %v2179, 4
        %v2181 = vrot.slane %v2040, 5
        %v2182 = vsel %vm1057, %v2180, %v2181
        %v2183 = vrot.slane %v2181, 4
        %v2184 = vrot.slane %v2041, 5
        %v2185 = vsel %vm1057, %v2183, %v2184
        %v2186 = vrot.slane %v2042, 5
        %v2187 = vrot.slane %v2186, 4
        %v2188 = vrot.slane %v2043, 5
        %v2189 = vsel %vm1057, %v2187, %v2188
        %v2190 = vrot.slane %v2188, 4
        %v2191 = vrot.slane %v2044, 5
        %v2192 = vsel %vm1057, %v2190, %v2191
        %v2193 = vrot.slane %v2045, 5
        %v2194 = vrot.slane %v2193, 4
        %v2195 = vrot.slane %v2046, 5
        %v2196 = vsel %vm1057, %v2194, %v2195
        %v2197 = vrot.slane %v2195, 4
        %v2198 = vrot.slane %v2047, 5
        %v2199 = vsel %vm1057, %v2197, %v2198
        %v2200 = vrot.slane %v2048, 5
        %v2201 = vrot.slane %v2200, 4
        %v2202 = vrot.slane %v2049, 5
        %v2203 = vsel %vm1057, %v2201, %v2202
        %v2204 = vrot.slane %v2202, 4
        %v2205 = vrot.slane %v2050, 5
        %v2206 = vsel %vm1057, %v2204, %v2205
        %v2207 = vrot.slane %v2051, 5
        %v2208 = vrot.slane %v2207, 4
        %v2209 = vrot.slane %v2052, 5
        %v2210 = vsel %vm1057, %v2208, %v2209
        %v2211 = vrot.slane %v2209, 4
        %v2212 = vrot.slane %v2053, 5
        %v2213 = vsel %vm1057, %v2211, %v2212
        %v2214 = vunpack.c.l.b16 %v2105
        %v2215 = vunpack.c.l.b16 %v2108
        %v2216 = vunpack.c.l.b16 %v2112
        %v2217 = vunpack.c.l.b16 %v2115
        %v2218 = vunpack.c.l.b16 %v2119
        %v2219 = vunpack.c.l.b16 %v2122
        %v2220 = vunpack.c.l.b16 %v2126
        %v2221 = vunpack.c.l.b16 %v2129
        %v2222 = vunpack.c.l.b16 %v2133
        %v2223 = vunpack.c.l.b16 %v2136
        %v2224 = vunpack.c.l.b16 %v2140
        %v2225 = vunpack.c.l.b16 %v2143
        %v2226 = vunpack.c.l.b16 %v2147
        %v2227 = vunpack.c.l.b16 %v2150
        %v2228 = vunpack.c.l.b16 %v2154
        %v2229 = vunpack.c.l.b16 %v2157
        %v2230 = vunpack.c.l.b16 %v2161
        %v2231 = vunpack.c.l.b16 %v2164
        %v2232 = vunpack.c.l.b16 %v2168
        %v2233 = vunpack.c.l.b16 %v2171
        %v2234 = vunpack.c.l.b16 %v2175
        %v2235 = vunpack.c.l.b16 %v2178
        %v2236 = vunpack.c.l.b16 %v2182
        %v2237 = vunpack.c.l.b16 %v2185
        %v2238 = vunpack.c.l.b16 %v2189
        %v2239 = vunpack.c.l.b16 %v2192
        %v2240 = vunpack.c.l.b16 %v2196
        %v2241 = vunpack.c.l.b16 %v2199
        %v2242 = vunpack.c.l.b16 %v2203
        %v2243 = vunpack.c.l.b16 %v2206
        %v2244 = vunpack.c.l.b16 %v2210
        %v2245 = vunpack.c.l.b16 %v2213
        %v2246 = vpack.c.b16 %v2215, %v2214
        %v2247 = vpack.c.b16 %v2217, %v2216
        %v2248 = vpack.c.b16 %v2219, %v2218
        %v2249 = vpack.c.b16 %v2221, %v2220
        %v2250 = vpack.c.b16 %v2223, %v2222
        %v2251 = vpack.c.b16 %v2225, %v2224
        %v2252 = vpack.c.b16 %v2227, %v2226
        %v2253 = vpack.c.b16 %v2229, %v2228
        %v2254 = vpack.c.b16 %v2231, %v2230
        %v2255 = vpack.c.b16 %v2233, %v2232
        %v2256 = vpack.c.b16 %v2235, %v2234
        %v2257 = vpack.c.b16 %v2237, %v2236
        %v2258 = vpack.c.b16 %v2239, %v2238
        %v2259 = vpack.c.b16 %v2241, %v2240
        %v2260 = vpack.c.b16 %v2243, %v2242
        %v2261 = vpack.c.b16 %v2245, %v2244
        %2262 = vrot.lane.b32.xlu0 %v2246, 20
        %v2263 = vpop.permute.xlu0 %2262
        %2264 = vrot.lane.b32.xlu0 %v2247, 20
        %v2265 = vpop.permute.xlu0 %2264
        %2266 = vrot.lane.b32.xlu0 %v2248, 20
        %v2267 = vpop.permute.xlu0 %2266
        %2268 = vrot.lane.b32.xlu0 %v2249, 20
        %v2269 = vpop.permute.xlu0 %2268
        %2270 = vrot.lane.b32.xlu0 %v2250, 20
        %v2271 = vpop.permute.xlu0 %2270
        %2272 = vrot.lane.b32.xlu0 %v2251, 20
        %v2273 = vpop.permute.xlu0 %2272
        %2274 = vrot.lane.b32.xlu0 %v2252, 20
        %v2275 = vpop.permute.xlu0 %2274
        %2276 = vrot.lane.b32.xlu0 %v2253, 20
        %v2277 = vpop.permute.xlu0 %2276
        %2278 = vrot.lane.b32.xlu0 %v2254, 20
        %v2279 = vpop.permute.xlu0 %2278
        %2280 = vrot.lane.b32.xlu0 %v2255, 20
        %v2281 = vpop.permute.xlu0 %2280
        %2282 = vrot.lane.b32.xlu0 %v2256, 20
        %v2283 = vpop.permute.xlu0 %2282
        %2284 = vrot.lane.b32.xlu0 %v2257, 20
        %v2285 = vpop.permute.xlu0 %2284
        %2286 = vrot.lane.b32.xlu0 %v2258, 20
        %v2287 = vpop.permute.xlu0 %2286
        %2288 = vrot.lane.b32.xlu0 %v2259, 20
        %v2289 = vpop.permute.xlu0 %2288
        %2290 = vrot.lane.b32.xlu0 %v2260, 20
        %v2291 = vpop.permute.xlu0 %2290
        %2292 = vrot.lane.b32.xlu0 %v2261, 20
        %v2293 = vpop.permute.xlu0 %2292
        %vm2310 = vcmask 195744
        %2311 = vst.msk [vmem:[#allocation2] sm:$0xff] %vm2310, %v2263
        %2312 = vst.msk [vmem:[#allocation2 + $0x8] sm:$0xff] %vm2310, %v2265
        %2313 = vst.msk [vmem:[#allocation2 + $0x10] sm:$0xff] %vm2310, %v2267
        %2314 = vst.msk [vmem:[#allocation2 + $0x18] sm:$0xff] %vm2310, %v2269
        %2315 = vst.msk [vmem:[#allocation2 + $0x20] sm:$0xff] %vm2310, %v2271
        %2316 = vst.msk [vmem:[#allocation2 + $0x28] sm:$0xff] %vm2310, %v2273
        %2317 = vst.msk [vmem:[#allocation2 + $0x30] sm:$0xff] %vm2310, %v2275
        %2318 = vst.msk [vmem:[#allocation2 + $0x38] sm:$0xff] %vm2310, %v2277
        %2319 = vst.msk [vmem:[#allocation2 + $0x40] sm:$0xff] %vm2310, %v2279
        %2320 = vst.msk [vmem:[#allocation2 + $0x48] sm:$0xff] %vm2310, %v2281
        %2321 = vst.msk [vmem:[#allocation2 + $0x50] sm:$0xff] %vm2310, %v2283
        %2322 = vst.msk [vmem:[#allocation2 + $0x58] sm:$0xff] %vm2310, %v2285
        %2323 = vst.msk [vmem:[#allocation2 + $0x60] sm:$0xff] %vm2310, %v2287
        %2324 = vst.msk [vmem:[#allocation2 + $0x68] sm:$0xff] %vm2310, %v2289
        %2325 = vst.msk [vmem:[#allocation2 + $0x70] sm:$0xff] %vm2310, %v2291
        %2326 = vst.msk [vmem:[#allocation2 + $0x78] sm:$0xff] %vm2310, %v2293
        %s2327 = scalar_lea.vmem %s259, 24
        %v2328 = vld [vmem:[%s2327] sm:$0xf]
        %v2329 = vld [vmem:[%s2327 + $0x4] sm:$0xf]
        %v2330 = vld [vmem:[%s2327 + $0xc] sm:$0xf]
        %v2331 = vld [vmem:[%s2327 + $0x10] sm:$0xf]
        %v2332 = vld [vmem:[%s2327 + $0x18] sm:$0xf]
        %v2333 = vld [vmem:[%s2327 + $0x1c] sm:$0xf]
        %v2334 = vld [vmem:[%s2327 + $0x24] sm:$0xf]
        %v2335 = vld [vmem:[%s2327 + $0x28] sm:$0xf]
        %v2336 = vld [vmem:[%s2327 + $0x30] sm:$0xf]
        %v2337 = vld [vmem:[%s2327 + $0x34] sm:$0xf]
        %v2338 = vld [vmem:[%s2327 + $0x3c] sm:$0xf]
        %v2339 = vld [vmem:[%s2327 + $0x40] sm:$0xf]
        %v2340 = vld [vmem:[%s2327 + $0x48] sm:$0xf]
        %v2341 = vld [vmem:[%s2327 + $0x4c] sm:$0xf]
        %v2342 = vld [vmem:[%s2327 + $0x54] sm:$0xf]
        %v2343 = vld [vmem:[%s2327 + $0x58] sm:$0xf]
        %v2344 = vld [vmem:[%s2327 + $0x60] sm:$0xf]
        %v2345 = vld [vmem:[%s2327 + $0x64] sm:$0xf]
        %v2346 = vld [vmem:[%s2327 + $0x6c] sm:$0xf]
        %v2347 = vld [vmem:[%s2327 + $0x70] sm:$0xf]
        %v2348 = vld [vmem:[%s2327 + $0x78] sm:$0xf]
        %v2349 = vld [vmem:[%s2327 + $0x7c] sm:$0xf]
        %v2350 = vld [vmem:[%s2327 + $0x84] sm:$0xf]
        %v2351 = vld [vmem:[%s2327 + $0x88] sm:$0xf]
        %v2352 = vld [vmem:[%s2327 + $0x90] sm:$0xf]
        %v2353 = vld [vmem:[%s2327 + $0x94] sm:$0xf]
        %v2354 = vld [vmem:[%s2327 + $0x9c] sm:$0xf]
        %v2355 = vld [vmem:[%s2327 + $0xa0] sm:$0xf]
        %v2356 = vld [vmem:[%s2327 + $0xa8] sm:$0xf]
        %v2357 = vld [vmem:[%s2327 + $0xac] sm:$0xf]
        %v2358 = vld [vmem:[%s2327 + $0xb4] sm:$0xf]
        %v2359 = vld [vmem:[%s2327 + $0xb8] sm:$0xf]
        %v2392 = vunpack.c.l.b16 %v2328
        %v2393 = vunpack.c.l.b16 %v2329
        %v2394 = vunpack.c.l.b16 %v2330
        %v2395 = vunpack.c.l.b16 %v2331
        %v2396 = vunpack.c.l.b16 %v2332
        %v2397 = vunpack.c.l.b16 %v2333
        %v2398 = vunpack.c.l.b16 %v2334
        %v2399 = vunpack.c.l.b16 %v2335
        %v2400 = vunpack.c.l.b16 %v2336
        %v2401 = vunpack.c.l.b16 %v2337
        %v2402 = vunpack.c.l.b16 %v2338
        %v2403 = vunpack.c.l.b16 %v2339
        %v2404 = vunpack.c.l.b16 %v2340
        %v2405 = vunpack.c.l.b16 %v2341
        %v2406 = vunpack.c.l.b16 %v2342
        %v2407 = vunpack.c.l.b16 %v2343
        %v2408 = vunpack.c.l.b16 %v2344
        %v2409 = vunpack.c.l.b16 %v2345
        %v2410 = vunpack.c.l.b16 %v2346
        %v2411 = vunpack.c.l.b16 %v2347
        %v2412 = vunpack.c.l.b16 %v2348
        %v2413 = vunpack.c.l.b16 %v2349
        %v2414 = vunpack.c.l.b16 %v2350
        %v2415 = vunpack.c.l.b16 %v2351
        %v2416 = vunpack.c.l.b16 %v2352
        %v2417 = vunpack.c.l.b16 %v2353
        %v2418 = vunpack.c.l.b16 %v2354
        %v2419 = vunpack.c.l.b16 %v2355
        %v2420 = vunpack.c.l.b16 %v2356
        %v2421 = vunpack.c.l.b16 %v2357
        %v2422 = vunpack.c.l.b16 %v2358
        %v2423 = vunpack.c.l.b16 %v2359
        %v2424 = vpack.c.b16 %v2393, %v2392
        %v2425 = vpack.c.b16 %v2395, %v2394
        %v2426 = vpack.c.b16 %v2397, %v2396
        %v2427 = vpack.c.b16 %v2399, %v2398
        %v2428 = vpack.c.b16 %v2401, %v2400
        %v2429 = vpack.c.b16 %v2403, %v2402
        %v2430 = vpack.c.b16 %v2405, %v2404
        %v2431 = vpack.c.b16 %v2407, %v2406
        %v2432 = vpack.c.b16 %v2409, %v2408
        %v2433 = vpack.c.b16 %v2411, %v2410
        %v2434 = vpack.c.b16 %v2413, %v2412
        %v2435 = vpack.c.b16 %v2415, %v2414
        %v2436 = vpack.c.b16 %v2417, %v2416
        %v2437 = vpack.c.b16 %v2419, %v2418
        %v2438 = vpack.c.b16 %v2421, %v2420
        %v2439 = vpack.c.b16 %v2423, %v2422
        %2440 = vrot.lane.b32.xlu0 %v2424, 24
        %v2441 = vpop.permute.xlu0 %2440
        %2442 = vrot.lane.b32.xlu0 %v2425, 24
        %v2443 = vpop.permute.xlu0 %2442
        %2444 = vrot.lane.b32.xlu0 %v2426, 24
        %v2445 = vpop.permute.xlu0 %2444
        %2446 = vrot.lane.b32.xlu0 %v2427, 24
        %v2447 = vpop.permute.xlu0 %2446
        %2448 = vrot.lane.b32.xlu0 %v2428, 24
        %v2449 = vpop.permute.xlu0 %2448
        %2450 = vrot.lane.b32.xlu0 %v2429, 24
        %v2451 = vpop.permute.xlu0 %2450
        %2452 = vrot.lane.b32.xlu0 %v2430, 24
        %v2453 = vpop.permute.xlu0 %2452
        %2454 = vrot.lane.b32.xlu0 %v2431, 24
        %v2455 = vpop.permute.xlu0 %2454
        %2456 = vrot.lane.b32.xlu0 %v2432, 24
        %v2457 = vpop.permute.xlu0 %2456
        %2458 = vrot.lane.b32.xlu0 %v2433, 24
        %v2459 = vpop.permute.xlu0 %2458
        %2460 = vrot.lane.b32.xlu0 %v2434, 24
        %v2461 = vpop.permute.xlu0 %2460
        %2462 = vrot.lane.b32.xlu0 %v2435, 24
        %v2463 = vpop.permute.xlu0 %2462
        %2464 = vrot.lane.b32.xlu0 %v2436, 24
        %v2465 = vpop.permute.xlu0 %2464
        %2466 = vrot.lane.b32.xlu0 %v2437, 24
        %v2467 = vpop.permute.xlu0 %2466
        %2468 = vrot.lane.b32.xlu0 %v2438, 24
        %v2469 = vpop.permute.xlu0 %2468
        %2470 = vrot.lane.b32.xlu0 %v2439, 24
        %v2471 = vpop.permute.xlu0 %2470
        %vm2488 = vcmask 228544
        %2489 = vst.msk [vmem:[#allocation2] sm:$0xff] %vm2488, %v2441
        %2490 = vst.msk [vmem:[#allocation2 + $0x8] sm:$0xff] %vm2488, %v2443
        %2491 = vst.msk [vmem:[#allocation2 + $0x10] sm:$0xff] %vm2488, %v2445
        %2492 = vst.msk [vmem:[#allocation2 + $0x18] sm:$0xff] %vm2488, %v2447
        %2493 = vst.msk [vmem:[#allocation2 + $0x20] sm:$0xff] %vm2488, %v2449
        %2494 = vst.msk [vmem:[#allocation2 + $0x28] sm:$0xff] %vm2488, %v2451
        %2495 = vst.msk [vmem:[#allocation2 + $0x30] sm:$0xff] %vm2488, %v2453
        %2496 = vst.msk [vmem:[#allocation2 + $0x38] sm:$0xff] %vm2488, %v2455
        %2497 = vst.msk [vmem:[#allocation2 + $0x40] sm:$0xff] %vm2488, %v2457
        %2498 = vst.msk [vmem:[#allocation2 + $0x48] sm:$0xff] %vm2488, %v2459
        %2499 = vst.msk [vmem:[#allocation2 + $0x50] sm:$0xff] %vm2488, %v2461
        %2500 = vst.msk [vmem:[#allocation2 + $0x58] sm:$0xff] %vm2488, %v2463
        %2501 = vst.msk [vmem:[#allocation2 + $0x60] sm:$0xff] %vm2488, %v2465
        %2502 = vst.msk [vmem:[#allocation2 + $0x68] sm:$0xff] %vm2488, %v2467
        %2503 = vst.msk [vmem:[#allocation2 + $0x70] sm:$0xff] %vm2488, %v2469
        %2504 = vst.msk [vmem:[#allocation2 + $0x78] sm:$0xff] %vm2488, %v2471
        %v2505 = vld [vmem:[%s2327] sm:$0xf]
        %v2506 = vld [vmem:[%s2327 + $0x4] sm:$0xf]
        %v2507 = vld [vmem:[%s2327 + $0x8] sm:$0x1]
        %v2508 = vld [vmem:[%s2327 + $0xc] sm:$0xf]
        %v2509 = vld [vmem:[%s2327 + $0x10] sm:$0xf]
        %v2510 = vld [vmem:[%s2327 + $0x14] sm:$0x1]
        %v2511 = vld [vmem:[%s2327 + $0x18] sm:$0xf]
        %v2512 = vld [vmem:[%s2327 + $0x1c] sm:$0xf]
        %v2513 = vld [vmem:[%s2327 + $0x20] sm:$0x1]
        %v2514 = vld [vmem:[%s2327 + $0x24] sm:$0xf]
        %v2515 = vld [vmem:[%s2327 + $0x28] sm:$0xf]
        %v2516 = vld [vmem:[%s2327 + $0x2c] sm:$0x1]
        %v2517 = vld [vmem:[%s2327 + $0x30] sm:$0xf]
        %v2518 = vld [vmem:[%s2327 + $0x34] sm:$0xf]
        %v2519 = vld [vmem:[%s2327 + $0x38] sm:$0x1]
        %v2520 = vld [vmem:[%s2327 + $0x3c] sm:$0xf]
        %v2521 = vld [vmem:[%s2327 + $0x40] sm:$0xf]
        %v2522 = vld [vmem:[%s2327 + $0x44] sm:$0x1]
        %v2523 = vld [vmem:[%s2327 + $0x48] sm:$0xf]
        %v2524 = vld [vmem:[%s2327 + $0x4c] sm:$0xf]
        %v2525 = vld [vmem:[%s2327 + $0x50] sm:$0x1]
        %v2526 = vld [vmem:[%s2327 + $0x54] sm:$0xf]
        %v2527 = vld [vmem:[%s2327 + $0x58] sm:$0xf]
        %v2528 = vld [vmem:[%s2327 + $0x5c] sm:$0x1]
        %v2529 = vld [vmem:[%s2327 + $0x60] sm:$0xf]
        %v2530 = vld [vmem:[%s2327 + $0x64] sm:$0xf]
        %v2531 = vld [vmem:[%s2327 + $0x68] sm:$0x1]
        %v2532 = vld [vmem:[%s2327 + $0x6c] sm:$0xf]
        %v2533 = vld [vmem:[%s2327 + $0x70] sm:$0xf]
        %v2534 = vld [vmem:[%s2327 + $0x74] sm:$0x1]
        %v2535 = vld [vmem:[%s2327 + $0x78] sm:$0xf]
        %v2536 = vld [vmem:[%s2327 + $0x7c] sm:$0xf]
        %v2537 = vld [vmem:[%s2327 + $0x80] sm:$0x1]
        %v2538 = vld [vmem:[%s2327 + $0x84] sm:$0xf]
        %v2539 = vld [vmem:[%s2327 + $0x88] sm:$0xf]
        %v2540 = vld [vmem:[%s2327 + $0x8c] sm:$0x1]
        %v2541 = vld [vmem:[%s2327 + $0x90] sm:$0xf]
        %v2542 = vld [vmem:[%s2327 + $0x94] sm:$0xf]
        %v2543 = vld [vmem:[%s2327 + $0x98] sm:$0x1]
        %v2544 = vld [vmem:[%s2327 + $0x9c] sm:$0xf]
        %v2545 = vld [vmem:[%s2327 + $0xa0] sm:$0xf]
        %v2546 = vld [vmem:[%s2327 + $0xa4] sm:$0x1]
        %v2547 = vld [vmem:[%s2327 + $0xa8] sm:$0xf]
        %v2548 = vld [vmem:[%s2327 + $0xac] sm:$0xf]
        %v2549 = vld [vmem:[%s2327 + $0xb0] sm:$0x1]
        %v2550 = vld [vmem:[%s2327 + $0xb4] sm:$0xf]
        %v2551 = vld [vmem:[%s2327 + $0xb8] sm:$0xf]
        %v2552 = vld [vmem:[%s2327 + $0xbc] sm:$0x1]
        %v2554 = vshrl.u32 %v2505, 16
        %v2556 = vrot.slane %v2554, 4
        %v2557 = vshll.u32 %v2505, 16
        %v2559 = vrot.slane %v2557, 5
        %v2560 = vor.u32 %v2556, %v2559
        %v2561 = vrot.slane %v2560, 4
        %v2563 = vshll.u32 %v2506, 16
        %v2565 = vrot.slane %v2563, 5
        %v2566 = vsel %vm461, %v2561, %v2565
        %v2567 = vshrl.u32 %v2506, 16
        %v2569 = vrot.slane %v2567, 4
        %v2570 = vor.u32 %v2569, %v2565
        %v2571 = vrot.slane %v2570, 4
        %v2573 = vshll.u32 %v2507, 16
        %v2575 = vrot.slane %v2573, 5
        %v2576 = vsel %vm461, %v2571, %v2575
        %v2578 = vshrl.u32 %v2508, 16
        %v2580 = vrot.slane %v2578, 4
        %v2581 = vshll.u32 %v2508, 16
        %v2583 = vrot.slane %v2581, 5
        %v2584 = vor.u32 %v2580, %v2583
        %v2585 = vrot.slane %v2584, 4
        %v2587 = vshll.u32 %v2509, 16
        %v2589 = vrot.slane %v2587, 5
        %v2590 = vsel %vm461, %v2585, %v2589
        %v2591 = vshrl.u32 %v2509, 16
        %v2593 = vrot.slane %v2591, 4
        %v2594 = vor.u32 %v2593, %v2589
        %v2595 = vrot.slane %v2594, 4
        %v2597 = vshll.u32 %v2510, 16
        %v2599 = vrot.slane %v2597, 5
        %v2600 = vsel %vm461, %v2595, %v2599
        %v2602 = vshrl.u32 %v2511, 16
        %v2604 = vrot.slane %v2602, 4
        %v2605 = vshll.u32 %v2511, 16
        %v2607 = vrot.slane %v2605, 5
        %v2608 = vor.u32 %v2604, %v2607
        %v2609 = vrot.slane %v2608, 4
        %v2611 = vshll.u32 %v2512, 16
        %v2613 = vrot.slane %v2611, 5
        %v2614 = vsel %vm461, %v2609, %v2613
        %v2615 = vshrl.u32 %v2512, 16
        %v2617 = vrot.slane %v2615, 4
        %v2618 = vor.u32 %v2617, %v2613
        %v2619 = vrot.slane %v2618, 4
        %v2621 = vshll.u32 %v2513, 16
        %v2623 = vrot.slane %v2621, 5
        %v2624 = vsel %vm461, %v2619, %v2623
        %v2626 = vshrl.u32 %v2514, 16
        %v2628 = vrot.slane %v2626, 4
        %v2629 = vshll.u32 %v2514, 16
        %v2631 = vrot.slane %v2629, 5
        %v2632 = vor.u32 %v2628, %v2631
        %v2633 = vrot.slane %v2632, 4
        %v2635 = vshll.u32 %v2515, 16
        %v2637 = vrot.slane %v2635, 5
        %v2638 = vsel %vm461, %v2633, %v2637
        %v2639 = vshrl.u32 %v2515, 16
        %v2641 = vrot.slane %v2639, 4
        %v2642 = vor.u32 %v2641, %v2637
        %v2643 = vrot.slane %v2642, 4
        %v2645 = vshll.u32 %v2516, 16
        %v2647 = vrot.slane %v2645, 5
        %v2648 = vsel %vm461, %v2643, %v2647
        %v2650 = vshrl.u32 %v2517, 16
        %v2652 = vrot.slane %v2650, 4
        %v2653 = vshll.u32 %v2517, 16
        %v2655 = vrot.slane %v2653, 5
        %v2656 = vor.u32 %v2652, %v2655
        %v2657 = vrot.slane %v2656, 4
        %v2659 = vshll.u32 %v2518, 16
        %v2661 = vrot.slane %v2659, 5
        %v2662 = vsel %vm461, %v2657, %v2661
        %v2663 = vshrl.u32 %v2518, 16
        %v2665 = vrot.slane %v2663, 4
        %v2666 = vor.u32 %v2665, %v2661
        %v2667 = vrot.slane %v2666, 4
        %v2669 = vshll.u32 %v2519, 16
        %v2671 = vrot.slane %v2669, 5
        %v2672 = vsel %vm461, %v2667, %v2671
        %v2674 = vshrl.u32 %v2520, 16
        %v2676 = vrot.slane %v2674, 4
        %v2677 = vshll.u32 %v2520, 16
        %v2679 = vrot.slane %v2677, 5
        %v2680 = vor.u32 %v2676, %v2679
        %v2681 = vrot.slane %v2680, 4
        %v2683 = vshll.u32 %v2521, 16
        %v2685 = vrot.slane %v2683, 5
        %v2686 = vsel %vm461, %v2681, %v2685
        %v2687 = vshrl.u32 %v2521, 16
        %v2689 = vrot.slane %v2687, 4
        %v2690 = vor.u32 %v2689, %v2685
        %v2691 = vrot.slane %v2690, 4
        %v2693 = vshll.u32 %v2522, 16
        %v2695 = vrot.slane %v2693, 5
        %v2696 = vsel %vm461, %v2691, %v2695
        %v2698 = vshrl.u32 %v2523, 16
        %v2700 = vrot.slane %v2698, 4
        %v2701 = vshll.u32 %v2523, 16
        %v2703 = vrot.slane %v2701, 5
        %v2704 = vor.u32 %v2700, %v2703
        %v2705 = vrot.slane %v2704, 4
        %v2707 = vshll.u32 %v2524, 16
        %v2709 = vrot.slane %v2707, 5
        %v2710 = vsel %vm461, %v2705, %v2709
        %v2711 = vshrl.u32 %v2524, 16
        %v2713 = vrot.slane %v2711, 4
        %v2714 = vor.u32 %v2713, %v2709
        %v2715 = vrot.slane %v2714, 4
        %v2717 = vshll.u32 %v2525, 16
        %v2719 = vrot.slane %v2717, 5
        %v2720 = vsel %vm461, %v2715, %v2719
        %v2722 = vshrl.u32 %v2526, 16
        %v2724 = vrot.slane %v2722, 4
        %v2725 = vshll.u32 %v2526, 16
        %v2727 = vrot.slane %v2725, 5
        %v2728 = vor.u32 %v2724, %v2727
        %v2729 = vrot.slane %v2728, 4
        %v2731 = vshll.u32 %v2527, 16
        %v2733 = vrot.slane %v2731, 5
        %v2734 = vsel %vm461, %v2729, %v2733
        %v2735 = vshrl.u32 %v2527, 16
        %v2737 = vrot.slane %v2735, 4
        %v2738 = vor.u32 %v2737, %v2733
        %v2739 = vrot.slane %v2738, 4
        %v2741 = vshll.u32 %v2528, 16
        %v2743 = vrot.slane %v2741, 5
        %v2744 = vsel %vm461, %v2739, %v2743
        %v2746 = vshrl.u32 %v2529, 16
        %v2748 = vrot.slane %v2746, 4
        %v2749 = vshll.u32 %v2529, 16
        %v2751 = vrot.slane %v2749, 5
        %v2752 = vor.u32 %v2748, %v2751
        %v2753 = vrot.slane %v2752, 4
        %v2755 = vshll.u32 %v2530, 16
        %v2757 = vrot.slane %v2755, 5
        %v2758 = vsel %vm461, %v2753, %v2757
        %v2759 = vshrl.u32 %v2530, 16
        %v2761 = vrot.slane %v2759, 4
        %v2762 = vor.u32 %v2761, %v2757
        %v2763 = vrot.slane %v2762, 4
        %v2765 = vshll.u32 %v2531, 16
        %v2767 = vrot.slane %v2765, 5
        %v2768 = vsel %vm461, %v2763, %v2767
        %v2770 = vshrl.u32 %v2532, 16
        %v2772 = vrot.slane %v2770, 4
        %v2773 = vshll.u32 %v2532, 16
        %v2775 = vrot.slane %v2773, 5
        %v2776 = vor.u32 %v2772, %v2775
        %v2777 = vrot.slane %v2776, 4
        %v2779 = vshll.u32 %v2533, 16
        %v2781 = vrot.slane %v2779, 5
        %v2782 = vsel %vm461, %v2777, %v2781
        %v2783 = vshrl.u32 %v2533, 16
        %v2785 = vrot.slane %v2783, 4
        %v2786 = vor.u32 %v2785, %v2781
        %v2787 = vrot.slane %v2786, 4
        %v2789 = vshll.u32 %v2534, 16
        %v2791 = vrot.slane %v2789, 5
        %v2792 = vsel %vm461, %v2787, %v2791
        %v2794 = vshrl.u32 %v2535, 16
        %v2796 = vrot.slane %v2794, 4
        %v2797 = vshll.u32 %v2535, 16
        %v2799 = vrot.slane %v2797, 5
        %v2800 = vor.u32 %v2796, %v2799
        %v2801 = vrot.slane %v2800, 4
        %v2803 = vshll.u32 %v2536, 16
        %v2805 = vrot.slane %v2803, 5
        %v2806 = vsel %vm461, %v2801, %v2805
        %v2807 = vshrl.u32 %v2536, 16
        %v2809 = vrot.slane %v2807, 4
        %v2810 = vor.u32 %v2809, %v2805
        %v2811 = vrot.slane %v2810, 4
        %v2813 = vshll.u32 %v2537, 16
        %v2815 = vrot.slane %v2813, 5
        %v2816 = vsel %vm461, %v2811, %v2815
        %v2818 = vshrl.u32 %v2538, 16
        %v2820 = vrot.slane %v2818, 4
        %v2821 = vshll.u32 %v2538, 16
        %v2823 = vrot.slane %v2821, 5
        %v2824 = vor.u32 %v2820, %v2823
        %v2825 = vrot.slane %v2824, 4
        %v2827 = vshll.u32 %v2539, 16
        %v2829 = vrot.slane %v2827, 5
        %v2830 = vsel %vm461, %v2825, %v2829
        %v2831 = vshrl.u32 %v2539, 16
        %v2833 = vrot.slane %v2831, 4
        %v2834 = vor.u32 %v2833, %v2829
        %v2835 = vrot.slane %v2834, 4
        %v2837 = vshll.u32 %v2540, 16
        %v2839 = vrot.slane %v2837, 5
        %v2840 = vsel %vm461, %v2835, %v2839
        %v2842 = vshrl.u32 %v2541, 16
        %v2844 = vrot.slane %v2842, 4
        %v2845 = vshll.u32 %v2541, 16
        %v2847 = vrot.slane %v2845, 5
        %v2848 = vor.u32 %v2844, %v2847
        %v2849 = vrot.slane %v2848, 4
        %v2851 = vshll.u32 %v2542, 16
        %v2853 = vrot.slane %v2851, 5
        %v2854 = vsel %vm461, %v2849, %v2853
        %v2855 = vshrl.u32 %v2542, 16
        %v2857 = vrot.slane %v2855, 4
        %v2858 = vor.u32 %v2857, %v2853
        %v2859 = vrot.slane %v2858, 4
        %v2861 = vshll.u32 %v2543, 16
        %v2863 = vrot.slane %v2861, 5
        %v2864 = vsel %vm461, %v2859, %v2863
        %v2866 = vshrl.u32 %v2544, 16
        %v2868 = vrot.slane %v2866, 4
        %v2869 = vshll.u32 %v2544, 16
        %v2871 = vrot.slane %v2869, 5
        %v2872 = vor.u32 %v2868, %v2871
        %v2873 = vrot.slane %v2872, 4
        %v2875 = vshll.u32 %v2545, 16
        %v2877 = vrot.slane %v2875, 5
        %v2878 = vsel %vm461, %v2873, %v2877
        %v2879 = vshrl.u32 %v2545, 16
        %v2881 = vrot.slane %v2879, 4
        %v2882 = vor.u32 %v2881, %v2877
        %v2883 = vrot.slane %v2882, 4
        %v2885 = vshll.u32 %v2546, 16
        %v2887 = vrot.slane %v2885, 5
        %v2888 = vsel %vm461, %v2883, %v2887
        %v2890 = vshrl.u32 %v2547, 16
        %v2892 = vrot.slane %v2890, 4
        %v2893 = vshll.u32 %v2547, 16
        %v2895 = vrot.slane %v2893, 5
        %v2896 = vor.u32 %v2892, %v2895
        %v2897 = vrot.slane %v2896, 4
        %v2899 = vshll.u32 %v2548, 16
        %v2901 = vrot.slane %v2899, 5
        %v2902 = vsel %vm461, %v2897, %v2901
        %v2903 = vshrl.u32 %v2548, 16
        %v2905 = vrot.slane %v2903, 4
        %v2906 = vor.u32 %v2905, %v2901
        %v2907 = vrot.slane %v2906, 4
        %v2909 = vshll.u32 %v2549, 16
        %v2911 = vrot.slane %v2909, 5
        %v2912 = vsel %vm461, %v2907, %v2911
        %v2914 = vshrl.u32 %v2550, 16
        %v2916 = vrot.slane %v2914, 4
        %v2917 = vshll.u32 %v2550, 16
        %v2919 = vrot.slane %v2917, 5
        %v2920 = vor.u32 %v2916, %v2919
        %v2921 = vrot.slane %v2920, 4
        %v2923 = vshll.u32 %v2551, 16
        %v2925 = vrot.slane %v2923, 5
        %v2926 = vsel %vm461, %v2921, %v2925
        %v2927 = vshrl.u32 %v2551, 16
        %v2929 = vrot.slane %v2927, 4
        %v2930 = vor.u32 %v2929, %v2925
        %v2931 = vrot.slane %v2930, 4
        %v2933 = vshll.u32 %v2552, 16
        %v2935 = vrot.slane %v2933, 5
        %v2936 = vsel %vm461, %v2931, %v2935
        %v2937 = vunpack.c.l.b16 %v2566
        %v2938 = vunpack.c.l.b16 %v2576
        %v2939 = vunpack.c.l.b16 %v2590
        %v2940 = vunpack.c.l.b16 %v2600
        %v2941 = vunpack.c.l.b16 %v2614
        %v2942 = vunpack.c.l.b16 %v2624
        %v2943 = vunpack.c.l.b16 %v2638
        %v2944 = vunpack.c.l.b16 %v2648
        %v2945 = vunpack.c.l.b16 %v2662
        %v2946 = vunpack.c.l.b16 %v2672
        %v2947 = vunpack.c.l.b16 %v2686
        %v2948 = vunpack.c.l.b16 %v2696
        %v2949 = vunpack.c.l.b16 %v2710
        %v2950 = vunpack.c.l.b16 %v2720
        %v2951 = vunpack.c.l.b16 %v2734
        %v2952 = vunpack.c.l.b16 %v2744
        %v2953 = vunpack.c.l.b16 %v2758
        %v2954 = vunpack.c.l.b16 %v2768
        %v2955 = vunpack.c.l.b16 %v2782
        %v2956 = vunpack.c.l.b16 %v2792
        %v2957 = vunpack.c.l.b16 %v2806
        %v2958 = vunpack.c.l.b16 %v2816
        %v2959 = vunpack.c.l.b16 %v2830
        %v2960 = vunpack.c.l.b16 %v2840
        %v2961 = vunpack.c.l.b16 %v2854
        %v2962 = vunpack.c.l.b16 %v2864
        %v2963 = vunpack.c.l.b16 %v2878
        %v2964 = vunpack.c.l.b16 %v2888
        %v2965 = vunpack.c.l.b16 %v2902
        %v2966 = vunpack.c.l.b16 %v2912
        %v2967 = vunpack.c.l.b16 %v2926
        %v2968 = vunpack.c.l.b16 %v2936
        %v2969 = vpack.c.b16 %v2938, %v2937
        %v2970 = vpack.c.b16 %v2940, %v2939
        %v2971 = vpack.c.b16 %v2942, %v2941
        %v2972 = vpack.c.b16 %v2944, %v2943
        %v2973 = vpack.c.b16 %v2946, %v2945
        %v2974 = vpack.c.b16 %v2948, %v2947
        %v2975 = vpack.c.b16 %v2950, %v2949
        %v2976 = vpack.c.b16 %v2952, %v2951
        %v2977 = vpack.c.b16 %v2954, %v2953
        %v2978 = vpack.c.b16 %v2956, %v2955
        %v2979 = vpack.c.b16 %v2958, %v2957
        %v2980 = vpack.c.b16 %v2960, %v2959
        %v2981 = vpack.c.b16 %v2962, %v2961
        %v2982 = vpack.c.b16 %v2964, %v2963
        %v2983 = vpack.c.b16 %v2966, %v2965
        %v2984 = vpack.c.b16 %v2968, %v2967
        %2985 = vrot.lane.b32.xlu0 %v2969, 28
        %v2986 = vpop.permute.xlu0 %2985
        %2987 = vrot.lane.b32.xlu0 %v2970, 28
        %v2988 = vpop.permute.xlu0 %2987
        %2989 = vrot.lane.b32.xlu0 %v2971, 28
        %v2990 = vpop.permute.xlu0 %2989
        %2991 = vrot.lane.b32.xlu0 %v2972, 28
        %v2992 = vpop.permute.xlu0 %2991
        %2993 = vrot.lane.b32.xlu0 %v2973, 28
        %v2994 = vpop.permute.xlu0 %2993
        %2995 = vrot.lane.b32.xlu0 %v2974, 28
        %v2996 = vpop.permute.xlu0 %2995
        %2997 = vrot.lane.b32.xlu0 %v2975, 28
        %v2998 = vpop.permute.xlu0 %2997
        %2999 = vrot.lane.b32.xlu0 %v2976, 28
        %v3000 = vpop.permute.xlu0 %2999
        %3001 = vrot.lane.b32.xlu0 %v2977, 28
        %v3002 = vpop.permute.xlu0 %3001
        %3003 = vrot.lane.b32.xlu0 %v2978, 28
        %v3004 = vpop.permute.xlu0 %3003
        %3005 = vrot.lane.b32.xlu0 %v2979, 28
        %v3006 = vpop.permute.xlu0 %3005
        %3007 = vrot.lane.b32.xlu0 %v2980, 28
        %v3008 = vpop.permute.xlu0 %3007
        %3009 = vrot.lane.b32.xlu0 %v2981, 28
        %v3010 = vpop.permute.xlu0 %3009
        %3011 = vrot.lane.b32.xlu0 %v2982, 28
        %v3012 = vpop.permute.xlu0 %3011
        %3013 = vrot.lane.b32.xlu0 %v2983, 28
        %v3014 = vpop.permute.xlu0 %3013
        %3015 = vrot.lane.b32.xlu0 %v2984, 28
        %v3016 = vpop.permute.xlu0 %3015
        %vm3033 = vcmask 261344
        %3034 = vst.msk [vmem:[#allocation2] sm:$0xff] %vm3033, %v2986
        %3035 = vst.msk [vmem:[#allocation2 + $0x8] sm:$0xff] %vm3033, %v2988
        %3036 = vst.msk [vmem:[#allocation2 + $0x10] sm:$0xff] %vm3033, %v2990
        %3037 = vst.msk [vmem:[#allocation2 + $0x18] sm:$0xff] %vm3033, %v2992
        %3038 = vst.msk [vmem:[#allocation2 + $0x20] sm:$0xff] %vm3033, %v2994
        %3039 = vst.msk [vmem:[#allocation2 + $0x28] sm:$0xff] %vm3033, %v2996
        %3040 = vst.msk [vmem:[#allocation2 + $0x30] sm:$0xff] %vm3033, %v2998
        %3041 = vst.msk [vmem:[#allocation2 + $0x38] sm:$0xff] %vm3033, %v3000
        %3042 = vst.msk [vmem:[#allocation2 + $0x40] sm:$0xff] %vm3033, %v3002
        %3043 = vst.msk [vmem:[#allocation2 + $0x48] sm:$0xff] %vm3033, %v3004
        %3044 = vst.msk [vmem:[#allocation2 + $0x50] sm:$0xff] %vm3033, %v3006
        %3045 = vst.msk [vmem:[#allocation2 + $0x58] sm:$0xff] %vm3033, %v3008
        %3046 = vst.msk [vmem:[#allocation2 + $0x60] sm:$0xff] %vm3033, %v3010
        %3047 = vst.msk [vmem:[#allocation2 + $0x68] sm:$0xff] %vm3033, %v3012
        %3048 = vst.msk [vmem:[#allocation2 + $0x70] sm:$0xff] %vm3033, %v3014
        %3049 = vst.msk [vmem:[#allocation2 + $0x78] sm:$0xff] %vm3033, %v3016
        %v3050 = vld [vmem:[%s2327] sm:$0xe]
        %v3051 = vld [vmem:[%s2327 + $0x4] sm:$0xf]
        %v3052 = vld [vmem:[%s2327 + $0x8] sm:$0x1]
        %v3053 = vld [vmem:[%s2327 + $0xc] sm:$0xe]
        %v3054 = vld [vmem:[%s2327 + $0x10] sm:$0xf]
        %v3055 = vld [vmem:[%s2327 + $0x14] sm:$0x1]
        %v3056 = vld [vmem:[%s2327 + $0x18] sm:$0xe]
        %v3057 = vld [vmem:[%s2327 + $0x1c] sm:$0xf]
        %v3058 = vld [vmem:[%s2327 + $0x20] sm:$0x1]
        %v3059 = vld [vmem:[%s2327 + $0x24] sm:$0xe]
        %v3060 = vld [vmem:[%s2327 + $0x28] sm:$0xf]
        %v3061 = vld [vmem:[%s2327 + $0x2c] sm:$0x1]
        %v3062 = vld [vmem:[%s2327 + $0x30] sm:$0xe]
        %v3063 = vld [vmem:[%s2327 + $0x34] sm:$0xf]
        %v3064 = vld [vmem:[%s2327 + $0x38] sm:$0x1]
        %v3065 = vld [vmem:[%s2327 + $0x3c] sm:$0xe]
        %v3066 = vld [vmem:[%s2327 + $0x40] sm:$0xf]
        %v3067 = vld [vmem:[%s2327 + $0x44] sm:$0x1]
        %v3068 = vld [vmem:[%s2327 + $0x48] sm:$0xe]
        %v3069 = vld [vmem:[%s2327 + $0x4c] sm:$0xf]
        %v3070 = vld [vmem:[%s2327 + $0x50] sm:$0x1]
        %v3071 = vld [vmem:[%s2327 + $0x54] sm:$0xe]
        %v3072 = vld [vmem:[%s2327 + $0x58] sm:$0xf]
        %v3073 = vld [vmem:[%s2327 + $0x5c] sm:$0x1]
        %v3074 = vld [vmem:[%s2327 + $0x60] sm:$0xe]
        %v3075 = vld [vmem:[%s2327 + $0x64] sm:$0xf]
        %v3076 = vld [vmem:[%s2327 + $0x68] sm:$0x1]
        %v3077 = vld [vmem:[%s2327 + $0x6c] sm:$0xe]
        %v3078 = vld [vmem:[%s2327 + $0x70] sm:$0xf]
        %v3079 = vld [vmem:[%s2327 + $0x74] sm:$0x1]
        %v3080 = vld [vmem:[%s2327 + $0x78] sm:$0xe]
        %v3081 = vld [vmem:[%s2327 + $0x7c] sm:$0xf]
        %v3082 = vld [vmem:[%s2327 + $0x80] sm:$0x1]
        %v3083 = vld [vmem:[%s2327 + $0x84] sm:$0xe]
        %v3084 = vld [vmem:[%s2327 + $0x88] sm:$0xf]
        %v3085 = vld [vmem:[%s2327 + $0x8c] sm:$0x1]
        %v3086 = vld [vmem:[%s2327 + $0x90] sm:$0xe]
        %v3087 = vld [vmem:[%s2327 + $0x94] sm:$0xf]
        %v3088 = vld [vmem:[%s2327 + $0x98] sm:$0x1]
        %v3089 = vld [vmem:[%s2327 + $0x9c] sm:$0xe]
        %v3090 = vld [vmem:[%s2327 + $0xa0] sm:$0xf]
        %v3091 = vld [vmem:[%s2327 + $0xa4] sm:$0x1]
        %v3092 = vld [vmem:[%s2327 + $0xa8] sm:$0xe]
        %v3093 = vld [vmem:[%s2327 + $0xac] sm:$0xf]
        %v3094 = vld [vmem:[%s2327 + $0xb0] sm:$0x1]
        %v3095 = vld [vmem:[%s2327 + $0xb4] sm:$0xe]
        %v3096 = vld [vmem:[%s2327 + $0xb8] sm:$0xf]
        %v3097 = vld [vmem:[%s2327 + $0xbc] sm:$0x1]
        %v3146 = vrot.slane %v3050, 5
        %v3147 = vrot.slane %v3146, 4
        %v3148 = vrot.slane %v3051, 5
        %v3149 = vsel %vm1057, %v3147, %v3148
        %v3150 = vrot.slane %v3148, 4
        %v3151 = vrot.slane %v3052, 5
        %v3152 = vsel %vm1057, %v3150, %v3151
        %v3153 = vrot.slane %v3053, 5
        %v3154 = vrot.slane %v3153, 4
        %v3155 = vrot.slane %v3054, 5
        %v3156 = vsel %vm1057, %v3154, %v3155
        %v3157 = vrot.slane %v3155, 4
        %v3158 = vrot.slane %v3055, 5
        %v3159 = vsel %vm1057, %v3157, %v3158
        %v3160 = vrot.slane %v3056, 5
        %v3161 = vrot.slane %v3160, 4
        %v3162 = vrot.slane %v3057, 5
        %v3163 = vsel %vm1057, %v3161, %v3162
        %v3164 = vrot.slane %v3162, 4
        %v3165 = vrot.slane %v3058, 5
        %v3166 = vsel %vm1057, %v3164, %v3165
        %v3167 = vrot.slane %v3059, 5
        %v3168 = vrot.slane %v3167, 4
        %v3169 = vrot.slane %v3060, 5
        %v3170 = vsel %vm1057, %v3168, %v3169
        %v3171 = vrot.slane %v3169, 4
        %v3172 = vrot.slane %v3061, 5
        %v3173 = vsel %vm1057, %v3171, %v3172
        %v3174 = vrot.slane %v3062, 5
        %v3175 = vrot.slane %v3174, 4
        %v3176 = vrot.slane %v3063, 5
        %v3177 = vsel %vm1057, %v3175, %v3176
        %v3178 = vrot.slane %v3176, 4
        %v3179 = vrot.slane %v3064, 5
        %v3180 = vsel %vm1057, %v3178, %v3179
        %v3181 = vrot.slane %v3065, 5
        %v3182 = vrot.slane %v3181, 4
        %v3183 = vrot.slane %v3066, 5
        %v3184 = vsel %vm1057, %v3182, %v3183
        %v3185 = vrot.slane %v3183, 4
        %v3186 = vrot.slane %v3067, 5
        %v3187 = vsel %vm1057, %v3185, %v3186
        %v3188 = vrot.slane %v3068, 5
        %v3189 = vrot.slane %v3188, 4
        %v3190 = vrot.slane %v3069, 5
        %v3191 = vsel %vm1057, %v3189, %v3190
        %v3192 = vrot.slane %v3190, 4
        %v3193 = vrot.slane %v3070, 5
        %v3194 = vsel %vm1057, %v3192, %v3193
        %v3195 = vrot.slane %v3071, 5
        %v3196 = vrot.slane %v3195, 4
        %v3197 = vrot.slane %v3072, 5
        %v3198 = vsel %vm1057, %v3196, %v3197
        %v3199 = vrot.slane %v3197, 4
        %v3200 = vrot.slane %v3073, 5
        %v3201 = vsel %vm1057, %v3199, %v3200
        %v3202 = vrot.slane %v3074, 5
        %v3203 = vrot.slane %v3202, 4
        %v3204 = vrot.slane %v3075, 5
        %v3205 = vsel %vm1057, %v3203, %v3204
        %v3206 = vrot.slane %v3204, 4
        %v3207 = vrot.slane %v3076, 5
        %v3208 = vsel %vm1057, %v3206, %v3207
        %v3209 = vrot.slane %v3077, 5
        %v3210 = vrot.slane %v3209, 4
        %v3211 = vrot.slane %v3078, 5
        %v3212 = vsel %vm1057, %v3210, %v3211
        %v3213 = vrot.slane %v3211, 4
        %v3214 = vrot.slane %v3079, 5
        %v3215 = vsel %vm1057, %v3213, %v3214
        %v3216 = vrot.slane %v3080, 5
        %v3217 = vrot.slane %v3216, 4
        %v3218 = vrot.slane %v3081, 5
        %v3219 = vsel %vm1057, %v3217, %v3218
        %v3220 = vrot.slane %v3218, 4
        %v3221 = vrot.slane %v3082, 5
        %v3222 = vsel %vm1057, %v3220, %v3221
        %v3223 = vrot.slane %v3083, 5
        %v3224 = vrot.slane %v3223, 4
        %v3225 = vrot.slane %v3084, 5
        %v3226 = vsel %vm1057, %v3224, %v3225
        %v3227 = vrot.slane %v3225, 4
        %v3228 = vrot.slane %v3085, 5
        %v3229 = vsel %vm1057, %v3227, %v3228
        %v3230 = vrot.slane %v3086, 5
        %v3231 = vrot.slane %v3230, 4
        %v3232 = vrot.slane %v3087, 5
        %v3233 = vsel %vm1057, %v3231, %v3232
        %v3234 = vrot.slane %v3232, 4
        %v3235 = vrot.slane %v3088, 5
        %v3236 = vsel %vm1057, %v3234, %v3235
        %v3237 = vrot.slane %v3089, 5
        %v3238 = vrot.slane %v3237, 4
        %v3239 = vrot.slane %v3090, 5
        %v3240 = vsel %vm1057, %v3238, %v3239
        %v3241 = vrot.slane %v3239, 4
        %v3242 = vrot.slane %v3091, 5
        %v3243 = vsel %vm1057, %v3241, %v3242
        %v3244 = vrot.slane %v3092, 5
        %v3245 = vrot.slane %v3244, 4
        %v3246 = vrot.slane %v3093, 5
        %v3247 = vsel %vm1057, %v3245, %v3246
        %v3248 = vrot.slane %v3246, 4
        %v3249 = vrot.slane %v3094, 5
        %v3250 = vsel %vm1057, %v3248, %v3249
        %v3251 = vrot.slane %v3095, 5
        %v3252 = vrot.slane %v3251, 4
        %v3253 = vrot.slane %v3096, 5
        %v3254 = vsel %vm1057, %v3252, %v3253
        %v3255 = vrot.slane %v3253, 4
        %v3256 = vrot.slane %v3097, 5
        %v3257 = vsel %vm1057, %v3255, %v3256
        %v3258 = vunpack.c.l.b16 %v3149
        %v3259 = vunpack.c.l.b16 %v3152
        %v3260 = vunpack.c.l.b16 %v3156
        %v3261 = vunpack.c.l.b16 %v3159
        %v3262 = vunpack.c.l.b16 %v3163
        %v3263 = vunpack.c.l.b16 %v3166
        %v3264 = vunpack.c.l.b16 %v3170
        %v3265 = vunpack.c.l.b16 %v3173
        %v3266 = vunpack.c.l.b16 %v3177
        %v3267 = vunpack.c.l.b16 %v3180
        %v3268 = vunpack.c.l.b16 %v3184
        %v3269 = vunpack.c.l.b16 %v3187
        %v3270 = vunpack.c.l.b16 %v3191
        %v3271 = vunpack.c.l.b16 %v3194
        %v3272 = vunpack.c.l.b16 %v3198
        %v3273 = vunpack.c.l.b16 %v3201
        %v3274 = vunpack.c.l.b16 %v3205
        %v3275 = vunpack.c.l.b16 %v3208
        %v3276 = vunpack.c.l.b16 %v3212
        %v3277 = vunpack.c.l.b16 %v3215
        %v3278 = vunpack.c.l.b16 %v3219
        %v3279 = vunpack.c.l.b16 %v3222
        %v3280 = vunpack.c.l.b16 %v3226
        %v3281 = vunpack.c.l.b16 %v3229
        %v3282 = vunpack.c.l.b16 %v3233
        %v3283 = vunpack.c.l.b16 %v3236
        %v3284 = vunpack.c.l.b16 %v3240
        %v3285 = vunpack.c.l.b16 %v3243
        %v3286 = vunpack.c.l.b16 %v3247
        %v3287 = vunpack.c.l.b16 %v3250
        %v3288 = vunpack.c.l.b16 %v3254
        %v3289 = vunpack.c.l.b16 %v3257
        %v3290 = vpack.c.b16 %v3259, %v3258
        %v3291 = vpack.c.b16 %v3261, %v3260
        %v3292 = vpack.c.b16 %v3263, %v3262
        %v3293 = vpack.c.b16 %v3265, %v3264
        %v3294 = vpack.c.b16 %v3267, %v3266
        %v3295 = vpack.c.b16 %v3269, %v3268
        %v3296 = vpack.c.b16 %v3271, %v3270
        %v3297 = vpack.c.b16 %v3273, %v3272
        %v3298 = vpack.c.b16 %v3275, %v3274
        %v3299 = vpack.c.b16 %v3277, %v3276
        %v3300 = vpack.c.b16 %v3279, %v3278
        %v3301 = vpack.c.b16 %v3281, %v3280
        %v3302 = vpack.c.b16 %v3283, %v3282
        %v3303 = vpack.c.b16 %v3285, %v3284
        %v3304 = vpack.c.b16 %v3287, %v3286
        %v3305 = vpack.c.b16 %v3289, %v3288
        %3306 = vrot.lane.b32.xlu0 %v3290, 32
        %v3307 = vpop.permute.xlu0 %3306
        %3308 = vrot.lane.b32.xlu0 %v3291, 32
        %v3309 = vpop.permute.xlu0 %3308
        %3310 = vrot.lane.b32.xlu0 %v3292, 32
        %v3311 = vpop.permute.xlu0 %3310
        %3312 = vrot.lane.b32.xlu0 %v3293, 32
        %v3313 = vpop.permute.xlu0 %3312
        %3314 = vrot.lane.b32.xlu0 %v3294, 32
        %v3315 = vpop.permute.xlu0 %3314
        %3316 = vrot.lane.b32.xlu0 %v3295, 32
        %v3317 = vpop.permute.xlu0 %3316
        %3318 = vrot.lane.b32.xlu0 %v3296, 32
        %v3319 = vpop.permute.xlu0 %3318
        %3320 = vrot.lane.b32.xlu0 %v3297, 32
        %v3321 = vpop.permute.xlu0 %3320
        %3322 = vrot.lane.b32.xlu0 %v3298, 32
        %v3323 = vpop.permute.xlu0 %3322
        %3324 = vrot.lane.b32.xlu0 %v3299, 32
        %v3325 = vpop.permute.xlu0 %3324
        %3326 = vrot.lane.b32.xlu0 %v3300, 32
        %v3327 = vpop.permute.xlu0 %3326
        %3328 = vrot.lane.b32.xlu0 %v3301, 32
        %v3329 = vpop.permute.xlu0 %3328
        %3330 = vrot.lane.b32.xlu0 %v3302, 32
        %v3331 = vpop.permute.xlu0 %3330
        %3332 = vrot.lane.b32.xlu0 %v3303, 32
        %v3333 = vpop.permute.xlu0 %3332
        %3334 = vrot.lane.b32.xlu0 %v3304, 32
        %v3335 = vpop.permute.xlu0 %3334
        %3336 = vrot.lane.b32.xlu0 %v3305, 32
        %v3337 = vpop.permute.xlu0 %3336
        %vm3354 = vcmask 294144
        %3355 = vst.msk [vmem:[#allocation2] sm:$0xff] %vm3354, %v3307
        %3356 = vst.msk [vmem:[#allocation2 + $0x8] sm:$0xff] %vm3354, %v3309
        %3357 = vst.msk [vmem:[#allocation2 + $0x10] sm:$0xff] %vm3354, %v3311
        %3358 = vst.msk [vmem:[#allocation2 + $0x18] sm:$0xff] %vm3354, %v3313
        %3359 = vst.msk [vmem:[#allocation2 + $0x20] sm:$0xff] %vm3354, %v3315
        %3360 = vst.msk [vmem:[#allocation2 + $0x28] sm:$0xff] %vm3354, %v3317
        %3361 = vst.msk [vmem:[#allocation2 + $0x30] sm:$0xff] %vm3354, %v3319
        %3362 = vst.msk [vmem:[#allocation2 + $0x38] sm:$0xff] %vm3354, %v3321
        %3363 = vst.msk [vmem:[#allocation2 + $0x40] sm:$0xff] %vm3354, %v3323
        %3364 = vst.msk [vmem:[#allocation2 + $0x48] sm:$0xff] %vm3354, %v3325
        %3365 = vst.msk [vmem:[#allocation2 + $0x50] sm:$0xff] %vm3354, %v3327
        %3366 = vst.msk [vmem:[#allocation2 + $0x58] sm:$0xff] %vm3354, %v3329
        %3367 = vst.msk [vmem:[#allocation2 + $0x60] sm:$0xff] %vm3354, %v3331
        %3368 = vst.msk [vmem:[#allocation2 + $0x68] sm:$0xff] %vm3354, %v3333
        %3369 = vst.msk [vmem:[#allocation2 + $0x70] sm:$0xff] %vm3354, %v3335
        %3370 = vst.msk [vmem:[#allocation2 + $0x78] sm:$0xff] %vm3354, %v3337
        %v3371 = vld [vmem:[#allocation2] sm:$0xff]
        %v3372 = vld [vmem:[#allocation2 + $0x8] sm:$0xff]
        %v3373 = vld [vmem:[#allocation2 + $0x10] sm:$0xff]
        %v3374 = vld [vmem:[#allocation2 + $0x18] sm:$0xff]
        %v3375 = vld [vmem:[#allocation2 + $0x20] sm:$0xff]
        %v3376 = vld [vmem:[#allocation2 + $0x28] sm:$0xff]
        %v3377 = vld [vmem:[#allocation2 + $0x30] sm:$0xff]
        %v3378 = vld [vmem:[#allocation2 + $0x38] sm:$0xff]
        %v3379 = vld [vmem:[#allocation2 + $0x40] sm:$0xff]
        %v3380 = vld [vmem:[#allocation2 + $0x48] sm:$0xff]
        %v3381 = vld [vmem:[#allocation2 + $0x50] sm:$0xff]
        %v3382 = vld [vmem:[#allocation2 + $0x58] sm:$0xff]
        %v3383 = vld [vmem:[#allocation2 + $0x60] sm:$0xff]
        %v3384 = vld [vmem:[#allocation2 + $0x68] sm:$0xff]
        %v3385 = vld [vmem:[#allocation2 + $0x70] sm:$0xff]
        %v3386 = vld [vmem:[#allocation2 + $0x78] sm:$0xff]
        %v3387 = vld [vmem:[#allocation4] sm:$0xf]
        %v3388 = vld [vmem:[#allocation4 + $0x4] sm:$0xf]
        %v3389 = vld [vmem:[#allocation4 + $0x8] sm:$0xf]
        %v3390 = vld [vmem:[#allocation4 + $0xc] sm:$0xf]
        %v3391 = vld [vmem:[#allocation4 + $0x10] sm:$0x3]
        %v3392 = vld [vmem:[#allocation6] sm:$0x1]
        %v3394 = vlaneseq
        %v3395 = vshrl.u32 %v3394, 7
        %v3396 = vsub.s32 0, %v3395
        %v3397 = vrot.slane %v3392, %v3396
        %v3404 = vunpack.c.l.b16 %v3387
        %v3405 = vunpack.c.l.b16 %v3388
        %v3406 = vunpack.c.l.b16 %v3389
        %v3407 = vunpack.c.l.b16 %v3390
        %v3408 = vunpack.c.l.b16 %v3391
        %v3409 = vpack.c.b16 %v3405, %v3404
        %v3410 = vpack.c.b16 %v3407, %v3406
        %v3411 = vpack.c.b16 %v3408, %v3408
        %vm3414 = vcmask 293888
        %v3416 = vsel %vm3414, %v3371, 0
        %v3419 = vsel %vm3414, %v3372, 0
        %v3422 = vsel %vm3414, %v3373, 0
        %v3425 = vsel %vm3414, %v3374, 0
        %v3428 = vsel %vm3414, %v3375, 0
        %v3431 = vsel %vm3414, %v3376, 0
        %v3434 = vsel %vm3414, %v3377, 0
        %v3437 = vsel %vm3414, %v3378, 0
        %v3440 = vsel %vm3414, %v3379, 0
        %v3443 = vsel %vm3414, %v3380, 0
        %v3446 = vsel %vm3414, %v3381, 0
        %v3449 = vsel %vm3414, %v3382, 0
        %v3452 = vsel %vm3414, %v3383, 0
        %v3455 = vsel %vm3414, %v3384, 0
        %v3458 = vsel %vm3414, %v3385, 0
        %v3461 = vsel %vm3414, %v3386, 0
        %vm3463 = vcmask 1041408
        %v3465 = vsel %vm3463, %v3411, 0
        %3467 = vmatprep.subr.bf16.mxu0 0
        %3468 = vmatpush1.bf16.msra.mxu0 %v3409
        %3469 = vmatprep.subr.bf16.mxu0 0
        %3470 = vmatpush1.bf16.msra.mxu0 %v3410
        %3471 = vmatprep.subr.bf16.mxu0 0
        %3472 = vmatpush1.bf16.msra.mxu0 %v3465
        %3473 = vmatprep.subr.bf16.mxu0 0
        %3474 = vmatpush1.bf16.msra.mxu0 0
        %3475 = vmatprep.subr.bf16.mxu0 0
        %3476 = vmatpush1.bf16.msra.mxu0 0
        %3477 = vmatprep.subr.bf16.mxu0 0
        %3478 = vmatpush1.bf16.msra.mxu0 0
        %3479 = vmatprep.subr.bf16.mxu0 0
        %3480 = vmatpush1.bf16.msra.mxu0 0
        %3481 = vmatprep.subr.bf16.mxu0 0
        %3482 = vmatpush1.bf16.msra.mxu0 0
        %3483 = vmatprep.subr.bf16.mxu0 0
        %3484 = vmatpush1.bf16.msra.mxu0 0
        %3485 = vmatprep.subr.bf16.mxu0 0
        %3486 = vmatpush1.bf16.msra.mxu0 0
        %3487 = vmatprep.subr.bf16.mxu0 0
        %3488 = vmatpush1.bf16.msra.mxu0 0
        %3489 = vmatprep.subr.bf16.mxu0 0
        %3490 = vmatpush1.bf16.msra.mxu0 0
        %3491 = vmatprep.subr.bf16.mxu0 0
        %3492 = vmatpush1.bf16.msra.mxu0 0
        %3493 = vmatprep.subr.bf16.mxu0 0
        %3494 = vmatpush1.bf16.msra.mxu0 0
        %3495 = vmatprep.subr.bf16.mxu0 0
        %3496 = vmatpush1.bf16.msra.mxu0 0
        %3497 = vmatprep.subr.bf16.mxu0 0
        %3498 = vmatpush1.bf16.msra.mxu0 0
        %3499 = vmatprep.mubr.bf16.mxu0 0
        %3500 = vmatmul.mubr.bf16.gmra.mrb[0].mxu0 %v3416
        %v3501 = vpop.f32.mrb[0].mxu0
        %v3502 = vadd.f32 %v3397, %v3501
        %v3503 = vpop.f32.mrb[0].mxu0
        %v3504 = vpop.f32.mrb[0].mxu0
        %v3505 = vadd.f32 %v3397, %v3504
        %v3506 = vpop.f32.mrb[0].mxu0
        %3507 = vmatprep.mubr.bf16.mxu0 0
        %3508 = vmatmul.mubr.bf16.gmra.mrb[0].mxu0 %v3419
        %v3509 = vpop.f32.mrb[0].mxu0
        %v3510 = vadd.f32 %v3397, %v3509
        %v3511 = vpop.f32.mrb[0].mxu0
        %v3512 = vpop.f32.mrb[0].mxu0
        %v3513 = vadd.f32 %v3397, %v3512
        %v3514 = vpop.f32.mrb[0].mxu0
        %3515 = vmatprep.mubr.bf16.mxu0 0
        %3516 = vmatmul.mubr.bf16.gmra.mrb[0].mxu0 %v3422
        %v3517 = vpop.f32.mrb[0].mxu0
        %v3518 = vadd.f32 %v3397, %v3517
        %v3519 = vpop.f32.mrb[0].mxu0
        %v3520 = vpop.f32.mrb[0].mxu0
        %v3521 = vadd.f32 %v3397, %v3520
        %v3522 = vpop.f32.mrb[0].mxu0
        %3523 = vmatprep.mubr.bf16.mxu0 0
        %3524 = vmatmul.mubr.bf16.gmra.mrb[0].mxu0 %v3425
        %v3525 = vpop.f32.mrb[0].mxu0
        %v3526 = vadd.f32 %v3397, %v3525
        %v3527 = vpop.f32.mrb[0].mxu0
        %v3528 = vpop.f32.mrb[0].mxu0
        %v3529 = vadd.f32 %v3397, %v3528
        %v3530 = vpop.f32.mrb[0].mxu0
        %3531 = vmatprep.mubr.bf16.mxu0 0
        %3532 = vmatmul.mubr.bf16.gmra.mrb[0].mxu0 %v3428
        %v3533 = vpop.f32.mrb[0].mxu0
        %v3534 = vadd.f32 %v3397, %v3533
        %v3535 = vpop.f32.mrb[0].mxu0
        %v3536 = vpop.f32.mrb[0].mxu0
        %v3537 = vadd.f32 %v3397, %v3536
        %v3538 = vpop.f32.mrb[0].mxu0
        %3539 = vmatprep.mubr.bf16.mxu0 0
        %3540 = vmatmul.mubr.bf16.gmra.mrb[0].mxu0 %v3431
        %v3541 = vpop.f32.mrb[0].mxu0
        %v3542 = vadd.f32 %v3397, %v3541
        %v3543 = vpop.f32.mrb[0].mxu0
        %v3544 = vpop.f32.mrb[0].mxu0
        %v3545 = vadd.f32 %v3397, %v3544
        %v3546 = vpop.f32.mrb[0].mxu0
        %3547 = vmatprep.mubr.bf16.mxu0 0
        %3548 = vmatmul.mubr.bf16.gmra.mrb[0].mxu0 %v3434
        %v3549 = vpop.f32.mrb[0].mxu0
        %v3550 = vadd.f32 %v3397, %v3549
        %v3551 = vpop.f32.mrb[0].mxu0
        %v3552 = vpop.f32.mrb[0].mxu0
        %v3553 = vadd.f32 %v3397, %v3552
        %v3554 = vpop.f32.mrb[0].mxu0
        %3555 = vmatprep.mubr.bf16.mxu0 0
        %3556 = vmatmul.mubr.bf16.gmra.mrb[0].mxu0 %v3437
        %v3557 = vpop.f32.mrb[0].mxu0
        %v3558 = vadd.f32 %v3397, %v3557
        %v3559 = vpop.f32.mrb[0].mxu0
        %v3560 = vpop.f32.mrb[0].mxu0
        %v3561 = vadd.f32 %v3397, %v3560
        %v3562 = vpop.f32.mrb[0].mxu0
        %3563 = vmatprep.mubr.bf16.mxu0 0
        %3564 = vmatmul.mubr.bf16.gmra.mrb[0].mxu0 %v3440
        %v3565 = vpop.f32.mrb[0].mxu0
        %v3566 = vadd.f32 %v3397, %v3565
        %v3567 = vpop.f32.mrb[0].mxu0
        %v3568 = vpop.f32.mrb[0].mxu0
        %v3569 = vadd.f32 %v3397, %v3568
        %v3570 = vpop.f32.mrb[0].mxu0
        %3571 = vmatprep.mubr.bf16.mxu0 0
        %3572 = vmatmul.mubr.bf16.gmra.mrb[0].mxu0 %v3443
        %v3573 = vpop.f32.mrb[0].mxu0
        %v3574 = vadd.f32 %v3397, %v3573
        %v3575 = vpop.f32.mrb[0].mxu0
        %v3576 = vpop.f32.mrb[0].mxu0
        %v3577 = vadd.f32 %v3397, %v3576
        %v3578 = vpop.f32.mrb[0].mxu0
        %3579 = vmatprep.mubr.bf16.mxu0 0
        %3580 = vmatmul.mubr.bf16.gmra.mrb[0].mxu0 %v3446
        %v3581 = vpop.f32.mrb[0].mxu0
        %v3582 = vadd.f32 %v3397, %v3581
        %v3583 = vpop.f32.mrb[0].mxu0
        %v3584 = vpop.f32.mrb[0].mxu0
        %v3585 = vadd.f32 %v3397, %v3584
        %v3586 = vpop.f32.mrb[0].mxu0
        %3587 = vmatprep.mubr.bf16.mxu0 0
        %3588 = vmatmul.mubr.bf16.gmra.mrb[0].mxu0 %v3449
        %v3589 = vpop.f32.mrb[0].mxu0
        %v3590 = vadd.f32 %v3397, %v3589
        %v3591 = vpop.f32.mrb[0].mxu0
        %v3592 = vpop.f32.mrb[0].mxu0
        %v3593 = vadd.f32 %v3397, %v3592
        %v3594 = vpop.f32.mrb[0].mxu0
        %3595 = vmatprep.mubr.bf16.mxu0 0
        %3596 = vmatmul.mubr.bf16.gmra.mrb[0].mxu0 %v3452
        %v3597 = vpop.f32.mrb[0].mxu0
        %v3598 = vadd.f32 %v3397, %v3597
        %v3599 = vpop.f32.mrb[0].mxu0
        %v3600 = vpop.f32.mrb[0].mxu0
        %v3601 = vadd.f32 %v3397, %v3600
        %v3602 = vpop.f32.mrb[0].mxu0
        %3603 = vmatprep.mubr.bf16.mxu0 0
        %3604 = vmatmul.mubr.bf16.gmra.mrb[0].mxu0 %v3455
        %v3605 = vpop.f32.mrb[0].mxu0
        %v3606 = vadd.f32 %v3397, %v3605
        %v3607 = vpop.f32.mrb[0].mxu0
        %v3608 = vpop.f32.mrb[0].mxu0
        %v3609 = vadd.f32 %v3397, %v3608
        %v3610 = vpop.f32.mrb[0].mxu0
        %3611 = vmatprep.mubr.bf16.mxu0 0
        %3612 = vmatmul.mubr.bf16.gmra.mrb[0].mxu0 %v3458
        %v3613 = vpop.f32.mrb[0].mxu0
        %v3614 = vadd.f32 %v3397, %v3613
        %v3615 = vpop.f32.mrb[0].mxu0
        %v3616 = vpop.f32.mrb[0].mxu0
        %v3617 = vadd.f32 %v3397, %v3616
        %v3618 = vpop.f32.mrb[0].mxu0
        %3619 = vmatprep.mubr.bf16.mxu0 0
        %3620 = vmatmul.mubr.bf16.gmra.mrb[0].mxu0 %v3461
        %v3621 = vpop.f32.mrb[0].mxu0
        %v3622 = vadd.f32 %v3397, %v3621
        %v3623 = vpop.f32.mrb[0].mxu0
        %v3624 = vpop.f32.mrb[0].mxu0
        %v3625 = vadd.f32 %v3397, %v3624
        %v3626 = vpop.f32.mrb[0].mxu0
        %3627 = vdwg.mxu0
        %v3628 = vmax.f32 %v3502, 0.0
        %v3629 = vmax.f32 %v3505, 0.0
        %v3630 = vmax.f32 %v3510, 0.0
        %v3631 = vmax.f32 %v3513, 0.0
        %v3632 = vmax.f32 %v3518, 0.0
        %v3633 = vmax.f32 %v3521, 0.0
        %v3634 = vmax.f32 %v3526, 0.0
        %v3635 = vmax.f32 %v3529, 0.0
        %v3636 = vmax.f32 %v3534, 0.0
        %v3637 = vmax.f32 %v3537, 0.0
        %v3638 = vmax.f32 %v3542, 0.0
        %v3639 = vmax.f32 %v3545, 0.0
        %v3640 = vmax.f32 %v3550, 0.0
        %v3641 = vmax.f32 %v3553, 0.0
        %v3642 = vmax.f32 %v3558, 0.0
        %v3643 = vmax.f32 %v3561, 0.0
        %v3644 = vmax.f32 %v3566, 0.0
        %v3645 = vmax.f32 %v3569, 0.0
        %v3646 = vmax.f32 %v3574, 0.0
        %v3647 = vmax.f32 %v3577, 0.0
        %v3648 = vmax.f32 %v3582, 0.0
        %v3649 = vmax.f32 %v3585, 0.0
        %v3650 = vmax.f32 %v3590, 0.0
        %v3651 = vmax.f32 %v3593, 0.0
        %v3652 = vmax.f32 %v3598, 0.0
        %v3653 = vmax.f32 %v3601, 0.0
        %v3654 = vmax.f32 %v3606, 0.0
        %v3655 = vmax.f32 %v3609, 0.0
        %v3656 = vmax.f32 %v3614, 0.0
        %v3657 = vmax.f32 %v3617, 0.0
        %v3658 = vmax.f32 %v3622, 0.0
        %v3659 = vmax.f32 %v3625, 0.0
        %vm3660 = vcmask 1040384
        %vm3661 = vsmask.f32 256
        %vm3662 = vmand %vm3660, %vm3661
        %v3663 = vld [vmem:[#allocation3] sm:$0x1]
        %v3664 = vsel %vm3662, 0, %v3663
        %3665 = vst [vmem:[#allocation3] sm:$0x1] %v3664
        %v3666 = vld [vmem:[#allocation3 + $0xc] sm:$0x1]
        %v3667 = vsel %vm3662, 0, %v3666
        %3668 = vst [vmem:[#allocation3 + $0xc] sm:$0x1] %v3667
        %v3669 = vld [vmem:[#allocation3 + $0x18] sm:$0x1]
        %v3670 = vsel %vm3662, 0, %v3669
        %3671 = vst [vmem:[#allocation3 + $0x18] sm:$0x1] %v3670
        %v3672 = vld [vmem:[#allocation3 + $0x24] sm:$0x1]
        %v3673 = vsel %vm3662, 0, %v3672
        %3674 = vst [vmem:[#allocation3 + $0x24] sm:$0x1] %v3673
        %v3675 = vld [vmem:[#allocation3 + $0x30] sm:$0x1]
        %v3676 = vsel %vm3662, 0, %v3675
        %3677 = vst [vmem:[#allocation3 + $0x30] sm:$0x1] %v3676
        %v3678 = vld [vmem:[#allocation3 + $0x3c] sm:$0x1]
        %v3679 = vsel %vm3662, 0, %v3678
        %3680 = vst [vmem:[#allocation3 + $0x3c] sm:$0x1] %v3679
        %v3681 = vld [vmem:[#allocation3 + $0x48] sm:$0x1]
        %v3682 = vsel %vm3662, 0, %v3681
        %3683 = vst [vmem:[#allocation3 + $0x48] sm:$0x1] %v3682
        %v3684 = vld [vmem:[#allocation3 + $0x54] sm:$0x1]
        %v3685 = vsel %vm3662, 0, %v3684
        %3686 = vst [vmem:[#allocation3 + $0x54] sm:$0x1] %v3685
        %v3687 = vld [vmem:[#allocation3 + $0x60] sm:$0x1]
        %v3688 = vsel %vm3662, 0, %v3687
        %3689 = vst [vmem:[#allocation3 + $0x60] sm:$0x1] %v3688
        %v3690 = vld [vmem:[#allocation3 + $0x6c] sm:$0x1]
        %v3691 = vsel %vm3662, 0, %v3690
        %3692 = vst [vmem:[#allocation3 + $0x6c] sm:$0x1] %v3691
        %v3693 = vld [vmem:[#allocation3 + $0x78] sm:$0x1]
        %v3694 = vsel %vm3662, 0, %v3693
        %3695 = vst [vmem:[#allocation3 + $0x78] sm:$0x1] %v3694
        %v3696 = vld [vmem:[#allocation3 + $0x84] sm:$0x1]
        %v3697 = vsel %vm3662, 0, %v3696
        %3698 = vst [vmem:[#allocation3 + $0x84] sm:$0x1] %v3697
        %v3699 = vld [vmem:[#allocation3 + $0x90] sm:$0x1]
        %v3700 = vsel %vm3662, 0, %v3699
        %3701 = vst [vmem:[#allocation3 + $0x90] sm:$0x1] %v3700
        %v3702 = vld [vmem:[#allocation3 + $0x9c] sm:$0x1]
        %v3703 = vsel %vm3662, 0, %v3702
        %3704 = vst [vmem:[#allocation3 + $0x9c] sm:$0x1] %v3703
        %v3705 = vld [vmem:[#allocation3 + $0xa8] sm:$0x1]
        %v3706 = vsel %vm3662, 0, %v3705
        %3707 = vst [vmem:[#allocation3 + $0xa8] sm:$0x1] %v3706
        %v3708 = vld [vmem:[#allocation3 + $0xb4] sm:$0x1]
        %v3709 = vsel %vm3662, 0, %v3708
        %3710 = vst [vmem:[#allocation3 + $0xb4] sm:$0x1] %v3709
        %v3711 = vld [vmem:[#allocation3 + $0xc0] sm:$0x1]
        %v3712 = vsel %vm3662, 0, %v3711
        %3713 = vst [vmem:[#allocation3 + $0xc0] sm:$0x1] %v3712
        %v3714 = vld [vmem:[#allocation3 + $0xcc] sm:$0x1]
        %v3715 = vsel %vm3662, 0, %v3714
        %3716 = vst [vmem:[#allocation3 + $0xcc] sm:$0x1] %v3715
        %vm3717 = vsmask.f32 7938
        %vm3718 = vmand %vm3660, %vm3717
        %v3719 = vld [vmem:[#allocation3 + $0x8] sm:$0x1]
        %v3720 = vsel %vm3718, 0, %v3719
        %3721 = vst [vmem:[#allocation3 + $0x8] sm:$0x1] %v3720
        %v3722 = vld [vmem:[#allocation3 + $0x14] sm:$0x1]
        %v3723 = vsel %vm3718, 0, %v3722
        %3724 = vst [vmem:[#allocation3 + $0x14] sm:$0x1] %v3723
        %v3725 = vld [vmem:[#allocation3 + $0x20] sm:$0x1]
        %v3726 = vsel %vm3718, 0, %v3725
        %3727 = vst [vmem:[#allocation3 + $0x20] sm:$0x1] %v3726
        %v3728 = vld [vmem:[#allocation3 + $0x2c] sm:$0x1]
        %v3729 = vsel %vm3718, 0, %v3728
        %3730 = vst [vmem:[#allocation3 + $0x2c] sm:$0x1] %v3729
        %v3731 = vld [vmem:[#allocation3 + $0x38] sm:$0x1]
        %v3732 = vsel %vm3718, 0, %v3731
        %3733 = vst [vmem:[#allocation3 + $0x38] sm:$0x1] %v3732
        %v3734 = vld [vmem:[#allocation3 + $0x44] sm:$0x1]
        %v3735 = vsel %vm3718, 0, %v3734
        %3736 = vst [vmem:[#allocation3 + $0x44] sm:$0x1] %v3735
        %v3737 = vld [vmem:[#allocation3 + $0x50] sm:$0x1]
        %v3738 = vsel %vm3718, 0, %v3737
        %3739 = vst [vmem:[#allocation3 + $0x50] sm:$0x1] %v3738
        %v3740 = vld [vmem:[#allocation3 + $0x5c] sm:$0x1]
        %v3741 = vsel %vm3718, 0, %v3740
        %3742 = vst [vmem:[#allocation3 + $0x5c] sm:$0x1] %v3741
        %v3743 = vld [vmem:[#allocation3 + $0x68] sm:$0x1]
        %v3744 = vsel %vm3718, 0, %v3743
        %3745 = vst [vmem:[#allocation3 + $0x68] sm:$0x1] %v3744
        %v3746 = vld [vmem:[#allocation3 + $0x74] sm:$0x1]
        %v3747 = vsel %vm3718, 0, %v3746
        %3748 = vst [vmem:[#allocation3 + $0x74] sm:$0x1] %v3747
        %v3749 = vld [vmem:[#allocation3 + $0x80] sm:$0x1]
        %v3750 = vsel %vm3718, 0, %v3749
        %3751 = vst [vmem:[#allocation3 + $0x80] sm:$0x1] %v3750
        %v3752 = vld [vmem:[#allocation3 + $0x8c] sm:$0x1]
        %v3753 = vsel %vm3718, 0, %v3752
        %3754 = vst [vmem:[#allocation3 + $0x8c] sm:$0x1] %v3753
        %v3755 = vld [vmem:[#allocation3 + $0x98] sm:$0x1]
        %v3756 = vsel %vm3718, 0, %v3755
        %3757 = vst [vmem:[#allocation3 + $0x98] sm:$0x1] %v3756
        %v3758 = vld [vmem:[#allocation3 + $0xa4] sm:$0x1]
        %v3759 = vsel %vm3718, 0, %v3758
        %3760 = vst [vmem:[#allocation3 + $0xa4] sm:$0x1] %v3759
        %v3761 = vld [vmem:[#allocation3 + $0xb0] sm:$0x1]
        %v3762 = vsel %vm3718, 0, %v3761
        %3763 = vst [vmem:[#allocation3 + $0xb0] sm:$0x1] %v3762
        %v3764 = vld [vmem:[#allocation3 + $0xbc] sm:$0x1]
        %v3765 = vsel %vm3718, 0, %v3764
        %3766 = vst [vmem:[#allocation3 + $0xbc] sm:$0x1] %v3765
        %v3767 = vld [vmem:[#allocation3 + $0xc8] sm:$0x1]
        %v3768 = vsel %vm3718, 0, %v3767
        %3769 = vst [vmem:[#allocation3 + $0xc8] sm:$0x1] %v3768
        %v3770 = vld [vmem:[#allocation3 + $0xd4] sm:$0x1]
        %v3771 = vsel %vm3718, 0, %v3770
        %3772 = vst [vmem:[#allocation3 + $0xd4] sm:$0x1] %v3771
        %3773 = vst [vmem:[#allocation3] sm:$0xf] 0
        %3774 = vst [vmem:[#allocation3 + $0x4] sm:$0xf] 0
        %3775 = vst [vmem:[#allocation3 + $0x8] sm:$0x1] 0
        %s3776 = scalar_lea.vmem [#allocation3], 204
        %3777 = vst [vmem:[%s3776] sm:$0xf] 0
        %3778 = vst [vmem:[%s3776 + $0x4] sm:$0xf] 0
        %3779 = vst [vmem:[%s3776 + $0x8] sm:$0x1] 0
        %v3780 = vpack.c.bf16 %v3629, %v3628
        %v3781 = vpack.c.bf16 %v3631, %v3630
        %v3782 = vpack.c.bf16 %v3633, %v3632
        %v3783 = vpack.c.bf16 %v3635, %v3634
        %v3784 = vpack.c.bf16 %v3637, %v3636
        %v3785 = vpack.c.bf16 %v3639, %v3638
        %v3786 = vpack.c.bf16 %v3641, %v3640
        %v3787 = vpack.c.bf16 %v3643, %v3642
        %v3788 = vpack.c.bf16 %v3645, %v3644
        %v3789 = vpack.c.bf16 %v3647, %v3646
        %v3790 = vpack.c.bf16 %v3649, %v3648
        %v3791 = vpack.c.bf16 %v3651, %v3650
        %v3792 = vpack.c.bf16 %v3653, %v3652
        %v3793 = vpack.c.bf16 %v3655, %v3654
        %v3794 = vpack.c.bf16 %v3657, %v3656
        %v3795 = vpack.c.bf16 %v3659, %v3658
        %v3812 = vunpack.c.l.b16 %v3780
        %v3813 = vunpack.c.h.b16 %v3780
        %v3814 = vunpack.c.l.b16 %v3781
        %v3815 = vunpack.c.h.b16 %v3781
        %v3816 = vunpack.c.l.b16 %v3782
        %v3817 = vunpack.c.h.b16 %v3782
        %v3818 = vunpack.c.l.b16 %v3783
        %v3819 = vunpack.c.h.b16 %v3783
        %v3820 = vunpack.c.l.b16 %v3784
        %v3821 = vunpack.c.h.b16 %v3784
        %v3822 = vunpack.c.l.b16 %v3785
        %v3823 = vunpack.c.h.b16 %v3785
        %v3824 = vunpack.c.l.b16 %v3786
        %v3825 = vunpack.c.h.b16 %v3786
        %v3826 = vunpack.c.l.b16 %v3787
        %v3827 = vunpack.c.h.b16 %v3787
        %v3828 = vunpack.c.l.b16 %v3788
        %v3829 = vunpack.c.h.b16 %v3788
        %v3830 = vunpack.c.l.b16 %v3789
        %v3831 = vunpack.c.h.b16 %v3789
        %v3832 = vunpack.c.l.b16 %v3790
        %v3833 = vunpack.c.h.b16 %v3790
        %v3834 = vunpack.c.l.b16 %v3791
        %v3835 = vunpack.c.h.b16 %v3791
        %v3836 = vunpack.c.l.b16 %v3792
        %v3837 = vunpack.c.h.b16 %v3792
        %v3838 = vunpack.c.l.b16 %v3793
        %v3839 = vunpack.c.h.b16 %v3793
        %v3840 = vunpack.c.l.b16 %v3794
        %v3841 = vunpack.c.h.b16 %v3794
        %v3842 = vunpack.c.l.b16 %v3795
        %v3843 = vunpack.c.h.b16 %v3795
        %v3844 = vpack.c.b16 %v3812, %v3812
        %v3845 = vpack.c.b16 %v3813, %v3813
        %v3846 = vpack.c.b16 %v3814, %v3814
        %v3847 = vpack.c.b16 %v3815, %v3815
        %v3848 = vpack.c.b16 %v3816, %v3816
        %v3849 = vpack.c.b16 %v3817, %v3817
        %v3850 = vpack.c.b16 %v3818, %v3818
        %v3851 = vpack.c.b16 %v3819, %v3819
        %v3852 = vpack.c.b16 %v3820, %v3820
        %v3853 = vpack.c.b16 %v3821, %v3821
        %v3854 = vpack.c.b16 %v3822, %v3822
        %v3855 = vpack.c.b16 %v3823, %v3823
        %v3856 = vpack.c.b16 %v3824, %v3824
        %v3857 = vpack.c.b16 %v3825, %v3825
        %v3858 = vpack.c.b16 %v3826, %v3826
        %v3859 = vpack.c.b16 %v3827, %v3827
        %v3860 = vpack.c.b16 %v3828, %v3828
        %v3861 = vpack.c.b16 %v3829, %v3829
        %v3862 = vpack.c.b16 %v3830, %v3830
        %v3863 = vpack.c.b16 %v3831, %v3831
        %v3864 = vpack.c.b16 %v3832, %v3832
        %v3865 = vpack.c.b16 %v3833, %v3833
        %v3866 = vpack.c.b16 %v3834, %v3834
        %v3867 = vpack.c.b16 %v3835, %v3835
        %v3868 = vpack.c.b16 %v3836, %v3836
        %v3869 = vpack.c.b16 %v3837, %v3837
        %v3870 = vpack.c.b16 %v3838, %v3838
        %v3871 = vpack.c.b16 %v3839, %v3839
        %v3872 = vpack.c.b16 %v3840, %v3840
        %v3873 = vpack.c.b16 %v3841, %v3841
        %v3874 = vpack.c.b16 %v3842, %v3842
        %v3875 = vpack.c.b16 %v3843, %v3843
        %vm3876 = vsmask.f32 4368
        %vm3877 = vmor %vm3661, %vm3876
        %v3879 = vshrl.u32 %v3844, 16
        %v3881 = vrot.slane %v3879, 7
        %v3882 = vshll.u32 %v3844, 16
        %v3884 = vor.u32 %v3881, %v3882
        %v3885 = vrot.slane %v3881, 4
        %v3887 = vshrl.u32 %v3845, 16
        %v3889 = vrot.slane %v3887, 7
        %v3890 = vshll.u32 %v3845, 16
        %v3892 = vor.u32 %v3889, %v3890
        %v3893 = vsel %vm3877, %v3885, %v3892
        %v3894 = vrot.slane %v3889, 4
        %v3896 = vshrl.u32 %v3846, 16
        %v3898 = vrot.slane %v3896, 7
        %v3899 = vshll.u32 %v3846, 16
        %v3901 = vor.u32 %v3898, %v3899
        %v3902 = vrot.slane %v3898, 4
        %v3904 = vshrl.u32 %v3847, 16
        %v3906 = vrot.slane %v3904, 7
        %v3907 = vshll.u32 %v3847, 16
        %v3909 = vor.u32 %v3906, %v3907
        %v3910 = vsel %vm3877, %v3902, %v3909
        %v3911 = vrot.slane %v3906, 4
        %v3913 = vshrl.u32 %v3848, 16
        %v3915 = vrot.slane %v3913, 7
        %v3916 = vshll.u32 %v3848, 16
        %v3918 = vor.u32 %v3915, %v3916
        %v3919 = vrot.slane %v3915, 4
        %v3921 = vshrl.u32 %v3849, 16
        %v3923 = vrot.slane %v3921, 7
        %v3924 = vshll.u32 %v3849, 16
        %v3926 = vor.u32 %v3923, %v3924
        %v3927 = vsel %vm3877, %v3919, %v3926
        %v3928 = vrot.slane %v3923, 4
        %v3930 = vshrl.u32 %v3850, 16
        %v3932 = vrot.slane %v3930, 7
        %v3933 = vshll.u32 %v3850, 16
        %v3935 = vor.u32 %v3932, %v3933
        %v3936 = vrot.slane %v3932, 4
        %v3938 = vshrl.u32 %v3851, 16
        %v3940 = vrot.slane %v3938, 7
        %v3941 = vshll.u32 %v3851, 16
        %v3943 = vor.u32 %v3940, %v3941
        %v3944 = vsel %vm3877, %v3936, %v3943
        %v3945 = vrot.slane %v3940, 4
        %v3947 = vshrl.u32 %v3852, 16
        %v3949 = vrot.slane %v3947, 7
        %v3950 = vshll.u32 %v3852, 16
        %v3952 = vor.u32 %v3949, %v3950
        %v3953 = vrot.slane %v3949, 4
        %v3955 = vshrl.u32 %v3853, 16
        %v3957 = vrot.slane %v3955, 7
        %v3958 = vshll.u32 %v3853, 16
        %v3960 = vor.u32 %v3957, %v3958
        %v3961 = vsel %vm3877, %v3953, %v3960
        %v3962 = vrot.slane %v3957, 4
        %v3964 = vshrl.u32 %v3854, 16
        %v3966 = vrot.slane %v3964, 7
        %v3967 = vshll.u32 %v3854, 16
        %v3969 = vor.u32 %v3966, %v3967
        %v3970 = vrot.slane %v3966, 4
        %v3972 = vshrl.u32 %v3855, 16
        %v3974 = vrot.slane %v3972, 7
        %v3975 = vshll.u32 %v3855, 16
        %v3977 = vor.u32 %v3974, %v3975
        %v3978 = vsel %vm3877, %v3970, %v3977
        %v3979 = vrot.slane %v3974, 4
        %v3981 = vshrl.u32 %v3856, 16
        %v3983 = vrot.slane %v3981, 7
        %v3984 = vshll.u32 %v3856, 16
        %v3986 = vor.u32 %v3983, %v3984
        %v3987 = vrot.slane %v3983, 4
        %v3989 = vshrl.u32 %v3857, 16
        %v3991 = vrot.slane %v3989, 7
        %v3992 = vshll.u32 %v3857, 16
        %v3994 = vor.u32 %v3991, %v3992
        %v3995 = vsel %vm3877, %v3987, %v3994
        %v3996 = vrot.slane %v3991, 4
        %v3998 = vshrl.u32 %v3858, 16
        %v4000 = vrot.slane %v3998, 7
        %v4001 = vshll.u32 %v3858, 16
        %v4003 = vor.u32 %v4000, %v4001
        %v4004 = vrot.slane %v4000, 4
        %v4006 = vshrl.u32 %v3859, 16
        %v4008 = vrot.slane %v4006, 7
        %v4009 = vshll.u32 %v3859, 16
        %v4011 = vor.u32 %v4008, %v4009
        %v4012 = vsel %vm3877, %v4004, %v4011
        %v4013 = vrot.slane %v4008, 4
        %v4015 = vshrl.u32 %v3860, 16
        %v4017 = vrot.slane %v4015, 7
        %v4018 = vshll.u32 %v3860, 16
        %v4020 = vor.u32 %v4017, %v4018
        %v4021 = vrot.slane %v4017, 4
        %v4023 = vshrl.u32 %v3861, 16
        %v4025 = vrot.slane %v4023, 7
        %v4026 = vshll.u32 %v3861, 16
        %v4028 = vor.u32 %v4025, %v4026
        %v4029 = vsel %vm3877, %v4021, %v4028
        %v4030 = vrot.slane %v4025, 4
        %v4032 = vshrl.u32 %v3862, 16
        %v4034 = vrot.slane %v4032, 7
        %v4035 = vshll.u32 %v3862, 16
        %v4037 = vor.u32 %v4034, %v4035
        %v4038 = vrot.slane %v4034, 4
        %v4040 = vshrl.u32 %v3863, 16
        %v4042 = vrot.slane %v4040, 7
        %v4043 = vshll.u32 %v3863, 16
        %v4045 = vor.u32 %v4042, %v4043
        %v4046 = vsel %vm3877, %v4038, %v4045
        %v4047 = vrot.slane %v4042, 4
        %v4049 = vshrl.u32 %v3864, 16
        %v4051 = vrot.slane %v4049, 7
        %v4052 = vshll.u32 %v3864, 16
        %v4054 = vor.u32 %v4051, %v4052
        %v4055 = vrot.slane %v4051, 4
        %v4057 = vshrl.u32 %v3865, 16
        %v4059 = vrot.slane %v4057, 7
        %v4060 = vshll.u32 %v3865, 16
        %v4062 = vor.u32 %v4059, %v4060
        %v4063 = vsel %vm3877, %v4055, %v4062
        %v4064 = vrot.slane %v4059, 4
        %v4066 = vshrl.u32 %v3866, 16
        %v4068 = vrot.slane %v4066, 7
        %v4069 = vshll.u32 %v3866, 16
        %v4071 = vor.u32 %v4068, %v4069
        %v4072 = vrot.slane %v4068, 4
        %v4074 = vshrl.u32 %v3867, 16
        %v4076 = vrot.slane %v4074, 7
        %v4077 = vshll.u32 %v3867, 16
        %v4079 = vor.u32 %v4076, %v4077
        %v4080 = vsel %vm3877, %v4072, %v4079
        %v4081 = vrot.slane %v4076, 4
        %v4083 = vshrl.u32 %v3868, 16
        %v4085 = vrot.slane %v4083, 7
        %v4086 = vshll.u32 %v3868, 16
        %v4088 = vor.u32 %v4085, %v4086
        %v4089 = vrot.slane %v4085, 4
        %v4091 = vshrl.u32 %v3869, 16
        %v4093 = vrot.slane %v4091, 7
        %v4094 = vshll.u32 %v3869, 16
        %v4096 = vor.u32 %v4093, %v4094
        %v4097 = vsel %vm3877, %v4089, %v4096
        %v4098 = vrot.slane %v4093, 4
        %v4100 = vshrl.u32 %v3870, 16
        %v4102 = vrot.slane %v4100, 7
        %v4103 = vshll.u32 %v3870, 16
        %v4105 = vor.u32 %v4102, %v4103
        %v4106 = vrot.slane %v4102, 4
        %v4108 = vshrl.u32 %v3871, 16
        %v4110 = vrot.slane %v4108, 7
        %v4111 = vshll.u32 %v3871, 16
        %v4113 = vor.u32 %v4110, %v4111
        %v4114 = vsel %vm3877, %v4106, %v4113
        %v4115 = vrot.slane %v4110, 4
        %v4117 = vshrl.u32 %v3872, 16
        %v4119 = vrot.slane %v4117, 7
        %v4120 = vshll.u32 %v3872, 16
        %v4122 = vor.u32 %v4119, %v4120
        %v4123 = vrot.slane %v4119, 4
        %v4125 = vshrl.u32 %v3873, 16
        %v4127 = vrot.slane %v4125, 7
        %v4128 = vshll.u32 %v3873, 16
        %v4130 = vor.u32 %v4127, %v4128
        %v4131 = vsel %vm3877, %v4123, %v4130
        %v4132 = vrot.slane %v4127, 4
        %v4134 = vshrl.u32 %v3874, 16
        %v4136 = vrot.slane %v4134, 7
        %v4137 = vshll.u32 %v3874, 16
        %v4139 = vor.u32 %v4136, %v4137
        %v4140 = vrot.slane %v4136, 4
        %v4142 = vshrl.u32 %v3875, 16
        %v4144 = vrot.slane %v4142, 7
        %v4145 = vshll.u32 %v3875, 16
        %v4147 = vor.u32 %v4144, %v4145
        %v4148 = vsel %vm3877, %v4140, %v4147
        %v4149 = vrot.slane %v4144, 4
        %s4198 = scalar_lea.vmem [#allocation3], 12
        %vm4199 = vcmask 1043456
        %vm4200 = vmand %vm4199, %vm3717
        %v4201 = vld [vmem:[%s4198] sm:$0xf]
        %v4202 = vsel %vm4200, %v3884, %v4201
        %4203 = vst [vmem:[%s4198] sm:$0xf] %v4202
        %4204 = vst [vmem:[%s4198 + $0x4] sm:$0xf] %v3893
        %v4205 = vld [vmem:[%s4198 + $0x8] sm:$0x1]
        %v4206 = vsel %vm3662, %v3894, %v4205
        %4207 = vst [vmem:[%s4198 + $0x8] sm:$0x1] %v4206
        %v4208 = vld [vmem:[%s4198 + $0xc] sm:$0xf]
        %v4209 = vsel %vm4200, %v3901, %v4208
        %4210 = vst [vmem:[%s4198 + $0xc] sm:$0xf] %v4209
        %4211 = vst [vmem:[%s4198 + $0x10] sm:$0xf] %v3910
        %v4212 = vld [vmem:[%s4198 + $0x14] sm:$0x1]
        %v4213 = vsel %vm3662, %v3911, %v4212
        %4214 = vst [vmem:[%s4198 + $0x14] sm:$0x1] %v4213
        %v4215 = vld [vmem:[%s4198 + $0x18] sm:$0xf]
        %v4216 = vsel %vm4200, %v3918, %v4215
        %4217 = vst [vmem:[%s4198 + $0x18] sm:$0xf] %v4216
        %4218 = vst [vmem:[%s4198 + $0x1c] sm:$0xf] %v3927
        %v4219 = vld [vmem:[%s4198 + $0x20] sm:$0x1]
        %v4220 = vsel %vm3662, %v3928, %v4219
        %4221 = vst [vmem:[%s4198 + $0x20] sm:$0x1] %v4220
        %v4222 = vld [vmem:[%s4198 + $0x24] sm:$0xf]
        %v4223 = vsel %vm4200, %v3935, %v4222
        %4224 = vst [vmem:[%s4198 + $0x24] sm:$0xf] %v4223
        %4225 = vst [vmem:[%s4198 + $0x28] sm:$0xf] %v3944
        %v4226 = vld [vmem:[%s4198 + $0x2c] sm:$0x1]
        %v4227 = vsel %vm3662, %v3945, %v4226
        %4228 = vst [vmem:[%s4198 + $0x2c] sm:$0x1] %v4227
        %v4229 = vld [vmem:[%s4198 + $0x30] sm:$0xf]
        %v4230 = vsel %vm4200, %v3952, %v4229
        %4231 = vst [vmem:[%s4198 + $0x30] sm:$0xf] %v4230
        %4232 = vst [vmem:[%s4198 + $0x34] sm:$0xf] %v3961
        %v4233 = vld [vmem:[%s4198 + $0x38] sm:$0x1]
        %v4234 = vsel %vm3662, %v3962, %v4233
        %4235 = vst [vmem:[%s4198 + $0x38] sm:$0x1] %v4234
        %v4236 = vld [vmem:[%s4198 + $0x3c] sm:$0xf]
        %v4237 = vsel %vm4200, %v3969, %v4236
        %4238 = vst [vmem:[%s4198 + $0x3c] sm:$0xf] %v4237
        %4239 = vst [vmem:[%s4198 + $0x40] sm:$0xf] %v3978
        %v4240 = vld [vmem:[%s4198 + $0x44] sm:$0x1]
        %v4241 = vsel %vm3662, %v3979, %v4240
        %4242 = vst [vmem:[%s4198 + $0x44] sm:$0x1] %v4241
        %v4243 = vld [vmem:[%s4198 + $0x48] sm:$0xf]
        %v4244 = vsel %vm4200, %v3986, %v4243
        %4245 = vst [vmem:[%s4198 + $0x48] sm:$0xf] %v4244
        %4246 = vst [vmem:[%s4198 + $0x4c] sm:$0xf] %v3995
        %v4247 = vld [vmem:[%s4198 + $0x50] sm:$0x1]
        %v4248 = vsel %vm3662, %v3996, %v4247
        %4249 = vst [vmem:[%s4198 + $0x50] sm:$0x1] %v4248
        %v4250 = vld [vmem:[%s4198 + $0x54] sm:$0xf]
        %v4251 = vsel %vm4200, %v4003, %v4250
        %4252 = vst [vmem:[%s4198 + $0x54] sm:$0xf] %v4251
        %4253 = vst [vmem:[%s4198 + $0x58] sm:$0xf] %v4012
        %v4254 = vld [vmem:[%s4198 + $0x5c] sm:$0x1]
        %v4255 = vsel %vm3662, %v4013, %v4254
        %4256 = vst [vmem:[%s4198 + $0x5c] sm:$0x1] %v4255
        %v4257 = vld [vmem:[%s4198 + $0x60] sm:$0xf]
        %v4258 = vsel %vm4200, %v4020, %v4257
        %4259 = vst [vmem:[%s4198 + $0x60] sm:$0xf] %v4258
        %4260 = vst [vmem:[%s4198 + $0x64] sm:$0xf] %v4029
        %v4261 = vld [vmem:[%s4198 + $0x68] sm:$0x1]
        %v4262 = vsel %vm3662, %v4030, %v4261
        %4263 = vst [vmem:[%s4198 + $0x68] sm:$0x1] %v4262
        %v4264 = vld [vmem:[%s4198 + $0x6c] sm:$0xf]
        %v4265 = vsel %vm4200, %v4037, %v4264
        %4266 = vst [vmem:[%s4198 + $0x6c] sm:$0xf] %v4265
        %4267 = vst [vmem:[%s4198 + $0x70] sm:$0xf] %v4046
        %v4268 = vld [vmem:[%s4198 + $0x74] sm:$0x1]
        %v4269 = vsel %vm3662, %v4047, %v4268
        %4270 = vst [vmem:[%s4198 + $0x74] sm:$0x1] %v4269
        %v4271 = vld [vmem:[%s4198 + $0x78] sm:$0xf]
        %v4272 = vsel %vm4200, %v4054, %v4271
        %4273 = vst [vmem:[%s4198 + $0x78] sm:$0xf] %v4272
        %4274 = vst [vmem:[%s4198 + $0x7c] sm:$0xf] %v4063
        %v4275 = vld [vmem:[%s4198 + $0x80] sm:$0x1]
        %v4276 = vsel %vm3662, %v4064, %v4275
        %4277 = vst [vmem:[%s4198 + $0x80] sm:$0x1] %v4276
        %v4278 = vld [vmem:[%s4198 + $0x84] sm:$0xf]
        %v4279 = vsel %vm4200, %v4071, %v4278
        %4280 = vst [vmem:[%s4198 + $0x84] sm:$0xf] %v4279
        %4281 = vst [vmem:[%s4198 + $0x88] sm:$0xf] %v4080
        %v4282 = vld [vmem:[%s4198 + $0x8c] sm:$0x1]
        %v4283 = vsel %vm3662, %v4081, %v4282
        %4284 = vst [vmem:[%s4198 + $0x8c] sm:$0x1] %v4283
        %v4285 = vld [vmem:[%s4198 + $0x90] sm:$0xf]
        %v4286 = vsel %vm4200, %v4088, %v4285
        %4287 = vst [vmem:[%s4198 + $0x90] sm:$0xf] %v4286
        %4288 = vst [vmem:[%s4198 + $0x94] sm:$0xf] %v4097
        %v4289 = vld [vmem:[%s4198 + $0x98] sm:$0x1]
        %v4290 = vsel %vm3662, %v4098, %v4289
        %4291 = vst [vmem:[%s4198 + $0x98] sm:$0x1] %v4290
        %v4292 = vld [vmem:[%s4198 + $0x9c] sm:$0xf]
        %v4293 = vsel %vm4200, %v4105, %v4292
        %4294 = vst [vmem:[%s4198 + $0x9c] sm:$0xf] %v4293
        %4295 = vst [vmem:[%s4198 + $0xa0] sm:$0xf] %v4114
        %v4296 = vld [vmem:[%s4198 + $0xa4] sm:$0x1]
        %v4297 = vsel %vm3662, %v4115, %v4296
        %4298 = vst [vmem:[%s4198 + $0xa4] sm:$0x1] %v4297
        %v4299 = vld [vmem:[%s4198 + $0xa8] sm:$0xf]
        %v4300 = vsel %vm4200, %v4122, %v4299
        %4301 = vst [vmem:[%s4198 + $0xa8] sm:$0xf] %v4300
        %4302 = vst [vmem:[%s4198 + $0xac] sm:$0xf] %v4131
        %v4303 = vld [vmem:[%s4198 + $0xb0] sm:$0x1]
        %v4304 = vsel %vm3662, %v4132, %v4303
        %4305 = vst [vmem:[%s4198 + $0xb0] sm:$0x1] %v4304
        %v4306 = vld [vmem:[%s4198 + $0xb4] sm:$0xf]
        %v4307 = vsel %vm4200, %v4139, %v4306
        %4308 = vst [vmem:[%s4198 + $0xb4] sm:$0xf] %v4307
        %4309 = vst [vmem:[%s4198 + $0xb8] sm:$0xf] %v4148
        %v4310 = vld [vmem:[%s4198 + $0xbc] sm:$0x1]
        %v4311 = vsel %vm3662, %v4149, %v4310
        %4312 = vst [vmem:[%s4198 + $0xbc] sm:$0x1] %v4311
        %v4313 = vld [vmem:[#allocation3] sm:$0xf]
        %v4314 = vld [vmem:[#allocation3 + $0x4] sm:$0xf]
        %v4315 = vld [vmem:[#allocation3 + $0xc] sm:$0xf]
        %v4316 = vld [vmem:[#allocation3 + $0x10] sm:$0xf]
        %v4317 = vld [vmem:[#allocation3 + $0x18] sm:$0xf]
        %v4318 = vld [vmem:[#allocation3 + $0x1c] sm:$0xf]
        %v4319 = vld [vmem:[#allocation3 + $0x24] sm:$0xf]
        %v4320 = vld [vmem:[#allocation3 + $0x28] sm:$0xf]
        %v4321 = vld [vmem:[#allocation3 + $0x30] sm:$0xf]
        %v4322 = vld [vmem:[#allocation3 + $0x34] sm:$0xf]
        %v4323 = vld [vmem:[#allocation3 + $0x3c] sm:$0xf]
        %v4324 = vld [vmem:[#allocation3 + $0x40] sm:$0xf]
        %v4325 = vld [vmem:[#allocation3 + $0x48] sm:$0xf]
        %v4326 = vld [vmem:[#allocation3 + $0x4c] sm:$0xf]
        %v4327 = vld [vmem:[#allocation3 + $0x54] sm:$0xf]
        %v4328 = vld [vmem:[#allocation3 + $0x58] sm:$0xf]
        %v4329 = vld [vmem:[#allocation3 + $0x60] sm:$0xf]
        %v4330 = vld [vmem:[#allocation3 + $0x64] sm:$0xf]
        %v4331 = vld [vmem:[#allocation3 + $0x6c] sm:$0xf]
        %v4332 = vld [vmem:[#allocation3 + $0x70] sm:$0xf]
        %v4333 = vld [vmem:[#allocation3 + $0x78] sm:$0xf]
        %v4334 = vld [vmem:[#allocation3 + $0x7c] sm:$0xf]
        %v4335 = vld [vmem:[#allocation3 + $0x84] sm:$0xf]
        %v4336 = vld [vmem:[#allocation3 + $0x88] sm:$0xf]
        %v4337 = vld [vmem:[#allocation3 + $0x90] sm:$0xf]
        %v4338 = vld [vmem:[#allocation3 + $0x94] sm:$0xf]
        %v4339 = vld [vmem:[#allocation3 + $0x9c] sm:$0xf]
        %v4340 = vld [vmem:[#allocation3 + $0xa0] sm:$0xf]
        %v4341 = vld [vmem:[#allocation3 + $0xa8] sm:$0xf]
        %v4342 = vld [vmem:[#allocation3 + $0xac] sm:$0xf]
        %v4343 = vld [vmem:[#allocation3 + $0xb4] sm:$0xf]
        %v4344 = vld [vmem:[#allocation3 + $0xb8] sm:$0xf]
        %v4345 = vld [vmem:[%s3] sm:$0xf]
        %v4346 = vld [vmem:[%s3 + $0x4] sm:$0xf]
        %v4347 = vld [vmem:[%s3 + $0x8] sm:$0xf]
        %v4348 = vld [vmem:[%s3 + $0xc] sm:$0xf]
        %v4349 = vld [vmem:[%s3 + $0x10] sm:$0xf]
        %v4350 = vld [vmem:[%s3 + $0x14] sm:$0xf]
        %v4351 = vld [vmem:[%s3 + $0x18] sm:$0xf]
        %v4352 = vld [vmem:[%s3 + $0x1c] sm:$0xf]
        %v4353 = vld [vmem:[%s3 + $0x20] sm:$0xf]
        %v4354 = vld [vmem:[%s3 + $0x24] sm:$0xf]
        %v4355 = vld [vmem:[%s3 + $0x28] sm:$0xf]
        %v4356 = vld [vmem:[%s3 + $0x2c] sm:$0xf]
        %v4357 = vld [vmem:[%s3 + $0x30] sm:$0xf]
        %v4358 = vld [vmem:[%s3 + $0x34] sm:$0xf]
        %v4359 = vld [vmem:[%s3 + $0x38] sm:$0xf]
        %v4360 = vld [vmem:[%s3 + $0x3c] sm:$0xf]
        %v4361 = vld [vmem:[#allocation3 + $0x8] sm:$0x1]
        %v4362 = vld [vmem:[#allocation3 + $0x14] sm:$0x1]
        %v4363 = vld [vmem:[#allocation3 + $0x20] sm:$0x1]
        %v4364 = vld [vmem:[#allocation3 + $0x2c] sm:$0x1]
        %v4365 = vld [vmem:[#allocation3 + $0x38] sm:$0x1]
        %v4366 = vld [vmem:[#allocation3 + $0x44] sm:$0x1]
        %v4367 = vld [vmem:[#allocation3 + $0x50] sm:$0x1]
        %v4368 = vld [vmem:[#allocation3 + $0x5c] sm:$0x1]
        %v4369 = vld [vmem:[#allocation3 + $0x68] sm:$0x1]
        %v4370 = vld [vmem:[#allocation3 + $0x74] sm:$0x1]
        %v4371 = vld [vmem:[#allocation3 + $0x80] sm:$0x1]
        %v4372 = vld [vmem:[#allocation3 + $0x8c] sm:$0x1]
        %v4373 = vld [vmem:[#allocation3 + $0x98] sm:$0x1]
        %v4374 = vld [vmem:[#allocation3 + $0xa4] sm:$0x1]
        %v4375 = vld [vmem:[#allocation3 + $0xb0] sm:$0x1]
        %v4376 = vld [vmem:[#allocation3 + $0xbc] sm:$0x1]
        %v4378 = vshrl.u32 %v4313, 16
        %v4380 = vrot.slane %v4378, 4
        %v4381 = vshll.u32 %v4313, 16
        %v4383 = vrot.slane %v4381, 5
        %v4384 = vor.u32 %v4380, %v4383
        %v4385 = vrot.slane %v4384, 4
        %v4387 = vshll.u32 %v4314, 16
        %v4389 = vrot.slane %v4387, 5
        %v4390 = vsel %vm461, %v4385, %v4389
        %v4391 = vshrl.u32 %v4314, 16
        %v4393 = vrot.slane %v4391, 4
        %v4394 = vor.u32 %v4393, %v4389
        %v4395 = vrot.slane %v4394, 4
        %v4397 = vshll.u32 %v4361, 16
        %v4399 = vrot.slane %v4397, 5
        %v4400 = vsel %vm461, %v4395, %v4399
        %v4402 = vshrl.u32 %v4315, 16
        %v4404 = vrot.slane %v4402, 4
        %v4405 = vshll.u32 %v4315, 16
        %v4407 = vrot.slane %v4405, 5
        %v4408 = vor.u32 %v4404, %v4407
        %v4409 = vrot.slane %v4408, 4
        %v4411 = vshll.u32 %v4316, 16
        %v4413 = vrot.slane %v4411, 5
        %v4414 = vsel %vm461, %v4409, %v4413
        %v4415 = vshrl.u32 %v4316, 16
        %v4417 = vrot.slane %v4415, 4
        %v4418 = vor.u32 %v4417, %v4413
        %v4419 = vrot.slane %v4418, 4
        %v4421 = vshll.u32 %v4362, 16
        %v4423 = vrot.slane %v4421, 5
        %v4424 = vsel %vm461, %v4419, %v4423
        %v4426 = vshrl.u32 %v4317, 16
        %v4428 = vrot.slane %v4426, 4
        %v4429 = vshll.u32 %v4317, 16
        %v4431 = vrot.slane %v4429, 5
        %v4432 = vor.u32 %v4428, %v4431
        %v4433 = vrot.slane %v4432, 4
        %v4435 = vshll.u32 %v4318, 16
        %v4437 = vrot.slane %v4435, 5
        %v4438 = vsel %vm461, %v4433, %v4437
        %v4439 = vshrl.u32 %v4318, 16
        %v4441 = vrot.slane %v4439, 4
        %v4442 = vor.u32 %v4441, %v4437
        %v4443 = vrot.slane %v4442, 4
        %v4445 = vshll.u32 %v4363, 16
        %v4447 = vrot.slane %v4445, 5
        %v4448 = vsel %vm461, %v4443, %v4447
        %v4450 = vshrl.u32 %v4319, 16
        %v4452 = vrot.slane %v4450, 4
        %v4453 = vshll.u32 %v4319, 16
        %v4455 = vrot.slane %v4453, 5
        %v4456 = vor.u32 %v4452, %v4455
        %v4457 = vrot.slane %v4456, 4
        %v4459 = vshll.u32 %v4320, 16
        %v4461 = vrot.slane %v4459, 5
        %v4462 = vsel %vm461, %v4457, %v4461
        %v4463 = vshrl.u32 %v4320, 16
        %v4465 = vrot.slane %v4463, 4
        %v4466 = vor.u32 %v4465, %v4461
        %v4467 = vrot.slane %v4466, 4
        %v4469 = vshll.u32 %v4364, 16
        %v4471 = vrot.slane %v4469, 5
        %v4472 = vsel %vm461, %v4467, %v4471
        %v4474 = vshrl.u32 %v4321, 16
        %v4476 = vrot.slane %v4474, 4
        %v4477 = vshll.u32 %v4321, 16
        %v4479 = vrot.slane %v4477, 5
        %v4480 = vor.u32 %v4476, %v4479
        %v4481 = vrot.slane %v4480, 4
        %v4483 = vshll.u32 %v4322, 16
        %v4485 = vrot.slane %v4483, 5
        %v4486 = vsel %vm461, %v4481, %v4485
        %v4487 = vshrl.u32 %v4322, 16
        %v4489 = vrot.slane %v4487, 4
        %v4490 = vor.u32 %v4489, %v4485
        %v4491 = vrot.slane %v4490, 4
        %v4493 = vshll.u32 %v4365, 16
        %v4495 = vrot.slane %v4493, 5
        %v4496 = vsel %vm461, %v4491, %v4495
        %v4498 = vshrl.u32 %v4323, 16
        %v4500 = vrot.slane %v4498, 4
        %v4501 = vshll.u32 %v4323, 16
        %v4503 = vrot.slane %v4501, 5
        %v4504 = vor.u32 %v4500, %v4503
        %v4505 = vrot.slane %v4504, 4
        %v4507 = vshll.u32 %v4324, 16
        %v4509 = vrot.slane %v4507, 5
        %v4510 = vsel %vm461, %v4505, %v4509
        %v4511 = vshrl.u32 %v4324, 16
        %v4513 = vrot.slane %v4511, 4
        %v4514 = vor.u32 %v4513, %v4509
        %v4515 = vrot.slane %v4514, 4
        %v4517 = vshll.u32 %v4366, 16
        %v4519 = vrot.slane %v4517, 5
        %v4520 = vsel %vm461, %v4515, %v4519
        %v4522 = vshrl.u32 %v4325, 16
        %v4524 = vrot.slane %v4522, 4
        %v4525 = vshll.u32 %v4325, 16
        %v4527 = vrot.slane %v4525, 5
        %v4528 = vor.u32 %v4524, %v4527
        %v4529 = vrot.slane %v4528, 4
        %v4531 = vshll.u32 %v4326, 16
        %v4533 = vrot.slane %v4531, 5
        %v4534 = vsel %vm461, %v4529, %v4533
        %v4535 = vshrl.u32 %v4326, 16
        %v4537 = vrot.slane %v4535, 4
        %v4538 = vor.u32 %v4537, %v4533
        %v4539 = vrot.slane %v4538, 4
        %v4541 = vshll.u32 %v4367, 16
        %v4543 = vrot.slane %v4541, 5
        %v4544 = vsel %vm461, %v4539, %v4543
        %v4546 = vshrl.u32 %v4327, 16
        %v4548 = vrot.slane %v4546, 4
        %v4549 = vshll.u32 %v4327, 16
        %v4551 = vrot.slane %v4549, 5
        %v4552 = vor.u32 %v4548, %v4551
        %v4553 = vrot.slane %v4552, 4
        %v4555 = vshll.u32 %v4328, 16
        %v4557 = vrot.slane %v4555, 5
        %v4558 = vsel %vm461, %v4553, %v4557
        %v4559 = vshrl.u32 %v4328, 16
        %v4561 = vrot.slane %v4559, 4
        %v4562 = vor.u32 %v4561, %v4557
        %v4563 = vrot.slane %v4562, 4
        %v4565 = vshll.u32 %v4368, 16
        %v4567 = vrot.slane %v4565, 5
        %v4568 = vsel %vm461, %v4563, %v4567
        %v4570 = vshrl.u32 %v4329, 16
        %v4572 = vrot.slane %v4570, 4
        %v4573 = vshll.u32 %v4329, 16
        %v4575 = vrot.slane %v4573, 5
        %v4576 = vor.u32 %v4572, %v4575
        %v4577 = vrot.slane %v4576, 4
        %v4579 = vshll.u32 %v4330, 16
        %v4581 = vrot.slane %v4579, 5
        %v4582 = vsel %vm461, %v4577, %v4581
        %v4583 = vshrl.u32 %v4330, 16
        %v4585 = vrot.slane %v4583, 4
        %v4586 = vor.u32 %v4585, %v4581
        %v4587 = vrot.slane %v4586, 4
        %v4589 = vshll.u32 %v4369, 16
        %v4591 = vrot.slane %v4589, 5
        %v4592 = vsel %vm461, %v4587, %v4591
        %v4594 = vshrl.u32 %v4331, 16
        %v4596 = vrot.slane %v4594, 4
        %v4597 = vshll.u32 %v4331, 16
        %v4599 = vrot.slane %v4597, 5
        %v4600 = vor.u32 %v4596, %v4599
        %v4601 = vrot.slane %v4600, 4
        %v4603 = vshll.u32 %v4332, 16
        %v4605 = vrot.slane %v4603, 5
        %v4606 = vsel %vm461, %v4601, %v4605
        %v4607 = vshrl.u32 %v4332, 16
        %v4609 = vrot.slane %v4607, 4
        %v4610 = vor.u32 %v4609, %v4605
        %v4611 = vrot.slane %v4610, 4
        %v4613 = vshll.u32 %v4370, 16
        %v4615 = vrot.slane %v4613, 5
        %v4616 = vsel %vm461, %v4611, %v4615
        %v4618 = vshrl.u32 %v4333, 16
        %v4620 = vrot.slane %v4618, 4
        %v4621 = vshll.u32 %v4333, 16
        %v4623 = vrot.slane %v4621, 5
        %v4624 = vor.u32 %v4620, %v4623
        %v4625 = vrot.slane %v4624, 4
        %v4627 = vshll.u32 %v4334, 16
        %v4629 = vrot.slane %v4627, 5
        %v4630 = vsel %vm461, %v4625, %v4629
        %v4631 = vshrl.u32 %v4334, 16
        %v4633 = vrot.slane %v4631, 4
        %v4634 = vor.u32 %v4633, %v4629
        %v4635 = vrot.slane %v4634, 4
        %v4637 = vshll.u32 %v4371, 16
        %v4639 = vrot.slane %v4637, 5
        %v4640 = vsel %vm461, %v4635, %v4639
        %v4642 = vshrl.u32 %v4335, 16
        %v4644 = vrot.slane %v4642, 4
        %v4645 = vshll.u32 %v4335, 16
        %v4647 = vrot.slane %v4645, 5
        %v4648 = vor.u32 %v4644, %v4647
        %v4649 = vrot.slane %v4648, 4
        %v4651 = vshll.u32 %v4336, 16
        %v4653 = vrot.slane %v4651, 5
        %v4654 = vsel %vm461, %v4649, %v4653
        %v4655 = vshrl.u32 %v4336, 16
        %v4657 = vrot.slane %v4655, 4
        %v4658 = vor.u32 %v4657, %v4653
        %v4659 = vrot.slane %v4658, 4
        %v4661 = vshll.u32 %v4372, 16
        %v4663 = vrot.slane %v4661, 5
        %v4664 = vsel %vm461, %v4659, %v4663
        %v4666 = vshrl.u32 %v4337, 16
        %v4668 = vrot.slane %v4666, 4
        %v4669 = vshll.u32 %v4337, 16
        %v4671 = vrot.slane %v4669, 5
        %v4672 = vor.u32 %v4668, %v4671
        %v4673 = vrot.slane %v4672, 4
        %v4675 = vshll.u32 %v4338, 16
        %v4677 = vrot.slane %v4675, 5
        %v4678 = vsel %vm461, %v4673, %v4677
        %v4679 = vshrl.u32 %v4338, 16
        %v4681 = vrot.slane %v4679, 4
        %v4682 = vor.u32 %v4681, %v4677
        %v4683 = vrot.slane %v4682, 4
        %v4685 = vshll.u32 %v4373, 16
        %v4687 = vrot.slane %v4685, 5
        %v4688 = vsel %vm461, %v4683, %v4687
        %v4690 = vshrl.u32 %v4339, 16
        %v4692 = vrot.slane %v4690, 4
        %v4693 = vshll.u32 %v4339, 16
        %v4695 = vrot.slane %v4693, 5
        %v4696 = vor.u32 %v4692, %v4695
        %v4697 = vrot.slane %v4696, 4
        %v4699 = vshll.u32 %v4340, 16
        %v4701 = vrot.slane %v4699, 5
        %v4702 = vsel %vm461, %v4697, %v4701
        %v4703 = vshrl.u32 %v4340, 16
        %v4705 = vrot.slane %v4703, 4
        %v4706 = vor.u32 %v4705, %v4701
        %v4707 = vrot.slane %v4706, 4
        %v4709 = vshll.u32 %v4374, 16
        %v4711 = vrot.slane %v4709, 5
        %v4712 = vsel %vm461, %v4707, %v4711
        %v4714 = vshrl.u32 %v4341, 16
        %v4716 = vrot.slane %v4714, 4
        %v4717 = vshll.u32 %v4341, 16
        %v4719 = vrot.slane %v4717, 5
        %v4720 = vor.u32 %v4716, %v4719
        %v4721 = vrot.slane %v4720, 4
        %v4723 = vshll.u32 %v4342, 16
        %v4725 = vrot.slane %v4723, 5
        %v4726 = vsel %vm461, %v4721, %v4725
        %v4727 = vshrl.u32 %v4342, 16
        %v4729 = vrot.slane %v4727, 4
        %v4730 = vor.u32 %v4729, %v4725
        %v4731 = vrot.slane %v4730, 4
        %v4733 = vshll.u32 %v4375, 16
        %v4735 = vrot.slane %v4733, 5
        %v4736 = vsel %vm461, %v4731, %v4735
        %v4738 = vshrl.u32 %v4343, 16
        %v4740 = vrot.slane %v4738, 4
        %v4741 = vshll.u32 %v4343, 16
        %v4743 = vrot.slane %v4741, 5
        %v4744 = vor.u32 %v4740, %v4743
        %v4745 = vrot.slane %v4744, 4
        %v4747 = vshll.u32 %v4344, 16
        %v4749 = vrot.slane %v4747, 5
        %v4750 = vsel %vm461, %v4745, %v4749
        %v4751 = vshrl.u32 %v4344, 16
        %v4753 = vrot.slane %v4751, 4
        %v4754 = vor.u32 %v4753, %v4749
        %v4755 = vrot.slane %v4754, 4
        %v4757 = vshll.u32 %v4376, 16
        %v4759 = vrot.slane %v4757, 5
        %v4760 = vsel %vm461, %v4755, %v4759
        %s4761 = scalar_lea.vmem %s3, 64
        %v4762 = vld [vmem:[%s4761] sm:$0xf]
        %v4763 = vld [vmem:[%s4761 + $0x4] sm:$0xf]
        %v4764 = vld [vmem:[%s4761 + $0x8] sm:$0xf]
        %v4765 = vld [vmem:[%s4761 + $0xc] sm:$0xf]
        %v4766 = vld [vmem:[%s4761 + $0x10] sm:$0xf]
        %v4767 = vld [vmem:[%s4761 + $0x14] sm:$0xf]
        %v4768 = vld [vmem:[%s4761 + $0x18] sm:$0xf]
        %v4769 = vld [vmem:[%s4761 + $0x1c] sm:$0xf]
        %v4770 = vld [vmem:[%s4761 + $0x20] sm:$0xf]
        %v4771 = vld [vmem:[%s4761 + $0x24] sm:$0xf]
        %v4772 = vld [vmem:[%s4761 + $0x28] sm:$0xf]
        %v4773 = vld [vmem:[%s4761 + $0x2c] sm:$0xf]
        %v4774 = vld [vmem:[%s4761 + $0x30] sm:$0xf]
        %v4775 = vld [vmem:[%s4761 + $0x34] sm:$0xf]
        %v4776 = vld [vmem:[%s4761 + $0x38] sm:$0xf]
        %v4777 = vld [vmem:[%s4761 + $0x3c] sm:$0xf]
        %v4778 = vunpack.c.l.b16 %v4390
        %v4779 = vunpack.c.l.b16 %v4400
        %v4780 = vunpack.c.l.b16 %v4414
        %v4781 = vunpack.c.l.b16 %v4424
        %v4782 = vunpack.c.l.b16 %v4438
        %v4783 = vunpack.c.l.b16 %v4448
        %v4784 = vunpack.c.l.b16 %v4462
        %v4785 = vunpack.c.l.b16 %v4472
        %v4786 = vunpack.c.l.b16 %v4486
        %v4787 = vunpack.c.l.b16 %v4496
        %v4788 = vunpack.c.l.b16 %v4510
        %v4789 = vunpack.c.l.b16 %v4520
        %v4790 = vunpack.c.l.b16 %v4534
        %v4791 = vunpack.c.l.b16 %v4544
        %v4792 = vunpack.c.l.b16 %v4558
        %v4793 = vunpack.c.l.b16 %v4568
        %v4794 = vunpack.c.l.b16 %v4582
        %v4795 = vunpack.c.l.b16 %v4592
        %v4796 = vunpack.c.l.b16 %v4606
        %v4797 = vunpack.c.l.b16 %v4616
        %v4798 = vunpack.c.l.b16 %v4630
        %v4799 = vunpack.c.l.b16 %v4640
        %v4800 = vunpack.c.l.b16 %v4654
        %v4801 = vunpack.c.l.b16 %v4664
        %v4802 = vunpack.c.l.b16 %v4678
        %v4803 = vunpack.c.l.b16 %v4688
        %v4804 = vunpack.c.l.b16 %v4702
        %v4805 = vunpack.c.l.b16 %v4712
        %v4806 = vunpack.c.l.b16 %v4726
        %v4807 = vunpack.c.l.b16 %v4736
        %v4808 = vunpack.c.l.b16 %v4750
        %v4809 = vunpack.c.l.b16 %v4760
        %v4810 = vpack.c.b16 %v4779, %v4778
        %v4811 = vpack.c.b16 %v4781, %v4780
        %v4812 = vpack.c.b16 %v4783, %v4782
        %v4813 = vpack.c.b16 %v4785, %v4784
        %v4814 = vpack.c.b16 %v4787, %v4786
        %v4815 = vpack.c.b16 %v4789, %v4788
        %v4816 = vpack.c.b16 %v4791, %v4790
        %v4817 = vpack.c.b16 %v4793, %v4792
        %v4818 = vpack.c.b16 %v4795, %v4794
        %v4819 = vpack.c.b16 %v4797, %v4796
        %v4820 = vpack.c.b16 %v4799, %v4798
        %v4821 = vpack.c.b16 %v4801, %v4800
        %v4822 = vpack.c.b16 %v4803, %v4802
        %v4823 = vpack.c.b16 %v4805, %v4804
        %v4824 = vpack.c.b16 %v4807, %v4806
        %v4825 = vpack.c.b16 %v4809, %v4808
        %v4858 = vunpack.c.l.b16 %v4762
        %v4859 = vunpack.c.l.b16 %v4763
        %v4860 = vunpack.c.l.b16 %v4764
        %v4861 = vunpack.c.l.b16 %v4765
        %v4862 = vunpack.c.l.b16 %v4766
        %v4863 = vunpack.c.l.b16 %v4767
        %v4864 = vunpack.c.l.b16 %v4768
        %v4865 = vunpack.c.l.b16 %v4769
        %v4866 = vunpack.c.l.b16 %v4770
        %v4867 = vunpack.c.l.b16 %v4771
        %v4868 = vunpack.c.l.b16 %v4772
        %v4869 = vunpack.c.l.b16 %v4773
        %v4870 = vunpack.c.l.b16 %v4774
        %v4871 = vunpack.c.l.b16 %v4775
        %v4872 = vunpack.c.l.b16 %v4776
        %v4873 = vunpack.c.l.b16 %v4777
        %v4874 = vpack.c.b16 %v4859, %v4858
        %v4875 = vpack.c.b16 %v4861, %v4860
        %v4876 = vpack.c.b16 %v4863, %v4862
        %v4877 = vpack.c.b16 %v4865, %v4864
        %v4878 = vpack.c.b16 %v4867, %v4866
        %v4879 = vpack.c.b16 %v4869, %v4868
        %v4880 = vpack.c.b16 %v4871, %v4870
        %v4881 = vpack.c.b16 %v4873, %v4872
        %4890 = vmatprep.subr.bf16.mxu0 0
        %4891 = vmatpush1.bf16.msra.mxu0 %v4874
        %4892 = vmatprep.subr.bf16.mxu0 0
        %4893 = vmatpush1.bf16.msra.mxu0 %v4875
        %4894 = vmatprep.subr.bf16.mxu0 0
        %4895 = vmatpush1.bf16.msra.mxu0 %v4876
        %4896 = vmatprep.subr.bf16.mxu0 0
        %4897 = vmatpush1.bf16.msra.mxu0 %v4877
        %4898 = vmatprep.subr.bf16.mxu0 0
        %4899 = vmatpush1.bf16.msra.mxu0 %v4878
        %4900 = vmatprep.subr.bf16.mxu0 0
        %4901 = vmatpush1.bf16.msra.mxu0 %v4879
        %4902 = vmatprep.subr.bf16.mxu0 0
        %4903 = vmatpush1.bf16.msra.mxu0 %v4880
        %4904 = vmatprep.subr.bf16.mxu0 0
        %4905 = vmatpush1.bf16.msra.mxu0 %v4881
        %4906 = vmatprep.subr.bf16.mxu0 0
        %4907 = vmatpush1.bf16.msra.mxu0 0
        %4908 = vmatprep.subr.bf16.mxu0 0
        %4909 = vmatpush1.bf16.msra.mxu0 0
        %4910 = vmatprep.subr.bf16.mxu0 0
        %4911 = vmatpush1.bf16.msra.mxu0 0
        %4912 = vmatprep.subr.bf16.mxu0 0
        %4913 = vmatpush1.bf16.msra.mxu0 0
        %4914 = vmatprep.subr.bf16.mxu0 0
        %4915 = vmatpush1.bf16.msra.mxu0 0
        %4916 = vmatprep.subr.bf16.mxu0 0
        %4917 = vmatpush1.bf16.msra.mxu0 0
        %4918 = vmatprep.subr.bf16.mxu0 0
        %4919 = vmatpush1.bf16.msra.mxu0 0
        %4920 = vmatprep.subr.bf16.mxu0 0
        %4921 = vmatpush1.bf16.msra.mxu0 0
        %4922 = vmatprep.mubr.bf16.mxu0 0
        %4923 = vmatmul.mubr.bf16.gmra.mrb[0].mxu0 %v4810
        %v4924 = vpop.f32.mrb[0].mxu0
        %v4925 = vadd.f32 0.0, %v4924
        %v4926 = vpop.f32.mrb[0].mxu0
        %v4927 = vpop.f32.mrb[0].mxu0
        %v4928 = vadd.f32 0.0, %v4927
        %v4929 = vpop.f32.mrb[0].mxu0
        %4930 = vmatprep.mubr.bf16.mxu0 0
        %4931 = vmatmul.mubr.bf16.gmra.mrb[0].mxu0 %v4811
        %v4932 = vpop.f32.mrb[0].mxu0
        %v4933 = vadd.f32 0.0, %v4932
        %v4934 = vpop.f32.mrb[0].mxu0
        %v4935 = vpop.f32.mrb[0].mxu0
        %v4936 = vadd.f32 0.0, %v4935
        %v4937 = vpop.f32.mrb[0].mxu0
        %4938 = vmatprep.mubr.bf16.mxu0 0
        %4939 = vmatmul.mubr.bf16.gmra.mrb[0].mxu0 %v4812
        %v4940 = vpop.f32.mrb[0].mxu0
        %v4941 = vadd.f32 0.0, %v4940
        %v4942 = vpop.f32.mrb[0].mxu0
        %v4943 = vpop.f32.mrb[0].mxu0
        %v4944 = vadd.f32 0.0, %v4943
        %v4945 = vpop.f32.mrb[0].mxu0
        %4946 = vmatprep.mubr.bf16.mxu0 0
        %4947 = vmatmul.mubr.bf16.gmra.mrb[0].mxu0 %v4813
        %v4948 = vpop.f32.mrb[0].mxu0
        %v4949 = vadd.f32 0.0, %v4948
        %v4950 = vpop.f32.mrb[0].mxu0
        %v4951 = vpop.f32.mrb[0].mxu0
        %v4952 = vadd.f32 0.0, %v4951
        %v4953 = vpop.f32.mrb[0].mxu0
        %4954 = vmatprep.mubr.bf16.mxu0 0
        %4955 = vmatmul.mubr.bf16.gmra.mrb[0].mxu0 %v4814
        %v4956 = vpop.f32.mrb[0].mxu0
        %v4957 = vadd.f32 0.0, %v4956
        %v4958 = vpop.f32.mrb[0].mxu0
        %v4959 = vpop.f32.mrb[0].mxu0
        %v4960 = vadd.f32 0.0, %v4959
        %v4961 = vpop.f32.mrb[0].mxu0
        %4962 = vmatprep.mubr.bf16.mxu0 0
        %4963 = vmatmul.mubr.bf16.gmra.mrb[0].mxu0 %v4815
        %v4964 = vpop.f32.mrb[0].mxu0
        %v4965 = vadd.f32 0.0, %v4964
        %v4966 = vpop.f32.mrb[0].mxu0
        %v4967 = vpop.f32.mrb[0].mxu0
        %v4968 = vadd.f32 0.0, %v4967
        %v4969 = vpop.f32.mrb[0].mxu0
        %4970 = vmatprep.mubr.bf16.mxu0 0
        %4971 = vmatmul.mubr.bf16.gmra.mrb[0].mxu0 %v4816
        %v4972 = vpop.f32.mrb[0].mxu0
        %v4973 = vadd.f32 0.0, %v4972
        %v4974 = vpop.f32.mrb[0].mxu0
        %v4975 = vpop.f32.mrb[0].mxu0
        %v4976 = vadd.f32 0.0, %v4975
        %v4977 = vpop.f32.mrb[0].mxu0
        %4978 = vmatprep.mubr.bf16.mxu0 0
        %4979 = vmatmul.mubr.bf16.gmra.mrb[0].mxu0 %v4817
        %v4980 = vpop.f32.mrb[0].mxu0
        %v4981 = vadd.f32 0.0, %v4980
        %v4982 = vpop.f32.mrb[0].mxu0
        %v4983 = vpop.f32.mrb[0].mxu0
        %v4984 = vadd.f32 0.0, %v4983
        %v4985 = vpop.f32.mrb[0].mxu0
        %4986 = vmatprep.mubr.bf16.mxu0 0
        %4987 = vmatmul.mubr.bf16.gmra.mrb[0].mxu0 %v4818
        %v4988 = vpop.f32.mrb[0].mxu0
        %v4989 = vadd.f32 0.0, %v4988
        %v4990 = vpop.f32.mrb[0].mxu0
        %v4991 = vpop.f32.mrb[0].mxu0
        %v4992 = vadd.f32 0.0, %v4991
        %v4993 = vpop.f32.mrb[0].mxu0
        %4994 = vmatprep.mubr.bf16.mxu0 0
        %4995 = vmatmul.mubr.bf16.gmra.mrb[0].mxu0 %v4819
        %v4996 = vpop.f32.mrb[0].mxu0
        %v4997 = vadd.f32 0.0, %v4996
        %v4998 = vpop.f32.mrb[0].mxu0
        %v4999 = vpop.f32.mrb[0].mxu0
        %v5000 = vadd.f32 0.0, %v4999
        %v5001 = vpop.f32.mrb[0].mxu0
        %5002 = vmatprep.mubr.bf16.mxu0 0
        %5003 = vmatmul.mubr.bf16.gmra.mrb[0].mxu0 %v4820
        %v5004 = vpop.f32.mrb[0].mxu0
        %v5005 = vadd.f32 0.0, %v5004
        %v5006 = vpop.f32.mrb[0].mxu0
        %v5007 = vpop.f32.mrb[0].mxu0
        %v5008 = vadd.f32 0.0, %v5007
        %v5009 = vpop.f32.mrb[0].mxu0
        %5010 = vmatprep.mubr.bf16.mxu0 0
        %5011 = vmatmul.mubr.bf16.gmra.mrb[0].mxu0 %v4821
        %v5012 = vpop.f32.mrb[0].mxu0
        %v5013 = vadd.f32 0.0, %v5012
        %v5014 = vpop.f32.mrb[0].mxu0
        %v5015 = vpop.f32.mrb[0].mxu0
        %v5016 = vadd.f32 0.0, %v5015
        %v5017 = vpop.f32.mrb[0].mxu0
        %5018 = vmatprep.mubr.bf16.mxu0 0
        %5019 = vmatmul.mubr.bf16.gmra.mrb[0].mxu0 %v4822
        %v5020 = vpop.f32.mrb[0].mxu0
        %v5021 = vadd.f32 0.0, %v5020
        %v5022 = vpop.f32.mrb[0].mxu0
        %v5023 = vpop.f32.mrb[0].mxu0
        %v5024 = vadd.f32 0.0, %v5023
        %v5025 = vpop.f32.mrb[0].mxu0
        %5026 = vmatprep.mubr.bf16.mxu0 0
        %5027 = vmatmul.mubr.bf16.gmra.mrb[0].mxu0 %v4823
        %v5028 = vpop.f32.mrb[0].mxu0
        %v5029 = vadd.f32 0.0, %v5028
        %v5030 = vpop.f32.mrb[0].mxu0
        %v5031 = vpop.f32.mrb[0].mxu0
        %v5032 = vadd.f32 0.0, %v5031
        %v5033 = vpop.f32.mrb[0].mxu0
        %5034 = vmatprep.mubr.bf16.mxu0 0
        %5035 = vmatmul.mubr.bf16.gmra.mrb[0].mxu0 %v4824
        %v5036 = vpop.f32.mrb[0].mxu0
        %v5037 = vadd.f32 0.0, %v5036
        %v5038 = vpop.f32.mrb[0].mxu0
        %v5039 = vpop.f32.mrb[0].mxu0
        %v5040 = vadd.f32 0.0, %v5039
        %v5041 = vpop.f32.mrb[0].mxu0
        %5042 = vmatprep.mubr.bf16.mxu0 0
        %5043 = vmatmul.mubr.bf16.gmra.mrb[0].mxu0 %v4825
        %v5044 = vpop.f32.mrb[0].mxu0
        %v5045 = vadd.f32 0.0, %v5044
        %v5046 = vpop.f32.mrb[0].mxu0
        %v5047 = vpop.f32.mrb[0].mxu0
        %v5048 = vadd.f32 0.0, %v5047
        %v5049 = vpop.f32.mrb[0].mxu0
        %5050 = vdwg.mxu0
        %v5083 = vunpack.c.l.b16 %v4313
        %v5084 = vunpack.c.l.b16 %v4314
        %v5085 = vunpack.c.l.b16 %v4315
        %v5086 = vunpack.c.l.b16 %v4316
        %v5087 = vunpack.c.l.b16 %v4317
        %v5088 = vunpack.c.l.b16 %v4318
        %v5089 = vunpack.c.l.b16 %v4319
        %v5090 = vunpack.c.l.b16 %v4320
        %v5091 = vunpack.c.l.b16 %v4321
        %v5092 = vunpack.c.l.b16 %v4322
        %v5093 = vunpack.c.l.b16 %v4323
        %v5094 = vunpack.c.l.b16 %v4324
        %v5095 = vunpack.c.l.b16 %v4325
        %v5096 = vunpack.c.l.b16 %v4326
        %v5097 = vunpack.c.l.b16 %v4327
        %v5098 = vunpack.c.l.b16 %v4328
        %v5099 = vunpack.c.l.b16 %v4329
        %v5100 = vunpack.c.l.b16 %v4330
        %v5101 = vunpack.c.l.b16 %v4331
        %v5102 = vunpack.c.l.b16 %v4332
        %v5103 = vunpack.c.l.b16 %v4333
        %v5104 = vunpack.c.l.b16 %v4334
        %v5105 = vunpack.c.l.b16 %v4335
        %v5106 = vunpack.c.l.b16 %v4336
        %v5107 = vunpack.c.l.b16 %v4337
        %v5108 = vunpack.c.l.b16 %v4338
        %v5109 = vunpack.c.l.b16 %v4339
        %v5110 = vunpack.c.l.b16 %v4340
        %v5111 = vunpack.c.l.b16 %v4341
        %v5112 = vunpack.c.l.b16 %v4342
        %v5113 = vunpack.c.l.b16 %v4343
        %v5114 = vunpack.c.l.b16 %v4344
        %v5115 = vpack.c.b16 %v5084, %v5083
        %v5116 = vpack.c.b16 %v5086, %v5085
        %v5117 = vpack.c.b16 %v5088, %v5087
        %v5118 = vpack.c.b16 %v5090, %v5089
        %v5119 = vpack.c.b16 %v5092, %v5091
        %v5120 = vpack.c.b16 %v5094, %v5093
        %v5121 = vpack.c.b16 %v5096, %v5095
        %v5122 = vpack.c.b16 %v5098, %v5097
        %v5123 = vpack.c.b16 %v5100, %v5099
        %v5124 = vpack.c.b16 %v5102, %v5101
        %v5125 = vpack.c.b16 %v5104, %v5103
        %v5126 = vpack.c.b16 %v5106, %v5105
        %v5127 = vpack.c.b16 %v5108, %v5107
        %v5128 = vpack.c.b16 %v5110, %v5109
        %v5129 = vpack.c.b16 %v5112, %v5111
        %v5130 = vpack.c.b16 %v5114, %v5113
        %v5163 = vunpack.c.l.b16 %v4345
        %v5164 = vunpack.c.l.b16 %v4346
        %v5165 = vunpack.c.l.b16 %v4347
        %v5166 = vunpack.c.l.b16 %v4348
        %v5167 = vunpack.c.l.b16 %v4349
        %v5168 = vunpack.c.l.b16 %v4350
        %v5169 = vunpack.c.l.b16 %v4351
        %v5170 = vunpack.c.l.b16 %v4352
        %v5171 = vunpack.c.l.b16 %v4353
        %v5172 = vunpack.c.l.b16 %v4354
        %v5173 = vunpack.c.l.b16 %v4355
        %v5174 = vunpack.c.l.b16 %v4356
        %v5175 = vunpack.c.l.b16 %v4357
        %v5176 = vunpack.c.l.b16 %v4358
        %v5177 = vunpack.c.l.b16 %v4359
        %v5178 = vunpack.c.l.b16 %v4360
        %v5179 = vpack.c.b16 %v5164, %v5163
        %v5180 = vpack.c.b16 %v5166, %v5165
        %v5181 = vpack.c.b16 %v5168, %v5167
        %v5182 = vpack.c.b16 %v5170, %v5169
        %v5183 = vpack.c.b16 %v5172, %v5171
        %v5184 = vpack.c.b16 %v5174, %v5173
        %v5185 = vpack.c.b16 %v5176, %v5175
        %v5186 = vpack.c.b16 %v5178, %v5177
        %5195 = vmatprep.subr.bf16.mxu0 0
        %5196 = vmatpush1.bf16.msra.mxu0 %v5179
        %5197 = vmatprep.subr.bf16.mxu0 0
        %5198 = vmatpush1.bf16.msra.mxu0 %v5180
        %5199 = vmatprep.subr.bf16.mxu0 0
        %5200 = vmatpush1.bf16.msra.mxu0 %v5181
        %5201 = vmatprep.subr.bf16.mxu0 0
        %5202 = vmatpush1.bf16.msra.mxu0 %v5182
        %5203 = vmatprep.subr.bf16.mxu0 0
        %5204 = vmatpush1.bf16.msra.mxu0 %v5183
        %5205 = vmatprep.subr.bf16.mxu0 0
        %5206 = vmatpush1.bf16.msra.mxu0 %v5184
        %5207 = vmatprep.subr.bf16.mxu0 0
        %5208 = vmatpush1.bf16.msra.mxu0 %v5185
        %5209 = vmatprep.subr.bf16.mxu0 0
        %5210 = vmatpush1.bf16.msra.mxu0 %v5186
        %5211 = vmatprep.subr.bf16.mxu0 0
        %5212 = vmatpush1.bf16.msra.mxu0 0
        %5213 = vmatprep.subr.bf16.mxu0 0
        %5214 = vmatpush1.bf16.msra.mxu0 0
        %5215 = vmatprep.subr.bf16.mxu0 0
        %5216 = vmatpush1.bf16.msra.mxu0 0
        %5217 = vmatprep.subr.bf16.mxu0 0
        %5218 = vmatpush1.bf16.msra.mxu0 0
        %5219 = vmatprep.subr.bf16.mxu0 0
        %5220 = vmatpush1.bf16.msra.mxu0 0
        %5221 = vmatprep.subr.bf16.mxu0 0
        %5222 = vmatpush1.bf16.msra.mxu0 0
        %5223 = vmatprep.subr.bf16.mxu0 0
        %5224 = vmatpush1.bf16.msra.mxu0 0
        %5225 = vmatprep.subr.bf16.mxu0 0
        %5226 = vmatpush1.bf16.msra.mxu0 0
        %5227 = vmatprep.mubr.bf16.mxu0 0
        %5228 = vmatmul.mubr.bf16.gmra.mrb[0].mxu0 %v5115
        %v5229 = vpop.f32.mrb[0].mxu0
        %v5230 = vadd.f32 %v4925, %v5229
        %v5231 = vpop.f32.mrb[0].mxu0
        %v5232 = vpop.f32.mrb[0].mxu0
        %v5233 = vadd.f32 %v4928, %v5232
        %v5234 = vpop.f32.mrb[0].mxu0
        %5235 = vmatprep.mubr.bf16.mxu0 0
        %5236 = vmatmul.mubr.bf16.gmra.mrb[0].mxu0 %v5116
        %v5237 = vpop.f32.mrb[0].mxu0
        %v5238 = vadd.f32 %v4933, %v5237
        %v5239 = vpop.f32.mrb[0].mxu0
        %v5240 = vpop.f32.mrb[0].mxu0
        %v5241 = vadd.f32 %v4936, %v5240
        %v5242 = vpop.f32.mrb[0].mxu0
        %5243 = vmatprep.mubr.bf16.mxu0 0
        %5244 = vmatmul.mubr.bf16.gmra.mrb[0].mxu0 %v5117
        %v5245 = vpop.f32.mrb[0].mxu0
        %v5246 = vadd.f32 %v4941, %v5245
        %v5247 = vpop.f32.mrb[0].mxu0
        %v5248 = vpop.f32.mrb[0].mxu0
        %v5249 = vadd.f32 %v4944, %v5248
        %v5250 = vpop.f32.mrb[0].mxu0
        %5251 = vmatprep.mubr.bf16.mxu0 0
        %5252 = vmatmul.mubr.bf16.gmra.mrb[0].mxu0 %v5118
        %v5253 = vpop.f32.mrb[0].mxu0
        %v5254 = vadd.f32 %v4949, %v5253
        %v5255 = vpop.f32.mrb[0].mxu0
        %v5256 = vpop.f32.mrb[0].mxu0
        %v5257 = vadd.f32 %v4952, %v5256
        %v5258 = vpop.f32.mrb[0].mxu0
        %5259 = vmatprep.mubr.bf16.mxu0 0
        %5260 = vmatmul.mubr.bf16.gmra.mrb[0].mxu0 %v5119
        %v5261 = vpop.f32.mrb[0].mxu0
        %v5262 = vadd.f32 %v4957, %v5261
        %v5263 = vpop.f32.mrb[0].mxu0
        %v5264 = vpop.f32.mrb[0].mxu0
        %v5265 = vadd.f32 %v4960, %v5264
        %v5266 = vpop.f32.mrb[0].mxu0
        %5267 = vmatprep.mubr.bf16.mxu0 0
        %5268 = vmatmul.mubr.bf16.gmra.mrb[0].mxu0 %v5120
        %v5269 = vpop.f32.mrb[0].mxu0
        %v5270 = vadd.f32 %v4965, %v5269
        %v5271 = vpop.f32.mrb[0].mxu0
        %v5272 = vpop.f32.mrb[0].mxu0
        %v5273 = vadd.f32 %v4968, %v5272
        %v5274 = vpop.f32.mrb[0].mxu0
        %5275 = vmatprep.mubr.bf16.mxu0 0
        %5276 = vmatmul.mubr.bf16.gmra.mrb[0].mxu0 %v5121
        %v5277 = vpop.f32.mrb[0].mxu0
        %v5278 = vadd.f32 %v4973, %v5277
        %v5279 = vpop.f32.mrb[0].mxu0
        %v5280 = vpop.f32.mrb[0].mxu0
        %v5281 = vadd.f32 %v4976, %v5280
        %v5282 = vpop.f32.mrb[0].mxu0
        %5283 = vmatprep.mubr.bf16.mxu0 0
        %5284 = vmatmul.mubr.bf16.gmra.mrb[0].mxu0 %v5122
        %v5285 = vpop.f32.mrb[0].mxu0
        %v5286 = vadd.f32 %v4981, %v5285
        %v5287 = vpop.f32.mrb[0].mxu0
        %v5288 = vpop.f32.mrb[0].mxu0
        %v5289 = vadd.f32 %v4984, %v5288
        %v5290 = vpop.f32.mrb[0].mxu0
        %5291 = vmatprep.mubr.bf16.mxu0 0
        %5292 = vmatmul.mubr.bf16.gmra.mrb[0].mxu0 %v5123
        %v5293 = vpop.f32.mrb[0].mxu0
        %v5294 = vadd.f32 %v4989, %v5293
        %v5295 = vpop.f32.mrb[0].mxu0
        %v5296 = vpop.f32.mrb[0].mxu0
        %v5297 = vadd.f32 %v4992, %v5296
        %v5298 = vpop.f32.mrb[0].mxu0
        %5299 = vmatprep.mubr.bf16.mxu0 0
        %5300 = vmatmul.mubr.bf16.gmra.mrb[0].mxu0 %v5124
        %v5301 = vpop.f32.mrb[0].mxu0
        %v5302 = vadd.f32 %v4997, %v5301
        %v5303 = vpop.f32.mrb[0].mxu0
        %v5304 = vpop.f32.mrb[0].mxu0
        %v5305 = vadd.f32 %v5000, %v5304
        %v5306 = vpop.f32.mrb[0].mxu0
        %5307 = vmatprep.mubr.bf16.mxu0 0
        %5308 = vmatmul.mubr.bf16.gmra.mrb[0].mxu0 %v5125
        %v5309 = vpop.f32.mrb[0].mxu0
        %v5310 = vadd.f32 %v5005, %v5309
        %v5311 = vpop.f32.mrb[0].mxu0
        %v5312 = vpop.f32.mrb[0].mxu0
        %v5313 = vadd.f32 %v5008, %v5312
        %v5314 = vpop.f32.mrb[0].mxu0
        %5315 = vmatprep.mubr.bf16.mxu0 0
        %5316 = vmatmul.mubr.bf16.gmra.mrb[0].mxu0 %v5126
        %v5317 = vpop.f32.mrb[0].mxu0
        %v5318 = vadd.f32 %v5013, %v5317
        %v5319 = vpop.f32.mrb[0].mxu0
        %v5320 = vpop.f32.mrb[0].mxu0
        %v5321 = vadd.f32 %v5016, %v5320
        %v5322 = vpop.f32.mrb[0].mxu0
        %5323 = vmatprep.mubr.bf16.mxu0 0
        %5324 = vmatmul.mubr.bf16.gmra.mrb[0].mxu0 %v5127
        %v5325 = vpop.f32.mrb[0].mxu0
        %v5326 = vadd.f32 %v5021, %v5325
        %v5327 = vpop.f32.mrb[0].mxu0
        %v5328 = vpop.f32.mrb[0].mxu0
        %v5329 = vadd.f32 %v5024, %v5328
        %v5330 = vpop.f32.mrb[0].mxu0
        %5331 = vmatprep.mubr.bf16.mxu0 0
        %5332 = vmatmul.mubr.bf16.gmra.mrb[0].mxu0 %v5128
        %v5333 = vpop.f32.mrb[0].mxu0
        %v5334 = vadd.f32 %v5029, %v5333
        %v5335 = vpop.f32.mrb[0].mxu0
        %v5336 = vpop.f32.mrb[0].mxu0
        %v5337 = vadd.f32 %v5032, %v5336
        %v5338 = vpop.f32.mrb[0].mxu0
        %5339 = vmatprep.mubr.bf16.mxu0 0
        %5340 = vmatmul.mubr.bf16.gmra.mrb[0].mxu0 %v5129
        %v5341 = vpop.f32.mrb[0].mxu0
        %v5342 = vadd.f32 %v5037, %v5341
        %v5343 = vpop.f32.mrb[0].mxu0
        %v5344 = vpop.f32.mrb[0].mxu0
        %v5345 = vadd.f32 %v5040, %v5344
        %v5346 = vpop.f32.mrb[0].mxu0
        %5347 = vmatprep.mubr.bf16.mxu0 0
        %5348 = vmatmul.mubr.bf16.gmra.mrb[0].mxu0 %v5130
        %v5349 = vpop.f32.mrb[0].mxu0
        %v5350 = vadd.f32 %v5045, %v5349
        %v5351 = vpop.f32.mrb[0].mxu0
        %v5352 = vpop.f32.mrb[0].mxu0
        %v5353 = vadd.f32 %v5048, %v5352
        %v5354 = vpop.f32.mrb[0].mxu0
        %5355 = vdwg.mxu0
        %v5356 = vld [vmem:[#allocation3] sm:$0xe]
        %v5357 = vld [vmem:[#allocation3 + $0xc] sm:$0xe]
        %v5358 = vld [vmem:[#allocation3 + $0x18] sm:$0xe]
        %v5359 = vld [vmem:[#allocation3 + $0x24] sm:$0xe]
        %v5360 = vld [vmem:[#allocation3 + $0x30] sm:$0xe]
        %v5361 = vld [vmem:[#allocation3 + $0x3c] sm:$0xe]
        %v5362 = vld [vmem:[#allocation3 + $0x48] sm:$0xe]
        %v5363 = vld [vmem:[#allocation3 + $0x54] sm:$0xe]
        %v5364 = vld [vmem:[#allocation3 + $0x60] sm:$0xe]
        %v5365 = vld [vmem:[#allocation3 + $0x6c] sm:$0xe]
        %v5366 = vld [vmem:[#allocation3 + $0x78] sm:$0xe]
        %v5367 = vld [vmem:[#allocation3 + $0x84] sm:$0xe]
        %v5368 = vld [vmem:[#allocation3 + $0x90] sm:$0xe]
        %v5369 = vld [vmem:[#allocation3 + $0x9c] sm:$0xe]
        %v5370 = vld [vmem:[#allocation3 + $0xa8] sm:$0xe]
        %v5371 = vld [vmem:[#allocation3 + $0xb4] sm:$0xe]
        %v5404 = vrot.slane %v5356, 5
        %v5405 = vrot.slane %v5404, 4
        %v5406 = vrot.slane %v4314, 5
        %v5407 = vsel %vm1057, %v5405, %v5406
        %v5408 = vrot.slane %v5406, 4
        %v5409 = vrot.slane %v4361, 5
        %v5410 = vsel %vm1057, %v5408, %v5409
        %v5411 = vrot.slane %v5357, 5
        %v5412 = vrot.slane %v5411, 4
        %v5413 = vrot.slane %v4316, 5
        %v5414 = vsel %vm1057, %v5412, %v5413
        %v5415 = vrot.slane %v5413, 4
        %v5416 = vrot.slane %v4362, 5
        %v5417 = vsel %vm1057, %v5415, %v5416
        %v5418 = vrot.slane %v5358, 5
        %v5419 = vrot.slane %v5418, 4
        %v5420 = vrot.slane %v4318, 5
        %v5421 = vsel %vm1057, %v5419, %v5420
        %v5422 = vrot.slane %v5420, 4
        %v5423 = vrot.slane %v4363, 5
        %v5424 = vsel %vm1057, %v5422, %v5423
        %v5425 = vrot.slane %v5359, 5
        %v5426 = vrot.slane %v5425, 4
        %v5427 = vrot.slane %v4320, 5
        %v5428 = vsel %vm1057, %v5426, %v5427
        %v5429 = vrot.slane %v5427, 4
        %v5430 = vrot.slane %v4364, 5
        %v5431 = vsel %vm1057, %v5429, %v5430
        %v5432 = vrot.slane %v5360, 5
        %v5433 = vrot.slane %v5432, 4
        %v5434 = vrot.slane %v4322, 5
        %v5435 = vsel %vm1057, %v5433, %v5434
        %v5436 = vrot.slane %v5434, 4
        %v5437 = vrot.slane %v4365, 5
        %v5438 = vsel %vm1057, %v5436, %v5437
        %v5439 = vrot.slane %v5361, 5
        %v5440 = vrot.slane %v5439, 4
        %v5441 = vrot.slane %v4324, 5
        %v5442 = vsel %vm1057, %v5440, %v5441
        %v5443 = vrot.slane %v5441, 4
        %v5444 = vrot.slane %v4366, 5
        %v5445 = vsel %vm1057, %v5443, %v5444
        %v5446 = vrot.slane %v5362, 5
        %v5447 = vrot.slane %v5446, 4
        %v5448 = vrot.slane %v4326, 5
        %v5449 = vsel %vm1057, %v5447, %v5448
        %v5450 = vrot.slane %v5448, 4
        %v5451 = vrot.slane %v4367, 5
        %v5452 = vsel %vm1057, %v5450, %v5451
        %v5453 = vrot.slane %v5363, 5
        %v5454 = vrot.slane %v5453, 4
        %v5455 = vrot.slane %v4328, 5
        %v5456 = vsel %vm1057, %v5454, %v5455
        %v5457 = vrot.slane %v5455, 4
        %v5458 = vrot.slane %v4368, 5
        %v5459 = vsel %vm1057, %v5457, %v5458
        %v5460 = vrot.slane %v5364, 5
        %v5461 = vrot.slane %v5460, 4
        %v5462 = vrot.slane %v4330, 5
        %v5463 = vsel %vm1057, %v5461, %v5462
        %v5464 = vrot.slane %v5462, 4
        %v5465 = vrot.slane %v4369, 5
        %v5466 = vsel %vm1057, %v5464, %v5465
        %v5467 = vrot.slane %v5365, 5
        %v5468 = vrot.slane %v5467, 4
        %v5469 = vrot.slane %v4332, 5
        %v5470 = vsel %vm1057, %v5468, %v5469
        %v5471 = vrot.slane %v5469, 4
        %v5472 = vrot.slane %v4370, 5
        %v5473 = vsel %vm1057, %v5471, %v5472
        %v5474 = vrot.slane %v5366, 5
        %v5475 = vrot.slane %v5474, 4
        %v5476 = vrot.slane %v4334, 5
        %v5477 = vsel %vm1057, %v5475, %v5476
        %v5478 = vrot.slane %v5476, 4
        %v5479 = vrot.slane %v4371, 5
        %v5480 = vsel %vm1057, %v5478, %v5479
        %v5481 = vrot.slane %v5367, 5
        %v5482 = vrot.slane %v5481, 4
        %v5483 = vrot.slane %v4336, 5
        %v5484 = vsel %vm1057, %v5482, %v5483
        %v5485 = vrot.slane %v5483, 4
        %v5486 = vrot.slane %v4372, 5
        %v5487 = vsel %vm1057, %v5485, %v5486
        %v5488 = vrot.slane %v5368, 5
        %v5489 = vrot.slane %v5488, 4
        %v5490 = vrot.slane %v4338, 5
        %v5491 = vsel %vm1057, %v5489, %v5490
        %v5492 = vrot.slane %v5490, 4
        %v5493 = vrot.slane %v4373, 5
        %v5494 = vsel %vm1057, %v5492, %v5493
        %v5495 = vrot.slane %v5369, 5
        %v5496 = vrot.slane %v5495, 4
        %v5497 = vrot.slane %v4340, 5
        %v5498 = vsel %vm1057, %v5496, %v5497
        %v5499 = vrot.slane %v5497, 4
        %v5500 = vrot.slane %v4374, 5
        %v5501 = vsel %vm1057, %v5499, %v5500
        %v5502 = vrot.slane %v5370, 5
        %v5503 = vrot.slane %v5502, 4
        %v5504 = vrot.slane %v4342, 5
        %v5505 = vsel %vm1057, %v5503, %v5504
        %v5506 = vrot.slane %v5504, 4
        %v5507 = vrot.slane %v4375, 5
        %v5508 = vsel %vm1057, %v5506, %v5507
        %v5509 = vrot.slane %v5371, 5
        %v5510 = vrot.slane %v5509, 4
        %v5511 = vrot.slane %v4344, 5
        %v5512 = vsel %vm1057, %v5510, %v5511
        %v5513 = vrot.slane %v5511, 4
        %v5514 = vrot.slane %v4376, 5
        %v5515 = vsel %vm1057, %v5513, %v5514
        %s5516 = scalar_lea.vmem %s3, 128
        %v5517 = vld [vmem:[%s5516] sm:$0xf]
        %v5518 = vld [vmem:[%s5516 + $0x4] sm:$0xf]
        %v5519 = vld [vmem:[%s5516 + $0x8] sm:$0xf]
        %v5520 = vld [vmem:[%s5516 + $0xc] sm:$0xf]
        %v5521 = vld [vmem:[%s5516 + $0x10] sm:$0xf]
        %v5522 = vld [vmem:[%s5516 + $0x14] sm:$0xf]
        %v5523 = vld [vmem:[%s5516 + $0x18] sm:$0xf]
        %v5524 = vld [vmem:[%s5516 + $0x1c] sm:$0xf]
        %v5525 = vld [vmem:[%s5516 + $0x20] sm:$0xf]
        %v5526 = vld [vmem:[%s5516 + $0x24] sm:$0xf]
        %v5527 = vld [vmem:[%s5516 + $0x28] sm:$0xf]
        %v5528 = vld [vmem:[%s5516 + $0x2c] sm:$0xf]
        %v5529 = vld [vmem:[%s5516 + $0x30] sm:$0xf]
        %v5530 = vld [vmem:[%s5516 + $0x34] sm:$0xf]
        %v5531 = vld [vmem:[%s5516 + $0x38] sm:$0xf]
        %v5532 = vld [vmem:[%s5516 + $0x3c] sm:$0xf]
        %v5533 = vunpack.c.l.b16 %v5407
        %v5534 = vunpack.c.l.b16 %v5410
        %v5535 = vunpack.c.l.b16 %v5414
        %v5536 = vunpack.c.l.b16 %v5417
        %v5537 = vunpack.c.l.b16 %v5421
        %v5538 = vunpack.c.l.b16 %v5424
        %v5539 = vunpack.c.l.b16 %v5428
        %v5540 = vunpack.c.l.b16 %v5431
        %v5541 = vunpack.c.l.b16 %v5435
        %v5542 = vunpack.c.l.b16 %v5438
        %v5543 = vunpack.c.l.b16 %v5442
        %v5544 = vunpack.c.l.b16 %v5445
        %v5545 = vunpack.c.l.b16 %v5449
        %v5546 = vunpack.c.l.b16 %v5452
        %v5547 = vunpack.c.l.b16 %v5456
        %v5548 = vunpack.c.l.b16 %v5459
        %v5549 = vunpack.c.l.b16 %v5463
        %v5550 = vunpack.c.l.b16 %v5466
        %v5551 = vunpack.c.l.b16 %v5470
        %v5552 = vunpack.c.l.b16 %v5473
        %v5553 = vunpack.c.l.b16 %v5477
        %v5554 = vunpack.c.l.b16 %v5480
        %v5555 = vunpack.c.l.b16 %v5484
        %v5556 = vunpack.c.l.b16 %v5487
        %v5557 = vunpack.c.l.b16 %v5491
        %v5558 = vunpack.c.l.b16 %v5494
        %v5559 = vunpack.c.l.b16 %v5498
        %v5560 = vunpack.c.l.b16 %v5501
        %v5561 = vunpack.c.l.b16 %v5505
        %v5562 = vunpack.c.l.b16 %v5508
        %v5563 = vunpack.c.l.b16 %v5512
        %v5564 = vunpack.c.l.b16 %v5515
        %v5565 = vpack.c.b16 %v5534, %v5533
        %v5566 = vpack.c.b16 %v5536, %v5535
        %v5567 = vpack.c.b16 %v5538, %v5537
        %v5568 = vpack.c.b16 %v5540, %v5539
        %v5569 = vpack.c.b16 %v5542, %v5541
        %v5570 = vpack.c.b16 %v5544, %v5543
        %v5571 = vpack.c.b16 %v5546, %v5545
        %v5572 = vpack.c.b16 %v5548, %v5547
        %v5573 = vpack.c.b16 %v5550, %v5549
        %v5574 = vpack.c.b16 %v5552, %v5551
        %v5575 = vpack.c.b16 %v5554, %v5553
        %v5576 = vpack.c.b16 %v5556, %v5555
        %v5577 = vpack.c.b16 %v5558, %v5557
        %v5578 = vpack.c.b16 %v5560, %v5559
        %v5579 = vpack.c.b16 %v5562, %v5561
        %v5580 = vpack.c.b16 %v5564, %v5563
        %v5613 = vunpack.c.l.b16 %v5517
        %v5614 = vunpack.c.l.b16 %v5518
        %v5615 = vunpack.c.l.b16 %v5519
        %v5616 = vunpack.c.l.b16 %v5520
        %v5617 = vunpack.c.l.b16 %v5521
        %v5618 = vunpack.c.l.b16 %v5522
        %v5619 = vunpack.c.l.b16 %v5523
        %v5620 = vunpack.c.l.b16 %v5524
        %v5621 = vunpack.c.l.b16 %v5525
        %v5622 = vunpack.c.l.b16 %v5526
        %v5623 = vunpack.c.l.b16 %v5527
        %v5624 = vunpack.c.l.b16 %v5528
        %v5625 = vunpack.c.l.b16 %v5529
        %v5626 = vunpack.c.l.b16 %v5530
        %v5627 = vunpack.c.l.b16 %v5531
        %v5628 = vunpack.c.l.b16 %v5532
        %v5629 = vpack.c.b16 %v5614, %v5613
        %v5630 = vpack.c.b16 %v5616, %v5615
        %v5631 = vpack.c.b16 %v5618, %v5617
        %v5632 = vpack.c.b16 %v5620, %v5619
        %v5633 = vpack.c.b16 %v5622, %v5621
        %v5634 = vpack.c.b16 %v5624, %v5623
        %v5635 = vpack.c.b16 %v5626, %v5625
        %v5636 = vpack.c.b16 %v5628, %v5627
        %5645 = vmatprep.subr.bf16.mxu0 0
        %5646 = vmatpush1.bf16.msra.mxu0 %v5629
        %5647 = vmatprep.subr.bf16.mxu0 0
        %5648 = vmatpush1.bf16.msra.mxu0 %v5630
        %5649 = vmatprep.subr.bf16.mxu0 0
        %5650 = vmatpush1.bf16.msra.mxu0 %v5631
        %5651 = vmatprep.subr.bf16.mxu0 0
        %5652 = vmatpush1.bf16.msra.mxu0 %v5632
        %5653 = vmatprep.subr.bf16.mxu0 0
        %5654 = vmatpush1.bf16.msra.mxu0 %v5633
        %5655 = vmatprep.subr.bf16.mxu0 0
        %5656 = vmatpush1.bf16.msra.mxu0 %v5634
        %5657 = vmatprep.subr.bf16.mxu0 0
        %5658 = vmatpush1.bf16.msra.mxu0 %v5635
        %5659 = vmatprep.subr.bf16.mxu0 0
        %5660 = vmatpush1.bf16.msra.mxu0 %v5636
        %5661 = vmatprep.subr.bf16.mxu0 0
        %5662 = vmatpush1.bf16.msra.mxu0 0
        %5663 = vmatprep.subr.bf16.mxu0 0
        %5664 = vmatpush1.bf16.msra.mxu0 0
        %5665 = vmatprep.subr.bf16.mxu0 0
        %5666 = vmatpush1.bf16.msra.mxu0 0
        %5667 = vmatprep.subr.bf16.mxu0 0
        %5668 = vmatpush1.bf16.msra.mxu0 0
        %5669 = vmatprep.subr.bf16.mxu0 0
        %5670 = vmatpush1.bf16.msra.mxu0 0
        %5671 = vmatprep.subr.bf16.mxu0 0
        %5672 = vmatpush1.bf16.msra.mxu0 0
        %5673 = vmatprep.subr.bf16.mxu0 0
        %5674 = vmatpush1.bf16.msra.mxu0 0
        %5675 = vmatprep.subr.bf16.mxu0 0
        %5676 = vmatpush1.bf16.msra.mxu0 0
        %5677 = vmatprep.mubr.bf16.mxu0 0
        %5678 = vmatmul.mubr.bf16.gmra.mrb[0].mxu0 %v5565
        %v5679 = vpop.f32.mrb[0].mxu0
        %v5680 = vadd.f32 0.0, %v5679
        %v5681 = vpop.f32.mrb[0].mxu0
        %v5682 = vpop.f32.mrb[0].mxu0
        %v5683 = vadd.f32 0.0, %v5682
        %v5684 = vpop.f32.mrb[0].mxu0
        %5685 = vmatprep.mubr.bf16.mxu0 0
        %5686 = vmatmul.mubr.bf16.gmra.mrb[0].mxu0 %v5566
        %v5687 = vpop.f32.mrb[0].mxu0
        %v5688 = vadd.f32 0.0, %v5687
        %v5689 = vpop.f32.mrb[0].mxu0
        %v5690 = vpop.f32.mrb[0].mxu0
        %v5691 = vadd.f32 0.0, %v5690
        %v5692 = vpop.f32.mrb[0].mxu0
        %5693 = vmatprep.mubr.bf16.mxu0 0
        %5694 = vmatmul.mubr.bf16.gmra.mrb[0].mxu0 %v5567
        %v5695 = vpop.f32.mrb[0].mxu0
        %v5696 = vadd.f32 0.0, %v5695
        %v5697 = vpop.f32.mrb[0].mxu0
        %v5698 = vpop.f32.mrb[0].mxu0
        %v5699 = vadd.f32 0.0, %v5698
        %v5700 = vpop.f32.mrb[0].mxu0
        %5701 = vmatprep.mubr.bf16.mxu0 0
        %5702 = vmatmul.mubr.bf16.gmra.mrb[0].mxu0 %v5568
        %v5703 = vpop.f32.mrb[0].mxu0
        %v5704 = vadd.f32 0.0, %v5703
        %v5705 = vpop.f32.mrb[0].mxu0
        %v5706 = vpop.f32.mrb[0].mxu0
        %v5707 = vadd.f32 0.0, %v5706
        %v5708 = vpop.f32.mrb[0].mxu0
        %5709 = vmatprep.mubr.bf16.mxu0 0
        %5710 = vmatmul.mubr.bf16.gmra.mrb[0].mxu0 %v5569
        %v5711 = vpop.f32.mrb[0].mxu0
        %v5712 = vadd.f32 0.0, %v5711
        %v5713 = vpop.f32.mrb[0].mxu0
        %v5714 = vpop.f32.mrb[0].mxu0
        %v5715 = vadd.f32 0.0, %v5714
        %v5716 = vpop.f32.mrb[0].mxu0
        %5717 = vmatprep.mubr.bf16.mxu0 0
        %5718 = vmatmul.mubr.bf16.gmra.mrb[0].mxu0 %v5570
        %v5719 = vpop.f32.mrb[0].mxu0
        %v5720 = vadd.f32 0.0, %v5719
        %v5721 = vpop.f32.mrb[0].mxu0
        %v5722 = vpop.f32.mrb[0].mxu0
        %v5723 = vadd.f32 0.0, %v5722
        %v5724 = vpop.f32.mrb[0].mxu0
        %5725 = vmatprep.mubr.bf16.mxu0 0
        %5726 = vmatmul.mubr.bf16.gmra.mrb[0].mxu0 %v5571
        %v5727 = vpop.f32.mrb[0].mxu0
        %v5728 = vadd.f32 0.0, %v5727
        %v5729 = vpop.f32.mrb[0].mxu0
        %v5730 = vpop.f32.mrb[0].mxu0
        %v5731 = vadd.f32 0.0, %v5730
        %v5732 = vpop.f32.mrb[0].mxu0
        %5733 = vmatprep.mubr.bf16.mxu0 0
        %5734 = vmatmul.mubr.bf16.gmra.mrb[0].mxu0 %v5572
        %v5735 = vpop.f32.mrb[0].mxu0
        %v5736 = vadd.f32 0.0, %v5735
        %v5737 = vpop.f32.mrb[0].mxu0
        %v5738 = vpop.f32.mrb[0].mxu0
        %v5739 = vadd.f32 0.0, %v5738
        %v5740 = vpop.f32.mrb[0].mxu0
        %5741 = vmatprep.mubr.bf16.mxu0 0
        %5742 = vmatmul.mubr.bf16.gmra.mrb[0].mxu0 %v5573
        %v5743 = vpop.f32.mrb[0].mxu0
        %v5744 = vadd.f32 0.0, %v5743
        %v5745 = vpop.f32.mrb[0].mxu0
        %v5746 = vpop.f32.mrb[0].mxu0
        %v5747 = vadd.f32 0.0, %v5746
        %v5748 = vpop.f32.mrb[0].mxu0
        %5749 = vmatprep.mubr.bf16.mxu0 0
        %5750 = vmatmul.mubr.bf16.gmra.mrb[0].mxu0 %v5574
        %v5751 = vpop.f32.mrb[0].mxu0
        %v5752 = vadd.f32 0.0, %v5751
        %v5753 = vpop.f32.mrb[0].mxu0
        %v5754 = vpop.f32.mrb[0].mxu0
        %v5755 = vadd.f32 0.0, %v5754
        %v5756 = vpop.f32.mrb[0].mxu0
        %5757 = vmatprep.mubr.bf16.mxu0 0
        %5758 = vmatmul.mubr.bf16.gmra.mrb[0].mxu0 %v5575
        %v5759 = vpop.f32.mrb[0].mxu0
        %v5760 = vadd.f32 0.0, %v5759
        %v5761 = vpop.f32.mrb[0].mxu0
        %v5762 = vpop.f32.mrb[0].mxu0
        %v5763 = vadd.f32 0.0, %v5762
        %v5764 = vpop.f32.mrb[0].mxu0
        %5765 = vmatprep.mubr.bf16.mxu0 0
        %5766 = vmatmul.mubr.bf16.gmra.mrb[0].mxu0 %v5576
        %v5767 = vpop.f32.mrb[0].mxu0
        %v5768 = vadd.f32 0.0, %v5767
        %v5769 = vpop.f32.mrb[0].mxu0
        %v5770 = vpop.f32.mrb[0].mxu0
        %v5771 = vadd.f32 0.0, %v5770
        %v5772 = vpop.f32.mrb[0].mxu0
        %5773 = vmatprep.mubr.bf16.mxu0 0
        %5774 = vmatmul.mubr.bf16.gmra.mrb[0].mxu0 %v5577
        %v5775 = vpop.f32.mrb[0].mxu0
        %v5776 = vadd.f32 0.0, %v5775
        %v5777 = vpop.f32.mrb[0].mxu0
        %v5778 = vpop.f32.mrb[0].mxu0
        %v5779 = vadd.f32 0.0, %v5778
        %v5780 = vpop.f32.mrb[0].mxu0
        %5781 = vmatprep.mubr.bf16.mxu0 0
        %5782 = vmatmul.mubr.bf16.gmra.mrb[0].mxu0 %v5578
        %v5783 = vpop.f32.mrb[0].mxu0
        %v5784 = vadd.f32 0.0, %v5783
        %v5785 = vpop.f32.mrb[0].mxu0
        %v5786 = vpop.f32.mrb[0].mxu0
        %v5787 = vadd.f32 0.0, %v5786
        %v5788 = vpop.f32.mrb[0].mxu0
        %5789 = vmatprep.mubr.bf16.mxu0 0
        %5790 = vmatmul.mubr.bf16.gmra.mrb[0].mxu0 %v5579
        %v5791 = vpop.f32.mrb[0].mxu0
        %v5792 = vadd.f32 0.0, %v5791
        %v5793 = vpop.f32.mrb[0].mxu0
        %v5794 = vpop.f32.mrb[0].mxu0
        %v5795 = vadd.f32 0.0, %v5794
        %v5796 = vpop.f32.mrb[0].mxu0
        %5797 = vmatprep.mubr.bf16.mxu0 0
        %5798 = vmatmul.mubr.bf16.gmra.mrb[0].mxu0 %v5580
        %v5799 = vpop.f32.mrb[0].mxu0
        %v5800 = vadd.f32 0.0, %v5799
        %v5801 = vpop.f32.mrb[0].mxu0
        %v5802 = vpop.f32.mrb[0].mxu0
        %v5803 = vadd.f32 0.0, %v5802
        %v5804 = vpop.f32.mrb[0].mxu0
        %5805 = vdwg.mxu0
        %v5806 = vadd.f32 %v5230, %v5680
        %v5807 = vadd.f32 %v5233, %v5683
        %v5808 = vadd.f32 %v5238, %v5688
        %v5809 = vadd.f32 %v5241, %v5691
        %v5810 = vadd.f32 %v5246, %v5696
        %v5811 = vadd.f32 %v5249, %v5699
        %v5812 = vadd.f32 %v5254, %v5704
        %v5813 = vadd.f32 %v5257, %v5707
        %v5814 = vadd.f32 %v5262, %v5712
        %v5815 = vadd.f32 %v5265, %v5715
        %v5816 = vadd.f32 %v5270, %v5720
        %v5817 = vadd.f32 %v5273, %v5723
        %v5818 = vadd.f32 %v5278, %v5728
        %v5819 = vadd.f32 %v5281, %v5731
        %v5820 = vadd.f32 %v5286, %v5736
        %v5821 = vadd.f32 %v5289, %v5739
        %v5822 = vadd.f32 %v5294, %v5744
        %v5823 = vadd.f32 %v5297, %v5747
        %v5824 = vadd.f32 %v5302, %v5752
        %v5825 = vadd.f32 %v5305, %v5755
        %v5826 = vadd.f32 %v5310, %v5760
        %v5827 = vadd.f32 %v5313, %v5763
        %v5828 = vadd.f32 %v5318, %v5768
        %v5829 = vadd.f32 %v5321, %v5771
        %v5830 = vadd.f32 %v5326, %v5776
        %v5831 = vadd.f32 %v5329, %v5779
        %v5832 = vadd.f32 %v5334, %v5784
        %v5833 = vadd.f32 %v5337, %v5787
        %v5834 = vadd.f32 %v5342, %v5792
        %v5835 = vadd.f32 %v5345, %v5795
        %v5836 = vadd.f32 %v5350, %v5800
        %v5837 = vadd.f32 %v5353, %v5803
        %v5838 = vld [vmem:[%s4198] sm:$0xf]
        %v5839 = vld [vmem:[%s4198 + $0x4] sm:$0xf]
        %v5840 = vld [vmem:[%s4198 + $0xc] sm:$0xf]
        %v5841 = vld [vmem:[%s4198 + $0x10] sm:$0xf]
        %v5842 = vld [vmem:[%s4198 + $0x18] sm:$0xf]
        %v5843 = vld [vmem:[%s4198 + $0x1c] sm:$0xf]
        %v5844 = vld [vmem:[%s4198 + $0x24] sm:$0xf]
        %v5845 = vld [vmem:[%s4198 + $0x28] sm:$0xf]
        %v5846 = vld [vmem:[%s4198 + $0x30] sm:$0xf]
        %v5847 = vld [vmem:[%s4198 + $0x34] sm:$0xf]
        %v5848 = vld [vmem:[%s4198 + $0x3c] sm:$0xf]
        %v5849 = vld [vmem:[%s4198 + $0x40] sm:$0xf]
        %v5850 = vld [vmem:[%s4198 + $0x48] sm:$0xf]
        %v5851 = vld [vmem:[%s4198 + $0x4c] sm:$0xf]
        %v5852 = vld [vmem:[%s4198 + $0x54] sm:$0xf]
        %v5853 = vld [vmem:[%s4198 + $0x58] sm:$0xf]
        %v5854 = vld [vmem:[%s4198 + $0x60] sm:$0xf]
        %v5855 = vld [vmem:[%s4198 + $0x64] sm:$0xf]
        %v5856 = vld [vmem:[%s4198 + $0x6c] sm:$0xf]
        %v5857 = vld [vmem:[%s4198 + $0x70] sm:$0xf]
        %v5858 = vld [vmem:[%s4198 + $0x78] sm:$0xf]
        %v5859 = vld [vmem:[%s4198 + $0x7c] sm:$0xf]
        %v5860 = vld [vmem:[%s4198 + $0x84] sm:$0xf]
        %v5861 = vld [vmem:[%s4198 + $0x88] sm:$0xf]
        %v5862 = vld [vmem:[%s4198 + $0x90] sm:$0xf]
        %v5863 = vld [vmem:[%s4198 + $0x94] sm:$0xf]
        %v5864 = vld [vmem:[%s4198 + $0x9c] sm:$0xf]
        %v5865 = vld [vmem:[%s4198 + $0xa0] sm:$0xf]
        %v5866 = vld [vmem:[%s4198 + $0xa8] sm:$0xf]
        %v5867 = vld [vmem:[%s4198 + $0xac] sm:$0xf]
        %v5868 = vld [vmem:[%s4198 + $0xb4] sm:$0xf]
        %v5869 = vld [vmem:[%s4198 + $0xb8] sm:$0xf]
        %s5870 = scalar_lea.vmem %s3, 192
        %v5871 = vld [vmem:[%s5870] sm:$0xf]
        %v5872 = vld [vmem:[%s5870 + $0x4] sm:$0xf]
        %v5873 = vld [vmem:[%s5870 + $0x8] sm:$0xf]
        %v5874 = vld [vmem:[%s5870 + $0xc] sm:$0xf]
        %v5875 = vld [vmem:[%s5870 + $0x10] sm:$0xf]
        %v5876 = vld [vmem:[%s5870 + $0x14] sm:$0xf]
        %v5877 = vld [vmem:[%s5870 + $0x18] sm:$0xf]
        %v5878 = vld [vmem:[%s5870 + $0x1c] sm:$0xf]
        %v5879 = vld [vmem:[%s5870 + $0x20] sm:$0xf]
        %v5880 = vld [vmem:[%s5870 + $0x24] sm:$0xf]
        %v5881 = vld [vmem:[%s5870 + $0x28] sm:$0xf]
        %v5882 = vld [vmem:[%s5870 + $0x2c] sm:$0xf]
        %v5883 = vld [vmem:[%s5870 + $0x30] sm:$0xf]
        %v5884 = vld [vmem:[%s5870 + $0x34] sm:$0xf]
        %v5885 = vld [vmem:[%s5870 + $0x38] sm:$0xf]
        %v5886 = vld [vmem:[%s5870 + $0x3c] sm:$0xf]
        %v5919 = vunpack.c.l.b16 %v5838
        %v5920 = vunpack.c.l.b16 %v5839
        %v5921 = vunpack.c.l.b16 %v5840
        %v5922 = vunpack.c.l.b16 %v5841
        %v5923 = vunpack.c.l.b16 %v5842
        %v5924 = vunpack.c.l.b16 %v5843
        %v5925 = vunpack.c.l.b16 %v5844
        %v5926 = vunpack.c.l.b16 %v5845
        %v5927 = vunpack.c.l.b16 %v5846
        %v5928 = vunpack.c.l.b16 %v5847
        %v5929 = vunpack.c.l.b16 %v5848
        %v5930 = vunpack.c.l.b16 %v5849
        %v5931 = vunpack.c.l.b16 %v5850
        %v5932 = vunpack.c.l.b16 %v5851
        %v5933 = vunpack.c.l.b16 %v5852
        %v5934 = vunpack.c.l.b16 %v5853
        %v5935 = vunpack.c.l.b16 %v5854
        %v5936 = vunpack.c.l.b16 %v5855
        %v5937 = vunpack.c.l.b16 %v5856
        %v5938 = vunpack.c.l.b16 %v5857
        %v5939 = vunpack.c.l.b16 %v5858
        %v5940 = vunpack.c.l.b16 %v5859
        %v5941 = vunpack.c.l.b16 %v5860
        %v5942 = vunpack.c.l.b16 %v5861
        %v5943 = vunpack.c.l.b16 %v5862
        %v5944 = vunpack.c.l.b16 %v5863
        %v5945 = vunpack.c.l.b16 %v5864
        %v5946 = vunpack.c.l.b16 %v5865
        %v5947 = vunpack.c.l.b16 %v5866
        %v5948 = vunpack.c.l.b16 %v5867
        %v5949 = vunpack.c.l.b16 %v5868
        %v5950 = vunpack.c.l.b16 %v5869
        %v5951 = vpack.c.b16 %v5920, %v5919
        %v5952 = vpack.c.b16 %v5922, %v5921
        %v5953 = vpack.c.b16 %v5924, %v5923
        %v5954 = vpack.c.b16 %v5926, %v5925
        %v5955 = vpack.c.b16 %v5928, %v5927
        %v5956 = vpack.c.b16 %v5930, %v5929
        %v5957 = vpack.c.b16 %v5932, %v5931
        %v5958 = vpack.c.b16 %v5934, %v5933
        %v5959 = vpack.c.b16 %v5936, %v5935
        %v5960 = vpack.c.b16 %v5938, %v5937
        %v5961 = vpack.c.b16 %v5940, %v5939
        %v5962 = vpack.c.b16 %v5942, %v5941
        %v5963 = vpack.c.b16 %v5944, %v5943
        %v5964 = vpack.c.b16 %v5946, %v5945
        %v5965 = vpack.c.b16 %v5948, %v5947
        %v5966 = vpack.c.b16 %v5950, %v5949
        %v5999 = vunpack.c.l.b16 %v5871
        %v6000 = vunpack.c.l.b16 %v5872
        %v6001 = vunpack.c.l.b16 %v5873
        %v6002 = vunpack.c.l.b16 %v5874
        %v6003 = vunpack.c.l.b16 %v5875
        %v6004 = vunpack.c.l.b16 %v5876
        %v6005 = vunpack.c.l.b16 %v5877
        %v6006 = vunpack.c.l.b16 %v5878
        %v6007 = vunpack.c.l.b16 %v5879
        %v6008 = vunpack.c.l.b16 %v5880
        %v6009 = vunpack.c.l.b16 %v5881
        %v6010 = vunpack.c.l.b16 %v5882
        %v6011 = vunpack.c.l.b16 %v5883
        %v6012 = vunpack.c.l.b16 %v5884
        %v6013 = vunpack.c.l.b16 %v5885
        %v6014 = vunpack.c.l.b16 %v5886
        %v6015 = vpack.c.b16 %v6000, %v5999
        %v6016 = vpack.c.b16 %v6002, %v6001
        %v6017 = vpack.c.b16 %v6004, %v6003
        %v6018 = vpack.c.b16 %v6006, %v6005
        %v6019 = vpack.c.b16 %v6008, %v6007
        %v6020 = vpack.c.b16 %v6010, %v6009
        %v6021 = vpack.c.b16 %v6012, %v6011
        %v6022 = vpack.c.b16 %v6014, %v6013
        %6031 = vmatprep.subr.bf16.mxu0 0
        %6032 = vmatpush1.bf16.msra.mxu0 %v6015
        %6033 = vmatprep.subr.bf16.mxu0 0
        %6034 = vmatpush1.bf16.msra.mxu0 %v6016
        %6035 = vmatprep.subr.bf16.mxu0 0
        %6036 = vmatpush1.bf16.msra.mxu0 %v6017
        %6037 = vmatprep.subr.bf16.mxu0 0
        %6038 = vmatpush1.bf16.msra.mxu0 %v6018
        %6039 = vmatprep.subr.bf16.mxu0 0
        %6040 = vmatpush1.bf16.msra.mxu0 %v6019
        %6041 = vmatprep.subr.bf16.mxu0 0
        %6042 = vmatpush1.bf16.msra.mxu0 %v6020
        %6043 = vmatprep.subr.bf16.mxu0 0
        %6044 = vmatpush1.bf16.msra.mxu0 %v6021
        %6045 = vmatprep.subr.bf16.mxu0 0
        %6046 = vmatpush1.bf16.msra.mxu0 %v6022
        %6047 = vmatprep.subr.bf16.mxu0 0
        %6048 = vmatpush1.bf16.msra.mxu0 0
        %6049 = vmatprep.subr.bf16.mxu0 0
        %6050 = vmatpush1.bf16.msra.mxu0 0
        %6051 = vmatprep.subr.bf16.mxu0 0
        %6052 = vmatpush1.bf16.msra.mxu0 0
        %6053 = vmatprep.subr.bf16.mxu0 0
        %6054 = vmatpush1.bf16.msra.mxu0 0
        %6055 = vmatprep.subr.bf16.mxu0 0
        %6056 = vmatpush1.bf16.msra.mxu0 0
        %6057 = vmatprep.subr.bf16.mxu0 0
        %6058 = vmatpush1.bf16.msra.mxu0 0
        %6059 = vmatprep.subr.bf16.mxu0 0
        %6060 = vmatpush1.bf16.msra.mxu0 0
        %6061 = vmatprep.subr.bf16.mxu0 0
        %6062 = vmatpush1.bf16.msra.mxu0 0
        %6063 = vmatprep.mubr.bf16.mxu0 0
        %6064 = vmatmul.mubr.bf16.gmra.mrb[0].mxu0 %v5951
        %v6065 = vpop.f32.mrb[0].mxu0
        %v6066 = vadd.f32 0.0, %v6065
        %v6067 = vpop.f32.mrb[0].mxu0
        %v6068 = vpop.f32.mrb[0].mxu0
        %v6069 = vadd.f32 0.0, %v6068
        %v6070 = vpop.f32.mrb[0].mxu0
        %6071 = vmatprep.mubr.bf16.mxu0 0
        %6072 = vmatmul.mubr.bf16.gmra.mrb[0].mxu0 %v5952
        %v6073 = vpop.f32.mrb[0].mxu0
        %v6074 = vadd.f32 0.0, %v6073
        %v6075 = vpop.f32.mrb[0].mxu0
        %v6076 = vpop.f32.mrb[0].mxu0
        %v6077 = vadd.f32 0.0, %v6076
        %v6078 = vpop.f32.mrb[0].mxu0
        %6079 = vmatprep.mubr.bf16.mxu0 0
        %6080 = vmatmul.mubr.bf16.gmra.mrb[0].mxu0 %v5953
        %v6081 = vpop.f32.mrb[0].mxu0
        %v6082 = vadd.f32 0.0, %v6081
        %v6083 = vpop.f32.mrb[0].mxu0
        %v6084 = vpop.f32.mrb[0].mxu0
        %v6085 = vadd.f32 0.0, %v6084
        %v6086 = vpop.f32.mrb[0].mxu0
        %6087 = vmatprep.mubr.bf16.mxu0 0
        %6088 = vmatmul.mubr.bf16.gmra.mrb[0].mxu0 %v5954
        %v6089 = vpop.f32.mrb[0].mxu0
        %v6090 = vadd.f32 0.0, %v6089
        %v6091 = vpop.f32.mrb[0].mxu0
        %v6092 = vpop.f32.mrb[0].mxu0
        %v6093 = vadd.f32 0.0, %v6092
        %v6094 = vpop.f32.mrb[0].mxu0
        %6095 = vmatprep.mubr.bf16.mxu0 0
        %6096 = vmatmul.mubr.bf16.gmra.mrb[0].mxu0 %v5955
        %v6097 = vpop.f32.mrb[0].mxu0
        %v6098 = vadd.f32 0.0, %v6097
        %v6099 = vpop.f32.mrb[0].mxu0
        %v6100 = vpop.f32.mrb[0].mxu0
        %v6101 = vadd.f32 0.0, %v6100
        %v6102 = vpop.f32.mrb[0].mxu0
        %6103 = vmatprep.mubr.bf16.mxu0 0
        %6104 = vmatmul.mubr.bf16.gmra.mrb[0].mxu0 %v5956
        %v6105 = vpop.f32.mrb[0].mxu0
        %v6106 = vadd.f32 0.0, %v6105
        %v6107 = vpop.f32.mrb[0].mxu0
        %v6108 = vpop.f32.mrb[0].mxu0
        %v6109 = vadd.f32 0.0, %v6108
        %v6110 = vpop.f32.mrb[0].mxu0
        %6111 = vmatprep.mubr.bf16.mxu0 0
        %6112 = vmatmul.mubr.bf16.gmra.mrb[0].mxu0 %v5957
        %v6113 = vpop.f32.mrb[0].mxu0
        %v6114 = vadd.f32 0.0, %v6113
        %v6115 = vpop.f32.mrb[0].mxu0
        %v6116 = vpop.f32.mrb[0].mxu0
        %v6117 = vadd.f32 0.0, %v6116
        %v6118 = vpop.f32.mrb[0].mxu0
        %6119 = vmatprep.mubr.bf16.mxu0 0
        %6120 = vmatmul.mubr.bf16.gmra.mrb[0].mxu0 %v5958
        %v6121 = vpop.f32.mrb[0].mxu0
        %v6122 = vadd.f32 0.0, %v6121
        %v6123 = vpop.f32.mrb[0].mxu0
        %v6124 = vpop.f32.mrb[0].mxu0
        %v6125 = vadd.f32 0.0, %v6124
        %v6126 = vpop.f32.mrb[0].mxu0
        %6127 = vmatprep.mubr.bf16.mxu0 0
        %6128 = vmatmul.mubr.bf16.gmra.mrb[0].mxu0 %v5959
        %v6129 = vpop.f32.mrb[0].mxu0
        %v6130 = vadd.f32 0.0, %v6129
        %v6131 = vpop.f32.mrb[0].mxu0
        %v6132 = vpop.f32.mrb[0].mxu0
        %v6133 = vadd.f32 0.0, %v6132
        %v6134 = vpop.f32.mrb[0].mxu0
        %6135 = vmatprep.mubr.bf16.mxu0 0
        %6136 = vmatmul.mubr.bf16.gmra.mrb[0].mxu0 %v5960
        %v6137 = vpop.f32.mrb[0].mxu0
        %v6138 = vadd.f32 0.0, %v6137
        %v6139 = vpop.f32.mrb[0].mxu0
        %v6140 = vpop.f32.mrb[0].mxu0
        %v6141 = vadd.f32 0.0, %v6140
        %v6142 = vpop.f32.mrb[0].mxu0
        %6143 = vmatprep.mubr.bf16.mxu0 0
        %6144 = vmatmul.mubr.bf16.gmra.mrb[0].mxu0 %v5961
        %v6145 = vpop.f32.mrb[0].mxu0
        %v6146 = vadd.f32 0.0, %v6145
        %v6147 = vpop.f32.mrb[0].mxu0
        %v6148 = vpop.f32.mrb[0].mxu0
        %v6149 = vadd.f32 0.0, %v6148
        %v6150 = vpop.f32.mrb[0].mxu0
        %6151 = vmatprep.mubr.bf16.mxu0 0
        %6152 = vmatmul.mubr.bf16.gmra.mrb[0].mxu0 %v5962
        %v6153 = vpop.f32.mrb[0].mxu0
        %v6154 = vadd.f32 0.0, %v6153
        %v6155 = vpop.f32.mrb[0].mxu0
        %v6156 = vpop.f32.mrb[0].mxu0
        %v6157 = vadd.f32 0.0, %v6156
        %v6158 = vpop.f32.mrb[0].mxu0
        %6159 = vmatprep.mubr.bf16.mxu0 0
        %6160 = vmatmul.mubr.bf16.gmra.mrb[0].mxu0 %v5963
        %v6161 = vpop.f32.mrb[0].mxu0
        %v6162 = vadd.f32 0.0, %v6161
        %v6163 = vpop.f32.mrb[0].mxu0
        %v6164 = vpop.f32.mrb[0].mxu0
        %v6165 = vadd.f32 0.0, %v6164
        %v6166 = vpop.f32.mrb[0].mxu0
        %6167 = vmatprep.mubr.bf16.mxu0 0
        %6168 = vmatmul.mubr.bf16.gmra.mrb[0].mxu0 %v5964
        %v6169 = vpop.f32.mrb[0].mxu0
        %v6170 = vadd.f32 0.0, %v6169
        %v6171 = vpop.f32.mrb[0].mxu0
        %v6172 = vpop.f32.mrb[0].mxu0
        %v6173 = vadd.f32 0.0, %v6172
        %v6174 = vpop.f32.mrb[0].mxu0
        %6175 = vmatprep.mubr.bf16.mxu0 0
        %6176 = vmatmul.mubr.bf16.gmra.mrb[0].mxu0 %v5965
        %v6177 = vpop.f32.mrb[0].mxu0
        %v6178 = vadd.f32 0.0, %v6177
        %v6179 = vpop.f32.mrb[0].mxu0
        %v6180 = vpop.f32.mrb[0].mxu0
        %v6181 = vadd.f32 0.0, %v6180
        %v6182 = vpop.f32.mrb[0].mxu0
        %6183 = vmatprep.mubr.bf16.mxu0 0
        %6184 = vmatmul.mubr.bf16.gmra.mrb[0].mxu0 %v5966
        %v6185 = vpop.f32.mrb[0].mxu0
        %v6186 = vadd.f32 0.0, %v6185
        %v6187 = vpop.f32.mrb[0].mxu0
        %v6188 = vpop.f32.mrb[0].mxu0
        %v6189 = vadd.f32 0.0, %v6188
        %v6190 = vpop.f32.mrb[0].mxu0
        %6191 = vdwg.mxu0
        %v6192 = vadd.f32 %v5806, %v6066
        %v6193 = vadd.f32 %v5807, %v6069
        %v6194 = vadd.f32 %v5808, %v6074
        %v6195 = vadd.f32 %v5809, %v6077
        %v6196 = vadd.f32 %v5810, %v6082
        %v6197 = vadd.f32 %v5811, %v6085
        %v6198 = vadd.f32 %v5812, %v6090
        %v6199 = vadd.f32 %v5813, %v6093
        %v6200 = vadd.f32 %v5814, %v6098
        %v6201 = vadd.f32 %v5815, %v6101
        %v6202 = vadd.f32 %v5816, %v6106
        %v6203 = vadd.f32 %v5817, %v6109
        %v6204 = vadd.f32 %v5818, %v6114
        %v6205 = vadd.f32 %v5819, %v6117
        %v6206 = vadd.f32 %v5820, %v6122
        %v6207 = vadd.f32 %v5821, %v6125
        %v6208 = vadd.f32 %v5822, %v6130
        %v6209 = vadd.f32 %v5823, %v6133
        %v6210 = vadd.f32 %v5824, %v6138
        %v6211 = vadd.f32 %v5825, %v6141
        %v6212 = vadd.f32 %v5826, %v6146
        %v6213 = vadd.f32 %v5827, %v6149
        %v6214 = vadd.f32 %v5828, %v6154
        %v6215 = vadd.f32 %v5829, %v6157
        %v6216 = vadd.f32 %v5830, %v6162
        %v6217 = vadd.f32 %v5831, %v6165
        %v6218 = vadd.f32 %v5832, %v6170
        %v6219 = vadd.f32 %v5833, %v6173
        %v6220 = vadd.f32 %v5834, %v6178
        %v6221 = vadd.f32 %v5835, %v6181
        %v6222 = vadd.f32 %v5836, %v6186
        %v6223 = vadd.f32 %v5837, %v6189
        %v6224 = vld [vmem:[%s4198] sm:$0xf]
        %v6225 = vld [vmem:[%s4198 + $0x4] sm:$0xf]
        %v6226 = vld [vmem:[%s4198 + $0x8] sm:$0x1]
        %v6227 = vld [vmem:[%s4198 + $0xc] sm:$0xf]
        %v6228 = vld [vmem:[%s4198 + $0x10] sm:$0xf]
        %v6229 = vld [vmem:[%s4198 + $0x14] sm:$0x1]
        %v6230 = vld [vmem:[%s4198 + $0x18] sm:$0xf]
        %v6231 = vld [vmem:[%s4198 + $0x1c] sm:$0xf]
        %v6232 = vld [vmem:[%s4198 + $0x20] sm:$0x1]
        %v6233 = vld [vmem:[%s4198 + $0x24] sm:$0xf]
        %v6234 = vld [vmem:[%s4198 + $0x28] sm:$0xf]
        %v6235 = vld [vmem:[%s4198 + $0x2c] sm:$0x1]
        %v6236 = vld [vmem:[%s4198 + $0x30] sm:$0xf]
        %v6237 = vld [vmem:[%s4198 + $0x34] sm:$0xf]
        %v6238 = vld [vmem:[%s4198 + $0x38] sm:$0x1]
        %v6239 = vld [vmem:[%s4198 + $0x3c] sm:$0xf]
        %v6240 = vld [vmem:[%s4198 + $0x40] sm:$0xf]
        %v6241 = vld [vmem:[%s4198 + $0x44] sm:$0x1]
        %v6242 = vld [vmem:[%s4198 + $0x48] sm:$0xf]
        %v6243 = vld [vmem:[%s4198 + $0x4c] sm:$0xf]
        %v6244 = vld [vmem:[%s4198 + $0x50] sm:$0x1]
        %v6245 = vld [vmem:[%s4198 + $0x54] sm:$0xf]
        %v6246 = vld [vmem:[%s4198 + $0x58] sm:$0xf]
        %v6247 = vld [vmem:[%s4198 + $0x5c] sm:$0x1]
        %v6248 = vld [vmem:[%s4198 + $0x60] sm:$0xf]
        %v6249 = vld [vmem:[%s4198 + $0x64] sm:$0xf]
        %v6250 = vld [vmem:[%s4198 + $0x68] sm:$0x1]
        %v6251 = vld [vmem:[%s4198 + $0x6c] sm:$0xf]
        %v6252 = vld [vmem:[%s4198 + $0x70] sm:$0xf]
        %v6253 = vld [vmem:[%s4198 + $0x74] sm:$0x1]
        %v6254 = vld [vmem:[%s4198 + $0x78] sm:$0xf]
        %v6255 = vld [vmem:[%s4198 + $0x7c] sm:$0xf]
        %v6256 = vld [vmem:[%s4198 + $0x80] sm:$0x1]
        %v6257 = vld [vmem:[%s4198 + $0x84] sm:$0xf]
        %v6258 = vld [vmem:[%s4198 + $0x88] sm:$0xf]
        %v6259 = vld [vmem:[%s4198 + $0x8c] sm:$0x1]
        %v6260 = vld [vmem:[%s4198 + $0x90] sm:$0xf]
        %v6261 = vld [vmem:[%s4198 + $0x94] sm:$0xf]
        %v6262 = vld [vmem:[%s4198 + $0x98] sm:$0x1]
        %v6263 = vld [vmem:[%s4198 + $0x9c] sm:$0xf]
        %v6264 = vld [vmem:[%s4198 + $0xa0] sm:$0xf]
        %v6265 = vld [vmem:[%s4198 + $0xa4] sm:$0x1]
        %v6266 = vld [vmem:[%s4198 + $0xa8] sm:$0xf]
        %v6267 = vld [vmem:[%s4198 + $0xac] sm:$0xf]
        %v6268 = vld [vmem:[%s4198 + $0xb0] sm:$0x1]
        %v6269 = vld [vmem:[%s4198 + $0xb4] sm:$0xf]
        %v6270 = vld [vmem:[%s4198 + $0xb8] sm:$0xf]
        %v6271 = vld [vmem:[%s4198 + $0xbc] sm:$0x1]
        %v6273 = vshrl.u32 %v6224, 16
        %v6275 = vrot.slane %v6273, 4
        %v6276 = vshll.u32 %v6224, 16
        %v6278 = vrot.slane %v6276, 5
        %v6279 = vor.u32 %v6275, %v6278
        %v6280 = vrot.slane %v6279, 4
        %v6282 = vshll.u32 %v6225, 16
        %v6284 = vrot.slane %v6282, 5
        %v6285 = vsel %vm461, %v6280, %v6284
        %v6286 = vshrl.u32 %v6225, 16
        %v6288 = vrot.slane %v6286, 4
        %v6289 = vor.u32 %v6288, %v6284
        %v6290 = vrot.slane %v6289, 4
        %v6292 = vshll.u32 %v6226, 16
        %v6294 = vrot.slane %v6292, 5
        %v6295 = vsel %vm461, %v6290, %v6294
        %v6297 = vshrl.u32 %v6227, 16
        %v6299 = vrot.slane %v6297, 4
        %v6300 = vshll.u32 %v6227, 16
        %v6302 = vrot.slane %v6300, 5
        %v6303 = vor.u32 %v6299, %v6302
        %v6304 = vrot.slane %v6303, 4
        %v6306 = vshll.u32 %v6228, 16
        %v6308 = vrot.slane %v6306, 5
        %v6309 = vsel %vm461, %v6304, %v6308
        %v6310 = vshrl.u32 %v6228, 16
        %v6312 = vrot.slane %v6310, 4
        %v6313 = vor.u32 %v6312, %v6308
        %v6314 = vrot.slane %v6313, 4
        %v6316 = vshll.u32 %v6229, 16
        %v6318 = vrot.slane %v6316, 5
        %v6319 = vsel %vm461, %v6314, %v6318
        %v6321 = vshrl.u32 %v6230, 16
        %v6323 = vrot.slane %v6321, 4
        %v6324 = vshll.u32 %v6230, 16
        %v6326 = vrot.slane %v6324, 5
        %v6327 = vor.u32 %v6323, %v6326
        %v6328 = vrot.slane %v6327, 4
        %v6330 = vshll.u32 %v6231, 16
        %v6332 = vrot.slane %v6330, 5
        %v6333 = vsel %vm461, %v6328, %v6332
        %v6334 = vshrl.u32 %v6231, 16
        %v6336 = vrot.slane %v6334, 4
        %v6337 = vor.u32 %v6336, %v6332
        %v6338 = vrot.slane %v6337, 4
        %v6340 = vshll.u32 %v6232, 16
        %v6342 = vrot.slane %v6340, 5
        %v6343 = vsel %vm461, %v6338, %v6342
        %v6345 = vshrl.u32 %v6233, 16
        %v6347 = vrot.slane %v6345, 4
        %v6348 = vshll.u32 %v6233, 16
        %v6350 = vrot.slane %v6348, 5
        %v6351 = vor.u32 %v6347, %v6350
        %v6352 = vrot.slane %v6351, 4
        %v6354 = vshll.u32 %v6234, 16
        %v6356 = vrot.slane %v6354, 5
        %v6357 = vsel %vm461, %v6352, %v6356
        %v6358 = vshrl.u32 %v6234, 16
        %v6360 = vrot.slane %v6358, 4
        %v6361 = vor.u32 %v6360, %v6356
        %v6362 = vrot.slane %v6361, 4
        %v6364 = vshll.u32 %v6235, 16
        %v6366 = vrot.slane %v6364, 5
        %v6367 = vsel %vm461, %v6362, %v6366
        %v6369 = vshrl.u32 %v6236, 16
        %v6371 = vrot.slane %v6369, 4
        %v6372 = vshll.u32 %v6236, 16
        %v6374 = vrot.slane %v6372, 5
        %v6375 = vor.u32 %v6371, %v6374
        %v6376 = vrot.slane %v6375, 4
        %v6378 = vshll.u32 %v6237, 16
        %v6380 = vrot.slane %v6378, 5
        %v6381 = vsel %vm461, %v6376, %v6380
        %v6382 = vshrl.u32 %v6237, 16
        %v6384 = vrot.slane %v6382, 4
        %v6385 = vor.u32 %v6384, %v6380
        %v6386 = vrot.slane %v6385, 4
        %v6388 = vshll.u32 %v6238, 16
        %v6390 = vrot.slane %v6388, 5
        %v6391 = vsel %vm461, %v6386, %v6390
        %v6393 = vshrl.u32 %v6239, 16
        %v6395 = vrot.slane %v6393, 4
        %v6396 = vshll.u32 %v6239, 16
        %v6398 = vrot.slane %v6396, 5
        %v6399 = vor.u32 %v6395, %v6398
        %v6400 = vrot.slane %v6399, 4
        %v6402 = vshll.u32 %v6240, 16
        %v6404 = vrot.slane %v6402, 5
        %v6405 = vsel %vm461, %v6400, %v6404
        %v6406 = vshrl.u32 %v6240, 16
        %v6408 = vrot.slane %v6406, 4
        %v6409 = vor.u32 %v6408, %v6404
        %v6410 = vrot.slane %v6409, 4
        %v6412 = vshll.u32 %v6241, 16
        %v6414 = vrot.slane %v6412, 5
        %v6415 = vsel %vm461, %v6410, %v6414
        %v6417 = vshrl.u32 %v6242, 16
        %v6419 = vrot.slane %v6417, 4
        %v6420 = vshll.u32 %v6242, 16
        %v6422 = vrot.slane %v6420, 5
        %v6423 = vor.u32 %v6419, %v6422
        %v6424 = vrot.slane %v6423, 4
        %v6426 = vshll.u32 %v6243, 16
        %v6428 = vrot.slane %v6426, 5
        %v6429 = vsel %vm461, %v6424, %v6428
        %v6430 = vshrl.u32 %v6243, 16
        %v6432 = vrot.slane %v6430, 4
        %v6433 = vor.u32 %v6432, %v6428
        %v6434 = vrot.slane %v6433, 4
        %v6436 = vshll.u32 %v6244, 16
        %v6438 = vrot.slane %v6436, 5
        %v6439 = vsel %vm461, %v6434, %v6438
        %v6441 = vshrl.u32 %v6245, 16
        %v6443 = vrot.slane %v6441, 4
        %v6444 = vshll.u32 %v6245, 16
        %v6446 = vrot.slane %v6444, 5
        %v6447 = vor.u32 %v6443, %v6446
        %v6448 = vrot.slane %v6447, 4
        %v6450 = vshll.u32 %v6246, 16
        %v6452 = vrot.slane %v6450, 5
        %v6453 = vsel %vm461, %v6448, %v6452
        %v6454 = vshrl.u32 %v6246, 16
        %v6456 = vrot.slane %v6454, 4
        %v6457 = vor.u32 %v6456, %v6452
        %v6458 = vrot.slane %v6457, 4
        %v6460 = vshll.u32 %v6247, 16
        %v6462 = vrot.slane %v6460, 5
        %v6463 = vsel %vm461, %v6458, %v6462
        %v6465 = vshrl.u32 %v6248, 16
        %v6467 = vrot.slane %v6465, 4
        %v6468 = vshll.u32 %v6248, 16
        %v6470 = vrot.slane %v6468, 5
        %v6471 = vor.u32 %v6467, %v6470
        %v6472 = vrot.slane %v6471, 4
        %v6474 = vshll.u32 %v6249, 16
        %v6476 = vrot.slane %v6474, 5
        %v6477 = vsel %vm461, %v6472, %v6476
        %v6478 = vshrl.u32 %v6249, 16
        %v6480 = vrot.slane %v6478, 4
        %v6481 = vor.u32 %v6480, %v6476
        %v6482 = vrot.slane %v6481, 4
        %v6484 = vshll.u32 %v6250, 16
        %v6486 = vrot.slane %v6484, 5
        %v6487 = vsel %vm461, %v6482, %v6486
        %v6489 = vshrl.u32 %v6251, 16
        %v6491 = vrot.slane %v6489, 4
        %v6492 = vshll.u32 %v6251, 16
        %v6494 = vrot.slane %v6492, 5
        %v6495 = vor.u32 %v6491, %v6494
        %v6496 = vrot.slane %v6495, 4
        %v6498 = vshll.u32 %v6252, 16
        %v6500 = vrot.slane %v6498, 5
        %v6501 = vsel %vm461, %v6496, %v6500
        %v6502 = vshrl.u32 %v6252, 16
        %v6504 = vrot.slane %v6502, 4
        %v6505 = vor.u32 %v6504, %v6500
        %v6506 = vrot.slane %v6505, 4
        %v6508 = vshll.u32 %v6253, 16
        %v6510 = vrot.slane %v6508, 5
        %v6511 = vsel %vm461, %v6506, %v6510
        %v6513 = vshrl.u32 %v6254, 16
        %v6515 = vrot.slane %v6513, 4
        %v6516 = vshll.u32 %v6254, 16
        %v6518 = vrot.slane %v6516, 5
        %v6519 = vor.u32 %v6515, %v6518
        %v6520 = vrot.slane %v6519, 4
        %v6522 = vshll.u32 %v6255, 16
        %v6524 = vrot.slane %v6522, 5
        %v6525 = vsel %vm461, %v6520, %v6524
        %v6526 = vshrl.u32 %v6255, 16
        %v6528 = vrot.slane %v6526, 4
        %v6529 = vor.u32 %v6528, %v6524
        %v6530 = vrot.slane %v6529, 4
        %v6532 = vshll.u32 %v6256, 16
        %v6534 = vrot.slane %v6532, 5
        %v6535 = vsel %vm461, %v6530, %v6534
        %v6537 = vshrl.u32 %v6257, 16
        %v6539 = vrot.slane %v6537, 4
        %v6540 = vshll.u32 %v6257, 16
        %v6542 = vrot.slane %v6540, 5
        %v6543 = vor.u32 %v6539, %v6542
        %v6544 = vrot.slane %v6543, 4
        %v6546 = vshll.u32 %v6258, 16
        %v6548 = vrot.slane %v6546, 5
        %v6549 = vsel %vm461, %v6544, %v6548
        %v6550 = vshrl.u32 %v6258, 16
        %v6552 = vrot.slane %v6550, 4
        %v6553 = vor.u32 %v6552, %v6548
        %v6554 = vrot.slane %v6553, 4
        %v6556 = vshll.u32 %v6259, 16
        %v6558 = vrot.slane %v6556, 5
        %v6559 = vsel %vm461, %v6554, %v6558
        %v6561 = vshrl.u32 %v6260, 16
        %v6563 = vrot.slane %v6561, 4
        %v6564 = vshll.u32 %v6260, 16
        %v6566 = vrot.slane %v6564, 5
        %v6567 = vor.u32 %v6563, %v6566
        %v6568 = vrot.slane %v6567, 4
        %v6570 = vshll.u32 %v6261, 16
        %v6572 = vrot.slane %v6570, 5
        %v6573 = vsel %vm461, %v6568, %v6572
        %v6574 = vshrl.u32 %v6261, 16
        %v6576 = vrot.slane %v6574, 4
        %v6577 = vor.u32 %v6576, %v6572
        %v6578 = vrot.slane %v6577, 4
        %v6580 = vshll.u32 %v6262, 16
        %v6582 = vrot.slane %v6580, 5
        %v6583 = vsel %vm461, %v6578, %v6582
        %v6585 = vshrl.u32 %v6263, 16
        %v6587 = vrot.slane %v6585, 4
        %v6588 = vshll.u32 %v6263, 16
        %v6590 = vrot.slane %v6588, 5
        %v6591 = vor.u32 %v6587, %v6590
        %v6592 = vrot.slane %v6591, 4
        %v6594 = vshll.u32 %v6264, 16
        %v6596 = vrot.slane %v6594, 5
        %v6597 = vsel %vm461, %v6592, %v6596
        %v6598 = vshrl.u32 %v6264, 16
        %v6600 = vrot.slane %v6598, 4
        %v6601 = vor.u32 %v6600, %v6596
        %v6602 = vrot.slane %v6601, 4
        %v6604 = vshll.u32 %v6265, 16
        %v6606 = vrot.slane %v6604, 5
        %v6607 = vsel %vm461, %v6602, %v6606
        %v6609 = vshrl.u32 %v6266, 16
        %v6611 = vrot.slane %v6609, 4
        %v6612 = vshll.u32 %v6266, 16
        %v6614 = vrot.slane %v6612, 5
        %v6615 = vor.u32 %v6611, %v6614
        %v6616 = vrot.slane %v6615, 4
        %v6618 = vshll.u32 %v6267, 16
        %v6620 = vrot.slane %v6618, 5
        %v6621 = vsel %vm461, %v6616, %v6620
        %v6622 = vshrl.u32 %v6267, 16
        %v6624 = vrot.slane %v6622, 4
        %v6625 = vor.u32 %v6624, %v6620
        %v6626 = vrot.slane %v6625, 4
        %v6628 = vshll.u32 %v6268, 16
        %v6630 = vrot.slane %v6628, 5
        %v6631 = vsel %vm461, %v6626, %v6630
        %v6633 = vshrl.u32 %v6269, 16
        %v6635 = vrot.slane %v6633, 4
        %v6636 = vshll.u32 %v6269, 16
        %v6638 = vrot.slane %v6636, 5
        %v6639 = vor.u32 %v6635, %v6638
        %v6640 = vrot.slane %v6639, 4
        %v6642 = vshll.u32 %v6270, 16
        %v6644 = vrot.slane %v6642, 5
        %v6645 = vsel %vm461, %v6640, %v6644
        %v6646 = vshrl.u32 %v6270, 16
        %v6648 = vrot.slane %v6646, 4
        %v6649 = vor.u32 %v6648, %v6644
        %v6650 = vrot.slane %v6649, 4
        %v6652 = vshll.u32 %v6271, 16
        %v6654 = vrot.slane %v6652, 5
        %v6655 = vsel %vm461, %v6650, %v6654
        %s6656 = scalar_lea.vmem %s3, 256
        %v6657 = vld [vmem:[%s6656] sm:$0xf]
        %v6658 = vld [vmem:[%s6656 + $0x4] sm:$0xf]
        %v6659 = vld [vmem:[%s6656 + $0x8] sm:$0xf]
        %v6660 = vld [vmem:[%s6656 + $0xc] sm:$0xf]
        %v6661 = vld [vmem:[%s6656 + $0x10] sm:$0xf]
        %v6662 = vld [vmem:[%s6656 + $0x14] sm:$0xf]
        %v6663 = vld [vmem:[%s6656 + $0x18] sm:$0xf]
        %v6664 = vld [vmem:[%s6656 + $0x1c] sm:$0xf]
        %v6665 = vld [vmem:[%s6656 + $0x20] sm:$0xf]
        %v6666 = vld [vmem:[%s6656 + $0x24] sm:$0xf]
        %v6667 = vld [vmem:[%s6656 + $0x28] sm:$0xf]
        %v6668 = vld [vmem:[%s6656 + $0x2c] sm:$0xf]
        %v6669 = vld [vmem:[%s6656 + $0x30] sm:$0xf]
        %v6670 = vld [vmem:[%s6656 + $0x34] sm:$0xf]
        %v6671 = vld [vmem:[%s6656 + $0x38] sm:$0xf]
        %v6672 = vld [vmem:[%s6656 + $0x3c] sm:$0xf]
        %v6673 = vunpack.c.l.b16 %v6285
        %v6674 = vunpack.c.l.b16 %v6295
        %v6675 = vunpack.c.l.b16 %v6309
        %v6676 = vunpack.c.l.b16 %v6319
        %v6677 = vunpack.c.l.b16 %v6333
        %v6678 = vunpack.c.l.b16 %v6343
        %v6679 = vunpack.c.l.b16 %v6357
        %v6680 = vunpack.c.l.b16 %v6367
        %v6681 = vunpack.c.l.b16 %v6381
        %v6682 = vunpack.c.l.b16 %v6391
        %v6683 = vunpack.c.l.b16 %v6405
        %v6684 = vunpack.c.l.b16 %v6415
        %v6685 = vunpack.c.l.b16 %v6429
        %v6686 = vunpack.c.l.b16 %v6439
        %v6687 = vunpack.c.l.b16 %v6453
        %v6688 = vunpack.c.l.b16 %v6463
        %v6689 = vunpack.c.l.b16 %v6477
        %v6690 = vunpack.c.l.b16 %v6487
        %v6691 = vunpack.c.l.b16 %v6501
        %v6692 = vunpack.c.l.b16 %v6511
        %v6693 = vunpack.c.l.b16 %v6525
        %v6694 = vunpack.c.l.b16 %v6535
        %v6695 = vunpack.c.l.b16 %v6549
        %v6696 = vunpack.c.l.b16 %v6559
        %v6697 = vunpack.c.l.b16 %v6573
        %v6698 = vunpack.c.l.b16 %v6583
        %v6699 = vunpack.c.l.b16 %v6597
        %v6700 = vunpack.c.l.b16 %v6607
        %v6701 = vunpack.c.l.b16 %v6621
        %v6702 = vunpack.c.l.b16 %v6631
        %v6703 = vunpack.c.l.b16 %v6645
        %v6704 = vunpack.c.l.b16 %v6655
        %v6705 = vpack.c.b16 %v6674, %v6673
        %v6706 = vpack.c.b16 %v6676, %v6675
        %v6707 = vpack.c.b16 %v6678, %v6677
        %v6708 = vpack.c.b16 %v6680, %v6679
        %v6709 = vpack.c.b16 %v6682, %v6681
        %v6710 = vpack.c.b16 %v6684, %v6683
        %v6711 = vpack.c.b16 %v6686, %v6685
        %v6712 = vpack.c.b16 %v6688, %v6687
        %v6713 = vpack.c.b16 %v6690, %v6689
        %v6714 = vpack.c.b16 %v6692, %v6691
        %v6715 = vpack.c.b16 %v6694, %v6693
        %v6716 = vpack.c.b16 %v6696, %v6695
        %v6717 = vpack.c.b16 %v6698, %v6697
        %v6718 = vpack.c.b16 %v6700, %v6699
        %v6719 = vpack.c.b16 %v6702, %v6701
        %v6720 = vpack.c.b16 %v6704, %v6703
        %v6753 = vunpack.c.l.b16 %v6657
        %v6754 = vunpack.c.l.b16 %v6658
        %v6755 = vunpack.c.l.b16 %v6659
        %v6756 = vunpack.c.l.b16 %v6660
        %v6757 = vunpack.c.l.b16 %v6661
        %v6758 = vunpack.c.l.b16 %v6662
        %v6759 = vunpack.c.l.b16 %v6663
        %v6760 = vunpack.c.l.b16 %v6664
        %v6761 = vunpack.c.l.b16 %v6665
        %v6762 = vunpack.c.l.b16 %v6666
        %v6763 = vunpack.c.l.b16 %v6667
        %v6764 = vunpack.c.l.b16 %v6668
        %v6765 = vunpack.c.l.b16 %v6669
        %v6766 = vunpack.c.l.b16 %v6670
        %v6767 = vunpack.c.l.b16 %v6671
        %v6768 = vunpack.c.l.b16 %v6672
        %v6769 = vpack.c.b16 %v6754, %v6753
        %v6770 = vpack.c.b16 %v6756, %v6755
        %v6771 = vpack.c.b16 %v6758, %v6757
        %v6772 = vpack.c.b16 %v6760, %v6759
        %v6773 = vpack.c.b16 %v6762, %v6761
        %v6774 = vpack.c.b16 %v6764, %v6763
        %v6775 = vpack.c.b16 %v6766, %v6765
        %v6776 = vpack.c.b16 %v6768, %v6767
        %6785 = vmatprep.subr.bf16.mxu0 0
        %6786 = vmatpush1.bf16.msra.mxu0 %v6769
        %6787 = vmatprep.subr.bf16.mxu0 0
        %6788 = vmatpush1.bf16.msra.mxu0 %v6770
        %6789 = vmatprep.subr.bf16.mxu0 0
        %6790 = vmatpush1.bf16.msra.mxu0 %v6771
        %6791 = vmatprep.subr.bf16.mxu0 0
        %6792 = vmatpush1.bf16.msra.mxu0 %v6772
        %6793 = vmatprep.subr.bf16.mxu0 0
        %6794 = vmatpush1.bf16.msra.mxu0 %v6773
        %6795 = vmatprep.subr.bf16.mxu0 0
        %6796 = vmatpush1.bf16.msra.mxu0 %v6774
        %6797 = vmatprep.subr.bf16.mxu0 0
        %6798 = vmatpush1.bf16.msra.mxu0 %v6775
        %6799 = vmatprep.subr.bf16.mxu0 0
        %6800 = vmatpush1.bf16.msra.mxu0 %v6776
        %6801 = vmatprep.subr.bf16.mxu0 0
        %6802 = vmatpush1.bf16.msra.mxu0 0
        %6803 = vmatprep.subr.bf16.mxu0 0
        %6804 = vmatpush1.bf16.msra.mxu0 0
        %6805 = vmatprep.subr.bf16.mxu0 0
        %6806 = vmatpush1.bf16.msra.mxu0 0
        %6807 = vmatprep.subr.bf16.mxu0 0
        %6808 = vmatpush1.bf16.msra.mxu0 0
        %6809 = vmatprep.subr.bf16.mxu0 0
        %6810 = vmatpush1.bf16.msra.mxu0 0
        %6811 = vmatprep.subr.bf16.mxu0 0
        %6812 = vmatpush1.bf16.msra.mxu0 0
        %6813 = vmatprep.subr.bf16.mxu0 0
        %6814 = vmatpush1.bf16.msra.mxu0 0
        %6815 = vmatprep.subr.bf16.mxu0 0
        %6816 = vmatpush1.bf16.msra.mxu0 0
        %6817 = vmatprep.mubr.bf16.mxu0 0
        %6818 = vmatmul.mubr.bf16.gmra.mrb[0].mxu0 %v6705
        %v6819 = vpop.f32.mrb[0].mxu0
        %v6820 = vadd.f32 0.0, %v6819
        %v6821 = vpop.f32.mrb[0].mxu0
        %v6822 = vpop.f32.mrb[0].mxu0
        %v6823 = vadd.f32 0.0, %v6822
        %v6824 = vpop.f32.mrb[0].mxu0
        %6825 = vmatprep.mubr.bf16.mxu0 0
        %6826 = vmatmul.mubr.bf16.gmra.mrb[0].mxu0 %v6706
        %v6827 = vpop.f32.mrb[0].mxu0
        %v6828 = vadd.f32 0.0, %v6827
        %v6829 = vpop.f32.mrb[0].mxu0
        %v6830 = vpop.f32.mrb[0].mxu0
        %v6831 = vadd.f32 0.0, %v6830
        %v6832 = vpop.f32.mrb[0].mxu0
        %6833 = vmatprep.mubr.bf16.mxu0 0
        %6834 = vmatmul.mubr.bf16.gmra.mrb[0].mxu0 %v6707
        %v6835 = vpop.f32.mrb[0].mxu0
        %v6836 = vadd.f32 0.0, %v6835
        %v6837 = vpop.f32.mrb[0].mxu0
        %v6838 = vpop.f32.mrb[0].mxu0
        %v6839 = vadd.f32 0.0, %v6838
        %v6840 = vpop.f32.mrb[0].mxu0
        %6841 = vmatprep.mubr.bf16.mxu0 0
        %6842 = vmatmul.mubr.bf16.gmra.mrb[0].mxu0 %v6708
        %v6843 = vpop.f32.mrb[0].mxu0
        %v6844 = vadd.f32 0.0, %v6843
        %v6845 = vpop.f32.mrb[0].mxu0
        %v6846 = vpop.f32.mrb[0].mxu0
        %v6847 = vadd.f32 0.0, %v6846
        %v6848 = vpop.f32.mrb[0].mxu0
        %6849 = vmatprep.mubr.bf16.mxu0 0
        %6850 = vmatmul.mubr.bf16.gmra.mrb[0].mxu0 %v6709
        %v6851 = vpop.f32.mrb[0].mxu0
        %v6852 = vadd.f32 0.0, %v6851
        %v6853 = vpop.f32.mrb[0].mxu0
        %v6854 = vpop.f32.mrb[0].mxu0
        %v6855 = vadd.f32 0.0, %v6854
        %v6856 = vpop.f32.mrb[0].mxu0
        %6857 = vmatprep.mubr.bf16.mxu0 0
        %6858 = vmatmul.mubr.bf16.gmra.mrb[0].mxu0 %v6710
        %v6859 = vpop.f32.mrb[0].mxu0
        %v6860 = vadd.f32 0.0, %v6859
        %v6861 = vpop.f32.mrb[0].mxu0
        %v6862 = vpop.f32.mrb[0].mxu0
        %v6863 = vadd.f32 0.0, %v6862
        %v6864 = vpop.f32.mrb[0].mxu0
        %6865 = vmatprep.mubr.bf16.mxu0 0
        %6866 = vmatmul.mubr.bf16.gmra.mrb[0].mxu0 %v6711
        %v6867 = vpop.f32.mrb[0].mxu0
        %v6868 = vadd.f32 0.0, %v6867
        %v6869 = vpop.f32.mrb[0].mxu0
        %v6870 = vpop.f32.mrb[0].mxu0
        %v6871 = vadd.f32 0.0, %v6870
        %v6872 = vpop.f32.mrb[0].mxu0
        %6873 = vmatprep.mubr.bf16.mxu0 0
        %6874 = vmatmul.mubr.bf16.gmra.mrb[0].mxu0 %v6712
        %v6875 = vpop.f32.mrb[0].mxu0
        %v6876 = vadd.f32 0.0, %v6875
        %v6877 = vpop.f32.mrb[0].mxu0
        %v6878 = vpop.f32.mrb[0].mxu0
        %v6879 = vadd.f32 0.0, %v6878
        %v6880 = vpop.f32.mrb[0].mxu0
        %6881 = vmatprep.mubr.bf16.mxu0 0
        %6882 = vmatmul.mubr.bf16.gmra.mrb[0].mxu0 %v6713
        %v6883 = vpop.f32.mrb[0].mxu0
        %v6884 = vadd.f32 0.0, %v6883
        %v6885 = vpop.f32.mrb[0].mxu0
        %v6886 = vpop.f32.mrb[0].mxu0
        %v6887 = vadd.f32 0.0, %v6886
        %v6888 = vpop.f32.mrb[0].mxu0
        %6889 = vmatprep.mubr.bf16.mxu0 0
        %6890 = vmatmul.mubr.bf16.gmra.mrb[0].mxu0 %v6714
        %v6891 = vpop.f32.mrb[0].mxu0
        %v6892 = vadd.f32 0.0, %v6891
        %v6893 = vpop.f32.mrb[0].mxu0
        %v6894 = vpop.f32.mrb[0].mxu0
        %v6895 = vadd.f32 0.0, %v6894
        %v6896 = vpop.f32.mrb[0].mxu0
        %6897 = vmatprep.mubr.bf16.mxu0 0
        %6898 = vmatmul.mubr.bf16.gmra.mrb[0].mxu0 %v6715
        %v6899 = vpop.f32.mrb[0].mxu0
        %v6900 = vadd.f32 0.0, %v6899
        %v6901 = vpop.f32.mrb[0].mxu0
        %v6902 = vpop.f32.mrb[0].mxu0
        %v6903 = vadd.f32 0.0, %v6902
        %v6904 = vpop.f32.mrb[0].mxu0
        %6905 = vmatprep.mubr.bf16.mxu0 0
        %6906 = vmatmul.mubr.bf16.gmra.mrb[0].mxu0 %v6716
        %v6907 = vpop.f32.mrb[0].mxu0
        %v6908 = vadd.f32 0.0, %v6907
        %v6909 = vpop.f32.mrb[0].mxu0
        %v6910 = vpop.f32.mrb[0].mxu0
        %v6911 = vadd.f32 0.0, %v6910
        %v6912 = vpop.f32.mrb[0].mxu0
        %6913 = vmatprep.mubr.bf16.mxu0 0
        %6914 = vmatmul.mubr.bf16.gmra.mrb[0].mxu0 %v6717
        %v6915 = vpop.f32.mrb[0].mxu0
        %v6916 = vadd.f32 0.0, %v6915
        %v6917 = vpop.f32.mrb[0].mxu0
        %v6918 = vpop.f32.mrb[0].mxu0
        %v6919 = vadd.f32 0.0, %v6918
        %v6920 = vpop.f32.mrb[0].mxu0
        %6921 = vmatprep.mubr.bf16.mxu0 0
        %6922 = vmatmul.mubr.bf16.gmra.mrb[0].mxu0 %v6718
        %v6923 = vpop.f32.mrb[0].mxu0
        %v6924 = vadd.f32 0.0, %v6923
        %v6925 = vpop.f32.mrb[0].mxu0
        %v6926 = vpop.f32.mrb[0].mxu0
        %v6927 = vadd.f32 0.0, %v6926
        %v6928 = vpop.f32.mrb[0].mxu0
        %6929 = vmatprep.mubr.bf16.mxu0 0
        %6930 = vmatmul.mubr.bf16.gmra.mrb[0].mxu0 %v6719
        %v6931 = vpop.f32.mrb[0].mxu0
        %v6932 = vadd.f32 0.0, %v6931
        %v6933 = vpop.f32.mrb[0].mxu0
        %v6934 = vpop.f32.mrb[0].mxu0
        %v6935 = vadd.f32 0.0, %v6934
        %v6936 = vpop.f32.mrb[0].mxu0
        %6937 = vmatprep.mubr.bf16.mxu0 0
        %6938 = vmatmul.mubr.bf16.gmra.mrb[0].mxu0 %v6720
        %v6939 = vpop.f32.mrb[0].mxu0
        %v6940 = vadd.f32 0.0, %v6939
        %v6941 = vpop.f32.mrb[0].mxu0
        %v6942 = vpop.f32.mrb[0].mxu0
        %v6943 = vadd.f32 0.0, %v6942
        %v6944 = vpop.f32.mrb[0].mxu0
        %6945 = vdwg.mxu0
        %v6946 = vadd.f32 %v6192, %v6820
        %v6947 = vadd.f32 %v6193, %v6823
        %v6948 = vadd.f32 %v6194, %v6828
        %v6949 = vadd.f32 %v6195, %v6831
        %v6950 = vadd.f32 %v6196, %v6836
        %v6951 = vadd.f32 %v6197, %v6839
        %v6952 = vadd.f32 %v6198, %v6844
        %v6953 = vadd.f32 %v6199, %v6847
        %v6954 = vadd.f32 %v6200, %v6852
        %v6955 = vadd.f32 %v6201, %v6855
        %v6956 = vadd.f32 %v6202, %v6860
        %v6957 = vadd.f32 %v6203, %v6863
        %v6958 = vadd.f32 %v6204, %v6868
        %v6959 = vadd.f32 %v6205, %v6871
        %v6960 = vadd.f32 %v6206, %v6876
        %v6961 = vadd.f32 %v6207, %v6879
        %v6962 = vadd.f32 %v6208, %v6884
        %v6963 = vadd.f32 %v6209, %v6887
        %v6964 = vadd.f32 %v6210, %v6892
        %v6965 = vadd.f32 %v6211, %v6895
        %v6966 = vadd.f32 %v6212, %v6900
        %v6967 = vadd.f32 %v6213, %v6903
        %v6968 = vadd.f32 %v6214, %v6908
        %v6969 = vadd.f32 %v6215, %v6911
        %v6970 = vadd.f32 %v6216, %v6916
        %v6971 = vadd.f32 %v6217, %v6919
        %v6972 = vadd.f32 %v6218, %v6924
        %v6973 = vadd.f32 %v6219, %v6927
        %v6974 = vadd.f32 %v6220, %v6932
        %v6975 = vadd.f32 %v6221, %v6935
        %v6976 = vadd.f32 %v6222, %v6940
        %v6977 = vadd.f32 %v6223, %v6943
        %v6978 = vld [vmem:[%s4198] sm:$0xe]
        %v6979 = vld [vmem:[%s4198 + $0xc] sm:$0xe]
        %v6980 = vld [vmem:[%s4198 + $0x18] sm:$0xe]
        %v6981 = vld [vmem:[%s4198 + $0x24] sm:$0xe]
        %v6982 = vld [vmem:[%s4198 + $0x30] sm:$0xe]
        %v6983 = vld [vmem:[%s4198 + $0x3c] sm:$0xe]
        %v6984 = vld [vmem:[%s4198 + $0x48] sm:$0xe]
        %v6985 = vld [vmem:[%s4198 + $0x54] sm:$0xe]
        %v6986 = vld [vmem:[%s4198 + $0x60] sm:$0xe]
        %v6987 = vld [vmem:[%s4198 + $0x6c] sm:$0xe]
        %v6988 = vld [vmem:[%s4198 + $0x78] sm:$0xe]
        %v6989 = vld [vmem:[%s4198 + $0x84] sm:$0xe]
        %v6990 = vld [vmem:[%s4198 + $0x90] sm:$0xe]
        %v6991 = vld [vmem:[%s4198 + $0x9c] sm:$0xe]
        %v6992 = vld [vmem:[%s4198 + $0xa8] sm:$0xe]
        %v6993 = vld [vmem:[%s4198 + $0xb4] sm:$0xe]
        %v7042 = vrot.slane %v6978, 5
        %v7043 = vrot.slane %v7042, 4
        %v7044 = vrot.slane %v6225, 5
        %v7045 = vsel %vm1057, %v7043, %v7044
        %v7046 = vrot.slane %v7044, 4
        %v7047 = vrot.slane %v6226, 5
        %v7048 = vsel %vm1057, %v7046, %v7047
        %v7049 = vrot.slane %v6979, 5
        %v7050 = vrot.slane %v7049, 4
        %v7051 = vrot.slane %v6228, 5
        %v7052 = vsel %vm1057, %v7050, %v7051
        %v7053 = vrot.slane %v7051, 4
        %v7054 = vrot.slane %v6229, 5
        %v7055 = vsel %vm1057, %v7053, %v7054
        %v7056 = vrot.slane %v6980, 5
        %v7057 = vrot.slane %v7056, 4
        %v7058 = vrot.slane %v6231, 5
        %v7059 = vsel %vm1057, %v7057, %v7058
        %v7060 = vrot.slane %v7058, 4
        %v7061 = vrot.slane %v6232, 5
        %v7062 = vsel %vm1057, %v7060, %v7061
        %v7063 = vrot.slane %v6981, 5
        %v7064 = vrot.slane %v7063, 4
        %v7065 = vrot.slane %v6234, 5
        %v7066 = vsel %vm1057, %v7064, %v7065
        %v7067 = vrot.slane %v7065, 4
        %v7068 = vrot.slane %v6235, 5
        %v7069 = vsel %vm1057, %v7067, %v7068
        %v7070 = vrot.slane %v6982, 5
        %v7071 = vrot.slane %v7070, 4
        %v7072 = vrot.slane %v6237, 5
        %v7073 = vsel %vm1057, %v7071, %v7072
        %v7074 = vrot.slane %v7072, 4
        %v7075 = vrot.slane %v6238, 5
        %v7076 = vsel %vm1057, %v7074, %v7075
        %v7077 = vrot.slane %v6983, 5
        %v7078 = vrot.slane %v7077, 4
        %v7079 = vrot.slane %v6240, 5
        %v7080 = vsel %vm1057, %v7078, %v7079
        %v7081 = vrot.slane %v7079, 4
        %v7082 = vrot.slane %v6241, 5
        %v7083 = vsel %vm1057, %v7081, %v7082
        %v7084 = vrot.slane %v6984, 5
        %v7085 = vrot.slane %v7084, 4
        %v7086 = vrot.slane %v6243, 5
        %v7087 = vsel %vm1057, %v7085, %v7086
        %v7088 = vrot.slane %v7086, 4
        %v7089 = vrot.slane %v6244, 5
        %v7090 = vsel %vm1057, %v7088, %v7089
        %v7091 = vrot.slane %v6985, 5
        %v7092 = vrot.slane %v7091, 4
        %v7093 = vrot.slane %v6246, 5
        %v7094 = vsel %vm1057, %v7092, %v7093
        %v7095 = vrot.slane %v7093, 4
        %v7096 = vrot.slane %v6247, 5
        %v7097 = vsel %vm1057, %v7095, %v7096
        %v7098 = vrot.slane %v6986, 5
        %v7099 = vrot.slane %v7098, 4
        %v7100 = vrot.slane %v6249, 5
        %v7101 = vsel %vm1057, %v7099, %v7100
        %v7102 = vrot.slane %v7100, 4
        %v7103 = vrot.slane %v6250, 5
        %v7104 = vsel %vm1057, %v7102, %v7103
        %v7105 = vrot.slane %v6987, 5
        %v7106 = vrot.slane %v7105, 4
        %v7107 = vrot.slane %v6252, 5
        %v7108 = vsel %vm1057, %v7106, %v7107
        %v7109 = vrot.slane %v7107, 4
        %v7110 = vrot.slane %v6253, 5
        %v7111 = vsel %vm1057, %v7109, %v7110
        %v7112 = vrot.slane %v6988, 5
        %v7113 = vrot.slane %v7112, 4
        %v7114 = vrot.slane %v6255, 5
        %v7115 = vsel %vm1057, %v7113, %v7114
        %v7116 = vrot.slane %v7114, 4
        %v7117 = vrot.slane %v6256, 5
        %v7118 = vsel %vm1057, %v7116, %v7117
        %v7119 = vrot.slane %v6989, 5
        %v7120 = vrot.slane %v7119, 4
        %v7121 = vrot.slane %v6258, 5
        %v7122 = vsel %vm1057, %v7120, %v7121
        %v7123 = vrot.slane %v7121, 4
        %v7124 = vrot.slane %v6259, 5
        %v7125 = vsel %vm1057, %v7123, %v7124
        %v7126 = vrot.slane %v6990, 5
        %v7127 = vrot.slane %v7126, 4
        %v7128 = vrot.slane %v6261, 5
        %v7129 = vsel %vm1057, %v7127, %v7128
        %v7130 = vrot.slane %v7128, 4
        %v7131 = vrot.slane %v6262, 5
        %v7132 = vsel %vm1057, %v7130, %v7131
        %v7133 = vrot.slane %v6991, 5
        %v7134 = vrot.slane %v7133, 4
        %v7135 = vrot.slane %v6264, 5
        %v7136 = vsel %vm1057, %v7134, %v7135
        %v7137 = vrot.slane %v7135, 4
        %v7138 = vrot.slane %v6265, 5
        %v7139 = vsel %vm1057, %v7137, %v7138
        %v7140 = vrot.slane %v6992, 5
        %v7141 = vrot.slane %v7140, 4
        %v7142 = vrot.slane %v6267, 5
        %v7143 = vsel %vm1057, %v7141, %v7142
        %v7144 = vrot.slane %v7142, 4
        %v7145 = vrot.slane %v6268, 5
        %v7146 = vsel %vm1057, %v7144, %v7145
        %v7147 = vrot.slane %v6993, 5
        %v7148 = vrot.slane %v7147, 4
        %v7149 = vrot.slane %v6270, 5
        %v7150 = vsel %vm1057, %v7148, %v7149
        %v7151 = vrot.slane %v7149, 4
        %v7152 = vrot.slane %v6271, 5
        %v7153 = vsel %vm1057, %v7151, %v7152
        %s7154 = scalar_lea.vmem %s3, 320
        %v7155 = vld [vmem:[%s7154] sm:$0xf]
        %v7156 = vld [vmem:[%s7154 + $0x4] sm:$0xf]
        %v7157 = vld [vmem:[%s7154 + $0x8] sm:$0xf]
        %v7158 = vld [vmem:[%s7154 + $0xc] sm:$0xf]
        %v7159 = vld [vmem:[%s7154 + $0x10] sm:$0xf]
        %v7160 = vld [vmem:[%s7154 + $0x14] sm:$0xf]
        %v7161 = vld [vmem:[%s7154 + $0x18] sm:$0xf]
        %v7162 = vld [vmem:[%s7154 + $0x1c] sm:$0xf]
        %v7163 = vld [vmem:[%s7154 + $0x20] sm:$0xf]
        %v7164 = vld [vmem:[%s7154 + $0x24] sm:$0xf]
        %v7165 = vld [vmem:[%s7154 + $0x28] sm:$0xf]
        %v7166 = vld [vmem:[%s7154 + $0x2c] sm:$0xf]
        %v7167 = vld [vmem:[%s7154 + $0x30] sm:$0xf]
        %v7168 = vld [vmem:[%s7154 + $0x34] sm:$0xf]
        %v7169 = vld [vmem:[%s7154 + $0x38] sm:$0xf]
        %v7170 = vld [vmem:[%s7154 + $0x3c] sm:$0xf]
        %v7171 = vunpack.c.l.b16 %v7045
        %v7172 = vunpack.c.l.b16 %v7048
        %v7173 = vunpack.c.l.b16 %v7052
        %v7174 = vunpack.c.l.b16 %v7055
        %v7175 = vunpack.c.l.b16 %v7059
        %v7176 = vunpack.c.l.b16 %v7062
        %v7177 = vunpack.c.l.b16 %v7066
        %v7178 = vunpack.c.l.b16 %v7069
        %v7179 = vunpack.c.l.b16 %v7073
        %v7180 = vunpack.c.l.b16 %v7076
        %v7181 = vunpack.c.l.b16 %v7080
        %v7182 = vunpack.c.l.b16 %v7083
        %v7183 = vunpack.c.l.b16 %v7087
        %v7184 = vunpack.c.l.b16 %v7090
        %v7185 = vunpack.c.l.b16 %v7094
        %v7186 = vunpack.c.l.b16 %v7097
        %v7187 = vunpack.c.l.b16 %v7101
        %v7188 = vunpack.c.l.b16 %v7104
        %v7189 = vunpack.c.l.b16 %v7108
        %v7190 = vunpack.c.l.b16 %v7111
        %v7191 = vunpack.c.l.b16 %v7115
        %v7192 = vunpack.c.l.b16 %v7118
        %v7193 = vunpack.c.l.b16 %v7122
        %v7194 = vunpack.c.l.b16 %v7125
        %v7195 = vunpack.c.l.b16 %v7129
        %v7196 = vunpack.c.l.b16 %v7132
        %v7197 = vunpack.c.l.b16 %v7136
        %v7198 = vunpack.c.l.b16 %v7139
        %v7199 = vunpack.c.l.b16 %v7143
        %v7200 = vunpack.c.l.b16 %v7146
        %v7201 = vunpack.c.l.b16 %v7150
        %v7202 = vunpack.c.l.b16 %v7153
        %v7203 = vpack.c.b16 %v7172, %v7171
        %v7204 = vpack.c.b16 %v7174, %v7173
        %v7205 = vpack.c.b16 %v7176, %v7175
        %v7206 = vpack.c.b16 %v7178, %v7177
        %v7207 = vpack.c.b16 %v7180, %v7179
        %v7208 = vpack.c.b16 %v7182, %v7181
        %v7209 = vpack.c.b16 %v7184, %v7183
        %v7210 = vpack.c.b16 %v7186, %v7185
        %v7211 = vpack.c.b16 %v7188, %v7187
        %v7212 = vpack.c.b16 %v7190, %v7189
        %v7213 = vpack.c.b16 %v7192, %v7191
        %v7214 = vpack.c.b16 %v7194, %v7193
        %v7215 = vpack.c.b16 %v7196, %v7195
        %v7216 = vpack.c.b16 %v7198, %v7197
        %v7217 = vpack.c.b16 %v7200, %v7199
        %v7218 = vpack.c.b16 %v7202, %v7201
        %v7251 = vunpack.c.l.b16 %v7155
        %v7252 = vunpack.c.l.b16 %v7156
        %v7253 = vunpack.c.l.b16 %v7157
        %v7254 = vunpack.c.l.b16 %v7158
        %v7255 = vunpack.c.l.b16 %v7159
        %v7256 = vunpack.c.l.b16 %v7160
        %v7257 = vunpack.c.l.b16 %v7161
        %v7258 = vunpack.c.l.b16 %v7162
        %v7259 = vunpack.c.l.b16 %v7163
        %v7260 = vunpack.c.l.b16 %v7164
        %v7261 = vunpack.c.l.b16 %v7165
        %v7262 = vunpack.c.l.b16 %v7166
        %v7263 = vunpack.c.l.b16 %v7167
        %v7264 = vunpack.c.l.b16 %v7168
        %v7265 = vunpack.c.l.b16 %v7169
        %v7266 = vunpack.c.l.b16 %v7170
        %v7267 = vpack.c.b16 %v7252, %v7251
        %v7268 = vpack.c.b16 %v7254, %v7253
        %v7269 = vpack.c.b16 %v7256, %v7255
        %v7270 = vpack.c.b16 %v7258, %v7257
        %v7271 = vpack.c.b16 %v7260, %v7259
        %v7272 = vpack.c.b16 %v7262, %v7261
        %v7273 = vpack.c.b16 %v7264, %v7263
        %v7274 = vpack.c.b16 %v7266, %v7265
        %7283 = vmatprep.subr.bf16.mxu0 0
        %7284 = vmatpush1.bf16.msra.mxu0 %v7267
        %7285 = vmatprep.subr.bf16.mxu0 0
        %7286 = vmatpush1.bf16.msra.mxu0 %v7268
        %7287 = vmatprep.subr.bf16.mxu0 0
        %7288 = vmatpush1.bf16.msra.mxu0 %v7269
        %7289 = vmatprep.subr.bf16.mxu0 0
        %7290 = vmatpush1.bf16.msra.mxu0 %v7270
        %7291 = vmatprep.subr.bf16.mxu0 0
        %7292 = vmatpush1.bf16.msra.mxu0 %v7271
        %7293 = vmatprep.subr.bf16.mxu0 0
        %7294 = vmatpush1.bf16.msra.mxu0 %v7272
        %7295 = vmatprep.subr.bf16.mxu0 0
        %7296 = vmatpush1.bf16.msra.mxu0 %v7273
        %7297 = vmatprep.subr.bf16.mxu0 0
        %7298 = vmatpush1.bf16.msra.mxu0 %v7274
        %7299 = vmatprep.subr.bf16.mxu0 0
        %7300 = vmatpush1.bf16.msra.mxu0 0
        %7301 = vmatprep.subr.bf16.mxu0 0
        %7302 = vmatpush1.bf16.msra.mxu0 0
        %7303 = vmatprep.subr.bf16.mxu0 0
        %7304 = vmatpush1.bf16.msra.mxu0 0
        %7305 = vmatprep.subr.bf16.mxu0 0
        %7306 = vmatpush1.bf16.msra.mxu0 0
        %7307 = vmatprep.subr.bf16.mxu0 0
        %7308 = vmatpush1.bf16.msra.mxu0 0
        %7309 = vmatprep.subr.bf16.mxu0 0
        %7310 = vmatpush1.bf16.msra.mxu0 0
        %7311 = vmatprep.subr.bf16.mxu0 0
        %7312 = vmatpush1.bf16.msra.mxu0 0
        %7313 = vmatprep.subr.bf16.mxu0 0
        %7314 = vmatpush1.bf16.msra.mxu0 0
        %7315 = vmatprep.mubr.bf16.mxu0 0
        %7316 = vmatmul.mubr.bf16.gmra.mrb[0].mxu0 %v7203
        %v7317 = vpop.f32.mrb[0].mxu0
        %v7318 = vadd.f32 0.0, %v7317
        %v7319 = vpop.f32.mrb[0].mxu0
        %v7320 = vpop.f32.mrb[0].mxu0
        %v7321 = vadd.f32 0.0, %v7320
        %v7322 = vpop.f32.mrb[0].mxu0
        %7323 = vmatprep.mubr.bf16.mxu0 0
        %7324 = vmatmul.mubr.bf16.gmra.mrb[0].mxu0 %v7204
        %v7325 = vpop.f32.mrb[0].mxu0
        %v7326 = vadd.f32 0.0, %v7325
        %v7327 = vpop.f32.mrb[0].mxu0
        %v7328 = vpop.f32.mrb[0].mxu0
        %v7329 = vadd.f32 0.0, %v7328
        %v7330 = vpop.f32.mrb[0].mxu0
        %7331 = vmatprep.mubr.bf16.mxu0 0
        %7332 = vmatmul.mubr.bf16.gmra.mrb[0].mxu0 %v7205
        %v7333 = vpop.f32.mrb[0].mxu0
        %v7334 = vadd.f32 0.0, %v7333
        %v7335 = vpop.f32.mrb[0].mxu0
        %v7336 = vpop.f32.mrb[0].mxu0
        %v7337 = vadd.f32 0.0, %v7336
        %v7338 = vpop.f32.mrb[0].mxu0
        %7339 = vmatprep.mubr.bf16.mxu0 0
        %7340 = vmatmul.mubr.bf16.gmra.mrb[0].mxu0 %v7206
        %v7341 = vpop.f32.mrb[0].mxu0
        %v7342 = vadd.f32 0.0, %v7341
        %v7343 = vpop.f32.mrb[0].mxu0
        %v7344 = vpop.f32.mrb[0].mxu0
        %v7345 = vadd.f32 0.0, %v7344
        %v7346 = vpop.f32.mrb[0].mxu0
        %7347 = vmatprep.mubr.bf16.mxu0 0
        %7348 = vmatmul.mubr.bf16.gmra.mrb[0].mxu0 %v7207
        %v7349 = vpop.f32.mrb[0].mxu0
        %v7350 = vadd.f32 0.0, %v7349
        %v7351 = vpop.f32.mrb[0].mxu0
        %v7352 = vpop.f32.mrb[0].mxu0
        %v7353 = vadd.f32 0.0, %v7352
        %v7354 = vpop.f32.mrb[0].mxu0
        %7355 = vmatprep.mubr.bf16.mxu0 0
        %7356 = vmatmul.mubr.bf16.gmra.mrb[0].mxu0 %v7208
        %v7357 = vpop.f32.mrb[0].mxu0
        %v7358 = vadd.f32 0.0, %v7357
        %v7359 = vpop.f32.mrb[0].mxu0
        %v7360 = vpop.f32.mrb[0].mxu0
        %v7361 = vadd.f32 0.0, %v7360
        %v7362 = vpop.f32.mrb[0].mxu0
        %7363 = vmatprep.mubr.bf16.mxu0 0
        %7364 = vmatmul.mubr.bf16.gmra.mrb[0].mxu0 %v7209
        %v7365 = vpop.f32.mrb[0].mxu0
        %v7366 = vadd.f32 0.0, %v7365
        %v7367 = vpop.f32.mrb[0].mxu0
        %v7368 = vpop.f32.mrb[0].mxu0
        %v7369 = vadd.f32 0.0, %v7368
        %v7370 = vpop.f32.mrb[0].mxu0
        %7371 = vmatprep.mubr.bf16.mxu0 0
        %7372 = vmatmul.mubr.bf16.gmra.mrb[0].mxu0 %v7210
        %v7373 = vpop.f32.mrb[0].mxu0
        %v7374 = vadd.f32 0.0, %v7373
        %v7375 = vpop.f32.mrb[0].mxu0
        %v7376 = vpop.f32.mrb[0].mxu0
        %v7377 = vadd.f32 0.0, %v7376
        %v7378 = vpop.f32.mrb[0].mxu0
        %7379 = vmatprep.mubr.bf16.mxu0 0
        %7380 = vmatmul.mubr.bf16.gmra.mrb[0].mxu0 %v7211
        %v7381 = vpop.f32.mrb[0].mxu0
        %v7382 = vadd.f32 0.0, %v7381
        %v7383 = vpop.f32.mrb[0].mxu0
        %v7384 = vpop.f32.mrb[0].mxu0
        %v7385 = vadd.f32 0.0, %v7384
        %v7386 = vpop.f32.mrb[0].mxu0
        %7387 = vmatprep.mubr.bf16.mxu0 0
        %7388 = vmatmul.mubr.bf16.gmra.mrb[0].mxu0 %v7212
        %v7389 = vpop.f32.mrb[0].mxu0
        %v7390 = vadd.f32 0.0, %v7389
        %v7391 = vpop.f32.mrb[0].mxu0
        %v7392 = vpop.f32.mrb[0].mxu0
        %v7393 = vadd.f32 0.0, %v7392
        %v7394 = vpop.f32.mrb[0].mxu0
        %7395 = vmatprep.mubr.bf16.mxu0 0
        %7396 = vmatmul.mubr.bf16.gmra.mrb[0].mxu0 %v7213
        %v7397 = vpop.f32.mrb[0].mxu0
        %v7398 = vadd.f32 0.0, %v7397
        %v7399 = vpop.f32.mrb[0].mxu0
        %v7400 = vpop.f32.mrb[0].mxu0
        %v7401 = vadd.f32 0.0, %v7400
        %v7402 = vpop.f32.mrb[0].mxu0
        %7403 = vmatprep.mubr.bf16.mxu0 0
        %7404 = vmatmul.mubr.bf16.gmra.mrb[0].mxu0 %v7214
        %v7405 = vpop.f32.mrb[0].mxu0
        %v7406 = vadd.f32 0.0, %v7405
        %v7407 = vpop.f32.mrb[0].mxu0
        %v7408 = vpop.f32.mrb[0].mxu0
        %v7409 = vadd.f32 0.0, %v7408
        %v7410 = vpop.f32.mrb[0].mxu0
        %7411 = vmatprep.mubr.bf16.mxu0 0
        %7412 = vmatmul.mubr.bf16.gmra.mrb[0].mxu0 %v7215
        %v7413 = vpop.f32.mrb[0].mxu0
        %v7414 = vadd.f32 0.0, %v7413
        %v7415 = vpop.f32.mrb[0].mxu0
        %v7416 = vpop.f32.mrb[0].mxu0
        %v7417 = vadd.f32 0.0, %v7416
        %v7418 = vpop.f32.mrb[0].mxu0
        %7419 = vmatprep.mubr.bf16.mxu0 0
        %7420 = vmatmul.mubr.bf16.gmra.mrb[0].mxu0 %v7216
        %v7421 = vpop.f32.mrb[0].mxu0
        %v7422 = vadd.f32 0.0, %v7421
        %v7423 = vpop.f32.mrb[0].mxu0
        %v7424 = vpop.f32.mrb[0].mxu0
        %v7425 = vadd.f32 0.0, %v7424
        %v7426 = vpop.f32.mrb[0].mxu0
        %7427 = vmatprep.mubr.bf16.mxu0 0
        %7428 = vmatmul.mubr.bf16.gmra.mrb[0].mxu0 %v7217
        %v7429 = vpop.f32.mrb[0].mxu0
        %v7430 = vadd.f32 0.0, %v7429
        %v7431 = vpop.f32.mrb[0].mxu0
        %v7432 = vpop.f32.mrb[0].mxu0
        %v7433 = vadd.f32 0.0, %v7432
        %v7434 = vpop.f32.mrb[0].mxu0
        %7435 = vmatprep.mubr.bf16.mxu0 0
        %7436 = vmatmul.mubr.bf16.gmra.mrb[0].mxu0 %v7218
        %v7437 = vpop.f32.mrb[0].mxu0
        %v7438 = vadd.f32 0.0, %v7437
        %v7439 = vpop.f32.mrb[0].mxu0
        %v7440 = vpop.f32.mrb[0].mxu0
        %v7441 = vadd.f32 0.0, %v7440
        %v7442 = vpop.f32.mrb[0].mxu0
        %7443 = vdwg.mxu0
        %v7444 = vadd.f32 %v6946, %v7318
        %v7445 = vadd.f32 %v6947, %v7321
        %v7446 = vadd.f32 %v6948, %v7326
        %v7447 = vadd.f32 %v6949, %v7329
        %v7448 = vadd.f32 %v6950, %v7334
        %v7449 = vadd.f32 %v6951, %v7337
        %v7450 = vadd.f32 %v6952, %v7342
        %v7451 = vadd.f32 %v6953, %v7345
        %v7452 = vadd.f32 %v6954, %v7350
        %v7453 = vadd.f32 %v6955, %v7353
        %v7454 = vadd.f32 %v6956, %v7358
        %v7455 = vadd.f32 %v6957, %v7361
        %v7456 = vadd.f32 %v6958, %v7366
        %v7457 = vadd.f32 %v6959, %v7369
        %v7458 = vadd.f32 %v6960, %v7374
        %v7459 = vadd.f32 %v6961, %v7377
        %v7460 = vadd.f32 %v6962, %v7382
        %v7461 = vadd.f32 %v6963, %v7385
        %v7462 = vadd.f32 %v6964, %v7390
        %v7463 = vadd.f32 %v6965, %v7393
        %v7464 = vadd.f32 %v6966, %v7398
        %v7465 = vadd.f32 %v6967, %v7401
        %v7466 = vadd.f32 %v6968, %v7406
        %v7467 = vadd.f32 %v6969, %v7409
        %v7468 = vadd.f32 %v6970, %v7414
        %v7469 = vadd.f32 %v6971, %v7417
        %v7470 = vadd.f32 %v6972, %v7422
        %v7471 = vadd.f32 %v6973, %v7425
        %v7472 = vadd.f32 %v6974, %v7430
        %v7473 = vadd.f32 %v6975, %v7433
        %v7474 = vadd.f32 %v6976, %v7438
        %v7475 = vadd.f32 %v6977, %v7441
        %s7476 = scalar_lea.vmem [#allocation3], 24
        %v7477 = vld [vmem:[%s7476] sm:$0xf]
        %v7478 = vld [vmem:[%s7476 + $0x4] sm:$0xf]
        %v7479 = vld [vmem:[%s7476 + $0xc] sm:$0xf]
        %v7480 = vld [vmem:[%s7476 + $0x10] sm:$0xf]
        %v7481 = vld [vmem:[%s7476 + $0x18] sm:$0xf]
        %v7482 = vld [vmem:[%s7476 + $0x1c] sm:$0xf]
        %v7483 = vld [vmem:[%s7476 + $0x24] sm:$0xf]
        %v7484 = vld [vmem:[%s7476 + $0x28] sm:$0xf]
        %v7485 = vld [vmem:[%s7476 + $0x30] sm:$0xf]
        %v7486 = vld [vmem:[%s7476 + $0x34] sm:$0xf]
        %v7487 = vld [vmem:[%s7476 + $0x3c] sm:$0xf]
        %v7488 = vld [vmem:[%s7476 + $0x40] sm:$0xf]
        %v7489 = vld [vmem:[%s7476 + $0x48] sm:$0xf]
        %v7490 = vld [vmem:[%s7476 + $0x4c] sm:$0xf]
        %v7491 = vld [vmem:[%s7476 + $0x54] sm:$0xf]
        %v7492 = vld [vmem:[%s7476 + $0x58] sm:$0xf]
        %v7493 = vld [vmem:[%s7476 + $0x60] sm:$0xf]
        %v7494 = vld [vmem:[%s7476 + $0x64] sm:$0xf]
        %v7495 = vld [vmem:[%s7476 + $0x6c] sm:$0xf]
        %v7496 = vld [vmem:[%s7476 + $0x70] sm:$0xf]
        %v7497 = vld [vmem:[%s7476 + $0x78] sm:$0xf]
        %v7498 = vld [vmem:[%s7476 + $0x7c] sm:$0xf]
        %v7499 = vld [vmem:[%s7476 + $0x84] sm:$0xf]
        %v7500 = vld [vmem:[%s7476 + $0x88] sm:$0xf]
        %v7501 = vld [vmem:[%s7476 + $0x90] sm:$0xf]
        %v7502 = vld [vmem:[%s7476 + $0x94] sm:$0xf]
        %v7503 = vld [vmem:[%s7476 + $0x9c] sm:$0xf]
        %v7504 = vld [vmem:[%s7476 + $0xa0] sm:$0xf]
        %v7505 = vld [vmem:[%s7476 + $0xa8] sm:$0xf]
        %v7506 = vld [vmem:[%s7476 + $0xac] sm:$0xf]
        %v7507 = vld [vmem:[%s7476 + $0xb4] sm:$0xf]
        %v7508 = vld [vmem:[%s7476 + $0xb8] sm:$0xf]
        %s7509 = scalar_lea.vmem %s3, 384
        %v7510 = vld [vmem:[%s7509] sm:$0xf]
        %v7511 = vld [vmem:[%s7509 + $0x4] sm:$0xf]
        %v7512 = vld [vmem:[%s7509 + $0x8] sm:$0xf]
        %v7513 = vld [vmem:[%s7509 + $0xc] sm:$0xf]
        %v7514 = vld [vmem:[%s7509 + $0x10] sm:$0xf]
        %v7515 = vld [vmem:[%s7509 + $0x14] sm:$0xf]
        %v7516 = vld [vmem:[%s7509 + $0x18] sm:$0xf]
        %v7517 = vld [vmem:[%s7509 + $0x1c] sm:$0xf]
        %v7518 = vld [vmem:[%s7509 + $0x20] sm:$0xf]
        %v7519 = vld [vmem:[%s7509 + $0x24] sm:$0xf]
        %v7520 = vld [vmem:[%s7509 + $0x28] sm:$0xf]
        %v7521 = vld [vmem:[%s7509 + $0x2c] sm:$0xf]
        %v7522 = vld [vmem:[%s7509 + $0x30] sm:$0xf]
        %v7523 = vld [vmem:[%s7509 + $0x34] sm:$0xf]
        %v7524 = vld [vmem:[%s7509 + $0x38] sm:$0xf]
        %v7525 = vld [vmem:[%s7509 + $0x3c] sm:$0xf]
        %v7558 = vunpack.c.l.b16 %v7477
        %v7559 = vunpack.c.l.b16 %v7478
        %v7560 = vunpack.c.l.b16 %v7479
        %v7561 = vunpack.c.l.b16 %v7480
        %v7562 = vunpack.c.l.b16 %v7481
        %v7563 = vunpack.c.l.b16 %v7482
        %v7564 = vunpack.c.l.b16 %v7483
        %v7565 = vunpack.c.l.b16 %v7484
        %v7566 = vunpack.c.l.b16 %v7485
        %v7567 = vunpack.c.l.b16 %v7486
        %v7568 = vunpack.c.l.b16 %v7487
        %v7569 = vunpack.c.l.b16 %v7488
        %v7570 = vunpack.c.l.b16 %v7489
        %v7571 = vunpack.c.l.b16 %v7490
        %v7572 = vunpack.c.l.b16 %v7491
        %v7573 = vunpack.c.l.b16 %v7492
        %v7574 = vunpack.c.l.b16 %v7493
        %v7575 = vunpack.c.l.b16 %v7494
        %v7576 = vunpack.c.l.b16 %v7495
        %v7577 = vunpack.c.l.b16 %v7496
        %v7578 = vunpack.c.l.b16 %v7497
        %v7579 = vunpack.c.l.b16 %v7498
        %v7580 = vunpack.c.l.b16 %v7499
        %v7581 = vunpack.c.l.b16 %v7500
        %v7582 = vunpack.c.l.b16 %v7501
        %v7583 = vunpack.c.l.b16 %v7502
        %v7584 = vunpack.c.l.b16 %v7503
        %v7585 = vunpack.c.l.b16 %v7504
        %v7586 = vunpack.c.l.b16 %v7505
        %v7587 = vunpack.c.l.b16 %v7506
        %v7588 = vunpack.c.l.b16 %v7507
        %v7589 = vunpack.c.l.b16 %v7508
        %v7590 = vpack.c.b16 %v7559, %v7558
        %v7591 = vpack.c.b16 %v7561, %v7560
        %v7592 = vpack.c.b16 %v7563, %v7562
        %v7593 = vpack.c.b16 %v7565, %v7564
        %v7594 = vpack.c.b16 %v7567, %v7566
        %v7595 = vpack.c.b16 %v7569, %v7568
        %v7596 = vpack.c.b16 %v7571, %v7570
        %v7597 = vpack.c.b16 %v7573, %v7572
        %v7598 = vpack.c.b16 %v7575, %v7574
        %v7599 = vpack.c.b16 %v7577, %v7576
        %v7600 = vpack.c.b16 %v7579, %v7578
        %v7601 = vpack.c.b16 %v7581, %v7580
        %v7602 = vpack.c.b16 %v7583, %v7582
        %v7603 = vpack.c.b16 %v7585, %v7584
        %v7604 = vpack.c.b16 %v7587, %v7586
        %v7605 = vpack.c.b16 %v7589, %v7588
        %v7638 = vunpack.c.l.b16 %v7510
        %v7639 = vunpack.c.l.b16 %v7511
        %v7640 = vunpack.c.l.b16 %v7512
        %v7641 = vunpack.c.l.b16 %v7513
        %v7642 = vunpack.c.l.b16 %v7514
        %v7643 = vunpack.c.l.b16 %v7515
        %v7644 = vunpack.c.l.b16 %v7516
        %v7645 = vunpack.c.l.b16 %v7517
        %v7646 = vunpack.c.l.b16 %v7518
        %v7647 = vunpack.c.l.b16 %v7519
        %v7648 = vunpack.c.l.b16 %v7520
        %v7649 = vunpack.c.l.b16 %v7521
        %v7650 = vunpack.c.l.b16 %v7522
        %v7651 = vunpack.c.l.b16 %v7523
        %v7652 = vunpack.c.l.b16 %v7524
        %v7653 = vunpack.c.l.b16 %v7525
        %v7654 = vpack.c.b16 %v7639, %v7638
        %v7655 = vpack.c.b16 %v7641, %v7640
        %v7656 = vpack.c.b16 %v7643, %v7642
        %v7657 = vpack.c.b16 %v7645, %v7644
        %v7658 = vpack.c.b16 %v7647, %v7646
        %v7659 = vpack.c.b16 %v7649, %v7648
        %v7660 = vpack.c.b16 %v7651, %v7650
        %v7661 = vpack.c.b16 %v7653, %v7652
        %7670 = vmatprep.subr.bf16.mxu0 0
        %7671 = vmatpush1.bf16.msra.mxu0 %v7654
        %7672 = vmatprep.subr.bf16.mxu0 0
        %7673 = vmatpush1.bf16.msra.mxu0 %v7655
        %7674 = vmatprep.subr.bf16.mxu0 0
        %7675 = vmatpush1.bf16.msra.mxu0 %v7656
        %7676 = vmatprep.subr.bf16.mxu0 0
        %7677 = vmatpush1.bf16.msra.mxu0 %v7657
        %7678 = vmatprep.subr.bf16.mxu0 0
        %7679 = vmatpush1.bf16.msra.mxu0 %v7658
        %7680 = vmatprep.subr.bf16.mxu0 0
        %7681 = vmatpush1.bf16.msra.mxu0 %v7659
        %7682 = vmatprep.subr.bf16.mxu0 0
        %7683 = vmatpush1.bf16.msra.mxu0 %v7660
        %7684 = vmatprep.subr.bf16.mxu0 0
        %7685 = vmatpush1.bf16.msra.mxu0 %v7661
        %7686 = vmatprep.subr.bf16.mxu0 0
        %7687 = vmatpush1.bf16.msra.mxu0 0
        %7688 = vmatprep.subr.bf16.mxu0 0
        %7689 = vmatpush1.bf16.msra.mxu0 0
        %7690 = vmatprep.subr.bf16.mxu0 0
        %7691 = vmatpush1.bf16.msra.mxu0 0
        %7692 = vmatprep.subr.bf16.mxu0 0
        %7693 = vmatpush1.bf16.msra.mxu0 0
        %7694 = vmatprep.subr.bf16.mxu0 0
        %7695 = vmatpush1.bf16.msra.mxu0 0
        %7696 = vmatprep.subr.bf16.mxu0 0
        %7697 = vmatpush1.bf16.msra.mxu0 0
        %7698 = vmatprep.subr.bf16.mxu0 0
        %7699 = vmatpush1.bf16.msra.mxu0 0
        %7700 = vmatprep.subr.bf16.mxu0 0
        %7701 = vmatpush1.bf16.msra.mxu0 0
        %7702 = vmatprep.mubr.bf16.mxu0 0
        %7703 = vmatmul.mubr.bf16.gmra.mrb[0].mxu0 %v7590
        %v7704 = vpop.f32.mrb[0].mxu0
        %v7705 = vadd.f32 0.0, %v7704
        %v7706 = vpop.f32.mrb[0].mxu0
        %v7707 = vpop.f32.mrb[0].mxu0
        %v7708 = vadd.f32 0.0, %v7707
        %v7709 = vpop.f32.mrb[0].mxu0
        %7710 = vmatprep.mubr.bf16.mxu0 0
        %7711 = vmatmul.mubr.bf16.gmra.mrb[0].mxu0 %v7591
        %v7712 = vpop.f32.mrb[0].mxu0
        %v7713 = vadd.f32 0.0, %v7712
        %v7714 = vpop.f32.mrb[0].mxu0
        %v7715 = vpop.f32.mrb[0].mxu0
        %v7716 = vadd.f32 0.0, %v7715
        %v7717 = vpop.f32.mrb[0].mxu0
        %7718 = vmatprep.mubr.bf16.mxu0 0
        %7719 = vmatmul.mubr.bf16.gmra.mrb[0].mxu0 %v7592
        %v7720 = vpop.f32.mrb[0].mxu0
        %v7721 = vadd.f32 0.0, %v7720
        %v7722 = vpop.f32.mrb[0].mxu0
        %v7723 = vpop.f32.mrb[0].mxu0
        %v7724 = vadd.f32 0.0, %v7723
        %v7725 = vpop.f32.mrb[0].mxu0
        %7726 = vmatprep.mubr.bf16.mxu0 0
        %7727 = vmatmul.mubr.bf16.gmra.mrb[0].mxu0 %v7593
        %v7728 = vpop.f32.mrb[0].mxu0
        %v7729 = vadd.f32 0.0, %v7728
        %v7730 = vpop.f32.mrb[0].mxu0
        %v7731 = vpop.f32.mrb[0].mxu0
        %v7732 = vadd.f32 0.0, %v7731
        %v7733 = vpop.f32.mrb[0].mxu0
        %7734 = vmatprep.mubr.bf16.mxu0 0
        %7735 = vmatmul.mubr.bf16.gmra.mrb[0].mxu0 %v7594
        %v7736 = vpop.f32.mrb[0].mxu0
        %v7737 = vadd.f32 0.0, %v7736
        %v7738 = vpop.f32.mrb[0].mxu0
        %v7739 = vpop.f32.mrb[0].mxu0
        %v7740 = vadd.f32 0.0, %v7739
        %v7741 = vpop.f32.mrb[0].mxu0
        %7742 = vmatprep.mubr.bf16.mxu0 0
        %7743 = vmatmul.mubr.bf16.gmra.mrb[0].mxu0 %v7595
        %v7744 = vpop.f32.mrb[0].mxu0
        %v7745 = vadd.f32 0.0, %v7744
        %v7746 = vpop.f32.mrb[0].mxu0
        %v7747 = vpop.f32.mrb[0].mxu0
        %v7748 = vadd.f32 0.0, %v7747
        %v7749 = vpop.f32.mrb[0].mxu0
        %7750 = vmatprep.mubr.bf16.mxu0 0
        %7751 = vmatmul.mubr.bf16.gmra.mrb[0].mxu0 %v7596
        %v7752 = vpop.f32.mrb[0].mxu0
        %v7753 = vadd.f32 0.0, %v7752
        %v7754 = vpop.f32.mrb[0].mxu0
        %v7755 = vpop.f32.mrb[0].mxu0
        %v7756 = vadd.f32 0.0, %v7755
        %v7757 = vpop.f32.mrb[0].mxu0
        %7758 = vmatprep.mubr.bf16.mxu0 0
        %7759 = vmatmul.mubr.bf16.gmra.mrb[0].mxu0 %v7597
        %v7760 = vpop.f32.mrb[0].mxu0
        %v7761 = vadd.f32 0.0, %v7760
        %v7762 = vpop.f32.mrb[0].mxu0
        %v7763 = vpop.f32.mrb[0].mxu0
        %v7764 = vadd.f32 0.0, %v7763
        %v7765 = vpop.f32.mrb[0].mxu0
        %7766 = vmatprep.mubr.bf16.mxu0 0
        %7767 = vmatmul.mubr.bf16.gmra.mrb[0].mxu0 %v7598
        %v7768 = vpop.f32.mrb[0].mxu0
        %v7769 = vadd.f32 0.0, %v7768
        %v7770 = vpop.f32.mrb[0].mxu0
        %v7771 = vpop.f32.mrb[0].mxu0
        %v7772 = vadd.f32 0.0, %v7771
        %v7773 = vpop.f32.mrb[0].mxu0
        %7774 = vmatprep.mubr.bf16.mxu0 0
        %7775 = vmatmul.mubr.bf16.gmra.mrb[0].mxu0 %v7599
        %v7776 = vpop.f32.mrb[0].mxu0
        %v7777 = vadd.f32 0.0, %v7776
        %v7778 = vpop.f32.mrb[0].mxu0
        %v7779 = vpop.f32.mrb[0].mxu0
        %v7780 = vadd.f32 0.0, %v7779
        %v7781 = vpop.f32.mrb[0].mxu0
        %7782 = vmatprep.mubr.bf16.mxu0 0
        %7783 = vmatmul.mubr.bf16.gmra.mrb[0].mxu0 %v7600
        %v7784 = vpop.f32.mrb[0].mxu0
        %v7785 = vadd.f32 0.0, %v7784
        %v7786 = vpop.f32.mrb[0].mxu0
        %v7787 = vpop.f32.mrb[0].mxu0
        %v7788 = vadd.f32 0.0, %v7787
        %v7789 = vpop.f32.mrb[0].mxu0
        %7790 = vmatprep.mubr.bf16.mxu0 0
        %7791 = vmatmul.mubr.bf16.gmra.mrb[0].mxu0 %v7601
        %v7792 = vpop.f32.mrb[0].mxu0
        %v7793 = vadd.f32 0.0, %v7792
        %v7794 = vpop.f32.mrb[0].mxu0
        %v7795 = vpop.f32.mrb[0].mxu0
        %v7796 = vadd.f32 0.0, %v7795
        %v7797 = vpop.f32.mrb[0].mxu0
        %7798 = vmatprep.mubr.bf16.mxu0 0
        %7799 = vmatmul.mubr.bf16.gmra.mrb[0].mxu0 %v7602
        %v7800 = vpop.f32.mrb[0].mxu0
        %v7801 = vadd.f32 0.0, %v7800
        %v7802 = vpop.f32.mrb[0].mxu0
        %v7803 = vpop.f32.mrb[0].mxu0
        %v7804 = vadd.f32 0.0, %v7803
        %v7805 = vpop.f32.mrb[0].mxu0
        %7806 = vmatprep.mubr.bf16.mxu0 0
        %7807 = vmatmul.mubr.bf16.gmra.mrb[0].mxu0 %v7603
        %v7808 = vpop.f32.mrb[0].mxu0
        %v7809 = vadd.f32 0.0, %v7808
        %v7810 = vpop.f32.mrb[0].mxu0
        %v7811 = vpop.f32.mrb[0].mxu0
        %v7812 = vadd.f32 0.0, %v7811
        %v7813 = vpop.f32.mrb[0].mxu0
        %7814 = vmatprep.mubr.bf16.mxu0 0
        %7815 = vmatmul.mubr.bf16.gmra.mrb[0].mxu0 %v7604
        %v7816 = vpop.f32.mrb[0].mxu0
        %v7817 = vadd.f32 0.0, %v7816
        %v7818 = vpop.f32.mrb[0].mxu0
        %v7819 = vpop.f32.mrb[0].mxu0
        %v7820 = vadd.f32 0.0, %v7819
        %v7821 = vpop.f32.mrb[0].mxu0
        %7822 = vmatprep.mubr.bf16.mxu0 0
        %7823 = vmatmul.mubr.bf16.gmra.mrb[0].mxu0 %v7605
        %v7824 = vpop.f32.mrb[0].mxu0
        %v7825 = vadd.f32 0.0, %v7824
        %v7826 = vpop.f32.mrb[0].mxu0
        %v7827 = vpop.f32.mrb[0].mxu0
        %v7828 = vadd.f32 0.0, %v7827
        %v7829 = vpop.f32.mrb[0].mxu0
        %7830 = vdwg.mxu0
        %v7831 = vadd.f32 %v7444, %v7705
        %v7832 = vadd.f32 %v7445, %v7708
        %v7833 = vadd.f32 %v7446, %v7713
        %v7834 = vadd.f32 %v7447, %v7716
        %v7835 = vadd.f32 %v7448, %v7721
        %v7836 = vadd.f32 %v7449, %v7724
        %v7837 = vadd.f32 %v7450, %v7729
        %v7838 = vadd.f32 %v7451, %v7732
        %v7839 = vadd.f32 %v7452, %v7737
        %v7840 = vadd.f32 %v7453, %v7740
        %v7841 = vadd.f32 %v7454, %v7745
        %v7842 = vadd.f32 %v7455, %v7748
        %v7843 = vadd.f32 %v7456, %v7753
        %v7844 = vadd.f32 %v7457, %v7756
        %v7845 = vadd.f32 %v7458, %v7761
        %v7846 = vadd.f32 %v7459, %v7764
        %v7847 = vadd.f32 %v7460, %v7769
        %v7848 = vadd.f32 %v7461, %v7772
        %v7849 = vadd.f32 %v7462, %v7777
        %v7850 = vadd.f32 %v7463, %v7780
        %v7851 = vadd.f32 %v7464, %v7785
        %v7852 = vadd.f32 %v7465, %v7788
        %v7853 = vadd.f32 %v7466, %v7793
        %v7854 = vadd.f32 %v7467, %v7796
        %v7855 = vadd.f32 %v7468, %v7801
        %v7856 = vadd.f32 %v7469, %v7804
        %v7857 = vadd.f32 %v7470, %v7809
        %v7858 = vadd.f32 %v7471, %v7812
        %v7859 = vadd.f32 %v7472, %v7817
        %v7860 = vadd.f32 %v7473, %v7820
        %v7861 = vadd.f32 %v7474, %v7825
        %v7862 = vadd.f32 %v7475, %v7828
        %v7863 = vld [vmem:[%s7476] sm:$0xf]
        %v7864 = vld [vmem:[%s7476 + $0x4] sm:$0xf]
        %v7865 = vld [vmem:[%s7476 + $0x8] sm:$0x1]
        %v7866 = vld [vmem:[%s7476 + $0xc] sm:$0xf]
        %v7867 = vld [vmem:[%s7476 + $0x10] sm:$0xf]
        %v7868 = vld [vmem:[%s7476 + $0x14] sm:$0x1]
        %v7869 = vld [vmem:[%s7476 + $0x18] sm:$0xf]
        %v7870 = vld [vmem:[%s7476 + $0x1c] sm:$0xf]
        %v7871 = vld [vmem:[%s7476 + $0x20] sm:$0x1]
        %v7872 = vld [vmem:[%s7476 + $0x24] sm:$0xf]
        %v7873 = vld [vmem:[%s7476 + $0x28] sm:$0xf]
        %v7874 = vld [vmem:[%s7476 + $0x2c] sm:$0x1]
        %v7875 = vld [vmem:[%s7476 + $0x30] sm:$0xf]
        %v7876 = vld [vmem:[%s7476 + $0x34] sm:$0xf]
        %v7877 = vld [vmem:[%s7476 + $0x38] sm:$0x1]
        %v7878 = vld [vmem:[%s7476 + $0x3c] sm:$0xf]
        %v7879 = vld [vmem:[%s7476 + $0x40] sm:$0xf]
        %v7880 = vld [vmem:[%s7476 + $0x44] sm:$0x1]
        %v7881 = vld [vmem:[%s7476 + $0x48] sm:$0xf]
        %v7882 = vld [vmem:[%s7476 + $0x4c] sm:$0xf]
        %v7883 = vld [vmem:[%s7476 + $0x50] sm:$0x1]
        %v7884 = vld [vmem:[%s7476 + $0x54] sm:$0xf]
        %v7885 = vld [vmem:[%s7476 + $0x58] sm:$0xf]
        %v7886 = vld [vmem:[%s7476 + $0x5c] sm:$0x1]
        %v7887 = vld [vmem:[%s7476 + $0x60] sm:$0xf]
        %v7888 = vld [vmem:[%s7476 + $0x64] sm:$0xf]
        %v7889 = vld [vmem:[%s7476 + $0x68] sm:$0x1]
        %v7890 = vld [vmem:[%s7476 + $0x6c] sm:$0xf]
        %v7891 = vld [vmem:[%s7476 + $0x70] sm:$0xf]
        %v7892 = vld [vmem:[%s7476 + $0x74] sm:$0x1]
        %v7893 = vld [vmem:[%s7476 + $0x78] sm:$0xf]
        %v7894 = vld [vmem:[%s7476 + $0x7c] sm:$0xf]
        %v7895 = vld [vmem:[%s7476 + $0x80] sm:$0x1]
        %v7896 = vld [vmem:[%s7476 + $0x84] sm:$0xf]
        %v7897 = vld [vmem:[%s7476 + $0x88] sm:$0xf]
        %v7898 = vld [vmem:[%s7476 + $0x8c] sm:$0x1]
        %v7899 = vld [vmem:[%s7476 + $0x90] sm:$0xf]
        %v7900 = vld [vmem:[%s7476 + $0x94] sm:$0xf]
        %v7901 = vld [vmem:[%s7476 + $0x98] sm:$0x1]
        %v7902 = vld [vmem:[%s7476 + $0x9c] sm:$0xf]
        %v7903 = vld [vmem:[%s7476 + $0xa0] sm:$0xf]
        %v7904 = vld [vmem:[%s7476 + $0xa4] sm:$0x1]
        %v7905 = vld [vmem:[%s7476 + $0xa8] sm:$0xf]
        %v7906 = vld [vmem:[%s7476 + $0xac] sm:$0xf]
        %v7907 = vld [vmem:[%s7476 + $0xb0] sm:$0x1]
        %v7908 = vld [vmem:[%s7476 + $0xb4] sm:$0xf]
        %v7909 = vld [vmem:[%s7476 + $0xb8] sm:$0xf]
        %v7910 = vld [vmem:[%s7476 + $0xbc] sm:$0x1]
        %v7912 = vshrl.u32 %v7863, 16
        %v7914 = vrot.slane %v7912, 4
        %v7915 = vshll.u32 %v7863, 16
        %v7917 = vrot.slane %v7915, 5
        %v7918 = vor.u32 %v7914, %v7917
        %v7919 = vrot.slane %v7918, 4
        %v7921 = vshll.u32 %v7864, 16
        %v7923 = vrot.slane %v7921, 5
        %v7924 = vsel %vm461, %v7919, %v7923
        %v7925 = vshrl.u32 %v7864, 16
        %v7927 = vrot.slane %v7925, 4
        %v7928 = vor.u32 %v7927, %v7923
        %v7929 = vrot.slane %v7928, 4
        %v7931 = vshll.u32 %v7865, 16
        %v7933 = vrot.slane %v7931, 5
        %v7934 = vsel %vm461, %v7929, %v7933
        %v7936 = vshrl.u32 %v7866, 16
        %v7938 = vrot.slane %v7936, 4
        %v7939 = vshll.u32 %v7866, 16
        %v7941 = vrot.slane %v7939, 5
        %v7942 = vor.u32 %v7938, %v7941
        %v7943 = vrot.slane %v7942, 4
        %v7945 = vshll.u32 %v7867, 16
        %v7947 = vrot.slane %v7945, 5
        %v7948 = vsel %vm461, %v7943, %v7947
        %v7949 = vshrl.u32 %v7867, 16
        %v7951 = vrot.slane %v7949, 4
        %v7952 = vor.u32 %v7951, %v7947
        %v7953 = vrot.slane %v7952, 4
        %v7955 = vshll.u32 %v7868, 16
        %v7957 = vrot.slane %v7955, 5
        %v7958 = vsel %vm461, %v7953, %v7957
        %v7960 = vshrl.u32 %v7869, 16
        %v7962 = vrot.slane %v7960, 4
        %v7963 = vshll.u32 %v7869, 16
        %v7965 = vrot.slane %v7963, 5
        %v7966 = vor.u32 %v7962, %v7965
        %v7967 = vrot.slane %v7966, 4
        %v7969 = vshll.u32 %v7870, 16
        %v7971 = vrot.slane %v7969, 5
        %v7972 = vsel %vm461, %v7967, %v7971
        %v7973 = vshrl.u32 %v7870, 16
        %v7975 = vrot.slane %v7973, 4
        %v7976 = vor.u32 %v7975, %v7971
        %v7977 = vrot.slane %v7976, 4
        %v7979 = vshll.u32 %v7871, 16
        %v7981 = vrot.slane %v7979, 5
        %v7982 = vsel %vm461, %v7977, %v7981
        %v7984 = vshrl.u32 %v7872, 16
        %v7986 = vrot.slane %v7984, 4
        %v7987 = vshll.u32 %v7872, 16
        %v7989 = vrot.slane %v7987, 5
        %v7990 = vor.u32 %v7986, %v7989
        %v7991 = vrot.slane %v7990, 4
        %v7993 = vshll.u32 %v7873, 16
        %v7995 = vrot.slane %v7993, 5
        %v7996 = vsel %vm461, %v7991, %v7995
        %v7997 = vshrl.u32 %v7873, 16
        %v7999 = vrot.slane %v7997, 4
        %v8000 = vor.u32 %v7999, %v7995
        %v8001 = vrot.slane %v8000, 4
        %v8003 = vshll.u32 %v7874, 16
        %v8005 = vrot.slane %v8003, 5
        %v8006 = vsel %vm461, %v8001, %v8005
        %v8008 = vshrl.u32 %v7875, 16
        %v8010 = vrot.slane %v8008, 4
        %v8011 = vshll.u32 %v7875, 16
        %v8013 = vrot.slane %v8011, 5
        %v8014 = vor.u32 %v8010, %v8013
        %v8015 = vrot.slane %v8014, 4
        %v8017 = vshll.u32 %v7876, 16
        %v8019 = vrot.slane %v8017, 5
        %v8020 = vsel %vm461, %v8015, %v8019
        %v8021 = vshrl.u32 %v7876, 16
        %v8023 = vrot.slane %v8021, 4
        %v8024 = vor.u32 %v8023, %v8019
        %v8025 = vrot.slane %v8024, 4
        %v8027 = vshll.u32 %v7877, 16
        %v8029 = vrot.slane %v8027, 5
        %v8030 = vsel %vm461, %v8025, %v8029
        %v8032 = vshrl.u32 %v7878, 16
        %v8034 = vrot.slane %v8032, 4
        %v8035 = vshll.u32 %v7878, 16
        %v8037 = vrot.slane %v8035, 5
        %v8038 = vor.u32 %v8034, %v8037
        %v8039 = vrot.slane %v8038, 4
        %v8041 = vshll.u32 %v7879, 16
        %v8043 = vrot.slane %v8041, 5
        %v8044 = vsel %vm461, %v8039, %v8043
        %v8045 = vshrl.u32 %v7879, 16
        %v8047 = vrot.slane %v8045, 4
        %v8048 = vor.u32 %v8047, %v8043
        %v8049 = vrot.slane %v8048, 4
        %v8051 = vshll.u32 %v7880, 16
        %v8053 = vrot.slane %v8051, 5
        %v8054 = vsel %vm461, %v8049, %v8053
        %v8056 = vshrl.u32 %v7881, 16
        %v8058 = vrot.slane %v8056, 4
        %v8059 = vshll.u32 %v7881, 16
        %v8061 = vrot.slane %v8059, 5
        %v8062 = vor.u32 %v8058, %v8061
        %v8063 = vrot.slane %v8062, 4
        %v8065 = vshll.u32 %v7882, 16
        %v8067 = vrot.slane %v8065, 5
        %v8068 = vsel %vm461, %v8063, %v8067
        %v8069 = vshrl.u32 %v7882, 16
        %v8071 = vrot.slane %v8069, 4
        %v8072 = vor.u32 %v8071, %v8067
        %v8073 = vrot.slane %v8072, 4
        %v8075 = vshll.u32 %v7883, 16
        %v8077 = vrot.slane %v8075, 5
        %v8078 = vsel %vm461, %v8073, %v8077
        %v8080 = vshrl.u32 %v7884, 16
        %v8082 = vrot.slane %v8080, 4
        %v8083 = vshll.u32 %v7884, 16
        %v8085 = vrot.slane %v8083, 5
        %v8086 = vor.u32 %v8082, %v8085
        %v8087 = vrot.slane %v8086, 4
        %v8089 = vshll.u32 %v7885, 16
        %v8091 = vrot.slane %v8089, 5
        %v8092 = vsel %vm461, %v8087, %v8091
        %v8093 = vshrl.u32 %v7885, 16
        %v8095 = vrot.slane %v8093, 4
        %v8096 = vor.u32 %v8095, %v8091
        %v8097 = vrot.slane %v8096, 4
        %v8099 = vshll.u32 %v7886, 16
        %v8101 = vrot.slane %v8099, 5
        %v8102 = vsel %vm461, %v8097, %v8101
        %v8104 = vshrl.u32 %v7887, 16
        %v8106 = vrot.slane %v8104, 4
        %v8107 = vshll.u32 %v7887, 16
        %v8109 = vrot.slane %v8107, 5
        %v8110 = vor.u32 %v8106, %v8109
        %v8111 = vrot.slane %v8110, 4
        %v8113 = vshll.u32 %v7888, 16
        %v8115 = vrot.slane %v8113, 5
        %v8116 = vsel %vm461, %v8111, %v8115
        %v8117 = vshrl.u32 %v7888, 16
        %v8119 = vrot.slane %v8117, 4
        %v8120 = vor.u32 %v8119, %v8115
        %v8121 = vrot.slane %v8120, 4
        %v8123 = vshll.u32 %v7889, 16
        %v8125 = vrot.slane %v8123, 5
        %v8126 = vsel %vm461, %v8121, %v8125
        %v8128 = vshrl.u32 %v7890, 16
        %v8130 = vrot.slane %v8128, 4
        %v8131 = vshll.u32 %v7890, 16
        %v8133 = vrot.slane %v8131, 5
        %v8134 = vor.u32 %v8130, %v8133
        %v8135 = vrot.slane %v8134, 4
        %v8137 = vshll.u32 %v7891, 16
        %v8139 = vrot.slane %v8137, 5
        %v8140 = vsel %vm461, %v8135, %v8139
        %v8141 = vshrl.u32 %v7891, 16
        %v8143 = vrot.slane %v8141, 4
        %v8144 = vor.u32 %v8143, %v8139
        %v8145 = vrot.slane %v8144, 4
        %v8147 = vshll.u32 %v7892, 16
        %v8149 = vrot.slane %v8147, 5
        %v8150 = vsel %vm461, %v8145, %v8149
        %v8152 = vshrl.u32 %v7893, 16
        %v8154 = vrot.slane %v8152, 4
        %v8155 = vshll.u32 %v7893, 16
        %v8157 = vrot.slane %v8155, 5
        %v8158 = vor.u32 %v8154, %v8157
        %v8159 = vrot.slane %v8158, 4
        %v8161 = vshll.u32 %v7894, 16
        %v8163 = vrot.slane %v8161, 5
        %v8164 = vsel %vm461, %v8159, %v8163
        %v8165 = vshrl.u32 %v7894, 16
        %v8167 = vrot.slane %v8165, 4
        %v8168 = vor.u32 %v8167, %v8163
        %v8169 = vrot.slane %v8168, 4
        %v8171 = vshll.u32 %v7895, 16
        %v8173 = vrot.slane %v8171, 5
        %v8174 = vsel %vm461, %v8169, %v8173
        %v8176 = vshrl.u32 %v7896, 16
        %v8178 = vrot.slane %v8176, 4
        %v8179 = vshll.u32 %v7896, 16
        %v8181 = vrot.slane %v8179, 5
        %v8182 = vor.u32 %v8178, %v8181
        %v8183 = vrot.slane %v8182, 4
        %v8185 = vshll.u32 %v7897, 16
        %v8187 = vrot.slane %v8185, 5
        %v8188 = vsel %vm461, %v8183, %v8187
        %v8189 = vshrl.u32 %v7897, 16
        %v8191 = vrot.slane %v8189, 4
        %v8192 = vor.u32 %v8191, %v8187
        %v8193 = vrot.slane %v8192, 4
        %v8195 = vshll.u32 %v7898, 16
        %v8197 = vrot.slane %v8195, 5
        %v8198 = vsel %vm461, %v8193, %v8197
        %v8200 = vshrl.u32 %v7899, 16
        %v8202 = vrot.slane %v8200, 4
        %v8203 = vshll.u32 %v7899, 16
        %v8205 = vrot.slane %v8203, 5
        %v8206 = vor.u32 %v8202, %v8205
        %v8207 = vrot.slane %v8206, 4
        %v8209 = vshll.u32 %v7900, 16
        %v8211 = vrot.slane %v8209, 5
        %v8212 = vsel %vm461, %v8207, %v8211
        %v8213 = vshrl.u32 %v7900, 16
        %v8215 = vrot.slane %v8213, 4
        %v8216 = vor.u32 %v8215, %v8211
        %v8217 = vrot.slane %v8216, 4
        %v8219 = vshll.u32 %v7901, 16
        %v8221 = vrot.slane %v8219, 5
        %v8222 = vsel %vm461, %v8217, %v8221
        %v8224 = vshrl.u32 %v7902, 16
        %v8226 = vrot.slane %v8224, 4
        %v8227 = vshll.u32 %v7902, 16
        %v8229 = vrot.slane %v8227, 5
        %v8230 = vor.u32 %v8226, %v8229
        %v8231 = vrot.slane %v8230, 4
        %v8233 = vshll.u32 %v7903, 16
        %v8235 = vrot.slane %v8233, 5
        %v8236 = vsel %vm461, %v8231, %v8235
        %v8237 = vshrl.u32 %v7903, 16
        %v8239 = vrot.slane %v8237, 4
        %v8240 = vor.u32 %v8239, %v8235
        %v8241 = vrot.slane %v8240, 4
        %v8243 = vshll.u32 %v7904, 16
        %v8245 = vrot.slane %v8243, 5
        %v8246 = vsel %vm461, %v8241, %v8245
        %v8248 = vshrl.u32 %v7905, 16
        %v8250 = vrot.slane %v8248, 4
        %v8251 = vshll.u32 %v7905, 16
        %v8253 = vrot.slane %v8251, 5
        %v8254 = vor.u32 %v8250, %v8253
        %v8255 = vrot.slane %v8254, 4
        %v8257 = vshll.u32 %v7906, 16
        %v8259 = vrot.slane %v8257, 5
        %v8260 = vsel %vm461, %v8255, %v8259
        %v8261 = vshrl.u32 %v7906, 16
        %v8263 = vrot.slane %v8261, 4
        %v8264 = vor.u32 %v8263, %v8259
        %v8265 = vrot.slane %v8264, 4
        %v8267 = vshll.u32 %v7907, 16
        %v8269 = vrot.slane %v8267, 5
        %v8270 = vsel %vm461, %v8265, %v8269
        %v8272 = vshrl.u32 %v7908, 16
        %v8274 = vrot.slane %v8272, 4
        %v8275 = vshll.u32 %v7908, 16
        %v8277 = vrot.slane %v8275, 5
        %v8278 = vor.u32 %v8274, %v8277
        %v8279 = vrot.slane %v8278, 4
        %v8281 = vshll.u32 %v7909, 16
        %v8283 = vrot.slane %v8281, 5
        %v8284 = vsel %vm461, %v8279, %v8283
        %v8285 = vshrl.u32 %v7909, 16
        %v8287 = vrot.slane %v8285, 4
        %v8288 = vor.u32 %v8287, %v8283
        %v8289 = vrot.slane %v8288, 4
        %v8291 = vshll.u32 %v7910, 16
        %v8293 = vrot.slane %v8291, 5
        %v8294 = vsel %vm461, %v8289, %v8293
        %s8295 = scalar_lea.vmem %s3, 448
        %v8296 = vld [vmem:[%s8295] sm:$0xf]
        %v8297 = vld [vmem:[%s8295 + $0x4] sm:$0xf]
        %v8298 = vld [vmem:[%s8295 + $0x8] sm:$0xf]
        %v8299 = vld [vmem:[%s8295 + $0xc] sm:$0xf]
        %v8300 = vld [vmem:[%s8295 + $0x10] sm:$0xf]
        %v8301 = vld [vmem:[%s8295 + $0x14] sm:$0xf]
        %v8302 = vld [vmem:[%s8295 + $0x18] sm:$0xf]
        %v8303 = vld [vmem:[%s8295 + $0x1c] sm:$0xf]
        %v8304 = vld [vmem:[%s8295 + $0x20] sm:$0xf]
        %v8305 = vld [vmem:[%s8295 + $0x24] sm:$0xf]
        %v8306 = vld [vmem:[%s8295 + $0x28] sm:$0xf]
        %v8307 = vld [vmem:[%s8295 + $0x2c] sm:$0xf]
        %v8308 = vld [vmem:[%s8295 + $0x30] sm:$0xf]
        %v8309 = vld [vmem:[%s8295 + $0x34] sm:$0xf]
        %v8310 = vld [vmem:[%s8295 + $0x38] sm:$0xf]
        %v8311 = vld [vmem:[%s8295 + $0x3c] sm:$0xf]
        %v8312 = vunpack.c.l.b16 %v7924
        %v8313 = vunpack.c.l.b16 %v7934
        %v8314 = vunpack.c.l.b16 %v7948
        %v8315 = vunpack.c.l.b16 %v7958
        %v8316 = vunpack.c.l.b16 %v7972
        %v8317 = vunpack.c.l.b16 %v7982
        %v8318 = vunpack.c.l.b16 %v7996
        %v8319 = vunpack.c.l.b16 %v8006
        %v8320 = vunpack.c.l.b16 %v8020
        %v8321 = vunpack.c.l.b16 %v8030
        %v8322 = vunpack.c.l.b16 %v8044
        %v8323 = vunpack.c.l.b16 %v8054
        %v8324 = vunpack.c.l.b16 %v8068
        %v8325 = vunpack.c.l.b16 %v8078
        %v8326 = vunpack.c.l.b16 %v8092
        %v8327 = vunpack.c.l.b16 %v8102
        %v8328 = vunpack.c.l.b16 %v8116
        %v8329 = vunpack.c.l.b16 %v8126
        %v8330 = vunpack.c.l.b16 %v8140
        %v8331 = vunpack.c.l.b16 %v8150
        %v8332 = vunpack.c.l.b16 %v8164
        %v8333 = vunpack.c.l.b16 %v8174
        %v8334 = vunpack.c.l.b16 %v8188
        %v8335 = vunpack.c.l.b16 %v8198
        %v8336 = vunpack.c.l.b16 %v8212
        %v8337 = vunpack.c.l.b16 %v8222
        %v8338 = vunpack.c.l.b16 %v8236
        %v8339 = vunpack.c.l.b16 %v8246
        %v8340 = vunpack.c.l.b16 %v8260
        %v8341 = vunpack.c.l.b16 %v8270
        %v8342 = vunpack.c.l.b16 %v8284
        %v8343 = vunpack.c.l.b16 %v8294
        %v8344 = vpack.c.b16 %v8313, %v8312
        %v8345 = vpack.c.b16 %v8315, %v8314
        %v8346 = vpack.c.b16 %v8317, %v8316
        %v8347 = vpack.c.b16 %v8319, %v8318
        %v8348 = vpack.c.b16 %v8321, %v8320
        %v8349 = vpack.c.b16 %v8323, %v8322
        %v8350 = vpack.c.b16 %v8325, %v8324
        %v8351 = vpack.c.b16 %v8327, %v8326
        %v8352 = vpack.c.b16 %v8329, %v8328
        %v8353 = vpack.c.b16 %v8331, %v8330
        %v8354 = vpack.c.b16 %v8333, %v8332
        %v8355 = vpack.c.b16 %v8335, %v8334
        %v8356 = vpack.c.b16 %v8337, %v8336
        %v8357 = vpack.c.b16 %v8339, %v8338
        %v8358 = vpack.c.b16 %v8341, %v8340
        %v8359 = vpack.c.b16 %v8343, %v8342
        %v8392 = vunpack.c.l.b16 %v8296
        %v8393 = vunpack.c.l.b16 %v8297
        %v8394 = vunpack.c.l.b16 %v8298
        %v8395 = vunpack.c.l.b16 %v8299
        %v8396 = vunpack.c.l.b16 %v8300
        %v8397 = vunpack.c.l.b16 %v8301
        %v8398 = vunpack.c.l.b16 %v8302
        %v8399 = vunpack.c.l.b16 %v8303
        %v8400 = vunpack.c.l.b16 %v8304
        %v8401 = vunpack.c.l.b16 %v8305
        %v8402 = vunpack.c.l.b16 %v8306
        %v8403 = vunpack.c.l.b16 %v8307
        %v8404 = vunpack.c.l.b16 %v8308
        %v8405 = vunpack.c.l.b16 %v8309
        %v8406 = vunpack.c.l.b16 %v8310
        %v8407 = vunpack.c.l.b16 %v8311
        %v8408 = vpack.c.b16 %v8393, %v8392
        %v8409 = vpack.c.b16 %v8395, %v8394
        %v8410 = vpack.c.b16 %v8397, %v8396
        %v8411 = vpack.c.b16 %v8399, %v8398
        %v8412 = vpack.c.b16 %v8401, %v8400
        %v8413 = vpack.c.b16 %v8403, %v8402
        %v8414 = vpack.c.b16 %v8405, %v8404
        %v8415 = vpack.c.b16 %v8407, %v8406
        %8424 = vmatprep.subr.bf16.mxu0 0
        %8425 = vmatpush1.bf16.msra.mxu0 %v8408
        %8426 = vmatprep.subr.bf16.mxu0 0
        %8427 = vmatpush1.bf16.msra.mxu0 %v8409
        %8428 = vmatprep.subr.bf16.mxu0 0
        %8429 = vmatpush1.bf16.msra.mxu0 %v8410
        %8430 = vmatprep.subr.bf16.mxu0 0
        %8431 = vmatpush1.bf16.msra.mxu0 %v8411
        %8432 = vmatprep.subr.bf16.mxu0 0
        %8433 = vmatpush1.bf16.msra.mxu0 %v8412
        %8434 = vmatprep.subr.bf16.mxu0 0
        %8435 = vmatpush1.bf16.msra.mxu0 %v8413
        %8436 = vmatprep.subr.bf16.mxu0 0
        %8437 = vmatpush1.bf16.msra.mxu0 %v8414
        %8438 = vmatprep.subr.bf16.mxu0 0
        %8439 = vmatpush1.bf16.msra.mxu0 %v8415
        %8440 = vmatprep.subr.bf16.mxu0 0
        %8441 = vmatpush1.bf16.msra.mxu0 0
        %8442 = vmatprep.subr.bf16.mxu0 0
        %8443 = vmatpush1.bf16.msra.mxu0 0
        %8444 = vmatprep.subr.bf16.mxu0 0
        %8445 = vmatpush1.bf16.msra.mxu0 0
        %8446 = vmatprep.subr.bf16.mxu0 0
        %8447 = vmatpush1.bf16.msra.mxu0 0
        %8448 = vmatprep.subr.bf16.mxu0 0
        %8449 = vmatpush1.bf16.msra.mxu0 0
        %8450 = vmatprep.subr.bf16.mxu0 0
        %8451 = vmatpush1.bf16.msra.mxu0 0
        %8452 = vmatprep.subr.bf16.mxu0 0
        %8453 = vmatpush1.bf16.msra.mxu0 0
        %8454 = vmatprep.subr.bf16.mxu0 0
        %8455 = vmatpush1.bf16.msra.mxu0 0
        %8456 = vmatprep.mubr.bf16.mxu0 0
        %8457 = vmatmul.mubr.bf16.gmra.mrb[0].mxu0 %v8344
        %v8458 = vpop.f32.mrb[0].mxu0
        %v8459 = vadd.f32 0.0, %v8458
        %v8460 = vpop.f32.mrb[0].mxu0
        %v8461 = vpop.f32.mrb[0].mxu0
        %v8462 = vadd.f32 0.0, %v8461
        %v8463 = vpop.f32.mrb[0].mxu0
        %8464 = vmatprep.mubr.bf16.mxu0 0
        %8465 = vmatmul.mubr.bf16.gmra.mrb[0].mxu0 %v8345
        %v8466 = vpop.f32.mrb[0].mxu0
        %v8467 = vadd.f32 0.0, %v8466
        %v8468 = vpop.f32.mrb[0].mxu0
        %v8469 = vpop.f32.mrb[0].mxu0
        %v8470 = vadd.f32 0.0, %v8469
        %v8471 = vpop.f32.mrb[0].mxu0
        %8472 = vmatprep.mubr.bf16.mxu0 0
        %8473 = vmatmul.mubr.bf16.gmra.mrb[0].mxu0 %v8346
        %v8474 = vpop.f32.mrb[0].mxu0
        %v8475 = vadd.f32 0.0, %v8474
        %v8476 = vpop.f32.mrb[0].mxu0
        %v8477 = vpop.f32.mrb[0].mxu0
        %v8478 = vadd.f32 0.0, %v8477
        %v8479 = vpop.f32.mrb[0].mxu0
        %8480 = vmatprep.mubr.bf16.mxu0 0
        %8481 = vmatmul.mubr.bf16.gmra.mrb[0].mxu0 %v8347
        %v8482 = vpop.f32.mrb[0].mxu0
        %v8483 = vadd.f32 0.0, %v8482
        %v8484 = vpop.f32.mrb[0].mxu0
        %v8485 = vpop.f32.mrb[0].mxu0
        %v8486 = vadd.f32 0.0, %v8485
        %v8487 = vpop.f32.mrb[0].mxu0
        %8488 = vmatprep.mubr.bf16.mxu0 0
        %8489 = vmatmul.mubr.bf16.gmra.mrb[0].mxu0 %v8348
        %v8490 = vpop.f32.mrb[0].mxu0
        %v8491 = vadd.f32 0.0, %v8490
        %v8492 = vpop.f32.mrb[0].mxu0
        %v8493 = vpop.f32.mrb[0].mxu0
        %v8494 = vadd.f32 0.0, %v8493
        %v8495 = vpop.f32.mrb[0].mxu0
        %8496 = vmatprep.mubr.bf16.mxu0 0
        %8497 = vmatmul.mubr.bf16.gmra.mrb[0].mxu0 %v8349
        %v8498 = vpop.f32.mrb[0].mxu0
        %v8499 = vadd.f32 0.0, %v8498
        %v8500 = vpop.f32.mrb[0].mxu0
        %v8501 = vpop.f32.mrb[0].mxu0
        %v8502 = vadd.f32 0.0, %v8501
        %v8503 = vpop.f32.mrb[0].mxu0
        %8504 = vmatprep.mubr.bf16.mxu0 0
        %8505 = vmatmul.mubr.bf16.gmra.mrb[0].mxu0 %v8350
        %v8506 = vpop.f32.mrb[0].mxu0
        %v8507 = vadd.f32 0.0, %v8506
        %v8508 = vpop.f32.mrb[0].mxu0
        %v8509 = vpop.f32.mrb[0].mxu0
        %v8510 = vadd.f32 0.0, %v8509
        %v8511 = vpop.f32.mrb[0].mxu0
        %8512 = vmatprep.mubr.bf16.mxu0 0
        %8513 = vmatmul.mubr.bf16.gmra.mrb[0].mxu0 %v8351
        %v8514 = vpop.f32.mrb[0].mxu0
        %v8515 = vadd.f32 0.0, %v8514
        %v8516 = vpop.f32.mrb[0].mxu0
        %v8517 = vpop.f32.mrb[0].mxu0
        %v8518 = vadd.f32 0.0, %v8517
        %v8519 = vpop.f32.mrb[0].mxu0
        %8520 = vmatprep.mubr.bf16.mxu0 0
        %8521 = vmatmul.mubr.bf16.gmra.mrb[0].mxu0 %v8352
        %v8522 = vpop.f32.mrb[0].mxu0
        %v8523 = vadd.f32 0.0, %v8522
        %v8524 = vpop.f32.mrb[0].mxu0
        %v8525 = vpop.f32.mrb[0].mxu0
        %v8526 = vadd.f32 0.0, %v8525
        %v8527 = vpop.f32.mrb[0].mxu0
        %8528 = vmatprep.mubr.bf16.mxu0 0
        %8529 = vmatmul.mubr.bf16.gmra.mrb[0].mxu0 %v8353
        %v8530 = vpop.f32.mrb[0].mxu0
        %v8531 = vadd.f32 0.0, %v8530
        %v8532 = vpop.f32.mrb[0].mxu0
        %v8533 = vpop.f32.mrb[0].mxu0
        %v8534 = vadd.f32 0.0, %v8533
        %v8535 = vpop.f32.mrb[0].mxu0
        %8536 = vmatprep.mubr.bf16.mxu0 0
        %8537 = vmatmul.mubr.bf16.gmra.mrb[0].mxu0 %v8354
        %v8538 = vpop.f32.mrb[0].mxu0
        %v8539 = vadd.f32 0.0, %v8538
        %v8540 = vpop.f32.mrb[0].mxu0
        %v8541 = vpop.f32.mrb[0].mxu0
        %v8542 = vadd.f32 0.0, %v8541
        %v8543 = vpop.f32.mrb[0].mxu0
        %8544 = vmatprep.mubr.bf16.mxu0 0
        %8545 = vmatmul.mubr.bf16.gmra.mrb[0].mxu0 %v8355
        %v8546 = vpop.f32.mrb[0].mxu0
        %v8547 = vadd.f32 0.0, %v8546
        %v8548 = vpop.f32.mrb[0].mxu0
        %v8549 = vpop.f32.mrb[0].mxu0
        %v8550 = vadd.f32 0.0, %v8549
        %v8551 = vpop.f32.mrb[0].mxu0
        %8552 = vmatprep.mubr.bf16.mxu0 0
        %8553 = vmatmul.mubr.bf16.gmra.mrb[0].mxu0 %v8356
        %v8554 = vpop.f32.mrb[0].mxu0
        %v8555 = vadd.f32 0.0, %v8554
        %v8556 = vpop.f32.mrb[0].mxu0
        %v8557 = vpop.f32.mrb[0].mxu0
        %v8558 = vadd.f32 0.0, %v8557
        %v8559 = vpop.f32.mrb[0].mxu0
        %8560 = vmatprep.mubr.bf16.mxu0 0
        %8561 = vmatmul.mubr.bf16.gmra.mrb[0].mxu0 %v8357
        %v8562 = vpop.f32.mrb[0].mxu0
        %v8563 = vadd.f32 0.0, %v8562
        %v8564 = vpop.f32.mrb[0].mxu0
        %v8565 = vpop.f32.mrb[0].mxu0
        %v8566 = vadd.f32 0.0, %v8565
        %v8567 = vpop.f32.mrb[0].mxu0
        %8568 = vmatprep.mubr.bf16.mxu0 0
        %8569 = vmatmul.mubr.bf16.gmra.mrb[0].mxu0 %v8358
        %v8570 = vpop.f32.mrb[0].mxu0
        %v8571 = vadd.f32 0.0, %v8570
        %v8572 = vpop.f32.mrb[0].mxu0
        %v8573 = vpop.f32.mrb[0].mxu0
        %v8574 = vadd.f32 0.0, %v8573
        %v8575 = vpop.f32.mrb[0].mxu0
        %8576 = vmatprep.mubr.bf16.mxu0 0
        %8577 = vmatmul.mubr.bf16.gmra.mrb[0].mxu0 %v8359
        %v8578 = vpop.f32.mrb[0].mxu0
        %v8579 = vadd.f32 0.0, %v8578
        %v8580 = vpop.f32.mrb[0].mxu0
        %v8581 = vpop.f32.mrb[0].mxu0
        %v8582 = vadd.f32 0.0, %v8581
        %v8583 = vpop.f32.mrb[0].mxu0
        %8584 = vdwg.mxu0
        %v8585 = vadd.f32 %v7831, %v8459
        %v8586 = vadd.f32 %v7832, %v8462
        %v8587 = vadd.f32 %v7833, %v8467
        %v8588 = vadd.f32 %v7834, %v8470
        %v8589 = vadd.f32 %v7835, %v8475
        %v8590 = vadd.f32 %v7836, %v8478
        %v8591 = vadd.f32 %v7837, %v8483
        %v8592 = vadd.f32 %v7838, %v8486
        %v8593 = vadd.f32 %v7839, %v8491
        %v8594 = vadd.f32 %v7840, %v8494
        %v8595 = vadd.f32 %v7841, %v8499
        %v8596 = vadd.f32 %v7842, %v8502
        %v8597 = vadd.f32 %v7843, %v8507
        %v8598 = vadd.f32 %v7844, %v8510
        %v8599 = vadd.f32 %v7845, %v8515
        %v8600 = vadd.f32 %v7846, %v8518
        %v8601 = vadd.f32 %v7847, %v8523
        %v8602 = vadd.f32 %v7848, %v8526
        %v8603 = vadd.f32 %v7849, %v8531
        %v8604 = vadd.f32 %v7850, %v8534
        %v8605 = vadd.f32 %v7851, %v8539
        %v8606 = vadd.f32 %v7852, %v8542
        %v8607 = vadd.f32 %v7853, %v8547
        %v8608 = vadd.f32 %v7854, %v8550
        %v8609 = vadd.f32 %v7855, %v8555
        %v8610 = vadd.f32 %v7856, %v8558
        %v8611 = vadd.f32 %v7857, %v8563
        %v8612 = vadd.f32 %v7858, %v8566
        %v8613 = vadd.f32 %v7859, %v8571
        %v8614 = vadd.f32 %v7860, %v8574
        %v8615 = vadd.f32 %v7861, %v8579
        %v8616 = vadd.f32 %v7862, %v8582
        %v8617 = vld [vmem:[%s7476] sm:$0xe]
        %v8618 = vld [vmem:[%s7476 + $0xc] sm:$0xe]
        %v8619 = vld [vmem:[%s7476 + $0x18] sm:$0xe]
        %v8620 = vld [vmem:[%s7476 + $0x24] sm:$0xe]
        %v8621 = vld [vmem:[%s7476 + $0x30] sm:$0xe]
        %v8622 = vld [vmem:[%s7476 + $0x3c] sm:$0xe]
        %v8623 = vld [vmem:[%s7476 + $0x48] sm:$0xe]
        %v8624 = vld [vmem:[%s7476 + $0x54] sm:$0xe]
        %v8625 = vld [vmem:[%s7476 + $0x60] sm:$0xe]
        %v8626 = vld [vmem:[%s7476 + $0x6c] sm:$0xe]
        %v8627 = vld [vmem:[%s7476 + $0x78] sm:$0xe]
        %v8628 = vld [vmem:[%s7476 + $0x84] sm:$0xe]
        %v8629 = vld [vmem:[%s7476 + $0x90] sm:$0xe]
        %v8630 = vld [vmem:[%s7476 + $0x9c] sm:$0xe]
        %v8631 = vld [vmem:[%s7476 + $0xa8] sm:$0xe]
        %v8632 = vld [vmem:[%s7476 + $0xb4] sm:$0xe]
        %v8681 = vrot.slane %v8617, 5
        %v8682 = vrot.slane %v8681, 4
        %v8683 = vrot.slane %v7864, 5
        %v8684 = vsel %vm1057, %v8682, %v8683
        %v8685 = vrot.slane %v8683, 4
        %v8686 = vrot.slane %v7865, 5
        %v8687 = vsel %vm1057, %v8685, %v8686
        %v8688 = vrot.slane %v8618, 5
        %v8689 = vrot.slane %v8688, 4
        %v8690 = vrot.slane %v7867, 5
        %v8691 = vsel %vm1057, %v8689, %v8690
        %v8692 = vrot.slane %v8690, 4
        %v8693 = vrot.slane %v7868, 5
        %v8694 = vsel %vm1057, %v8692, %v8693
        %v8695 = vrot.slane %v8619, 5
        %v8696 = vrot.slane %v8695, 4
        %v8697 = vrot.slane %v7870, 5
        %v8698 = vsel %vm1057, %v8696, %v8697
        %v8699 = vrot.slane %v8697, 4
        %v8700 = vrot.slane %v7871, 5
        %v8701 = vsel %vm1057, %v8699, %v8700
        %v8702 = vrot.slane %v8620, 5
        %v8703 = vrot.slane %v8702, 4
        %v8704 = vrot.slane %v7873, 5
        %v8705 = vsel %vm1057, %v8703, %v8704
        %v8706 = vrot.slane %v8704, 4
        %v8707 = vrot.slane %v7874, 5
        %v8708 = vsel %vm1057, %v8706, %v8707
        %v8709 = vrot.slane %v8621, 5
        %v8710 = vrot.slane %v8709, 4
        %v8711 = vrot.slane %v7876, 5
        %v8712 = vsel %vm1057, %v8710, %v8711
        %v8713 = vrot.slane %v8711, 4
        %v8714 = vrot.slane %v7877, 5
        %v8715 = vsel %vm1057, %v8713, %v8714
        %v8716 = vrot.slane %v8622, 5
        %v8717 = vrot.slane %v8716, 4
        %v8718 = vrot.slane %v7879, 5
        %v8719 = vsel %vm1057, %v8717, %v8718
        %v8720 = vrot.slane %v8718, 4
        %v8721 = vrot.slane %v7880, 5
        %v8722 = vsel %vm1057, %v8720, %v8721
        %v8723 = vrot.slane %v8623, 5
        %v8724 = vrot.slane %v8723, 4
        %v8725 = vrot.slane %v7882, 5
        %v8726 = vsel %vm1057, %v8724, %v8725
        %v8727 = vrot.slane %v8725, 4
        %v8728 = vrot.slane %v7883, 5
        %v8729 = vsel %vm1057, %v8727, %v8728
        %v8730 = vrot.slane %v8624, 5
        %v8731 = vrot.slane %v8730, 4
        %v8732 = vrot.slane %v7885, 5
        %v8733 = vsel %vm1057, %v8731, %v8732
        %v8734 = vrot.slane %v8732, 4
        %v8735 = vrot.slane %v7886, 5
        %v8736 = vsel %vm1057, %v8734, %v8735
        %v8737 = vrot.slane %v8625, 5
        %v8738 = vrot.slane %v8737, 4
        %v8739 = vrot.slane %v7888, 5
        %v8740 = vsel %vm1057, %v8738, %v8739
        %v8741 = vrot.slane %v8739, 4
        %v8742 = vrot.slane %v7889, 5
        %v8743 = vsel %vm1057, %v8741, %v8742
        %v8744 = vrot.slane %v8626, 5
        %v8745 = vrot.slane %v8744, 4
        %v8746 = vrot.slane %v7891, 5
        %v8747 = vsel %vm1057, %v8745, %v8746
        %v8748 = vrot.slane %v8746, 4
        %v8749 = vrot.slane %v7892, 5
        %v8750 = vsel %vm1057, %v8748, %v8749
        %v8751 = vrot.slane %v8627, 5
        %v8752 = vrot.slane %v8751, 4
        %v8753 = vrot.slane %v7894, 5
        %v8754 = vsel %vm1057, %v8752, %v8753
        %v8755 = vrot.slane %v8753, 4
        %v8756 = vrot.slane %v7895, 5
        %v8757 = vsel %vm1057, %v8755, %v8756
        %v8758 = vrot.slane %v8628, 5
        %v8759 = vrot.slane %v8758, 4
        %v8760 = vrot.slane %v7897, 5
        %v8761 = vsel %vm1057, %v8759, %v8760
        %v8762 = vrot.slane %v8760, 4
        %v8763 = vrot.slane %v7898, 5
        %v8764 = vsel %vm1057, %v8762, %v8763
        %v8765 = vrot.slane %v8629, 5
        %v8766 = vrot.slane %v8765, 4
        %v8767 = vrot.slane %v7900, 5
        %v8768 = vsel %vm1057, %v8766, %v8767
        %v8769 = vrot.slane %v8767, 4
        %v8770 = vrot.slane %v7901, 5
        %v8771 = vsel %vm1057, %v8769, %v8770
        %v8772 = vrot.slane %v8630, 5
        %v8773 = vrot.slane %v8772, 4
        %v8774 = vrot.slane %v7903, 5
        %v8775 = vsel %vm1057, %v8773, %v8774
        %v8776 = vrot.slane %v8774, 4
        %v8777 = vrot.slane %v7904, 5
        %v8778 = vsel %vm1057, %v8776, %v8777
        %v8779 = vrot.slane %v8631, 5
        %v8780 = vrot.slane %v8779, 4
        %v8781 = vrot.slane %v7906, 5
        %v8782 = vsel %vm1057, %v8780, %v8781
        %v8783 = vrot.slane %v8781, 4
        %v8784 = vrot.slane %v7907, 5
        %v8785 = vsel %vm1057, %v8783, %v8784
        %v8786 = vrot.slane %v8632, 5
        %v8787 = vrot.slane %v8786, 4
        %v8788 = vrot.slane %v7909, 5
        %v8789 = vsel %vm1057, %v8787, %v8788
        %v8790 = vrot.slane %v8788, 4
        %v8791 = vrot.slane %v7910, 5
        %v8792 = vsel %vm1057, %v8790, %v8791
        %s8793 = scalar_lea.vmem %s3, 512
        %v8794 = vld [vmem:[%s8793] sm:$0xf]
        %v8795 = vld [vmem:[%s8793 + $0x4] sm:$0xf]
        %v8796 = vld [vmem:[%s8793 + $0x8] sm:$0xf]
        %v8797 = vld [vmem:[%s8793 + $0xc] sm:$0xf]
        %v8798 = vld [vmem:[%s8793 + $0x10] sm:$0xf]
        %v8799 = vld [vmem:[%s8793 + $0x14] sm:$0xf]
        %v8800 = vld [vmem:[%s8793 + $0x18] sm:$0xf]
        %v8801 = vld [vmem:[%s8793 + $0x1c] sm:$0xf]
        %v8802 = vld [vmem:[%s8793 + $0x20] sm:$0xf]
        %v8803 = vld [vmem:[%s8793 + $0x24] sm:$0xf]
        %v8804 = vld [vmem:[%s8793 + $0x28] sm:$0xf]
        %v8805 = vld [vmem:[%s8793 + $0x2c] sm:$0xf]
        %v8806 = vld [vmem:[%s8793 + $0x30] sm:$0xf]
        %v8807 = vld [vmem:[%s8793 + $0x34] sm:$0xf]
        %v8808 = vld [vmem:[%s8793 + $0x38] sm:$0xf]
        %v8809 = vld [vmem:[%s8793 + $0x3c] sm:$0xf]
        %v8810 = vunpack.c.l.b16 %v8684
        %v8811 = vunpack.c.l.b16 %v8687
        %v8812 = vunpack.c.l.b16 %v8691
        %v8813 = vunpack.c.l.b16 %v8694
        %v8814 = vunpack.c.l.b16 %v8698
        %v8815 = vunpack.c.l.b16 %v8701
        %v8816 = vunpack.c.l.b16 %v8705
        %v8817 = vunpack.c.l.b16 %v8708
        %v8818 = vunpack.c.l.b16 %v8712
        %v8819 = vunpack.c.l.b16 %v8715
        %v8820 = vunpack.c.l.b16 %v8719
        %v8821 = vunpack.c.l.b16 %v8722
        %v8822 = vunpack.c.l.b16 %v8726
        %v8823 = vunpack.c.l.b16 %v8729
        %v8824 = vunpack.c.l.b16 %v8733
        %v8825 = vunpack.c.l.b16 %v8736
        %v8826 = vunpack.c.l.b16 %v8740
        %v8827 = vunpack.c.l.b16 %v8743
        %v8828 = vunpack.c.l.b16 %v8747
        %v8829 = vunpack.c.l.b16 %v8750
        %v8830 = vunpack.c.l.b16 %v8754
        %v8831 = vunpack.c.l.b16 %v8757
        %v8832 = vunpack.c.l.b16 %v8761
        %v8833 = vunpack.c.l.b16 %v8764
        %v8834 = vunpack.c.l.b16 %v8768
        %v8835 = vunpack.c.l.b16 %v8771
        %v8836 = vunpack.c.l.b16 %v8775
        %v8837 = vunpack.c.l.b16 %v8778
        %v8838 = vunpack.c.l.b16 %v8782
        %v8839 = vunpack.c.l.b16 %v8785
        %v8840 = vunpack.c.l.b16 %v8789
        %v8841 = vunpack.c.l.b16 %v8792
        %v8842 = vpack.c.b16 %v8811, %v8810
        %v8843 = vpack.c.b16 %v8813, %v8812
        %v8844 = vpack.c.b16 %v8815, %v8814
        %v8845 = vpack.c.b16 %v8817, %v8816
        %v8846 = vpack.c.b16 %v8819, %v8818
        %v8847 = vpack.c.b16 %v8821, %v8820
        %v8848 = vpack.c.b16 %v8823, %v8822
        %v8849 = vpack.c.b16 %v8825, %v8824
        %v8850 = vpack.c.b16 %v8827, %v8826
        %v8851 = vpack.c.b16 %v8829, %v8828
        %v8852 = vpack.c.b16 %v8831, %v8830
        %v8853 = vpack.c.b16 %v8833, %v8832
        %v8854 = vpack.c.b16 %v8835, %v8834
        %v8855 = vpack.c.b16 %v8837, %v8836
        %v8856 = vpack.c.b16 %v8839, %v8838
        %v8857 = vpack.c.b16 %v8841, %v8840
        %v8890 = vunpack.c.l.b16 %v8794
        %v8891 = vunpack.c.l.b16 %v8795
        %v8892 = vunpack.c.l.b16 %v8796
        %v8893 = vunpack.c.l.b16 %v8797
        %v8894 = vunpack.c.l.b16 %v8798
        %v8895 = vunpack.c.l.b16 %v8799
        %v8896 = vunpack.c.l.b16 %v8800
        %v8897 = vunpack.c.l.b16 %v8801
        %v8898 = vunpack.c.l.b16 %v8802
        %v8899 = vunpack.c.l.b16 %v8803
        %v8900 = vunpack.c.l.b16 %v8804
        %v8901 = vunpack.c.l.b16 %v8805
        %v8902 = vunpack.c.l.b16 %v8806
        %v8903 = vunpack.c.l.b16 %v8807
        %v8904 = vunpack.c.l.b16 %v8808
        %v8905 = vunpack.c.l.b16 %v8809
        %v8906 = vpack.c.b16 %v8891, %v8890
        %v8907 = vpack.c.b16 %v8893, %v8892
        %v8908 = vpack.c.b16 %v8895, %v8894
        %v8909 = vpack.c.b16 %v8897, %v8896
        %v8910 = vpack.c.b16 %v8899, %v8898
        %v8911 = vpack.c.b16 %v8901, %v8900
        %v8912 = vpack.c.b16 %v8903, %v8902
        %v8913 = vpack.c.b16 %v8905, %v8904
        %8922 = vmatprep.subr.bf16.mxu0 0
        %8923 = vmatpush1.bf16.msra.mxu0 %v8906
        %8924 = vmatprep.subr.bf16.mxu0 0
        %8925 = vmatpush1.bf16.msra.mxu0 %v8907
        %8926 = vmatprep.subr.bf16.mxu0 0
        %8927 = vmatpush1.bf16.msra.mxu0 %v8908
        %8928 = vmatprep.subr.bf16.mxu0 0
        %8929 = vmatpush1.bf16.msra.mxu0 %v8909
        %8930 = vmatprep.subr.bf16.mxu0 0
        %8931 = vmatpush1.bf16.msra.mxu0 %v8910
        %8932 = vmatprep.subr.bf16.mxu0 0
        %8933 = vmatpush1.bf16.msra.mxu0 %v8911
        %8934 = vmatprep.subr.bf16.mxu0 0
        %8935 = vmatpush1.bf16.msra.mxu0 %v8912
        %8936 = vmatprep.subr.bf16.mxu0 0
        %8937 = vmatpush1.bf16.msra.mxu0 %v8913
        %8938 = vmatprep.subr.bf16.mxu0 0
        %8939 = vmatpush1.bf16.msra.mxu0 0
        %8940 = vmatprep.subr.bf16.mxu0 0
        %8941 = vmatpush1.bf16.msra.mxu0 0
        %8942 = vmatprep.subr.bf16.mxu0 0
        %8943 = vmatpush1.bf16.msra.mxu0 0
        %8944 = vmatprep.subr.bf16.mxu0 0
        %8945 = vmatpush1.bf16.msra.mxu0 0
        %8946 = vmatprep.subr.bf16.mxu0 0
        %8947 = vmatpush1.bf16.msra.mxu0 0
        %8948 = vmatprep.subr.bf16.mxu0 0
        %8949 = vmatpush1.bf16.msra.mxu0 0
        %8950 = vmatprep.subr.bf16.mxu0 0
        %8951 = vmatpush1.bf16.msra.mxu0 0
        %8952 = vmatprep.subr.bf16.mxu0 0
        %8953 = vmatpush1.bf16.msra.mxu0 0
        %8954 = vmatprep.mubr.bf16.mxu0 0
        %8955 = vmatmul.mubr.bf16.gmra.mrb[0].mxu0 %v8842
        %v8956 = vpop.f32.mrb[0].mxu0
        %v8957 = vadd.f32 0.0, %v8956
        %v8958 = vpop.f32.mrb[0].mxu0
        %v8959 = vpop.f32.mrb[0].mxu0
        %v8960 = vadd.f32 0.0, %v8959
        %v8961 = vpop.f32.mrb[0].mxu0
        %8962 = vmatprep.mubr.bf16.mxu0 0
        %8963 = vmatmul.mubr.bf16.gmra.mrb[0].mxu0 %v8843
        %v8964 = vpop.f32.mrb[0].mxu0
        %v8965 = vadd.f32 0.0, %v8964
        %v8966 = vpop.f32.mrb[0].mxu0
        %v8967 = vpop.f32.mrb[0].mxu0
        %v8968 = vadd.f32 0.0, %v8967
        %v8969 = vpop.f32.mrb[0].mxu0
        %8970 = vmatprep.mubr.bf16.mxu0 0
        %8971 = vmatmul.mubr.bf16.gmra.mrb[0].mxu0 %v8844
        %v8972 = vpop.f32.mrb[0].mxu0
        %v8973 = vadd.f32 0.0, %v8972
        %v8974 = vpop.f32.mrb[0].mxu0
        %v8975 = vpop.f32.mrb[0].mxu0
        %v8976 = vadd.f32 0.0, %v8975
        %v8977 = vpop.f32.mrb[0].mxu0
        %8978 = vmatprep.mubr.bf16.mxu0 0
        %8979 = vmatmul.mubr.bf16.gmra.mrb[0].mxu0 %v8845
        %v8980 = vpop.f32.mrb[0].mxu0
        %v8981 = vadd.f32 0.0, %v8980
        %v8982 = vpop.f32.mrb[0].mxu0
        %v8983 = vpop.f32.mrb[0].mxu0
        %v8984 = vadd.f32 0.0, %v8983
        %v8985 = vpop.f32.mrb[0].mxu0
        %8986 = vmatprep.mubr.bf16.mxu0 0
        %8987 = vmatmul.mubr.bf16.gmra.mrb[0].mxu0 %v8846
        %v8988 = vpop.f32.mrb[0].mxu0
        %v8989 = vadd.f32 0.0, %v8988
        %v8990 = vpop.f32.mrb[0].mxu0
        %v8991 = vpop.f32.mrb[0].mxu0
        %v8992 = vadd.f32 0.0, %v8991
        %v8993 = vpop.f32.mrb[0].mxu0
        %8994 = vmatprep.mubr.bf16.mxu0 0
        %8995 = vmatmul.mubr.bf16.gmra.mrb[0].mxu0 %v8847
        %v8996 = vpop.f32.mrb[0].mxu0
        %v8997 = vadd.f32 0.0, %v8996
        %v8998 = vpop.f32.mrb[0].mxu0
        %v8999 = vpop.f32.mrb[0].mxu0
        %v9000 = vadd.f32 0.0, %v8999
        %v9001 = vpop.f32.mrb[0].mxu0
        %9002 = vmatprep.mubr.bf16.mxu0 0
        %9003 = vmatmul.mubr.bf16.gmra.mrb[0].mxu0 %v8848
        %v9004 = vpop.f32.mrb[0].mxu0
        %v9005 = vadd.f32 0.0, %v9004
        %v9006 = vpop.f32.mrb[0].mxu0
        %v9007 = vpop.f32.mrb[0].mxu0
        %v9008 = vadd.f32 0.0, %v9007
        %v9009 = vpop.f32.mrb[0].mxu0
        %9010 = vmatprep.mubr.bf16.mxu0 0
        %9011 = vmatmul.mubr.bf16.gmra.mrb[0].mxu0 %v8849
        %v9012 = vpop.f32.mrb[0].mxu0
        %v9013 = vadd.f32 0.0, %v9012
        %v9014 = vpop.f32.mrb[0].mxu0
        %v9015 = vpop.f32.mrb[0].mxu0
        %v9016 = vadd.f32 0.0, %v9015
        %v9017 = vpop.f32.mrb[0].mxu0
        %9018 = vmatprep.mubr.bf16.mxu0 0
        %9019 = vmatmul.mubr.bf16.gmra.mrb[0].mxu0 %v8850
        %v9020 = vpop.f32.mrb[0].mxu0
        %v9021 = vadd.f32 0.0, %v9020
        %v9022 = vpop.f32.mrb[0].mxu0
        %v9023 = vpop.f32.mrb[0].mxu0
        %v9024 = vadd.f32 0.0, %v9023
        %v9025 = vpop.f32.mrb[0].mxu0
        %9026 = vmatprep.mubr.bf16.mxu0 0
        %9027 = vmatmul.mubr.bf16.gmra.mrb[0].mxu0 %v8851
        %v9028 = vpop.f32.mrb[0].mxu0
        %v9029 = vadd.f32 0.0, %v9028
        %v9030 = vpop.f32.mrb[0].mxu0
        %v9031 = vpop.f32.mrb[0].mxu0
        %v9032 = vadd.f32 0.0, %v9031
        %v9033 = vpop.f32.mrb[0].mxu0
        %9034 = vmatprep.mubr.bf16.mxu0 0
        %9035 = vmatmul.mubr.bf16.gmra.mrb[0].mxu0 %v8852
        %v9036 = vpop.f32.mrb[0].mxu0
        %v9037 = vadd.f32 0.0, %v9036
        %v9038 = vpop.f32.mrb[0].mxu0
        %v9039 = vpop.f32.mrb[0].mxu0
        %v9040 = vadd.f32 0.0, %v9039
        %v9041 = vpop.f32.mrb[0].mxu0
        %9042 = vmatprep.mubr.bf16.mxu0 0
        %9043 = vmatmul.mubr.bf16.gmra.mrb[0].mxu0 %v8853
        %v9044 = vpop.f32.mrb[0].mxu0
        %v9045 = vadd.f32 0.0, %v9044
        %v9046 = vpop.f32.mrb[0].mxu0
        %v9047 = vpop.f32.mrb[0].mxu0
        %v9048 = vadd.f32 0.0, %v9047
        %v9049 = vpop.f32.mrb[0].mxu0
        %9050 = vmatprep.mubr.bf16.mxu0 0
        %9051 = vmatmul.mubr.bf16.gmra.mrb[0].mxu0 %v8854
        %v9052 = vpop.f32.mrb[0].mxu0
        %v9053 = vadd.f32 0.0, %v9052
        %v9054 = vpop.f32.mrb[0].mxu0
        %v9055 = vpop.f32.mrb[0].mxu0
        %v9056 = vadd.f32 0.0, %v9055
        %v9057 = vpop.f32.mrb[0].mxu0
        %9058 = vmatprep.mubr.bf16.mxu0 0
        %9059 = vmatmul.mubr.bf16.gmra.mrb[0].mxu0 %v8855
        %v9060 = vpop.f32.mrb[0].mxu0
        %v9061 = vadd.f32 0.0, %v9060
        %v9062 = vpop.f32.mrb[0].mxu0
        %v9063 = vpop.f32.mrb[0].mxu0
        %v9064 = vadd.f32 0.0, %v9063
        %v9065 = vpop.f32.mrb[0].mxu0
        %9066 = vmatprep.mubr.bf16.mxu0 0
        %9067 = vmatmul.mubr.bf16.gmra.mrb[0].mxu0 %v8856
        %v9068 = vpop.f32.mrb[0].mxu0
        %v9069 = vadd.f32 0.0, %v9068
        %v9070 = vpop.f32.mrb[0].mxu0
        %v9071 = vpop.f32.mrb[0].mxu0
        %v9072 = vadd.f32 0.0, %v9071
        %v9073 = vpop.f32.mrb[0].mxu0
        %9074 = vmatprep.mubr.bf16.mxu0 0
        %9075 = vmatmul.mubr.bf16.gmra.mrb[0].mxu0 %v8857
        %v9076 = vpop.f32.mrb[0].mxu0
        %v9077 = vadd.f32 0.0, %v9076
        %v9078 = vpop.f32.mrb[0].mxu0
        %v9079 = vpop.f32.mrb[0].mxu0
        %v9080 = vadd.f32 0.0, %v9079
        %v9081 = vpop.f32.mrb[0].mxu0
        %9082 = vdwg.mxu0
        %v9083 = vadd.f32 %v8585, %v8957
        %v9084 = vadd.f32 %v8586, %v8960
        %v9085 = vadd.f32 %v8587, %v8965
        %v9086 = vadd.f32 %v8588, %v8968
        %v9087 = vadd.f32 %v8589, %v8973
        %v9088 = vadd.f32 %v8590, %v8976
        %v9089 = vadd.f32 %v8591, %v8981
        %v9090 = vadd.f32 %v8592, %v8984
        %v9091 = vadd.f32 %v8593, %v8989
        %v9092 = vadd.f32 %v8594, %v8992
        %v9093 = vadd.f32 %v8595, %v8997
        %v9094 = vadd.f32 %v8596, %v9000
        %v9095 = vadd.f32 %v8597, %v9005
        %v9096 = vadd.f32 %v8598, %v9008
        %v9097 = vadd.f32 %v8599, %v9013
        %v9098 = vadd.f32 %v8600, %v9016
        %v9099 = vadd.f32 %v8601, %v9021
        %v9100 = vadd.f32 %v8602, %v9024
        %v9101 = vadd.f32 %v8603, %v9029
        %v9102 = vadd.f32 %v8604, %v9032
        %v9103 = vadd.f32 %v8605, %v9037
        %v9104 = vadd.f32 %v8606, %v9040
        %v9105 = vadd.f32 %v8607, %v9045
        %v9106 = vadd.f32 %v8608, %v9048
        %v9107 = vadd.f32 %v8609, %v9053
        %v9108 = vadd.f32 %v8610, %v9056
        %v9109 = vadd.f32 %v8611, %v9061
        %v9110 = vadd.f32 %v8612, %v9064
        %v9111 = vadd.f32 %v8613, %v9069
        %v9112 = vadd.f32 %v8614, %v9072
        %v9113 = vadd.f32 %v8615, %v9077
        %v9114 = vadd.f32 %v8616, %v9080
        %v9115 = vld [vmem:[#allocation8] sm:$0x1]
        %v9117 = vlaneseq
        %v9118 = vshrl.u32 %v9117, 7
        %v9119 = vsub.s32 0, %v9118
        %v9120 = vrot.slane %v9115, %v9119
        %v9122 = vadd.f32 %v9083, %v9120
        %v9123 = vadd.f32 %v9084, %v9120
        %v9124 = vadd.f32 %v9085, %v9120
        %v9125 = vadd.f32 %v9086, %v9120
        %v9126 = vadd.f32 %v9087, %v9120
        %v9127 = vadd.f32 %v9088, %v9120
        %v9128 = vadd.f32 %v9089, %v9120
        %v9129 = vadd.f32 %v9090, %v9120
        %v9130 = vadd.f32 %v9091, %v9120
        %v9131 = vadd.f32 %v9092, %v9120
        %v9132 = vadd.f32 %v9093, %v9120
        %v9133 = vadd.f32 %v9094, %v9120
        %v9134 = vadd.f32 %v9095, %v9120
        %v9135 = vadd.f32 %v9096, %v9120
        %v9136 = vadd.f32 %v9097, %v9120
        %v9137 = vadd.f32 %v9098, %v9120
        %v9138 = vadd.f32 %v9099, %v9120
        %v9139 = vadd.f32 %v9100, %v9120
        %v9140 = vadd.f32 %v9101, %v9120
        %v9141 = vadd.f32 %v9102, %v9120
        %v9142 = vadd.f32 %v9103, %v9120
        %v9143 = vadd.f32 %v9104, %v9120
        %v9144 = vadd.f32 %v9105, %v9120
        %v9145 = vadd.f32 %v9106, %v9120
        %v9146 = vadd.f32 %v9107, %v9120
        %v9147 = vadd.f32 %v9108, %v9120
        %v9148 = vadd.f32 %v9109, %v9120
        %v9149 = vadd.f32 %v9110, %v9120
        %v9150 = vadd.f32 %v9111, %v9120
        %v9151 = vadd.f32 %v9112, %v9120
        %v9152 = vadd.f32 %v9113, %v9120
        %v9153 = vadd.f32 %v9114, %v9120
        %v9154 = vxor.u32 %v9122, 2147483648
        %v9155 = vxor.u32 %v9123, 2147483648
        %v9156 = vxor.u32 %v9124, 2147483648
        %v9157 = vxor.u32 %v9125, 2147483648
        %v9158 = vxor.u32 %v9126, 2147483648
        %v9159 = vxor.u32 %v9127, 2147483648
        %v9160 = vxor.u32 %v9128, 2147483648
        %v9161 = vxor.u32 %v9129, 2147483648
        %v9162 = vxor.u32 %v9130, 2147483648
        %v9163 = vxor.u32 %v9131, 2147483648
        %v9164 = vxor.u32 %v9132, 2147483648
        %v9165 = vxor.u32 %v9133, 2147483648
        %v9166 = vxor.u32 %v9134, 2147483648
        %v9167 = vxor.u32 %v9135, 2147483648
        %v9168 = vxor.u32 %v9136, 2147483648
        %v9169 = vxor.u32 %v9137, 2147483648
        %v9170 = vxor.u32 %v9138, 2147483648
        %v9171 = vxor.u32 %v9139, 2147483648
        %v9172 = vxor.u32 %v9140, 2147483648
        %v9173 = vxor.u32 %v9141, 2147483648
        %v9174 = vxor.u32 %v9142, 2147483648
        %v9175 = vxor.u32 %v9143, 2147483648
        %v9176 = vxor.u32 %v9144, 2147483648
        %v9177 = vxor.u32 %v9145, 2147483648
        %v9178 = vxor.u32 %v9146, 2147483648
        %v9179 = vxor.u32 %v9147, 2147483648
        %v9180 = vxor.u32 %v9148, 2147483648
        %v9181 = vxor.u32 %v9149, 2147483648
        %v9182 = vxor.u32 %v9150, 2147483648
        %v9183 = vxor.u32 %v9151, 2147483648
        %v9184 = vxor.u32 %v9152, 2147483648
        %v9185 = vxor.u32 %v9153, 2147483648
        %v9186 = vmul.f32 %v9154, 1.442695
        %v9187 = vpow.pop %v9186
        %v9188 = vmul.f32 %v9155, 1.442695
        %v9189 = vpow.pop %v9188
        %v9190 = vmul.f32 %v9156, 1.442695
        %v9191 = vpow.pop %v9190
        %v9192 = vmul.f32 %v9157, 1.442695
        %v9193 = vpow.pop %v9192
        %v9194 = vmul.f32 %v9158, 1.442695
        %v9195 = vpow.pop %v9194
        %v9196 = vmul.f32 %v9159, 1.442695
        %v9197 = vpow.pop %v9196
        %v9198 = vmul.f32 %v9160, 1.442695
        %v9199 = vpow.pop %v9198
        %v9200 = vmul.f32 %v9161, 1.442695
        %v9201 = vpow.pop %v9200
        %v9202 = vmul.f32 %v9162, 1.442695
        %v9203 = vpow.pop %v9202
        %v9204 = vmul.f32 %v9163, 1.442695
        %v9205 = vpow.pop %v9204
        %v9206 = vmul.f32 %v9164, 1.442695
        %v9207 = vpow.pop %v9206
        %v9208 = vmul.f32 %v9165, 1.442695
        %v9209 = vpow.pop %v9208
        %v9210 = vmul.f32 %v9166, 1.442695
        %v9211 = vpow.pop %v9210
        %v9212 = vmul.f32 %v9167, 1.442695
        %v9213 = vpow.pop %v9212
        %v9214 = vmul.f32 %v9168, 1.442695
        %v9215 = vpow.pop %v9214
        %v9216 = vmul.f32 %v9169, 1.442695
        %v9217 = vpow.pop %v9216
        %v9218 = vmul.f32 %v9170, 1.442695
        %v9219 = vpow.pop %v9218
        %v9220 = vmul.f32 %v9171, 1.442695
        %v9221 = vpow.pop %v9220
        %v9222 = vmul.f32 %v9172, 1.442695
        %v9223 = vpow.pop %v9222
        %v9224 = vmul.f32 %v9173, 1.442695
        %v9225 = vpow.pop %v9224
        %v9226 = vmul.f32 %v9174, 1.442695
        %v9227 = vpow.pop %v9226
        %v9228 = vmul.f32 %v9175, 1.442695
        %v9229 = vpow.pop %v9228
        %v9230 = vmul.f32 %v9176, 1.442695
        %v9231 = vpow.pop %v9230
        %v9232 = vmul.f32 %v9177, 1.442695
        %v9233 = vpow.pop %v9232
        %v9234 = vmul.f32 %v9178, 1.442695
        %v9235 = vpow.pop %v9234
        %v9236 = vmul.f32 %v9179, 1.442695
        %v9237 = vpow.pop %v9236
        %v9238 = vmul.f32 %v9180, 1.442695
        %v9239 = vpow.pop %v9238
        %v9240 = vmul.f32 %v9181, 1.442695
        %v9241 = vpow.pop %v9240
        %v9242 = vmul.f32 %v9182, 1.442695
        %v9243 = vpow.pop %v9242
        %v9244 = vmul.f32 %v9183, 1.442695
        %v9245 = vpow.pop %v9244
        %v9246 = vmul.f32 %v9184, 1.442695
        %v9247 = vpow.pop %v9246
        %v9248 = vmul.f32 %v9185, 1.442695
        %v9249 = vpow.pop %v9248
        %v9250 = vadd.f32 %v9187, 1.0
        %v9251 = vadd.f32 %v9189, 1.0
        %v9252 = vadd.f32 %v9191, 1.0
        %v9253 = vadd.f32 %v9193, 1.0
        %v9254 = vadd.f32 %v9195, 1.0
        %v9255 = vadd.f32 %v9197, 1.0
        %v9256 = vadd.f32 %v9199, 1.0
        %v9257 = vadd.f32 %v9201, 1.0
        %v9258 = vadd.f32 %v9203, 1.0
        %v9259 = vadd.f32 %v9205, 1.0
        %v9260 = vadd.f32 %v9207, 1.0
        %v9261 = vadd.f32 %v9209, 1.0
        %v9262 = vadd.f32 %v9211, 1.0
        %v9263 = vadd.f32 %v9213, 1.0
        %v9264 = vadd.f32 %v9215, 1.0
        %v9265 = vadd.f32 %v9217, 1.0
        %v9266 = vadd.f32 %v9219, 1.0
        %v9267 = vadd.f32 %v9221, 1.0
        %v9268 = vadd.f32 %v9223, 1.0
        %v9269 = vadd.f32 %v9225, 1.0
        %v9270 = vadd.f32 %v9227, 1.0
        %v9271 = vadd.f32 %v9229, 1.0
        %v9272 = vadd.f32 %v9231, 1.0
        %v9273 = vadd.f32 %v9233, 1.0
        %v9274 = vadd.f32 %v9235, 1.0
        %v9275 = vadd.f32 %v9237, 1.0
        %v9276 = vadd.f32 %v9239, 1.0
        %v9277 = vadd.f32 %v9241, 1.0
        %v9278 = vadd.f32 %v9243, 1.0
        %v9279 = vadd.f32 %v9245, 1.0
        %v9280 = vadd.f32 %v9247, 1.0
        %v9281 = vadd.f32 %v9249, 1.0
        %v9282 = vrcp.pop %v9250
        %v9283 = vmul.f32 1.0, %v9282
        %v9284 = vrcp.pop %v9251
        %v9285 = vmul.f32 1.0, %v9284
        %v9286 = vrcp.pop %v9252
        %v9287 = vmul.f32 1.0, %v9286
        %v9288 = vrcp.pop %v9253
        %v9289 = vmul.f32 1.0, %v9288
        %v9290 = vrcp.pop %v9254
        %v9291 = vmul.f32 1.0, %v9290
        %v9292 = vrcp.pop %v9255
        %v9293 = vmul.f32 1.0, %v9292
        %v9294 = vrcp.pop %v9256
        %v9295 = vmul.f32 1.0, %v9294
        %v9296 = vrcp.pop %v9257
        %v9297 = vmul.f32 1.0, %v9296
        %v9298 = vrcp.pop %v9258
        %v9299 = vmul.f32 1.0, %v9298
        %v9300 = vrcp.pop %v9259
        %v9301 = vmul.f32 1.0, %v9300
        %v9302 = vrcp.pop %v9260
        %v9303 = vmul.f32 1.0, %v9302
        %v9304 = vrcp.pop %v9261
        %v9305 = vmul.f32 1.0, %v9304
        %v9306 = vrcp.pop %v9262
        %v9307 = vmul.f32 1.0, %v9306
        %v9308 = vrcp.pop %v9263
        %v9309 = vmul.f32 1.0, %v9308
        %v9310 = vrcp.pop %v9264
        %v9311 = vmul.f32 1.0, %v9310
        %v9312 = vrcp.pop %v9265
        %v9313 = vmul.f32 1.0, %v9312
        %v9314 = vrcp.pop %v9266
        %v9315 = vmul.f32 1.0, %v9314
        %v9316 = vrcp.pop %v9267
        %v9317 = vmul.f32 1.0, %v9316
        %v9318 = vrcp.pop %v9268
        %v9319 = vmul.f32 1.0, %v9318
        %v9320 = vrcp.pop %v9269
        %v9321 = vmul.f32 1.0, %v9320
        %v9322 = vrcp.pop %v9270
        %v9323 = vmul.f32 1.0, %v9322
        %v9324 = vrcp.pop %v9271
        %v9325 = vmul.f32 1.0, %v9324
        %v9326 = vrcp.pop %v9272
        %v9327 = vmul.f32 1.0, %v9326
        %v9328 = vrcp.pop %v9273
        %v9329 = vmul.f32 1.0, %v9328
        %v9330 = vrcp.pop %v9274
        %v9331 = vmul.f32 1.0, %v9330
        %v9332 = vrcp.pop %v9275
        %v9333 = vmul.f32 1.0, %v9332
        %v9334 = vrcp.pop %v9276
        %v9335 = vmul.f32 1.0, %v9334
        %v9336 = vrcp.pop %v9277
        %v9337 = vmul.f32 1.0, %v9336
        %v9338 = vrcp.pop %v9278
        %v9339 = vmul.f32 1.0, %v9338
        %v9340 = vrcp.pop %v9279
        %v9341 = vmul.f32 1.0, %v9340
        %v9342 = vrcp.pop %v9280
        %v9343 = vmul.f32 1.0, %v9342
        %v9344 = vrcp.pop %v9281
        %v9345 = vmul.f32 1.0, %v9344
        %vm9346 = vcmask 130048
        %9347 = vst.msk [vmem:[%s264] sm:$0xff] %vm9346, %v9283
        %9348 = vst.msk [vmem:[%s264 + $0x8] sm:$0xff] %vm9346, %v9285
        %9349 = vst.msk [vmem:[%s264 + $0x10] sm:$0xff] %vm9346, %v9287
        %9350 = vst.msk [vmem:[%s264 + $0x18] sm:$0xff] %vm9346, %v9289
        %9351 = vst.msk [vmem:[%s264 + $0x20] sm:$0xff] %vm9346, %v9291
        %9352 = vst.msk [vmem:[%s264 + $0x28] sm:$0xff] %vm9346, %v9293
        %9353 = vst.msk [vmem:[%s264 + $0x30] sm:$0xff] %vm9346, %v9295
        %9354 = vst.msk [vmem:[%s264 + $0x38] sm:$0xff] %vm9346, %v9297
        %9355 = vst.msk [vmem:[%s264 + $0x40] sm:$0xff] %vm9346, %v9299
        %9356 = vst.msk [vmem:[%s264 + $0x48] sm:$0xff] %vm9346, %v9301
        %9357 = vst.msk [vmem:[%s264 + $0x50] sm:$0xff] %vm9346, %v9303
        %9358 = vst.msk [vmem:[%s264 + $0x58] sm:$0xff] %vm9346, %v9305
        %9359 = vst.msk [vmem:[%s264 + $0x60] sm:$0xff] %vm9346, %v9307
        %9360 = vst.msk [vmem:[%s264 + $0x68] sm:$0xff] %vm9346, %v9309
        %9361 = vst.msk [vmem:[%s264 + $0x70] sm:$0xff] %vm9346, %v9311
        %9362 = vst.msk [vmem:[%s264 + $0x78] sm:$0xff] %vm9346, %v9313
        %9363 = vst.msk [vmem:[%s264 + $0x80] sm:$0xff] %vm9346, %v9315
        %9364 = vst.msk [vmem:[%s264 + $0x88] sm:$0xff] %vm9346, %v9317
        %9365 = vst.msk [vmem:[%s264 + $0x90] sm:$0xff] %vm9346, %v9319
        %9366 = vst.msk [vmem:[%s264 + $0x98] sm:$0xff] %vm9346, %v9321
        %9367 = vst.msk [vmem:[%s264 + $0xa0] sm:$0xff] %vm9346, %v9323
        %9368 = vst.msk [vmem:[%s264 + $0xa8] sm:$0xff] %vm9346, %v9325
        %9369 = vst.msk [vmem:[%s264 + $0xb0] sm:$0xff] %vm9346, %v9327
        %9370 = vst.msk [vmem:[%s264 + $0xb8] sm:$0xff] %vm9346, %v9329
        %9371 = vst.msk [vmem:[%s264 + $0xc0] sm:$0xff] %vm9346, %v9331
        %9372 = vst.msk [vmem:[%s264 + $0xc8] sm:$0xff] %vm9346, %v9333
        %9373 = vst.msk [vmem:[%s264 + $0xd0] sm:$0xff] %vm9346, %v9335
        %9374 = vst.msk [vmem:[%s264 + $0xd8] sm:$0xff] %vm9346, %v9337
        %9375 = vst.msk [vmem:[%s264 + $0xe0] sm:$0xff] %vm9346, %v9339
        %9376 = vst.msk [vmem:[%s264 + $0xe8] sm:$0xff] %vm9346, %v9341
        %9377 = vst.msk [vmem:[%s264 + $0xf0] sm:$0xff] %vm9346, %v9343
        %9378 = vst.msk [vmem:[%s264 + $0xf8] sm:$0xff] %vm9346, %v9345
        %p9379 = scmp.lt.s32.totalorder %s18, 1
        %s9380 = scalar_select %p9379, %s18, 1
        %s9381 = smul.addr %s9380, 32
        %s9382 = smul.addr %s9381, 8
        %s9383 = scalar_lea.vmem %s5, %s9382
        // Predicated region
        $region53: #{decoder_forward.1} parent=39 // pred_check
          %p9384 = pneg %p146
        $region54: #{decoder_forward.1} parent=39 // pred_check_branch
          %9386 = sbr.rel (%p9384) target = $region56
        $region55: #{decoder_forward.1} parent=39 // pred_region
          _
        $region56: #{decoder_forward.1} parent=39 // pred_fallthru
          _
      $region40: #{decoder_forward.1} parent=5 // pred_fallthru
        _
      %p9387 = scmp.le.s32.totalorder 2, %s13
      // Predicated region
      $region57: #{decoder_forward.1} parent=5 // pred_check
        %p9388 = pneg %p9387
      $region58: #{decoder_forward.1} parent=5 // pred_check_branch
        %9390 = sbr.rel (%p9388) target = $region60
      $region59: #{decoder_forward.1} parent=5 // pred_region
        %s9391 = ssub.s32 %s13, 2
        // Predicated region
        $region61: #{decoder_forward.1} parent=59 // pred_check
          %p9392 = pneg %p152
        $region62: #{decoder_forward.1} parent=59 // pred_check_branch
          %9394 = sbr.rel (%p9392) target = $region64
        $region63: #{decoder_forward.1} parent=59 // pred_region
          %p9395 = scmp.lt.s32.totalorder %s19, 1
          %s9396 = scalar_select %p9395, %s19, 1
          %s9397 = smul.addr %s9396, 32
          %s9398 = smul.addr %s9397, 8
          %s9399 = scalar_lea.vmem %s5, %s9398
        $region64: #{decoder_forward.1} parent=59 // pred_fallthru
          _
      $region60: #{decoder_forward.1} parent=5 // pred_fallthru
        _
    $region6: #{decoder_forward.1} parent=1 // loop_footer
      %s17 = sadd.s32 1, %s13
    $region7: #{decoder_forward.1} parent=1 // loop_footer_branch
      %12 = sbr.rel target = $region3
    $region8: #{decoder_forward.1} parent=1 // loop_exit
      _
    %9400 = vsyncpa [#allocation5], 1
    %s9401 = scalar_lea.sflag [#allocation5], 1
    %9402 = vsyncpa %s9401, 1
    %9403 = vsyncpa [#allocation7], 1

</llo_original>
